<compile_context>
chip_gen: v7x
topology: tpu7x:2x2x1
jax: 0.10.0
libtpu: 0.0.40
codegen_flags: <defaults>
</compile_context>

<pallas_src>
import functools

import jax
import jax.numpy as jnp
from jax.experimental import pallas as pl
from jax.experimental.pallas import tpu as pltpu

LANE = 128                     # TPU lane width
LPAD = 16                      # left spatial halo, sublane-aligned for bf16 tiles
COMPUTE_DTYPE = jnp.bfloat16   # matmul input dtype (f32 accumulation)


def _round_up(x, m):
    return (x + m - 1) // m * m


def _padded_channels(G0, C, G):
    return _round_up(G0 + C * G, LANE)


# --------------------------------------------------------------------------
# Fused RDB kernel
# --------------------------------------------------------------------------

def _make_rdb_kernel(G0, C, G, H, W, CP):
    HW = H * W
    WP = LPAD + W + 1          # buffer width: left halo LPAD, right halo 1

    def kernel(x_ref, wconv_ref, bconv_ref, wlff_ref, blff_ref, o_ref, buf_ref):
        # x_ref    : (H, W, CP)    f32   input, lanes 0:G0 real, rest zero
        # wconv_ref: (C, 9, CP, G) bf16  per-tap 3x3 weights, rows >= cin zeroed
        # bconv_ref: (C, 1, G)     f32   conv biases
        # wlff_ref : (CP, CP)      bf16  1x1 LFF weight, zero outside [:CT, :G0]
        # blff_ref : (1, CP)       f32   LFF bias, zero beyond lane G0
        # o_ref    : (H, W, CP)    f32   LFF(out)+x in lanes 0:G0, zero elsewhere
        # buf_ref  : (H+2, WP, CP) bf16  dense concat buffer with zero halo

        # ---- zero ONLY the halo ring; interior + unused lanes are fully -----
        # ---- overwritten by the lane-dense x store below ---------------------
        zrow = jnp.zeros((1, WP, CP), COMPUTE_DTYPE)
        buf_ref[0:1, :, :] = zrow
        buf_ref[H + 1:H + 2, :, :] = zrow
        zcol = jnp.zeros((H, 1, CP), COMPUTE_DTYPE)
        buf_ref[1:H + 1, LPAD - 1:LPAD, :] = zcol
        buf_ref[1:H + 1, LPAD + W:LPAD + W + 1, :] = zcol

        # ---- drop x into the interior (all CP lanes -> zeros unused lanes) ---
        x = x_ref[...]                                            # (H, W, CP) f32
        buf_ref[1:H + 1, LPAD:LPAD + W, :] = x.astype(COMPUTE_DTYPE)

        def window(dy, dx):
            # Shifted 3x3-tap window of the full channel block, (HW, CP) bf16.
            c0 = LPAD - 1 + dx
            return buf_ref[dy:dy + H, c0:c0 + W, :].reshape(HW, CP)

        # ---- C x (3x3 conv + LeakyReLU(0.1)); 9 per-tap K=CP MXU dots each ----
        # Channels not yet produced are zero in the buffer and their weight rows
        # are zero, so reading the full CP lane block is exact.
        for c in range(C):
            acc = jnp.zeros((HW, G), jnp.float32)
            for t in range(9):
                acc = acc + jnp.dot(window(t // 3, t % 3),
                                    wconv_ref[c, t, :, :],
                                    preferred_element_type=jnp.float32)
            y = acc + bconv_ref[c, :, :]                          # (HW, G)
            y = jnp.where(y > 0, y, 0.1 * y)                      # LeakyReLU(0.1)
            buf_ref[1:H + 1, LPAD:LPAD + W, G0 + c * G:G0 + (c + 1) * G] = (
                y.astype(COMPUTE_DTYPE).reshape(H, W, G))

        # ---- LFF 1x1 conv (padded to CP output lanes) + residual --------------
        feat = window(1, 1)                                       # (HW, CP)
        lff = jnp.dot(feat, wlff_ref[...], preferred_element_type=jnp.float32)
        out = lff + blff_ref[...] + x.reshape(HW, CP)             # lanes >= G0 stay 0
        o_ref[...] = out.reshape(H, W, CP).astype(o_ref.dtype)

    return kernel


# --------------------------------------------------------------------------
# Host-side weight packing into the dense, CP-lane-padded channel layout
# --------------------------------------------------------------------------

def pack_rdb_params(params, G0, C, G):
    CP = _padded_channels(G0, C, G)
    CT = G0 + C * G

    w_conv = jnp.zeros((C, 9, CP, G), jnp.float32)
    b_conv = jnp.zeros((C, 1, G), jnp.float32)
    for c, (w, b) in enumerate(params["convs"]):
        cin = G0 + c * G
        w9 = w.reshape(9, cin, G)                 # tap-major (kh*3 + kw)
        w_conv = w_conv.at[c, :, 0:cin, :].set(w9)
        b_conv = b_conv.at[c, 0, :].set(b)

    lw, lb = params["lff"]
    w_lff = jnp.zeros((CP, CP), jnp.float32)
    w_lff = w_lff.at[0:CT, 0:G0].set(lw.reshape(CT, G0))
    b_lff = jnp.zeros((1, CP), jnp.float32)
    b_lff = b_lff.at[0, 0:G0].set(lb)

    return {
        "w_conv": w_conv.astype(COMPUTE_DTYPE),
        "b_conv": b_conv,
        "w_lff": w_lff.astype(COMPUTE_DTYPE),
        "b_lff": b_lff,
    }


# --------------------------------------------------------------------------
# Public forward (NCHW in / NCHW out, like the PyTorch module)
# --------------------------------------------------------------------------

def _vmem_limit_bytes(H, W, CP, C, G):
    WP = LPAD + W + 1
    scratch = (H + 2) * WP * CP * 2                  # bf16 concat buffer
    io = 2 * 2 * H * W * CP * 4                      # double-buffered f32 in/out blocks
    weights = C * 9 * CP * G * 2 + CP * CP * 2 + C * G * 4 + CP * 4
    total = scratch + io + 2 * weights
    # 2x headroom for window / matmul temporaries; clamp to a sane ceiling.
    return int(min(max(2 * total + (8 << 20), 16 << 20), 100 << 20))


def rdb_forward(x_nchw, packed, G0, C, G):
    N, _, H, W = x_nchw.shape
    CP = _padded_channels(G0, C, G)

    x = jnp.transpose(x_nchw, (0, 2, 3, 1))                         # NCHW -> NHWC
    xp = jnp.pad(x, ((0, 0), (0, 0), (0, 0), (0, CP - G0)))         # lane-dense channels

    kernel = _make_rdb_kernel(G0, C, G, H, W, CP)

    flops = 2 * N * H * W * (C * 9 * CP * G + CP * CP)
    bytes_accessed = int(2 * N * H * W * CP * 4
                         + packed["w_conv"].size * 2 + packed["w_lff"].size * 2
                         + packed["b_conv"].size * 4 + packed["b_lff"].size * 4)

    out = pl.pallas_call(
        kernel,
        out_shape=jax.ShapeDtypeStruct((N, H, W, CP), x.dtype),
        grid=(N,),
        in_specs=[
            pl.BlockSpec((None, H, W, CP), lambda n: (n, 0, 0, 0)),
            pl.BlockSpec((C, 9, CP, G), lambda n: (0, 0, 0, 0)),
            pl.BlockSpec((C, 1, G), lambda n: (0, 0, 0)),
            pl.BlockSpec((CP, CP), lambda n: (0, 0)),
            pl.BlockSpec((1, CP), lambda n: (0, 0)),
        ],
        out_specs=pl.BlockSpec((None, H, W, CP), lambda n: (n, 0, 0, 0)),
        scratch_shapes=[
            pltpu.VMEM((H + 2, LPAD + W + 1, CP), COMPUTE_DTYPE),
        ],
        compiler_params=pltpu.CompilerParams(
            dimension_semantics=("parallel",),
            vmem_limit_bytes=_vmem_limit_bytes(H, W, CP, C, G),
        ),
        cost_estimate=pl.CostEstimate(flops=flops, transcendentals=0,
                                      bytes_accessed=bytes_accessed),
    )(xp, packed["w_conv"], packed["b_conv"], packed["w_lff"], packed["b_lff"])

    out = out[..., :G0]                                   # drop zero-padded lanes
    return jnp.transpose(out, (0, 3, 1, 2))               # NHWC -> NCHW


# --------------------------------------------------------------------------
# Parameter init + plain-JAX reference (for a correctness check)
# --------------------------------------------------------------------------

def _init_conv(key, kh, kw, cin, cout, scale=0.05):
    k1, k2 = jax.random.split(key)
    w = jax.random.normal(k1, (kh, kw, cin, cout), jnp.float32) * scale
    b = jax.random.normal(k2, (cout,), jnp.float32) * scale
    return w, b


def init_rdb_params(key, G0, C, G):
    keys = jax.random.split(key, C + 1)
    convs = [_init_conv(keys[c], 3, 3, G0 + c * G, G) for c in range(C)]
    lff = _init_conv(keys[C], 1, 1, G0 + C * G, G0)
    return {"convs": convs, "lff": lff}


def rdb_reference(x_nchw, params):
    """Plain-JAX (f32) reference of the PyTorch RDB forward, MHCA = identity."""
    x = jnp.transpose(x_nchw, (0, 2, 3, 1))
    dn = ("NHWC", "HWIO", "NHWC")
    buf = x
    for (w, b) in params["convs"]:
        y = jax.lax.conv_general_dilated(buf, w, (1, 1), "SAME",
                                         dimension_numbers=dn) + b
        y = jnp.where(y > 0, y, 0.1 * y)
        buf = jnp.concatenate([buf, y], axis=-1)
    lw, lb = params["lff"]
    lff = jax.lax.conv_general_dilated(buf, lw, (1, 1), "SAME",
                                       dimension_numbers=dn) + lb
    return jnp.transpose(lff + x, (0, 3, 1, 2))


# --------------------------------------------------------------------------

if __name__ == "__main__":
    G0, C, G = 8, 2, 4
    N, H, W = 2, 16, 16

    key = jax.random.PRNGKey(0)
    kx, kp = jax.random.split(key)
    x = jax.random.normal(kx, (N, G0, H, W), jnp.float32)   # NCHW like PyTorch
    params = init_rdb_params(kp, G0, C, G)
    packed = pack_rdb_params(params, G0, C, G)

    fwd = jax.jit(functools.partial(rdb_forward, G0=G0, C=C, G=G))
    out = fwd(x, packed)
    jax.block_until_ready(out)

    assert out.shape == (N, G0, H, W)
    assert bool(jnp.all(jnp.isfinite(out)))

    ref = rdb_reference(x, params)
    err = float(jnp.max(jnp.abs(out - ref)))
    assert err < 5e-2, f"max abs error vs reference too large: {err}"

    print("KERNEL_OK")
</pallas_src>

<mosaic_0001>
module attributes {stable_mosaic.version = 11 : i64} {
  func.func @kernel(%arg0: i32, %arg1: memref<1x16x16x128xf32, #tpu.memory_space<vmem>>, %arg2: memref<2x9x128x4xbf16, #tpu.memory_space<vmem>>, %arg3: memref<2x1x4xf32, #tpu.memory_space<vmem>>, %arg4: memref<128x128xbf16, #tpu.memory_space<vmem>>, %arg5: memref<1x128xf32, #tpu.memory_space<vmem>>, %arg6: memref<1x16x16x128xf32, #tpu.memory_space<vmem>>, %arg7: memref<18x33x128xbf16, #tpu.memory_space<vmem>>) attributes {dimension_semantics = [#tpu.dimension_semantics<parallel>], iteration_bounds = array<i64: 2>, scalar_prefetch = 0 : i64, scratch_operands = 1 : i64, tpu.core_type = #tpu.core_type<tc>, window_params = [{transform_indices = @transform_0, window_bounds = array<i64: 1, 16, 16, 128>}, {pipeline_mode = #tpu.pipeline_mode<synchronous>, transform_indices = @transform_1, window_bounds = array<i64: 2, 9, 128, 4>}, {pipeline_mode = #tpu.pipeline_mode<synchronous>, transform_indices = @transform_2, window_bounds = array<i64: 2, 1, 4>}, {pipeline_mode = #tpu.pipeline_mode<synchronous>, transform_indices = @transform_3, window_bounds = array<i64: 128, 128>}, {pipeline_mode = #tpu.pipeline_mode<synchronous>, transform_indices = @transform_4, window_bounds = array<i64: 1, 128>}, {transform_indices = @transform_5, window_bounds = array<i64: 1, 16, 16, 128>}]} {
    %cst = arith.constant 0.000000e+00 : bf16
    %0 = vector.broadcast %cst : bf16 to vector<1x33x128xbf16>
    %c0 = arith.constant 0 : index
    %c0_0 = arith.constant 0 : index
    %c0_1 = arith.constant 0 : index
    %1 = vector.load %arg7[%c0, %c0_0, %c0_1] : memref<18x33x128xbf16, #tpu.memory_space<vmem>>, vector<1x33x128xbf16>
    tpu.vector_store %arg7[%c0, %c0_0, %c0_1], %0 {strides = array<i32>} : memref<18x33x128xbf16, #tpu.memory_space<vmem>>, vector<1x33x128xbf16>,
    %c17 = arith.constant 17 : index
    %c0_2 = arith.constant 0 : index
    %c0_3 = arith.constant 0 : index
    %2 = vector.load %arg7[%c17, %c0_2, %c0_3] : memref<18x33x128xbf16, #tpu.memory_space<vmem>>, vector<1x33x128xbf16>
    tpu.vector_store %arg7[%c17, %c0_2, %c0_3], %0 {strides = array<i32>} : memref<18x33x128xbf16, #tpu.memory_space<vmem>>, vector<1x33x128xbf16>,
    %cst_4 = arith.constant 0.000000e+00 : bf16
    %3 = vector.broadcast %cst_4 : bf16 to vector<16x1x128xbf16>
    %c1 = arith.constant 1 : index
    %c15 = arith.constant 15 : index
    %c0_5 = arith.constant 0 : index
    %4 = vector.load %arg7[%c1, %c15, %c0_5] : memref<18x33x128xbf16, #tpu.memory_space<vmem>>, vector<16x1x128xbf16>
    tpu.vector_store %arg7[%c1, %c15, %c0_5], %3 {strides = array<i32>} : memref<18x33x128xbf16, #tpu.memory_space<vmem>>, vector<16x1x128xbf16>,
    %c1_6 = arith.constant 1 : index
    %c32 = arith.constant 32 : index
    %c0_7 = arith.constant 0 : index
    %5 = vector.load %arg7[%c1_6, %c32, %c0_7] : memref<18x33x128xbf16, #tpu.memory_space<vmem>>, vector<16x1x128xbf16>
    tpu.vector_store %arg7[%c1_6, %c32, %c0_7], %3 {strides = array<i32>} : memref<18x33x128xbf16, #tpu.memory_space<vmem>>, vector<16x1x128xbf16>,
    %c0_8 = arith.constant 0 : index
    %c0_9 = arith.constant 0 : index
    %c0_10 = arith.constant 0 : index
    %c0_11 = arith.constant 0 : index
    %6 = vector.load %arg1[%c0_8, %c0_9, %c0_10, %c0_11] : memref<1x16x16x128xf32, #tpu.memory_space<vmem>>, vector<1x16x16x128xf32>
    %7 = vector.shape_cast %6 : vector<1x16x16x128xf32> to vector<16x16x128xf32>
    %8 = arith.truncf %7 : vector<16x16x128xf32> to vector<16x16x128xbf16>
    %c1_12 = arith.constant 1 : index
    %c16 = arith.constant 16 : index
    %c0_13 = arith.constant 0 : index
    %9 = vector.load %arg7[%c1_12, %c16, %c0_13] : memref<18x33x128xbf16, #tpu.memory_space<vmem>>, vector<16x16x128xbf16>
    tpu.vector_store %arg7[%c1_12, %c16, %c0_13], %8 {strides = array<i32>} : memref<18x33x128xbf16, #tpu.memory_space<vmem>>, vector<16x16x128xbf16>,
    %cst_14 = arith.constant 0.000000e+00 : f32
    %10 = vector.broadcast %cst_14 : f32 to vector<256x4xf32>
    %c0_15 = arith.constant 0 : index
    %c15_16 = arith.constant 15 : index
    %c0_17 = arith.constant 0 : index
    %11 = vector.load %arg7[%c0_15, %c15_16, %c0_17] : memref<18x33x128xbf16, #tpu.memory_space<vmem>>, vector<16x16x128xbf16>
    %12 = vector.shape_cast %11 : vector<16x16x128xbf16> to vector<256x128xbf16>
    %c0_18 = arith.constant 0 : index
    %c0_19 = arith.constant 0 : index
    %c0_20 = arith.constant 0 : index
    %c0_21 = arith.constant 0 : index
    %13 = vector.load %arg2[%c0_18, %c0_19, %c0_20, %c0_21] : memref<2x9x128x4xbf16, #tpu.memory_space<vmem>>, vector<1x1x128x4xbf16>
    %14 = vector.shape_cast %13 : vector<1x1x128x4xbf16> to vector<128x4xbf16>
    %cst_22 = arith.constant dense<0.000000e+00> : vector<256x4xf32>
    %15 = tpu.matmul %12, %14, %cst_22 {dimension_numbers = #tpu.dot_dimension_numbers<[1], [0], [0], [1], [0, 0, 1, 1], [], []>} : vector<256x128xbf16>, vector<128x4xbf16>, vector<256x4xf32> -> vector<256x4xf32>
    %16 = arith.addf %10, %15 : vector<256x4xf32>
    %c0_23 = arith.constant 0 : index
    %c16_24 = arith.constant 16 : index
    %c0_25 = arith.constant 0 : index
    %17 = vector.load %arg7[%c0_23, %c16_24, %c0_25] : memref<18x33x128xbf16, #tpu.memory_space<vmem>>, vector<16x16x128xbf16>
    %18 = vector.shape_cast %17 : vector<16x16x128xbf16> to vector<256x128xbf16>
    %c0_26 = arith.constant 0 : index
    %c1_27 = arith.constant 1 : index
    %c0_28 = arith.constant 0 : index
    %c0_29 = arith.constant 0 : index
    %19 = vector.load %arg2[%c0_26, %c1_27, %c0_28, %c0_29] : memref<2x9x128x4xbf16, #tpu.memory_space<vmem>>, vector<1x1x128x4xbf16>
    %20 = vector.shape_cast %19 : vector<1x1x128x4xbf16> to vector<128x4xbf16>
    %cst_30 = arith.constant dense<0.000000e+00> : vector<256x4xf32>
    %21 = tpu.matmul %18, %20, %cst_30 {dimension_numbers = #tpu.dot_dimension_numbers<[1], [0], [0], [1], [0, 0, 1, 1], [], []>} : vector<256x128xbf16>, vector<128x4xbf16>, vector<256x4xf32> -> vector<256x4xf32>
    %22 = arith.addf %16, %21 : vector<256x4xf32>
    %c0_31 = arith.constant 0 : index
    %c17_32 = arith.constant 17 : index
    %c0_33 = arith.constant 0 : index
    %23 = vector.load %arg7[%c0_31, %c17_32, %c0_33] : memref<18x33x128xbf16, #tpu.memory_space<vmem>>, vector<16x16x128xbf16>
    %24 = vector.shape_cast %23 : vector<16x16x128xbf16> to vector<256x128xbf16>
    %c0_34 = arith.constant 0 : index
    %c2 = arith.constant 2 : index
    %c0_35 = arith.constant 0 : index
    %c0_36 = arith.constant 0 : index
    %25 = vector.load %arg2[%c0_34, %c2, %c0_35, %c0_36] : memref<2x9x128x4xbf16, #tpu.memory_space<vmem>>, vector<1x1x128x4xbf16>
    %26 = vector.shape_cast %25 : vector<1x1x128x4xbf16> to vector<128x4xbf16>
    %cst_37 = arith.constant dense<0.000000e+00> : vector<256x4xf32>
    %27 = tpu.matmul %24, %26, %cst_37 {dimension_numbers = #tpu.dot_dimension_numbers<[1], [0], [0], [1], [0, 0, 1, 1], [], []>} : vector<256x128xbf16>, vector<128x4xbf16>, vector<256x4xf32> -> vector<256x4xf32>
    %28 = arith.addf %22, %27 : vector<256x4xf32>
    %c1_38 = arith.constant 1 : index
    %c15_39 = arith.constant 15 : index
    %c0_40 = arith.constant 0 : index
    %29 = vector.load %arg7[%c1_38, %c15_39, %c0_40] : memref<18x33x128xbf16, #tpu.memory_space<vmem>>, vector<16x16x128xbf16>
    %30 = vector.shape_cast %29 : vector<16x16x128xbf16> to vector<256x128xbf16>
    %c0_41 = arith.constant 0 : index
    %c3 = arith.constant 3 : index
    %c0_42 = arith.constant 0 : index
    %c0_43 = arith.constant 0 : index
    %31 = vector.load %arg2[%c0_41, %c3, %c0_42, %c0_43] : memref<2x9x128x4xbf16, #tpu.memory_space<vmem>>, vector<1x1x128x4xbf16>
    %32 = vector.shape_cast %31 : vector<1x1x128x4xbf16> to vector<128x4xbf16>
    %cst_44 = arith.constant dense<0.000000e+00> : vector<256x4xf32>
    %33 = tpu.matmul %30, %32, %cst_44 {dimension_numbers = #tpu.dot_dimension_numbers<[1], [0], [0], [1], [0, 0, 1, 1], [], []>} : vector<256x128xbf16>, vector<128x4xbf16>, vector<256x4xf32> -> vector<256x4xf32>
    %34 = arith.addf %28, %33 : vector<256x4xf32>
    %c1_45 = arith.constant 1 : index
    %c16_46 = arith.constant 16 : index
    %c0_47 = arith.constant 0 : index
    %35 = vector.load %arg7[%c1_45, %c16_46, %c0_47] : memref<18x33x128xbf16, #tpu.memory_space<vmem>>, vector<16x16x128xbf16>
    %36 = vector.shape_cast %35 : vector<16x16x128xbf16> to vector<256x128xbf16>
    %c0_48 = arith.constant 0 : index
    %c4 = arith.constant 4 : index
    %c0_49 = arith.constant 0 : index
    %c0_50 = arith.constant 0 : index
    %37 = vector.load %arg2[%c0_48, %c4, %c0_49, %c0_50] : memref<2x9x128x4xbf16, #tpu.memory_space<vmem>>, vector<1x1x128x4xbf16>
    %38 = vector.shape_cast %37 : vector<1x1x128x4xbf16> to vector<128x4xbf16>
    %cst_51 = arith.constant dense<0.000000e+00> : vector<256x4xf32>
    %39 = tpu.matmul %36, %38, %cst_51 {dimension_numbers = #tpu.dot_dimension_numbers<[1], [0], [0], [1], [0, 0, 1, 1], [], []>} : vector<256x128xbf16>, vector<128x4xbf16>, vector<256x4xf32> -> vector<256x4xf32>
    %40 = arith.addf %34, %39 : vector<256x4xf32>
    %c1_52 = arith.constant 1 : index
    %c17_53 = arith.constant 17 : index
    %c0_54 = arith.constant 0 : index
    %41 = vector.load %arg7[%c1_52, %c17_53, %c0_54] : memref<18x33x128xbf16, #tpu.memory_space<vmem>>, vector<16x16x128xbf16>
    %42 = vector.shape_cast %41 : vector<16x16x128xbf16> to vector<256x128xbf16>
    %c0_55 = arith.constant 0 : index
    %c5 = arith.constant 5 : index
    %c0_56 = arith.constant 0 : index
    %c0_57 = arith.constant 0 : index
    %43 = vector.load %arg2[%c0_55, %c5, %c0_56, %c0_57] : memref<2x9x128x4xbf16, #tpu.memory_space<vmem>>, vector<1x1x128x4xbf16>
    %44 = vector.shape_cast %43 : vector<1x1x128x4xbf16> to vector<128x4xbf16>
    %cst_58 = arith.constant dense<0.000000e+00> : vector<256x4xf32>
    %45 = tpu.matmul %42, %44, %cst_58 {dimension_numbers = #tpu.dot_dimension_numbers<[1], [0], [0], [1], [0, 0, 1, 1], [], []>} : vector<256x128xbf16>, vector<128x4xbf16>, vector<256x4xf32> -> vector<256x4xf32>
    %46 = arith.addf %40, %45 : vector<256x4xf32>
    %c2_59 = arith.constant 2 : index
    %c15_60 = arith.constant 15 : index
    %c0_61 = arith.constant 0 : index
    %47 = vector.load %arg7[%c2_59, %c15_60, %c0_61] : memref<18x33x128xbf16, #tpu.memory_space<vmem>>, vector<16x16x128xbf16>
    %48 = vector.shape_cast %47 : vector<16x16x128xbf16> to vector<256x128xbf16>
    %c0_62 = arith.constant 0 : index
    %c6 = arith.constant 6 : index
    %c0_63 = arith.constant 0 : index
    %c0_64 = arith.constant 0 : index
    %49 = vector.load %arg2[%c0_62, %c6, %c0_63, %c0_64] : memref<2x9x128x4xbf16, #tpu.memory_space<vmem>>, vector<1x1x128x4xbf16>
    %50 = vector.shape_cast %49 : vector<1x1x128x4xbf16> to vector<128x4xbf16>
    %cst_65 = arith.constant dense<0.000000e+00> : vector<256x4xf32>
    %51 = tpu.matmul %48, %50, %cst_65 {dimension_numbers = #tpu.dot_dimension_numbers<[1], [0], [0], [1], [0, 0, 1, 1], [], []>} : vector<256x128xbf16>, vector<128x4xbf16>, vector<256x4xf32> -> vector<256x4xf32>
    %52 = arith.addf %46, %51 : vector<256x4xf32>
    %c2_66 = arith.constant 2 : index
    %c16_67 = arith.constant 16 : index
    %c0_68 = arith.constant 0 : index
    %53 = vector.load %arg7[%c2_66, %c16_67, %c0_68] : memref<18x33x128xbf16, #tpu.memory_space<vmem>>, vector<16x16x128xbf16>
    %54 = vector.shape_cast %53 : vector<16x16x128xbf16> to vector<256x128xbf16>
    %c0_69 = arith.constant 0 : index
    %c7 = arith.constant 7 : index
    %c0_70 = arith.constant 0 : index
    %c0_71 = arith.constant 0 : index
    %55 = vector.load %arg2[%c0_69, %c7, %c0_70, %c0_71] : memref<2x9x128x4xbf16, #tpu.memory_space<vmem>>, vector<1x1x128x4xbf16>
    %56 = vector.shape_cast %55 : vector<1x1x128x4xbf16> to vector<128x4xbf16>
    %cst_72 = arith.constant dense<0.000000e+00> : vector<256x4xf32>
    %57 = tpu.matmul %54, %56, %cst_72 {dimension_numbers = #tpu.dot_dimension_numbers<[1], [0], [0], [1], [0, 0, 1, 1], [], []>} : vector<256x128xbf16>, vector<128x4xbf16>, vector<256x4xf32> -> vector<256x4xf32>
    %58 = arith.addf %52, %57 : vector<256x4xf32>
    %c2_73 = arith.constant 2 : index
    %c17_74 = arith.constant 17 : index
    %c0_75 = arith.constant 0 : index
    %59 = vector.load %arg7[%c2_73, %c17_74, %c0_75] : memref<18x33x128xbf16, #tpu.memory_space<vmem>>, vector<16x16x128xbf16>
    %60 = vector.shape_cast %59 : vector<16x16x128xbf16> to vector<256x128xbf16>
    %c0_76 = arith.constant 0 : index
    %c8 = arith.constant 8 : index
    %c0_77 = arith.constant 0 : index
    %c0_78 = arith.constant 0 : index
    %61 = vector.load %arg2[%c0_76, %c8, %c0_77, %c0_78] : memref<2x9x128x4xbf16, #tpu.memory_space<vmem>>, vector<1x1x128x4xbf16>
    %62 = vector.shape_cast %61 : vector<1x1x128x4xbf16> to vector<128x4xbf16>
    %cst_79 = arith.constant dense<0.000000e+00> : vector<256x4xf32>
    %63 = tpu.matmul %60, %62, %cst_79 {dimension_numbers = #tpu.dot_dimension_numbers<[1], [0], [0], [1], [0, 0, 1, 1], [], []>} : vector<256x128xbf16>, vector<128x4xbf16>, vector<256x4xf32> -> vector<256x4xf32>
    %64 = arith.addf %58, %63 : vector<256x4xf32>
    %c0_80 = arith.constant 0 : index
    %c0_81 = arith.constant 0 : index
    %c0_82 = arith.constant 0 : index
    %65 = vector.load %arg3[%c0_80, %c0_81, %c0_82] : memref<2x1x4xf32, #tpu.memory_space<vmem>>, vector<1x1x4xf32>
    %66 = vector.shape_cast %65 : vector<1x1x4xf32> to vector<1x4xf32>
    %67 = vector.broadcast %66 : vector<1x4xf32> to vector<256x4xf32>
    %68 = arith.addf %64, %67 : vector<256x4xf32>
    %cst_83 = arith.constant 0.000000e+00 : f32
    %69 = vector.broadcast %cst_83 : f32 to vector<256x4xf32>
    %70 = arith.cmpf ogt, %68, %69 : vector<256x4xf32>
    %cst_84 = arith.constant 1.000000e-01 : f32
    %71 = vector.broadcast %cst_84 : f32 to vector<256x4xf32>
    %72 = arith.mulf %71, %68 : vector<256x4xf32>
    %73 = arith.select %70, %68, %72 : vector<256x4xi1>, vector<256x4xf32>
    %74 = arith.truncf %73 : vector<256x4xf32> to vector<256x4xbf16>
    %75 = vector.shape_cast %74 : vector<256x4xbf16> to vector<16x16x4xbf16>
    %c1_85 = arith.constant 1 : index
    %c16_86 = arith.constant 16 : index
    %c8_87 = arith.constant 8 : index
    %76 = vector.load %arg7[%c1_85, %c16_86, %c8_87] : memref<18x33x128xbf16, #tpu.memory_space<vmem>>, vector<16x16x4xbf16>
    tpu.vector_store %arg7[%c1_85, %c16_86, %c8_87], %75 {strides = array<i32>} : memref<18x33x128xbf16, #tpu.memory_space<vmem>>, vector<16x16x4xbf16>,
    %cst_88 = arith.constant 0.000000e+00 : f32
    %77 = vector.broadcast %cst_88 : f32 to vector<256x4xf32>
    %c0_89 = arith.constant 0 : index
    %c15_90 = arith.constant 15 : index
    %c0_91 = arith.constant 0 : index
    %78 = vector.load %arg7[%c0_89, %c15_90, %c0_91] : memref<18x33x128xbf16, #tpu.memory_space<vmem>>, vector<16x16x128xbf16>
    %79 = vector.shape_cast %78 : vector<16x16x128xbf16> to vector<256x128xbf16>
    %c1_92 = arith.constant 1 : index
    %c0_93 = arith.constant 0 : index
    %c0_94 = arith.constant 0 : index
    %c0_95 = arith.constant 0 : index
    %80 = vector.load %arg2[%c1_92, %c0_93, %c0_94, %c0_95] : memref<2x9x128x4xbf16, #tpu.memory_space<vmem>>, vector<1x1x128x4xbf16>
    %81 = vector.shape_cast %80 : vector<1x1x128x4xbf16> to vector<128x4xbf16>
    %cst_96 = arith.constant dense<0.000000e+00> : vector<256x4xf32>
    %82 = tpu.matmul %79, %81, %cst_96 {dimension_numbers = #tpu.dot_dimension_numbers<[1], [0], [0], [1], [0, 0, 1, 1], [], []>} : vector<256x128xbf16>, vector<128x4xbf16>, vector<256x4xf32> -> vector<256x4xf32>
    %83 = arith.addf %77, %82 : vector<256x4xf32>
    %c0_97 = arith.constant 0 : index
    %c16_98 = arith.constant 16 : index
    %c0_99 = arith.constant 0 : index
    %84 = vector.load %arg7[%c0_97, %c16_98, %c0_99] : memref<18x33x128xbf16, #tpu.memory_space<vmem>>, vector<16x16x128xbf16>
    %85 = vector.shape_cast %84 : vector<16x16x128xbf16> to vector<256x128xbf16>
    %c1_100 = arith.constant 1 : index
    %c1_101 = arith.constant 1 : index
    %c0_102 = arith.constant 0 : index
    %c0_103 = arith.constant 0 : index
    %86 = vector.load %arg2[%c1_100, %c1_101, %c0_102, %c0_103] : memref<2x9x128x4xbf16, #tpu.memory_space<vmem>>, vector<1x1x128x4xbf16>
    %87 = vector.shape_cast %86 : vector<1x1x128x4xbf16> to vector<128x4xbf16>
    %cst_104 = arith.constant dense<0.000000e+00> : vector<256x4xf32>
    %88 = tpu.matmul %85, %87, %cst_104 {dimension_numbers = #tpu.dot_dimension_numbers<[1], [0], [0], [1], [0, 0, 1, 1], [], []>} : vector<256x128xbf16>, vector<128x4xbf16>, vector<256x4xf32> -> vector<256x4xf32>
    %89 = arith.addf %83, %88 : vector<256x4xf32>
    %c0_105 = arith.constant 0 : index
    %c17_106 = arith.constant 17 : index
    %c0_107 = arith.constant 0 : index
    %90 = vector.load %arg7[%c0_105, %c17_106, %c0_107] : memref<18x33x128xbf16, #tpu.memory_space<vmem>>, vector<16x16x128xbf16>
    %91 = vector.shape_cast %90 : vector<16x16x128xbf16> to vector<256x128xbf16>
    %c1_108 = arith.constant 1 : index
    %c2_109 = arith.constant 2 : index
    %c0_110 = arith.constant 0 : index
    %c0_111 = arith.constant 0 : index
    %92 = vector.load %arg2[%c1_108, %c2_109, %c0_110, %c0_111] : memref<2x9x128x4xbf16, #tpu.memory_space<vmem>>, vector<1x1x128x4xbf16>
    %93 = vector.shape_cast %92 : vector<1x1x128x4xbf16> to vector<128x4xbf16>
    %cst_112 = arith.constant dense<0.000000e+00> : vector<256x4xf32>
    %94 = tpu.matmul %91, %93, %cst_112 {dimension_numbers = #tpu.dot_dimension_numbers<[1], [0], [0], [1], [0, 0, 1, 1], [], []>} : vector<256x128xbf16>, vector<128x4xbf16>, vector<256x4xf32> -> vector<256x4xf32>
    %95 = arith.addf %89, %94 : vector<256x4xf32>
    %c1_113 = arith.constant 1 : index
    %c15_114 = arith.constant 15 : index
    %c0_115 = arith.constant 0 : index
    %96 = vector.load %arg7[%c1_113, %c15_114, %c0_115] : memref<18x33x128xbf16, #tpu.memory_space<vmem>>, vector<16x16x128xbf16>
    %97 = vector.shape_cast %96 : vector<16x16x128xbf16> to vector<256x128xbf16>
    %c1_116 = arith.constant 1 : index
    %c3_117 = arith.constant 3 : index
    %c0_118 = arith.constant 0 : index
    %c0_119 = arith.constant 0 : index
    %98 = vector.load %arg2[%c1_116, %c3_117, %c0_118, %c0_119] : memref<2x9x128x4xbf16, #tpu.memory_space<vmem>>, vector<1x1x128x4xbf16>
    %99 = vector.shape_cast %98 : vector<1x1x128x4xbf16> to vector<128x4xbf16>
    %cst_120 = arith.constant dense<0.000000e+00> : vector<256x4xf32>
    %100 = tpu.matmul %97, %99, %cst_120 {dimension_numbers = #tpu.dot_dimension_numbers<[1], [0], [0], [1], [0, 0, 1, 1], [], []>} : vector<256x128xbf16>, vector<128x4xbf16>, vector<256x4xf32> -> vector<256x4xf32>
    %101 = arith.addf %95, %100 : vector<256x4xf32>
    %c1_121 = arith.constant 1 : index
    %c16_122 = arith.constant 16 : index
    %c0_123 = arith.constant 0 : index
    %102 = vector.load %arg7[%c1_121, %c16_122, %c0_123] : memref<18x33x128xbf16, #tpu.memory_space<vmem>>, vector<16x16x128xbf16>
    %103 = vector.shape_cast %102 : vector<16x16x128xbf16> to vector<256x128xbf16>
    %c1_124 = arith.constant 1 : index
    %c4_125 = arith.constant 4 : index
    %c0_126 = arith.constant 0 : index
    %c0_127 = arith.constant 0 : index
    %104 = vector.load %arg2[%c1_124, %c4_125, %c0_126, %c0_127] : memref<2x9x128x4xbf16, #tpu.memory_space<vmem>>, vector<1x1x128x4xbf16>
    %105 = vector.shape_cast %104 : vector<1x1x128x4xbf16> to vector<128x4xbf16>
    %cst_128 = arith.constant dense<0.000000e+00> : vector<256x4xf32>
    %106 = tpu.matmul %103, %105, %cst_128 {dimension_numbers = #tpu.dot_dimension_numbers<[1], [0], [0], [1], [0, 0, 1, 1], [], []>} : vector<256x128xbf16>, vector<128x4xbf16>, vector<256x4xf32> -> vector<256x4xf32>
    %107 = arith.addf %101, %106 : vector<256x4xf32>
    %c1_129 = arith.constant 1 : index
    %c17_130 = arith.constant 17 : index
    %c0_131 = arith.constant 0 : index
    %108 = vector.load %arg7[%c1_129, %c17_130, %c0_131] : memref<18x33x128xbf16, #tpu.memory_space<vmem>>, vector<16x16x128xbf16>
    %109 = vector.shape_cast %108 : vector<16x16x128xbf16> to vector<256x128xbf16>
    %c1_132 = arith.constant 1 : index
    %c5_133 = arith.constant 5 : index
    %c0_134 = arith.constant 0 : index
    %c0_135 = arith.constant 0 : index
    %110 = vector.load %arg2[%c1_132, %c5_133, %c0_134, %c0_135] : memref<2x9x128x4xbf16, #tpu.memory_space<vmem>>, vector<1x1x128x4xbf16>
    %111 = vector.shape_cast %110 : vector<1x1x128x4xbf16> to vector<128x4xbf16>
    %cst_136 = arith.constant dense<0.000000e+00> : vector<256x4xf32>
    %112 = tpu.matmul %109, %111, %cst_136 {dimension_numbers = #tpu.dot_dimension_numbers<[1], [0], [0], [1], [0, 0, 1, 1], [], []>} : vector<256x128xbf16>, vector<128x4xbf16>, vector<256x4xf32> -> vector<256x4xf32>
    %113 = arith.addf %107, %112 : vector<256x4xf32>
    %c2_137 = arith.constant 2 : index
    %c15_138 = arith.constant 15 : index
    %c0_139 = arith.constant 0 : index
    %114 = vector.load %arg7[%c2_137, %c15_138, %c0_139] : memref<18x33x128xbf16, #tpu.memory_space<vmem>>, vector<16x16x128xbf16>
    %115 = vector.shape_cast %114 : vector<16x16x128xbf16> to vector<256x128xbf16>
    %c1_140 = arith.constant 1 : index
    %c6_141 = arith.constant 6 : index
    %c0_142 = arith.constant 0 : index
    %c0_143 = arith.constant 0 : index
    %116 = vector.load %arg2[%c1_140, %c6_141, %c0_142, %c0_143] : memref<2x9x128x4xbf16, #tpu.memory_space<vmem>>, vector<1x1x128x4xbf16>
    %117 = vector.shape_cast %116 : vector<1x1x128x4xbf16> to vector<128x4xbf16>
    %cst_144 = arith.constant dense<0.000000e+00> : vector<256x4xf32>
    %118 = tpu.matmul %115, %117, %cst_144 {dimension_numbers = #tpu.dot_dimension_numbers<[1], [0], [0], [1], [0, 0, 1, 1], [], []>} : vector<256x128xbf16>, vector<128x4xbf16>, vector<256x4xf32> -> vector<256x4xf32>
    %119 = arith.addf %113, %118 : vector<256x4xf32>
    %c2_145 = arith.constant 2 : index
    %c16_146 = arith.constant 16 : index
    %c0_147 = arith.constant 0 : index
    %120 = vector.load %arg7[%c2_145, %c16_146, %c0_147] : memref<18x33x128xbf16, #tpu.memory_space<vmem>>, vector<16x16x128xbf16>
    %121 = vector.shape_cast %120 : vector<16x16x128xbf16> to vector<256x128xbf16>
    %c1_148 = arith.constant 1 : index
    %c7_149 = arith.constant 7 : index
    %c0_150 = arith.constant 0 : index
    %c0_151 = arith.constant 0 : index
    %122 = vector.load %arg2[%c1_148, %c7_149, %c0_150, %c0_151] : memref<2x9x128x4xbf16, #tpu.memory_space<vmem>>, vector<1x1x128x4xbf16>
    %123 = vector.shape_cast %122 : vector<1x1x128x4xbf16> to vector<128x4xbf16>
    %cst_152 = arith.constant dense<0.000000e+00> : vector<256x4xf32>
    %124 = tpu.matmul %121, %123, %cst_152 {dimension_numbers = #tpu.dot_dimension_numbers<[1], [0], [0], [1], [0, 0, 1, 1], [], []>} : vector<256x128xbf16>, vector<128x4xbf16>, vector<256x4xf32> -> vector<256x4xf32>
    %125 = arith.addf %119, %124 : vector<256x4xf32>
    %c2_153 = arith.constant 2 : index
    %c17_154 = arith.constant 17 : index
    %c0_155 = arith.constant 0 : index
    %126 = vector.load %arg7[%c2_153, %c17_154, %c0_155] : memref<18x33x128xbf16, #tpu.memory_space<vmem>>, vector<16x16x128xbf16>
    %127 = vector.shape_cast %126 : vector<16x16x128xbf16> to vector<256x128xbf16>
    %c1_156 = arith.constant 1 : index
    %c8_157 = arith.constant 8 : index
    %c0_158 = arith.constant 0 : index
    %c0_159 = arith.constant 0 : index
    %128 = vector.load %arg2[%c1_156, %c8_157, %c0_158, %c0_159] : memref<2x9x128x4xbf16, #tpu.memory_space<vmem>>, vector<1x1x128x4xbf16>
    %129 = vector.shape_cast %128 : vector<1x1x128x4xbf16> to vector<128x4xbf16>
    %cst_160 = arith.constant dense<0.000000e+00> : vector<256x4xf32>
    %130 = tpu.matmul %127, %129, %cst_160 {dimension_numbers = #tpu.dot_dimension_numbers<[1], [0], [0], [1], [0, 0, 1, 1], [], []>} : vector<256x128xbf16>, vector<128x4xbf16>, vector<256x4xf32> -> vector<256x4xf32>
    %131 = arith.addf %125, %130 : vector<256x4xf32>
    %c1_161 = arith.constant 1 : index
    %c0_162 = arith.constant 0 : index
    %c0_163 = arith.constant 0 : index
    %132 = vector.load %arg3[%c1_161, %c0_162, %c0_163] : memref<2x1x4xf32, #tpu.memory_space<vmem>>, vector<1x1x4xf32>
    %133 = vector.shape_cast %132 : vector<1x1x4xf32> to vector<1x4xf32>
    %134 = vector.broadcast %133 : vector<1x4xf32> to vector<256x4xf32>
    %135 = arith.addf %131, %134 : vector<256x4xf32>
    %cst_164 = arith.constant 0.000000e+00 : f32
    %136 = vector.broadcast %cst_164 : f32 to vector<256x4xf32>
    %137 = arith.cmpf ogt, %135, %136 : vector<256x4xf32>
    %cst_165 = arith.constant 1.000000e-01 : f32
    %138 = vector.broadcast %cst_165 : f32 to vector<256x4xf32>
    %139 = arith.mulf %138, %135 : vector<256x4xf32>
    %140 = arith.select %137, %135, %139 : vector<256x4xi1>, vector<256x4xf32>
    %141 = arith.truncf %140 : vector<256x4xf32> to vector<256x4xbf16>
    %142 = vector.shape_cast %141 : vector<256x4xbf16> to vector<16x16x4xbf16>
    %c1_166 = arith.constant 1 : index
    %c16_167 = arith.constant 16 : index
    %c12 = arith.constant 12 : index
    %143 = vector.load %arg7[%c1_166, %c16_167, %c12] : memref<18x33x128xbf16, #tpu.memory_space<vmem>>, vector<16x16x4xbf16>
    tpu.vector_store %arg7[%c1_166, %c16_167, %c12], %142 {strides = array<i32>} : memref<18x33x128xbf16, #tpu.memory_space<vmem>>, vector<16x16x4xbf16>,
    %c1_168 = arith.constant 1 : index
    %c16_169 = arith.constant 16 : index
    %c0_170 = arith.constant 0 : index
    %144 = vector.load %arg7[%c1_168, %c16_169, %c0_170] : memref<18x33x128xbf16, #tpu.memory_space<vmem>>, vector<16x16x128xbf16>
    %145 = vector.shape_cast %144 : vector<16x16x128xbf16> to vector<256x128xbf16>
    %c0_171 = arith.constant 0 : index
    %c0_172 = arith.constant 0 : index
    %146 = vector.load %arg4[%c0_171, %c0_172] : memref<128x128xbf16, #tpu.memory_space<vmem>>, vector<128x128xbf16>
    %cst_173 = arith.constant dense<0.000000e+00> : vector<256x128xf32>
    %147 = tpu.matmul %145, %146, %cst_173 {dimension_numbers = #tpu.dot_dimension_numbers<[1], [0], [0], [1], [0, 0, 1, 1], [], []>} : vector<256x128xbf16>, vector<128x128xbf16>, vector<256x128xf32> -> vector<256x128xf32>
    %c0_174 = arith.constant 0 : index
    %c0_175 = arith.constant 0 : index
    %148 = vector.load %arg5[%c0_174, %c0_175] : memref<1x128xf32, #tpu.memory_space<vmem>>, vector<1x128xf32>
    %149 = vector.broadcast %148 : vector<1x128xf32> to vector<256x128xf32>
    %150 = arith.addf %147, %149 : vector<256x128xf32>
    %151 = vector.shape_cast %7 : vector<16x16x128xf32> to vector<256x128xf32>
    %152 = arith.addf %150, %151 : vector<256x128xf32>
    %153 = vector.shape_cast %152 : vector<256x128xf32> to vector<16x16x128xf32>
    %c0_176 = arith.constant 0 : index
    %c0_177 = arith.constant 0 : index
    %c0_178 = arith.constant 0 : index
    %c0_179 = arith.constant 0 : index
    %154 = vector.load %arg6[%c0_176, %c0_177, %c0_178, %c0_179] : memref<1x16x16x128xf32, #tpu.memory_space<vmem>>, vector<1x16x16x128xf32>
    %155 = vector.shape_cast %154 : vector<1x16x16x128xf32> to vector<16x16x128xf32>
    %156 = vector.shape_cast %153 : vector<16x16x128xf32> to vector<1x16x16x128xf32>
    tpu.vector_store %arg6[%c0_176, %c0_177, %c0_178, %c0_179], %156 {strides = array<i32>} : memref<1x16x16x128xf32, #tpu.memory_space<vmem>>, vector<1x16x16x128xf32>,
    return
  }
  func.func @transform_0(%arg0: i32) -> (i32, i32, i32, i32) {
    %c0_i32 = arith.constant 0 : i32
    %c0_i32_0 = arith.constant 0 : i32
    %c0_i32_1 = arith.constant 0 : i32
    %c0_i32_2 = arith.constant 0 : i32
    return %arg0, %c0_i32, %c0_i32_0, %c0_i32_1 : i32, i32, i32, i32
  }
  func.func @transform_1(%arg0: i32) -> (i32, i32, i32, i32) {
    %c0_i32 = arith.constant 0 : i32
    %c0_i32_0 = arith.constant 0 : i32
    %c0_i32_1 = arith.constant 0 : i32
    %c0_i32_2 = arith.constant 0 : i32
    %c0_i32_3 = arith.constant 0 : i32
    return %c0_i32, %c0_i32_0, %c0_i32_1, %c0_i32_2 : i32, i32, i32, i32
  }
  func.func @transform_2(%arg0: i32) -> (i32, i32, i32) {
    %c0_i32 = arith.constant 0 : i32
    %c0_i32_0 = arith.constant 0 : i32
    %c0_i32_1 = arith.constant 0 : i32
    %c0_i32_2 = arith.constant 0 : i32
    return %c0_i32, %c0_i32_0, %c0_i32_1 : i32, i32, i32
  }
  func.func @transform_3(%arg0: i32) -> (i32, i32) {
    %c0_i32 = arith.constant 0 : i32
    %c0_i32_0 = arith.constant 0 : i32
    %c0_i32_1 = arith.constant 0 : i32
    return %c0_i32, %c0_i32_0 : i32, i32
  }
  func.func @transform_4(%arg0: i32) -> (i32, i32) {
    %c0_i32 = arith.constant 0 : i32
    %c0_i32_0 = arith.constant 0 : i32
    %c0_i32_1 = arith.constant 0 : i32
    return %c0_i32, %c0_i32_0 : i32, i32
  }
  func.func @transform_5(%arg0: i32) -> (i32, i32, i32, i32) {
    %c0_i32 = arith.constant 0 : i32
    %c0_i32_0 = arith.constant 0 : i32
    %c0_i32_1 = arith.constant 0 : i32
    %c0_i32_2 = arith.constant 0 : i32
    return %arg0, %c0_i32, %c0_i32_0, %c0_i32_1 : i32, i32, i32, i32
  }
}

</mosaic_0001>

<llo_original>
// kernel: rdb_forward.1
$region0: #{rdb_forward.1}
  #allocation0 [shape = 'u32[]', space=smem, size = 0x4, offset = 0x4, fixed_abs, tag = 'smem constant byte address 0x4 - core index']
  #allocation1 [shape = 'u32[144,128]{1,0:T(1,128)}', space=vmem, size = 0x12000, scoped, tag = 'internal scratch']
  #allocation2 [shape = 'bf16[18,33,128]{2,1,0:T(8,128)(2,1)}', space=vmem, size = 0x2d000, scoped, tag = 'scratch operand']
  %s0 = inlined_call_operand.vmem [shape: f32[2,16,16,128], index: 0, kind: input, shape index: {}]
  %s1 = inlined_call_operand.vmem [shape: bf16[2,9,128,4], index: 1, kind: input, shape index: {}]
  %s2 = inlined_call_operand.vmem [shape: f32[2,1,4], index: 2, kind: input, shape index: {}]
  %s3 = inlined_call_operand.vmem [shape: bf16[128,128], index: 3, kind: input, shape index: {}]
  %s4 = inlined_call_operand.vmem [shape: f32[1,128], index: 4, kind: input, shape index: {}]
  %s5 = inlined_call_operand.vmem [shape: f32[2,16,16,128], index: 5, kind: output, shape index: {}]
  %s6 = sld [smem:[#allocation0]]
  $region53: #{rdb_forward.1} parent=0
    _
  %s8 = ssub.s32 1, %s6
  %s9 = scalar_select 0, %s8, %s6
  loop: start=0, step=1, limit=4
  $region2: #{rdb_forward.1} parent=0 // loop_pre_header
    _
  $region3: #{rdb_forward.1} parent=0 // loop_header
    %s11 = sphi 0, %s15
    %p12 = scmp.ge.s32.totalorder %s11, 4
    %s21 = sphi 0, %s23
    %s24 = sphi 0, %s21
    %s25 = sphi 0, %s24
    %s41 = sphi 0, %s25
    %s45 = sphi 0, %s45
    %s47 = sphi 0, %s45
    %s48 = sphi 0, %s47
    %s62 = sphi 0, %s48
    %s66 = sphi 0, %s66
    %s68 = sphi 0, %s66
    %s69 = sphi 0, %s68
    %s83 = sphi 0, %s69
    %s87 = sphi 0, %s87
    %s89 = sphi 0, %s87
    %s90 = sphi 0, %s89
    %s104 = sphi 0, %s90
    %s108 = sphi 0, %s108
    %s110 = sphi 0, %s108
    %s111 = sphi 0, %s110
    %s125 = sphi 0, %s111
    %s131 = sphi 0, %s133
    %s134 = sphi 0, %s131
    %s135 = sphi 0, %s134
    %s151 = sphi 0, %s135
  $region4: #{rdb_forward.1} parent=0 // loop_header_branch
    %14 = sbr.rel (%p12) target = $region8
  $region5: #{rdb_forward.1} parent=0 // loop_body
    %s16 = ssub.s32 %s11, 1
    %s17 = ssub.s32 %s11, 2
    %s18 = sadd.s32 %s11, 1
    %s19 = ssub.s32 %s11, %s18
    %p20 = scmp.eq.s32.totalorder %s19, 0
    %s22 = sadd.s32 %s21, 1
    %s23 = scalar_select %p20, %s21, %s22
    %p26 = pneg %p20
    %p27 = scmp.eq.s32.totalorder %s11, 1
    %p28 = por %p26, %p27
    %p29 = scmp.ne.s32.totalorder %s21, %s24
    %p30 = scmp.eq.s32.totalorder %s11, 0
    %p31 = por %p29, %p30
    %p32 = scmp.ne.s32.totalorder %s21, %s24
    %p33 = scmp.eq.s32.totalorder %s16, 1
    %p34 = por %p32, %p33
    %p35 = scmp.ne.s32.totalorder %s24, %s25
    %p36 = scmp.eq.s32.totalorder %s16, 0
    %p37 = por %p35, %p36
    %p38 = scmp.ne.s32.totalorder %s24, %s25
    %p39 = scmp.eq.s32.totalorder %s17, 1
    %p40 = por %p38, %p39
    %p42 = scmp.ne.s32.totalorder %s25, %s41
    %p43 = scmp.eq.s32.totalorder %s17, 0
    %p44 = por %p42, %p43
    %s46 = sadd.s32 %s45, 1
    %p49 = scmp.eq.s32.totalorder %s11, 1
    %p50 = scmp.ne.s32.totalorder %s45, %s47
    %p51 = scmp.eq.s32.totalorder %s11, 0
    %p52 = por %p50, %p51
    %p53 = scmp.ne.s32.totalorder %s45, %s47
    %p54 = scmp.eq.s32.totalorder %s16, 1
    %p55 = por %p53, %p54
    %p56 = scmp.ne.s32.totalorder %s47, %s48
    %p57 = scmp.eq.s32.totalorder %s16, 0
    %p58 = por %p56, %p57
    %p59 = scmp.ne.s32.totalorder %s47, %s48
    %p60 = scmp.eq.s32.totalorder %s17, 1
    %p61 = por %p59, %p60
    %p63 = scmp.ne.s32.totalorder %s48, %s62
    %p64 = scmp.eq.s32.totalorder %s17, 0
    %p65 = por %p63, %p64
    %s67 = sadd.s32 %s66, 1
    %p70 = scmp.eq.s32.totalorder %s11, 1
    %p71 = scmp.ne.s32.totalorder %s66, %s68
    %p72 = scmp.eq.s32.totalorder %s11, 0
    %p73 = por %p71, %p72
    %p74 = scmp.ne.s32.totalorder %s66, %s68
    %p75 = scmp.eq.s32.totalorder %s16, 1
    %p76 = por %p74, %p75
    %p77 = scmp.ne.s32.totalorder %s68, %s69
    %p78 = scmp.eq.s32.totalorder %s16, 0
    %p79 = por %p77, %p78
    %p80 = scmp.ne.s32.totalorder %s68, %s69
    %p81 = scmp.eq.s32.totalorder %s17, 1
    %p82 = por %p80, %p81
    %p84 = scmp.ne.s32.totalorder %s69, %s83
    %p85 = scmp.eq.s32.totalorder %s17, 0
    %p86 = por %p84, %p85
    %s88 = sadd.s32 %s87, 1
    %p91 = scmp.eq.s32.totalorder %s11, 1
    %p92 = scmp.ne.s32.totalorder %s87, %s89
    %p93 = scmp.eq.s32.totalorder %s11, 0
    %p94 = por %p92, %p93
    %p95 = scmp.ne.s32.totalorder %s87, %s89
    %p96 = scmp.eq.s32.totalorder %s16, 1
    %p97 = por %p95, %p96
    %p98 = scmp.ne.s32.totalorder %s89, %s90
    %p99 = scmp.eq.s32.totalorder %s16, 0
    %p100 = por %p98, %p99
    %p101 = scmp.ne.s32.totalorder %s89, %s90
    %p102 = scmp.eq.s32.totalorder %s17, 1
    %p103 = por %p101, %p102
    %p105 = scmp.ne.s32.totalorder %s90, %s104
    %p106 = scmp.eq.s32.totalorder %s17, 0
    %p107 = por %p105, %p106
    %s109 = sadd.s32 %s108, 1
    %p112 = scmp.eq.s32.totalorder %s11, 1
    %p113 = scmp.ne.s32.totalorder %s108, %s110
    %p114 = scmp.eq.s32.totalorder %s11, 0
    %p115 = por %p113, %p114
    %p116 = scmp.ne.s32.totalorder %s108, %s110
    %p117 = scmp.eq.s32.totalorder %s16, 1
    %p118 = por %p116, %p117
    %p119 = scmp.ne.s32.totalorder %s110, %s111
    %p120 = scmp.eq.s32.totalorder %s16, 0
    %p121 = por %p119, %p120
    %p122 = scmp.ne.s32.totalorder %s110, %s111
    %p123 = scmp.eq.s32.totalorder %s17, 1
    %p124 = por %p122, %p123
    %p126 = scmp.ne.s32.totalorder %s111, %s125
    %p127 = scmp.eq.s32.totalorder %s17, 0
    %p128 = por %p126, %p127
    %s129 = ssub.s32 %s11, %s18
    %p130 = scmp.eq.s32.totalorder %s129, 0
    %s132 = sadd.s32 %s131, 1
    %s133 = scalar_select %p130, %s131, %s132
    %p136 = pneg %p130
    %p137 = scmp.eq.s32.totalorder %s11, 1
    %p138 = por %p136, %p137
    %p139 = scmp.ne.s32.totalorder %s131, %s134
    %p140 = scmp.eq.s32.totalorder %s11, 0
    %p141 = por %p139, %p140
    %p142 = scmp.ne.s32.totalorder %s131, %s134
    %p143 = scmp.eq.s32.totalorder %s16, 1
    %p144 = por %p142, %p143
    %p145 = scmp.ne.s32.totalorder %s134, %s135
    %p146 = scmp.eq.s32.totalorder %s16, 0
    %p147 = por %p145, %p146
    %p148 = scmp.ne.s32.totalorder %s134, %s135
    %p149 = scmp.eq.s32.totalorder %s17, 1
    %p150 = por %p148, %p149
    %p152 = scmp.ne.s32.totalorder %s135, %s151
    %p153 = scmp.eq.s32.totalorder %s17, 0
    %p154 = por %p152, %p153
    %p155 = scmp.le.s32.totalorder 1, %s11
    %p156 = scmp.lt.s32.totalorder %s11, 3
    %p157 = pnand %p155, %p156
    %p158 = pneg %p157
    // Predicated region
    $region9: #{rdb_forward.1} parent=5 // pred_check
      _
    $region10: #{rdb_forward.1} parent=5 // pred_check_branch
      %160 = sbr.rel (%p157) target = $region12
    $region11: #{rdb_forward.1} parent=5 // pred_region
      %s161 = ssub.s32 %s11, 1
      // Predicated region
      $region13: #{rdb_forward.1} parent=11 // pred_check
        %p162 = pneg %p58
      $region14: #{rdb_forward.1} parent=11 // pred_check_branch
        %164 = sbr.rel (%p162) target = $region16
      $region15: #{rdb_forward.1} parent=11 // pred_region
        _
      $region16: #{rdb_forward.1} parent=11 // pred_fallthru
        _
      // Predicated region
      $region17: #{rdb_forward.1} parent=11 // pred_check
        %p165 = pneg %p79
      $region18: #{rdb_forward.1} parent=11 // pred_check_branch
        %167 = sbr.rel (%p165) target = $region20
      $region19: #{rdb_forward.1} parent=11 // pred_region
        _
      $region20: #{rdb_forward.1} parent=11 // pred_fallthru
        _
      // Predicated region
      $region21: #{rdb_forward.1} parent=11 // pred_check
        %p168 = pneg %p100
      $region22: #{rdb_forward.1} parent=11 // pred_check_branch
        %170 = sbr.rel (%p168) target = $region24
      $region23: #{rdb_forward.1} parent=11 // pred_region
        _
      $region24: #{rdb_forward.1} parent=11 // pred_fallthru
        _
      // Predicated region
      $region25: #{rdb_forward.1} parent=11 // pred_check
        %p171 = pneg %p121
      $region26: #{rdb_forward.1} parent=11 // pred_check_branch
        %173 = sbr.rel (%p171) target = $region28
      $region27: #{rdb_forward.1} parent=11 // pred_region
        _
      $region28: #{rdb_forward.1} parent=11 // pred_fallthru
        _
    $region12: #{rdb_forward.1} parent=5 // pred_fallthru
      _
    %p174 = scmp.lt.s32.totalorder %s11, 2
    // Predicated region
    $region29: #{rdb_forward.1} parent=5 // pred_check
      %p175 = pneg %p174
    $region30: #{rdb_forward.1} parent=5 // pred_check_branch
      %177 = sbr.rel (%p175) target = $region32
    $region31: #{rdb_forward.1} parent=5 // pred_region
      // Predicated region
      $region33: #{rdb_forward.1} parent=31 // pred_check
        %p178 = pneg %p31
      $region34: #{rdb_forward.1} parent=31 // pred_check_branch
        %180 = sbr.rel (%p178) target = $region36
      $region35: #{rdb_forward.1} parent=31 // pred_region
        %p181 = scmp.lt.s32.totalorder %s11, 1
        %s182 = scalar_select %p181, %s11, 1
        %s183 = smul.addr %s182, 32
        %s184 = smul.addr %s183, 8
        %s185 = scalar_lea.vmem %s0, %s184
      $region36: #{rdb_forward.1} parent=31 // pred_fallthru
        _
    $region32: #{rdb_forward.1} parent=5 // pred_fallthru
      _
    %p186 = scmp.le.s32.totalorder 1, %s11
    %p187 = scmp.lt.s32.totalorder %s11, 3
    %p188 = pnand %p186, %p187
    %p189 = pneg %p188
    // Predicated region
    $region37: #{rdb_forward.1} parent=5 // pred_check
      _
    $region38: #{rdb_forward.1} parent=5 // pred_check_branch
      %191 = sbr.rel (%p188) target = $region40
    $region39: #{rdb_forward.1} parent=5 // pred_region
      %s192 = ssub.s32 %s11, 1
      %p193 = scmp.lt.s32.totalorder %s16, 1
      %s194 = scalar_select %p193, %s16, 1
      %s195 = smul.addr %s194, 32
      %s196 = smul.addr %s195, 8
      %s197 = scalar_lea.vmem %s0, %s196
      %p198 = pneg %p37
      %p199 = pneg %p34
      %p200 = pneg %p58
      %p201 = pneg %p55
      %p202 = pneg %p79
      %p203 = pneg %p76
      %p204 = pneg %p100
      %p205 = pneg %p97
      %p206 = pneg %p121
      %p207 = pneg %p118
      %p208 = pneg %p147
      %p209 = pneg %p144
      %p210 = scmp.lt.s32.totalorder %s16, 1
      %s211 = scalar_select %p210, %s16, 1
      %s212 = smul.addr %s211, 32
      %s213 = smul.addr %s212, 8
      %s214 = scalar_lea.vmem %s5, %s213
      %p215 = scmp.lt.s32.totalorder %s16, 1
      %s216 = scalar_select %p215, %s16, 1
      %s217 = smul.addr %s216, 32
      %s218 = smul.addr %s217, 8
      %s219 = scalar_lea.vmem %s0, %s218
      %p220 = scmp.lt.s32.totalorder %s16, 1
      %s221 = scalar_select %p220, %s16, 1
      %s222 = smul.addr %s221, 32
      %s223 = smul.addr %s222, 8
      %s224 = scalar_lea.vmem %s5, %s223
      %226 = vst [vmem:[#allocation2] sm:$0xf] 0
      %227 = vst [vmem:[#allocation2 + $0x4] sm:$0xf] 0
      %228 = vst [vmem:[#allocation2 + $0x8] sm:$0xf] 0
      %229 = vst [vmem:[#allocation2 + $0xc] sm:$0xf] 0
      %vm230 = vcmask 1040384
      %vm231 = vsmask.f32 256
      %vm232 = vmand %vm230, %vm231
      %v233 = vld [vmem:[#allocation2 + $0x10] sm:$0x1]
      %v234 = vsel %vm232, 0, %v233
      %235 = vst [vmem:[#allocation2 + $0x10] sm:$0x1] %v234
      %s236 = scalar_lea.vmem [#allocation2], 340
      %237 = vst [vmem:[%s236] sm:$0xf] 0
      %238 = vst [vmem:[%s236 + $0x4] sm:$0xf] 0
      %239 = vst [vmem:[%s236 + $0x8] sm:$0xf] 0
      %240 = vst [vmem:[%s236 + $0xc] sm:$0xf] 0
      %v241 = vld [vmem:[%s236 + $0x10] sm:$0x1]
      %v242 = vsel %vm232, 0, %v241
      %243 = vst [vmem:[%s236 + $0x10] sm:$0x1] %v242
      %s244 = scalar_lea.vmem [#allocation2], 20
      %vm245 = vcmask 1043459
      %vm246 = vsmask.f32 7950
      %vm247 = vmand %vm245, %vm246
      %v248 = vld [vmem:[%s244 + $0x4] sm:$0x8]
      %v249 = vsel %vm247, 0, %v248
      %250 = vst [vmem:[%s244 + $0x4] sm:$0x8] %v249
      %v251 = vld [vmem:[%s244 + $0x18] sm:$0x8]
      %v252 = vsel %vm247, 0, %v251
      %253 = vst [vmem:[%s244 + $0x18] sm:$0x8] %v252
      %v254 = vld [vmem:[%s244 + $0x2c] sm:$0x8]
      %v255 = vsel %vm247, 0, %v254
      %256 = vst [vmem:[%s244 + $0x2c] sm:$0x8] %v255
      %v257 = vld [vmem:[%s244 + $0x40] sm:$0x8]
      %v258 = vsel %vm247, 0, %v257
      %259 = vst [vmem:[%s244 + $0x40] sm:$0x8] %v258
      %v260 = vld [vmem:[%s244 + $0x54] sm:$0x8]
      %v261 = vsel %vm247, 0, %v260
      %262 = vst [vmem:[%s244 + $0x54] sm:$0x8] %v261
      %v263 = vld [vmem:[%s244 + $0x68] sm:$0x8]
      %v264 = vsel %vm247, 0, %v263
      %265 = vst [vmem:[%s244 + $0x68] sm:$0x8] %v264
      %v266 = vld [vmem:[%s244 + $0x7c] sm:$0x8]
      %v267 = vsel %vm247, 0, %v266
      %268 = vst [vmem:[%s244 + $0x7c] sm:$0x8] %v267
      %v269 = vld [vmem:[%s244 + $0x90] sm:$0x8]
      %v270 = vsel %vm247, 0, %v269
      %271 = vst [vmem:[%s244 + $0x90] sm:$0x8] %v270
      %v272 = vld [vmem:[%s244 + $0xa4] sm:$0x8]
      %v273 = vsel %vm247, 0, %v272
      %274 = vst [vmem:[%s244 + $0xa4] sm:$0x8] %v273
      %v275 = vld [vmem:[%s244 + $0xb8] sm:$0x8]
      %v276 = vsel %vm247, 0, %v275
      %277 = vst [vmem:[%s244 + $0xb8] sm:$0x8] %v276
      %v278 = vld [vmem:[%s244 + $0xcc] sm:$0x8]
      %v279 = vsel %vm247, 0, %v278
      %280 = vst [vmem:[%s244 + $0xcc] sm:$0x8] %v279
      %v281 = vld [vmem:[%s244 + $0xe0] sm:$0x8]
      %v282 = vsel %vm247, 0, %v281
      %283 = vst [vmem:[%s244 + $0xe0] sm:$0x8] %v282
      %v284 = vld [vmem:[%s244 + $0xf4] sm:$0x8]
      %v285 = vsel %vm247, 0, %v284
      %286 = vst [vmem:[%s244 + $0xf4] sm:$0x8] %v285
      %v287 = vld [vmem:[%s244 + $0x108] sm:$0x8]
      %v288 = vsel %vm247, 0, %v287
      %289 = vst [vmem:[%s244 + $0x108] sm:$0x8] %v288
      %v290 = vld [vmem:[%s244 + $0x11c] sm:$0x8]
      %v291 = vsel %vm247, 0, %v290
      %292 = vst [vmem:[%s244 + $0x11c] sm:$0x8] %v291
      %v293 = vld [vmem:[%s244 + $0x130] sm:$0x8]
      %v294 = vsel %vm247, 0, %v293
      %295 = vst [vmem:[%s244 + $0x130] sm:$0x8] %v294
      %v296 = vld [vmem:[%s244 + $0x10] sm:$0x1]
      %v297 = vsel %vm232, 0, %v296
      %298 = vst [vmem:[%s244 + $0x10] sm:$0x1] %v297
      %v299 = vld [vmem:[%s244 + $0x24] sm:$0x1]
      %v300 = vsel %vm232, 0, %v299
      %301 = vst [vmem:[%s244 + $0x24] sm:$0x1] %v300
      %v302 = vld [vmem:[%s244 + $0x38] sm:$0x1]
      %v303 = vsel %vm232, 0, %v302
      %304 = vst [vmem:[%s244 + $0x38] sm:$0x1] %v303
      %v305 = vld [vmem:[%s244 + $0x4c] sm:$0x1]
      %v306 = vsel %vm232, 0, %v305
      %307 = vst [vmem:[%s244 + $0x4c] sm:$0x1] %v306
      %v308 = vld [vmem:[%s244 + $0x60] sm:$0x1]
      %v309 = vsel %vm232, 0, %v308
      %310 = vst [vmem:[%s244 + $0x60] sm:$0x1] %v309
      %v311 = vld [vmem:[%s244 + $0x74] sm:$0x1]
      %v312 = vsel %vm232, 0, %v311
      %313 = vst [vmem:[%s244 + $0x74] sm:$0x1] %v312
      %v314 = vld [vmem:[%s244 + $0x88] sm:$0x1]
      %v315 = vsel %vm232, 0, %v314
      %316 = vst [vmem:[%s244 + $0x88] sm:$0x1] %v315
      %v317 = vld [vmem:[%s244 + $0x9c] sm:$0x1]
      %v318 = vsel %vm232, 0, %v317
      %319 = vst [vmem:[%s244 + $0x9c] sm:$0x1] %v318
      %v320 = vld [vmem:[%s244 + $0xb0] sm:$0x1]
      %v321 = vsel %vm232, 0, %v320
      %322 = vst [vmem:[%s244 + $0xb0] sm:$0x1] %v321
      %v323 = vld [vmem:[%s244 + $0xc4] sm:$0x1]
      %v324 = vsel %vm232, 0, %v323
      %325 = vst [vmem:[%s244 + $0xc4] sm:$0x1] %v324
      %v326 = vld [vmem:[%s244 + $0xd8] sm:$0x1]
      %v327 = vsel %vm232, 0, %v326
      %328 = vst [vmem:[%s244 + $0xd8] sm:$0x1] %v327
      %v329 = vld [vmem:[%s244 + $0xec] sm:$0x1]
      %v330 = vsel %vm232, 0, %v329
      %331 = vst [vmem:[%s244 + $0xec] sm:$0x1] %v330
      %v332 = vld [vmem:[%s244 + $0x100] sm:$0x1]
      %v333 = vsel %vm232, 0, %v332
      %334 = vst [vmem:[%s244 + $0x100] sm:$0x1] %v333
      %v335 = vld [vmem:[%s244 + $0x114] sm:$0x1]
      %v336 = vsel %vm232, 0, %v335
      %337 = vst [vmem:[%s244 + $0x114] sm:$0x1] %v336
      %v338 = vld [vmem:[%s244 + $0x128] sm:$0x1]
      %v339 = vsel %vm232, 0, %v338
      %340 = vst [vmem:[%s244 + $0x128] sm:$0x1] %v339
      %v341 = vld [vmem:[%s244 + $0x13c] sm:$0x1]
      %v342 = vsel %vm232, 0, %v341
      %343 = vst [vmem:[%s244 + $0x13c] sm:$0x1] %v342
      %v344 = vld [vmem:[%s219] sm:$0xff]
      %v345 = vld [vmem:[%s219 + $0x8] sm:$0xff]
      %v346 = vld [vmem:[%s219 + $0x10] sm:$0xff]
      %v347 = vld [vmem:[%s219 + $0x18] sm:$0xff]
      %v348 = vld [vmem:[%s219 + $0x20] sm:$0xff]
      %v349 = vld [vmem:[%s219 + $0x28] sm:$0xff]
      %v350 = vld [vmem:[%s219 + $0x30] sm:$0xff]
      %v351 = vld [vmem:[%s219 + $0x38] sm:$0xff]
      %v352 = vld [vmem:[%s219 + $0x40] sm:$0xff]
      %v353 = vld [vmem:[%s219 + $0x48] sm:$0xff]
      %v354 = vld [vmem:[%s219 + $0x50] sm:$0xff]
      %v355 = vld [vmem:[%s219 + $0x58] sm:$0xff]
      %v356 = vld [vmem:[%s219 + $0x60] sm:$0xff]
      %v357 = vld [vmem:[%s219 + $0x68] sm:$0xff]
      %v358 = vld [vmem:[%s219 + $0x70] sm:$0xff]
      %v359 = vld [vmem:[%s219 + $0x78] sm:$0xff]
      %v360 = vld [vmem:[%s219 + $0x80] sm:$0xff]
      %v361 = vld [vmem:[%s219 + $0x88] sm:$0xff]
      %v362 = vld [vmem:[%s219 + $0x90] sm:$0xff]
      %v363 = vld [vmem:[%s219 + $0x98] sm:$0xff]
      %v364 = vld [vmem:[%s219 + $0xa0] sm:$0xff]
      %v365 = vld [vmem:[%s219 + $0xa8] sm:$0xff]
      %v366 = vld [vmem:[%s219 + $0xb0] sm:$0xff]
      %v367 = vld [vmem:[%s219 + $0xb8] sm:$0xff]
      %v368 = vld [vmem:[%s219 + $0xc0] sm:$0xff]
      %v369 = vld [vmem:[%s219 + $0xc8] sm:$0xff]
      %v370 = vld [vmem:[%s219 + $0xd0] sm:$0xff]
      %v371 = vld [vmem:[%s219 + $0xd8] sm:$0xff]
      %v372 = vld [vmem:[%s219 + $0xe0] sm:$0xff]
      %v373 = vld [vmem:[%s219 + $0xe8] sm:$0xff]
      %v374 = vld [vmem:[%s219 + $0xf0] sm:$0xff]
      %v375 = vld [vmem:[%s219 + $0xf8] sm:$0xff]
      %v376 = vpack.c.bf16 %v345, %v344
      %v377 = vpack.c.bf16 %v347, %v346
      %v378 = vpack.c.bf16 %v349, %v348
      %v379 = vpack.c.bf16 %v351, %v350
      %v380 = vpack.c.bf16 %v353, %v352
      %v381 = vpack.c.bf16 %v355, %v354
      %v382 = vpack.c.bf16 %v357, %v356
      %v383 = vpack.c.bf16 %v359, %v358
      %v384 = vpack.c.bf16 %v361, %v360
      %v385 = vpack.c.bf16 %v363, %v362
      %v386 = vpack.c.bf16 %v365, %v364
      %v387 = vpack.c.bf16 %v367, %v366
      %v388 = vpack.c.bf16 %v369, %v368
      %v389 = vpack.c.bf16 %v371, %v370
      %v390 = vpack.c.bf16 %v373, %v372
      %v391 = vpack.c.bf16 %v375, %v374
      %v408 = vunpack.c.l.b16 %v376
      %v409 = vunpack.c.h.b16 %v376
      %v410 = vunpack.c.l.b16 %v377
      %v411 = vunpack.c.h.b16 %v377
      %v412 = vunpack.c.l.b16 %v378
      %v413 = vunpack.c.h.b16 %v378
      %v414 = vunpack.c.l.b16 %v379
      %v415 = vunpack.c.h.b16 %v379
      %v416 = vunpack.c.l.b16 %v380
      %v417 = vunpack.c.h.b16 %v380
      %v418 = vunpack.c.l.b16 %v381
      %v419 = vunpack.c.h.b16 %v381
      %v420 = vunpack.c.l.b16 %v382
      %v421 = vunpack.c.h.b16 %v382
      %v422 = vunpack.c.l.b16 %v383
      %v423 = vunpack.c.h.b16 %v383
      %v424 = vunpack.c.l.b16 %v384
      %v425 = vunpack.c.h.b16 %v384
      %v426 = vunpack.c.l.b16 %v385
      %v427 = vunpack.c.h.b16 %v385
      %v428 = vunpack.c.l.b16 %v386
      %v429 = vunpack.c.h.b16 %v386
      %v430 = vunpack.c.l.b16 %v387
      %v431 = vunpack.c.h.b16 %v387
      %v432 = vunpack.c.l.b16 %v388
      %v433 = vunpack.c.h.b16 %v388
      %v434 = vunpack.c.l.b16 %v389
      %v435 = vunpack.c.h.b16 %v389
      %v436 = vunpack.c.l.b16 %v390
      %v437 = vunpack.c.h.b16 %v390
      %v438 = vunpack.c.l.b16 %v391
      %v439 = vunpack.c.h.b16 %v391
      %v440 = vpack.c.b16 %v408, %v408
      %v441 = vpack.c.b16 %v409, %v409
      %v442 = vpack.c.b16 %v410, %v410
      %v443 = vpack.c.b16 %v411, %v411
      %v444 = vpack.c.b16 %v412, %v412
      %v445 = vpack.c.b16 %v413, %v413
      %v446 = vpack.c.b16 %v414, %v414
      %v447 = vpack.c.b16 %v415, %v415
      %v448 = vpack.c.b16 %v416, %v416
      %v449 = vpack.c.b16 %v417, %v417
      %v450 = vpack.c.b16 %v418, %v418
      %v451 = vpack.c.b16 %v419, %v419
      %v452 = vpack.c.b16 %v420, %v420
      %v453 = vpack.c.b16 %v421, %v421
      %v454 = vpack.c.b16 %v422, %v422
      %v455 = vpack.c.b16 %v423, %v423
      %v456 = vpack.c.b16 %v424, %v424
      %v457 = vpack.c.b16 %v425, %v425
      %v458 = vpack.c.b16 %v426, %v426
      %v459 = vpack.c.b16 %v427, %v427
      %v460 = vpack.c.b16 %v428, %v428
      %v461 = vpack.c.b16 %v429, %v429
      %v462 = vpack.c.b16 %v430, %v430
      %v463 = vpack.c.b16 %v431, %v431
      %v464 = vpack.c.b16 %v432, %v432
      %v465 = vpack.c.b16 %v433, %v433
      %v466 = vpack.c.b16 %v434, %v434
      %v467 = vpack.c.b16 %v435, %v435
      %v468 = vpack.c.b16 %v436, %v436
      %v469 = vpack.c.b16 %v437, %v437
      %v470 = vpack.c.b16 %v438, %v438
      %v471 = vpack.c.b16 %v439, %v439
      %504 = vst [vmem:[%s244 + $0x8] sm:$0xf] %v440
      %505 = vst [vmem:[%s244 + $0xc] sm:$0xf] %v441
      %506 = vst [vmem:[%s244 + $0x1c] sm:$0xf] %v442
      %507 = vst [vmem:[%s244 + $0x20] sm:$0xf] %v443
      %508 = vst [vmem:[%s244 + $0x30] sm:$0xf] %v444
      %509 = vst [vmem:[%s244 + $0x34] sm:$0xf] %v445
      %510 = vst [vmem:[%s244 + $0x44] sm:$0xf] %v446
      %511 = vst [vmem:[%s244 + $0x48] sm:$0xf] %v447
      %512 = vst [vmem:[%s244 + $0x58] sm:$0xf] %v448
      %513 = vst [vmem:[%s244 + $0x5c] sm:$0xf] %v449
      %514 = vst [vmem:[%s244 + $0x6c] sm:$0xf] %v450
      %515 = vst [vmem:[%s244 + $0x70] sm:$0xf] %v451
      %516 = vst [vmem:[%s244 + $0x80] sm:$0xf] %v452
      %517 = vst [vmem:[%s244 + $0x84] sm:$0xf] %v453
      %518 = vst [vmem:[%s244 + $0x94] sm:$0xf] %v454
      %519 = vst [vmem:[%s244 + $0x98] sm:$0xf] %v455
      %520 = vst [vmem:[%s244 + $0xa8] sm:$0xf] %v456
      %521 = vst [vmem:[%s244 + $0xac] sm:$0xf] %v457
      %522 = vst [vmem:[%s244 + $0xbc] sm:$0xf] %v458
      %523 = vst [vmem:[%s244 + $0xc0] sm:$0xf] %v459
      %524 = vst [vmem:[%s244 + $0xd0] sm:$0xf] %v460
      %525 = vst [vmem:[%s244 + $0xd4] sm:$0xf] %v461
      %526 = vst [vmem:[%s244 + $0xe4] sm:$0xf] %v462
      %527 = vst [vmem:[%s244 + $0xe8] sm:$0xf] %v463
      %528 = vst [vmem:[%s244 + $0xf8] sm:$0xf] %v464
      %529 = vst [vmem:[%s244 + $0xfc] sm:$0xf] %v465
      %530 = vst [vmem:[%s244 + $0x10c] sm:$0xf] %v466
      %531 = vst [vmem:[%s244 + $0x110] sm:$0xf] %v467
      %532 = vst [vmem:[%s244 + $0x120] sm:$0xf] %v468
      %533 = vst [vmem:[%s244 + $0x124] sm:$0xf] %v469
      %534 = vst [vmem:[%s244 + $0x134] sm:$0xf] %v470
      %535 = vst [vmem:[%s244 + $0x138] sm:$0xf] %v471
      %v536 = vld [vmem:[#allocation2 + $0x4] sm:$0x8]
      %v537 = vld [vmem:[#allocation2 + $0x8] sm:$0xf]
      %v538 = vld [vmem:[#allocation2 + $0xc] sm:$0xf]
      %v539 = vld [vmem:[#allocation2 + $0x18] sm:$0x8]
      %v540 = vld [vmem:[#allocation2 + $0x1c] sm:$0xf]
      %v541 = vld [vmem:[#allocation2 + $0x20] sm:$0xf]
      %v542 = vld [vmem:[#allocation2 + $0x2c] sm:$0x8]
      %v543 = vld [vmem:[#allocation2 + $0x30] sm:$0xf]
      %v544 = vld [vmem:[#allocation2 + $0x34] sm:$0xf]
      %v545 = vld [vmem:[#allocation2 + $0x40] sm:$0x8]
      %v546 = vld [vmem:[#allocation2 + $0x44] sm:$0xf]
      %v547 = vld [vmem:[#allocation2 + $0x48] sm:$0xf]
      %v548 = vld [vmem:[#allocation2 + $0x54] sm:$0x8]
      %v549 = vld [vmem:[#allocation2 + $0x58] sm:$0xf]
      %v550 = vld [vmem:[#allocation2 + $0x5c] sm:$0xf]
      %v551 = vld [vmem:[#allocation2 + $0x68] sm:$0x8]
      %v552 = vld [vmem:[#allocation2 + $0x6c] sm:$0xf]
      %v553 = vld [vmem:[#allocation2 + $0x70] sm:$0xf]
      %v554 = vld [vmem:[#allocation2 + $0x7c] sm:$0x8]
      %v555 = vld [vmem:[#allocation2 + $0x80] sm:$0xf]
      %v556 = vld [vmem:[#allocation2 + $0x84] sm:$0xf]
      %v557 = vld [vmem:[#allocation2 + $0x90] sm:$0x8]
      %v558 = vld [vmem:[#allocation2 + $0x94] sm:$0xf]
      %v559 = vld [vmem:[#allocation2 + $0x98] sm:$0xf]
      %v560 = vld [vmem:[#allocation2 + $0xa4] sm:$0x8]
      %v561 = vld [vmem:[#allocation2 + $0xa8] sm:$0xf]
      %v562 = vld [vmem:[#allocation2 + $0xac] sm:$0xf]
      %v563 = vld [vmem:[#allocation2 + $0xb8] sm:$0x8]
      %v564 = vld [vmem:[#allocation2 + $0xbc] sm:$0xf]
      %v565 = vld [vmem:[#allocation2 + $0xc0] sm:$0xf]
      %v566 = vld [vmem:[#allocation2 + $0xcc] sm:$0x8]
      %v567 = vld [vmem:[#allocation2 + $0xd0] sm:$0xf]
      %v568 = vld [vmem:[#allocation2 + $0xd4] sm:$0xf]
      %v569 = vld [vmem:[#allocation2 + $0xe0] sm:$0x8]
      %v570 = vld [vmem:[#allocation2 + $0xe4] sm:$0xf]
      %v571 = vld [vmem:[#allocation2 + $0xe8] sm:$0xf]
      %v572 = vld [vmem:[#allocation2 + $0xf4] sm:$0x8]
      %v573 = vld [vmem:[#allocation2 + $0xf8] sm:$0xf]
      %v574 = vld [vmem:[#allocation2 + $0xfc] sm:$0xf]
      %v575 = vld [vmem:[#allocation2 + $0x108] sm:$0x8]
      %v576 = vld [vmem:[#allocation2 + $0x10c] sm:$0xf]
      %v577 = vld [vmem:[#allocation2 + $0x110] sm:$0xf]
      %v578 = vld [vmem:[#allocation2 + $0x11c] sm:$0x8]
      %v579 = vld [vmem:[#allocation2 + $0x120] sm:$0xf]
      %v580 = vld [vmem:[#allocation2 + $0x124] sm:$0xf]
      %v581 = vld [vmem:[#allocation2 + $0x130] sm:$0x8]
      %v582 = vld [vmem:[#allocation2 + $0x134] sm:$0xf]
      %v583 = vld [vmem:[#allocation2 + $0x138] sm:$0xf]
      %vm584 = vsmask.f32 4368
      %vm585 = vmor %vm231, %vm584
      %v587 = vshrl.u32 %v536, 16
      %v589 = vrot.slane %v587, 7
      %v590 = vrot.slane %v589, 4
      %v592 = vshrl.u32 %v537, 16
      %v594 = vrot.slane %v592, 7
      %v595 = vshll.u32 %v537, 16
      %v597 = vor.u32 %v594, %v595
      %v598 = vsel %vm585, %v590, %v597
      %v599 = vrot.slane %v594, 4
      %v601 = vshrl.u32 %v538, 16
      %v603 = vrot.slane %v601, 7
      %v604 = vshll.u32 %v538, 16
      %v606 = vor.u32 %v603, %v604
      %v607 = vsel %vm585, %v599, %v606
      %v609 = vshrl.u32 %v539, 16
      %v611 = vrot.slane %v609, 7
      %v612 = vrot.slane %v611, 4
      %v614 = vshrl.u32 %v540, 16
      %v616 = vrot.slane %v614, 7
      %v617 = vshll.u32 %v540, 16
      %v619 = vor.u32 %v616, %v617
      %v620 = vsel %vm585, %v612, %v619
      %v621 = vrot.slane %v616, 4
      %v623 = vshrl.u32 %v541, 16
      %v625 = vrot.slane %v623, 7
      %v626 = vshll.u32 %v541, 16
      %v628 = vor.u32 %v625, %v626
      %v629 = vsel %vm585, %v621, %v628
      %v631 = vshrl.u32 %v542, 16
      %v633 = vrot.slane %v631, 7
      %v634 = vrot.slane %v633, 4
      %v636 = vshrl.u32 %v543, 16
      %v638 = vrot.slane %v636, 7
      %v639 = vshll.u32 %v543, 16
      %v641 = vor.u32 %v638, %v639
      %v642 = vsel %vm585, %v634, %v641
      %v643 = vrot.slane %v638, 4
      %v645 = vshrl.u32 %v544, 16
      %v647 = vrot.slane %v645, 7
      %v648 = vshll.u32 %v544, 16
      %v650 = vor.u32 %v647, %v648
      %v651 = vsel %vm585, %v643, %v650
      %v653 = vshrl.u32 %v545, 16
      %v655 = vrot.slane %v653, 7
      %v656 = vrot.slane %v655, 4
      %v658 = vshrl.u32 %v546, 16
      %v660 = vrot.slane %v658, 7
      %v661 = vshll.u32 %v546, 16
      %v663 = vor.u32 %v660, %v661
      %v664 = vsel %vm585, %v656, %v663
      %v665 = vrot.slane %v660, 4
      %v667 = vshrl.u32 %v547, 16
      %v669 = vrot.slane %v667, 7
      %v670 = vshll.u32 %v547, 16
      %v672 = vor.u32 %v669, %v670
      %v673 = vsel %vm585, %v665, %v672
      %v675 = vshrl.u32 %v548, 16
      %v677 = vrot.slane %v675, 7
      %v678 = vrot.slane %v677, 4
      %v680 = vshrl.u32 %v549, 16
      %v682 = vrot.slane %v680, 7
      %v683 = vshll.u32 %v549, 16
      %v685 = vor.u32 %v682, %v683
      %v686 = vsel %vm585, %v678, %v685
      %v687 = vrot.slane %v682, 4
      %v689 = vshrl.u32 %v550, 16
      %v691 = vrot.slane %v689, 7
      %v692 = vshll.u32 %v550, 16
      %v694 = vor.u32 %v691, %v692
      %v695 = vsel %vm585, %v687, %v694
      %v697 = vshrl.u32 %v551, 16
      %v699 = vrot.slane %v697, 7
      %v700 = vrot.slane %v699, 4
      %v702 = vshrl.u32 %v552, 16
      %v704 = vrot.slane %v702, 7
      %v705 = vshll.u32 %v552, 16
      %v707 = vor.u32 %v704, %v705
      %v708 = vsel %vm585, %v700, %v707
      %v709 = vrot.slane %v704, 4
      %v711 = vshrl.u32 %v553, 16
      %v713 = vrot.slane %v711, 7
      %v714 = vshll.u32 %v553, 16
      %v716 = vor.u32 %v713, %v714
      %v717 = vsel %vm585, %v709, %v716
      %v719 = vshrl.u32 %v554, 16
      %v721 = vrot.slane %v719, 7
      %v722 = vrot.slane %v721, 4
      %v724 = vshrl.u32 %v555, 16
      %v726 = vrot.slane %v724, 7
      %v727 = vshll.u32 %v555, 16
      %v729 = vor.u32 %v726, %v727
      %v730 = vsel %vm585, %v722, %v729
      %v731 = vrot.slane %v726, 4
      %v733 = vshrl.u32 %v556, 16
      %v735 = vrot.slane %v733, 7
      %v736 = vshll.u32 %v556, 16
      %v738 = vor.u32 %v735, %v736
      %v739 = vsel %vm585, %v731, %v738
      %v741 = vshrl.u32 %v557, 16
      %v743 = vrot.slane %v741, 7
      %v744 = vrot.slane %v743, 4
      %v746 = vshrl.u32 %v558, 16
      %v748 = vrot.slane %v746, 7
      %v749 = vshll.u32 %v558, 16
      %v751 = vor.u32 %v748, %v749
      %v752 = vsel %vm585, %v744, %v751
      %v753 = vrot.slane %v748, 4
      %v755 = vshrl.u32 %v559, 16
      %v757 = vrot.slane %v755, 7
      %v758 = vshll.u32 %v559, 16
      %v760 = vor.u32 %v757, %v758
      %v761 = vsel %vm585, %v753, %v760
      %v763 = vshrl.u32 %v560, 16
      %v765 = vrot.slane %v763, 7
      %v766 = vrot.slane %v765, 4
      %v768 = vshrl.u32 %v561, 16
      %v770 = vrot.slane %v768, 7
      %v771 = vshll.u32 %v561, 16
      %v773 = vor.u32 %v770, %v771
      %v774 = vsel %vm585, %v766, %v773
      %v775 = vrot.slane %v770, 4
      %v777 = vshrl.u32 %v562, 16
      %v779 = vrot.slane %v777, 7
      %v780 = vshll.u32 %v562, 16
      %v782 = vor.u32 %v779, %v780
      %v783 = vsel %vm585, %v775, %v782
      %v785 = vshrl.u32 %v563, 16
      %v787 = vrot.slane %v785, 7
      %v788 = vrot.slane %v787, 4
      %v790 = vshrl.u32 %v564, 16
      %v792 = vrot.slane %v790, 7
      %v793 = vshll.u32 %v564, 16
      %v795 = vor.u32 %v792, %v793
      %v796 = vsel %vm585, %v788, %v795
      %v797 = vrot.slane %v792, 4
      %v799 = vshrl.u32 %v565, 16
      %v801 = vrot.slane %v799, 7
      %v802 = vshll.u32 %v565, 16
      %v804 = vor.u32 %v801, %v802
      %v805 = vsel %vm585, %v797, %v804
      %v807 = vshrl.u32 %v566, 16
      %v809 = vrot.slane %v807, 7
      %v810 = vrot.slane %v809, 4
      %v812 = vshrl.u32 %v567, 16
      %v814 = vrot.slane %v812, 7
      %v815 = vshll.u32 %v567, 16
      %v817 = vor.u32 %v814, %v815
      %v818 = vsel %vm585, %v810, %v817
      %v819 = vrot.slane %v814, 4
      %v821 = vshrl.u32 %v568, 16
      %v823 = vrot.slane %v821, 7
      %v824 = vshll.u32 %v568, 16
      %v826 = vor.u32 %v823, %v824
      %v827 = vsel %vm585, %v819, %v826
      %v829 = vshrl.u32 %v569, 16
      %v831 = vrot.slane %v829, 7
      %v832 = vrot.slane %v831, 4
      %v834 = vshrl.u32 %v570, 16
      %v836 = vrot.slane %v834, 7
      %v837 = vshll.u32 %v570, 16
      %v839 = vor.u32 %v836, %v837
      %v840 = vsel %vm585, %v832, %v839
      %v841 = vrot.slane %v836, 4
      %v843 = vshrl.u32 %v571, 16
      %v845 = vrot.slane %v843, 7
      %v846 = vshll.u32 %v571, 16
      %v848 = vor.u32 %v845, %v846
      %v849 = vsel %vm585, %v841, %v848
      %v851 = vshrl.u32 %v572, 16
      %v853 = vrot.slane %v851, 7
      %v854 = vrot.slane %v853, 4
      %v856 = vshrl.u32 %v573, 16
      %v858 = vrot.slane %v856, 7
      %v859 = vshll.u32 %v573, 16
      %v861 = vor.u32 %v858, %v859
      %v862 = vsel %vm585, %v854, %v861
      %v863 = vrot.slane %v858, 4
      %v865 = vshrl.u32 %v574, 16
      %v867 = vrot.slane %v865, 7
      %v868 = vshll.u32 %v574, 16
      %v870 = vor.u32 %v867, %v868
      %v871 = vsel %vm585, %v863, %v870
      %v873 = vshrl.u32 %v575, 16
      %v875 = vrot.slane %v873, 7
      %v876 = vrot.slane %v875, 4
      %v878 = vshrl.u32 %v576, 16
      %v880 = vrot.slane %v878, 7
      %v881 = vshll.u32 %v576, 16
      %v883 = vor.u32 %v880, %v881
      %v884 = vsel %vm585, %v876, %v883
      %v885 = vrot.slane %v880, 4
      %v887 = vshrl.u32 %v577, 16
      %v889 = vrot.slane %v887, 7
      %v890 = vshll.u32 %v577, 16
      %v892 = vor.u32 %v889, %v890
      %v893 = vsel %vm585, %v885, %v892
      %v895 = vshrl.u32 %v578, 16
      %v897 = vrot.slane %v895, 7
      %v898 = vrot.slane %v897, 4
      %v900 = vshrl.u32 %v579, 16
      %v902 = vrot.slane %v900, 7
      %v903 = vshll.u32 %v579, 16
      %v905 = vor.u32 %v902, %v903
      %v906 = vsel %vm585, %v898, %v905
      %v907 = vrot.slane %v902, 4
      %v909 = vshrl.u32 %v580, 16
      %v911 = vrot.slane %v909, 7
      %v912 = vshll.u32 %v580, 16
      %v914 = vor.u32 %v911, %v912
      %v915 = vsel %vm585, %v907, %v914
      %v917 = vshrl.u32 %v581, 16
      %v919 = vrot.slane %v917, 7
      %v920 = vrot.slane %v919, 4
      %v922 = vshrl.u32 %v582, 16
      %v924 = vrot.slane %v922, 7
      %v925 = vshll.u32 %v582, 16
      %v927 = vor.u32 %v924, %v925
      %v928 = vsel %vm585, %v920, %v927
      %v929 = vrot.slane %v924, 4
      %v931 = vshrl.u32 %v583, 16
      %v933 = vrot.slane %v931, 7
      %v934 = vshll.u32 %v583, 16
      %v936 = vor.u32 %v933, %v934
      %v937 = vsel %vm585, %v929, %v936
      %v938 = vld [vmem:[%s1] sm:$0xf]
      %v939 = vld [vmem:[%s1 + $0x4] sm:$0xf]
      %v940 = vld [vmem:[%s1 + $0x8] sm:$0xf]
      %v941 = vld [vmem:[%s1 + $0xc] sm:$0xf]
      %v942 = vld [vmem:[%s1 + $0x10] sm:$0xf]
      %v943 = vld [vmem:[%s1 + $0x14] sm:$0xf]
      %v944 = vld [vmem:[%s1 + $0x18] sm:$0xf]
      %v945 = vld [vmem:[%s1 + $0x1c] sm:$0xf]
      %v946 = vld [vmem:[%s1 + $0x20] sm:$0xf]
      %v947 = vld [vmem:[%s1 + $0x24] sm:$0xf]
      %v948 = vld [vmem:[%s1 + $0x28] sm:$0xf]
      %v949 = vld [vmem:[%s1 + $0x2c] sm:$0xf]
      %v950 = vld [vmem:[%s1 + $0x30] sm:$0xf]
      %v951 = vld [vmem:[%s1 + $0x34] sm:$0xf]
      %v952 = vld [vmem:[%s1 + $0x38] sm:$0xf]
      %v953 = vld [vmem:[%s1 + $0x3c] sm:$0xf]
      %s954 = scalar_lea.vmem %s1, 64
      %v955 = vld [vmem:[%s954] sm:$0xf]
      %v956 = vld [vmem:[%s954 + $0x4] sm:$0xf]
      %v957 = vld [vmem:[%s954 + $0x8] sm:$0xf]
      %v958 = vld [vmem:[%s954 + $0xc] sm:$0xf]
      %v959 = vld [vmem:[%s954 + $0x10] sm:$0xf]
      %v960 = vld [vmem:[%s954 + $0x14] sm:$0xf]
      %v961 = vld [vmem:[%s954 + $0x18] sm:$0xf]
      %v962 = vld [vmem:[%s954 + $0x1c] sm:$0xf]
      %v963 = vld [vmem:[%s954 + $0x20] sm:$0xf]
      %v964 = vld [vmem:[%s954 + $0x24] sm:$0xf]
      %v965 = vld [vmem:[%s954 + $0x28] sm:$0xf]
      %v966 = vld [vmem:[%s954 + $0x2c] sm:$0xf]
      %v967 = vld [vmem:[%s954 + $0x30] sm:$0xf]
      %v968 = vld [vmem:[%s954 + $0x34] sm:$0xf]
      %v969 = vld [vmem:[%s954 + $0x38] sm:$0xf]
      %v970 = vld [vmem:[%s954 + $0x3c] sm:$0xf]
      %v1003 = vunpack.c.l.b16 %v537
      %v1004 = vunpack.c.l.b16 %v538
      %v1005 = vunpack.c.l.b16 %v540
      %v1006 = vunpack.c.l.b16 %v541
      %v1007 = vunpack.c.l.b16 %v543
      %v1008 = vunpack.c.l.b16 %v544
      %v1009 = vunpack.c.l.b16 %v546
      %v1010 = vunpack.c.l.b16 %v547
      %v1011 = vunpack.c.l.b16 %v549
      %v1012 = vunpack.c.l.b16 %v550
      %v1013 = vunpack.c.l.b16 %v552
      %v1014 = vunpack.c.l.b16 %v553
      %v1015 = vunpack.c.l.b16 %v555
      %v1016 = vunpack.c.l.b16 %v556
      %v1017 = vunpack.c.l.b16 %v558
      %v1018 = vunpack.c.l.b16 %v559
      %v1019 = vunpack.c.l.b16 %v561
      %v1020 = vunpack.c.l.b16 %v562
      %v1021 = vunpack.c.l.b16 %v564
      %v1022 = vunpack.c.l.b16 %v565
      %v1023 = vunpack.c.l.b16 %v567
      %v1024 = vunpack.c.l.b16 %v568
      %v1025 = vunpack.c.l.b16 %v570
      %v1026 = vunpack.c.l.b16 %v571
      %v1027 = vunpack.c.l.b16 %v573
      %v1028 = vunpack.c.l.b16 %v574
      %v1029 = vunpack.c.l.b16 %v576
      %v1030 = vunpack.c.l.b16 %v577
      %v1031 = vunpack.c.l.b16 %v579
      %v1032 = vunpack.c.l.b16 %v580
      %v1033 = vunpack.c.l.b16 %v582
      %v1034 = vunpack.c.l.b16 %v583
      %v1035 = vpack.c.b16 %v1004, %v1003
      %v1036 = vpack.c.b16 %v1006, %v1005
      %v1037 = vpack.c.b16 %v1008, %v1007
      %v1038 = vpack.c.b16 %v1010, %v1009
      %v1039 = vpack.c.b16 %v1012, %v1011
      %v1040 = vpack.c.b16 %v1014, %v1013
      %v1041 = vpack.c.b16 %v1016, %v1015
      %v1042 = vpack.c.b16 %v1018, %v1017
      %v1043 = vpack.c.b16 %v1020, %v1019
      %v1044 = vpack.c.b16 %v1022, %v1021
      %v1045 = vpack.c.b16 %v1024, %v1023
      %v1046 = vpack.c.b16 %v1026, %v1025
      %v1047 = vpack.c.b16 %v1028, %v1027
      %v1048 = vpack.c.b16 %v1030, %v1029
      %v1049 = vpack.c.b16 %v1032, %v1031
      %v1050 = vpack.c.b16 %v1034, %v1033
      %v1083 = vunpack.c.l.b16 %v955
      %v1084 = vunpack.c.l.b16 %v956
      %v1085 = vunpack.c.l.b16 %v957
      %v1086 = vunpack.c.l.b16 %v958
      %v1087 = vunpack.c.l.b16 %v959
      %v1088 = vunpack.c.l.b16 %v960
      %v1089 = vunpack.c.l.b16 %v961
      %v1090 = vunpack.c.l.b16 %v962
      %v1091 = vunpack.c.l.b16 %v963
      %v1092 = vunpack.c.l.b16 %v964
      %v1093 = vunpack.c.l.b16 %v965
      %v1094 = vunpack.c.l.b16 %v966
      %v1095 = vunpack.c.l.b16 %v967
      %v1096 = vunpack.c.l.b16 %v968
      %v1097 = vunpack.c.l.b16 %v969
      %v1098 = vunpack.c.l.b16 %v970
      %v1099 = vpack.c.b16 %v1084, %v1083
      %v1100 = vpack.c.b16 %v1086, %v1085
      %v1101 = vpack.c.b16 %v1088, %v1087
      %v1102 = vpack.c.b16 %v1090, %v1089
      %v1103 = vpack.c.b16 %v1092, %v1091
      %v1104 = vpack.c.b16 %v1094, %v1093
      %v1105 = vpack.c.b16 %v1096, %v1095
      %v1106 = vpack.c.b16 %v1098, %v1097
      %1115 = vmatprep.subr.bf16.mxu0 0
      %1116 = vmatpush1.bf16.msra.mxu0 %v1099
      %1117 = vmatprep.subr.bf16.mxu0 0
      %1118 = vmatpush1.bf16.msra.mxu0 %v1100
      %1119 = vmatprep.subr.bf16.mxu0 0
      %1120 = vmatpush1.bf16.msra.mxu0 %v1101
      %1121 = vmatprep.subr.bf16.mxu0 0
      %1122 = vmatpush1.bf16.msra.mxu0 %v1102
      %1123 = vmatprep.subr.bf16.mxu0 0
      %1124 = vmatpush1.bf16.msra.mxu0 %v1103
      %1125 = vmatprep.subr.bf16.mxu0 0
      %1126 = vmatpush1.bf16.msra.mxu0 %v1104
      %1127 = vmatprep.subr.bf16.mxu0 0
      %1128 = vmatpush1.bf16.msra.mxu0 %v1105
      %1129 = vmatprep.subr.bf16.mxu0 0
      %1130 = vmatpush1.bf16.msra.mxu0 %v1106
      %1131 = vmatprep.subr.bf16.mxu0 0
      %1132 = vmatpush1.bf16.msra.mxu0 0
      %1133 = vmatprep.subr.bf16.mxu0 0
      %1134 = vmatpush1.bf16.msra.mxu0 0
      %1135 = vmatprep.subr.bf16.mxu0 0
      %1136 = vmatpush1.bf16.msra.mxu0 0
      %1137 = vmatprep.subr.bf16.mxu0 0
      %1138 = vmatpush1.bf16.msra.mxu0 0
      %1139 = vmatprep.subr.bf16.mxu0 0
      %1140 = vmatpush1.bf16.msra.mxu0 0
      %1141 = vmatprep.subr.bf16.mxu0 0
      %1142 = vmatpush1.bf16.msra.mxu0 0
      %1143 = vmatprep.subr.bf16.mxu0 0
      %1144 = vmatpush1.bf16.msra.mxu0 0
      %1145 = vmatprep.subr.bf16.mxu0 0
      %1146 = vmatpush1.bf16.msra.mxu0 0
      %1147 = vmatprep.mubr.bf16.mxu0 0
      %1148 = vmatmul.mubr.bf16.gmra.mrb[0].mxu0 %v1035
      %v1149 = vpop.f32.mrb[0].mxu0
      %v1150 = vadd.f32 0.0, %v1149
      %v1151 = vpop.f32.mrb[0].mxu0
      %v1152 = vpop.f32.mrb[0].mxu0
      %v1153 = vadd.f32 0.0, %v1152
      %v1154 = vpop.f32.mrb[0].mxu0
      %1155 = vmatprep.mubr.bf16.mxu0 0
      %1156 = vmatmul.mubr.bf16.gmra.mrb[0].mxu0 %v1036
      %v1157 = vpop.f32.mrb[0].mxu0
      %v1158 = vadd.f32 0.0, %v1157
      %v1159 = vpop.f32.mrb[0].mxu0
      %v1160 = vpop.f32.mrb[0].mxu0
      %v1161 = vadd.f32 0.0, %v1160
      %v1162 = vpop.f32.mrb[0].mxu0
      %1163 = vmatprep.mubr.bf16.mxu0 0
      %1164 = vmatmul.mubr.bf16.gmra.mrb[0].mxu0 %v1037
      %v1165 = vpop.f32.mrb[0].mxu0
      %v1166 = vadd.f32 0.0, %v1165
      %v1167 = vpop.f32.mrb[0].mxu0
      %v1168 = vpop.f32.mrb[0].mxu0
      %v1169 = vadd.f32 0.0, %v1168
      %v1170 = vpop.f32.mrb[0].mxu0
      %1171 = vmatprep.mubr.bf16.mxu0 0
      %1172 = vmatmul.mubr.bf16.gmra.mrb[0].mxu0 %v1038
      %v1173 = vpop.f32.mrb[0].mxu0
      %v1174 = vadd.f32 0.0, %v1173
      %v1175 = vpop.f32.mrb[0].mxu0
      %v1176 = vpop.f32.mrb[0].mxu0
      %v1177 = vadd.f32 0.0, %v1176
      %v1178 = vpop.f32.mrb[0].mxu0
      %1179 = vmatprep.mubr.bf16.mxu0 0
      %1180 = vmatmul.mubr.bf16.gmra.mrb[0].mxu0 %v1039
      %v1181 = vpop.f32.mrb[0].mxu0
      %v1182 = vadd.f32 0.0, %v1181
      %v1183 = vpop.f32.mrb[0].mxu0
      %v1184 = vpop.f32.mrb[0].mxu0
      %v1185 = vadd.f32 0.0, %v1184
      %v1186 = vpop.f32.mrb[0].mxu0
      %1187 = vmatprep.mubr.bf16.mxu0 0
      %1188 = vmatmul.mubr.bf16.gmra.mrb[0].mxu0 %v1040
      %v1189 = vpop.f32.mrb[0].mxu0
      %v1190 = vadd.f32 0.0, %v1189
      %v1191 = vpop.f32.mrb[0].mxu0
      %v1192 = vpop.f32.mrb[0].mxu0
      %v1193 = vadd.f32 0.0, %v1192
      %v1194 = vpop.f32.mrb[0].mxu0
      %1195 = vmatprep.mubr.bf16.mxu0 0
      %1196 = vmatmul.mubr.bf16.gmra.mrb[0].mxu0 %v1041
      %v1197 = vpop.f32.mrb[0].mxu0
      %v1198 = vadd.f32 0.0, %v1197
      %v1199 = vpop.f32.mrb[0].mxu0
      %v1200 = vpop.f32.mrb[0].mxu0
      %v1201 = vadd.f32 0.0, %v1200
      %v1202 = vpop.f32.mrb[0].mxu0
      %1203 = vmatprep.mubr.bf16.mxu0 0
      %1204 = vmatmul.mubr.bf16.gmra.mrb[0].mxu0 %v1042
      %v1205 = vpop.f32.mrb[0].mxu0
      %v1206 = vadd.f32 0.0, %v1205
      %v1207 = vpop.f32.mrb[0].mxu0
      %v1208 = vpop.f32.mrb[0].mxu0
      %v1209 = vadd.f32 0.0, %v1208
      %v1210 = vpop.f32.mrb[0].mxu0
      %1211 = vmatprep.mubr.bf16.mxu0 0
      %1212 = vmatmul.mubr.bf16.gmra.mrb[0].mxu0 %v1043
      %v1213 = vpop.f32.mrb[0].mxu0
      %v1214 = vadd.f32 0.0, %v1213
      %v1215 = vpop.f32.mrb[0].mxu0
      %v1216 = vpop.f32.mrb[0].mxu0
      %v1217 = vadd.f32 0.0, %v1216
      %v1218 = vpop.f32.mrb[0].mxu0
      %1219 = vmatprep.mubr.bf16.mxu0 0
      %1220 = vmatmul.mubr.bf16.gmra.mrb[0].mxu0 %v1044
      %v1221 = vpop.f32.mrb[0].mxu0
      %v1222 = vadd.f32 0.0, %v1221
      %v1223 = vpop.f32.mrb[0].mxu0
      %v1224 = vpop.f32.mrb[0].mxu0
      %v1225 = vadd.f32 0.0, %v1224
      %v1226 = vpop.f32.mrb[0].mxu0
      %1227 = vmatprep.mubr.bf16.mxu0 0
      %1228 = vmatmul.mubr.bf16.gmra.mrb[0].mxu0 %v1045
      %v1229 = vpop.f32.mrb[0].mxu0
      %v1230 = vadd.f32 0.0, %v1229
      %v1231 = vpop.f32.mrb[0].mxu0
      %v1232 = vpop.f32.mrb[0].mxu0
      %v1233 = vadd.f32 0.0, %v1232
      %v1234 = vpop.f32.mrb[0].mxu0
      %1235 = vmatprep.mubr.bf16.mxu0 0
      %1236 = vmatmul.mubr.bf16.gmra.mrb[0].mxu0 %v1046
      %v1237 = vpop.f32.mrb[0].mxu0
      %v1238 = vadd.f32 0.0, %v1237
      %v1239 = vpop.f32.mrb[0].mxu0
      %v1240 = vpop.f32.mrb[0].mxu0
      %v1241 = vadd.f32 0.0, %v1240
      %v1242 = vpop.f32.mrb[0].mxu0
      %1243 = vmatprep.mubr.bf16.mxu0 0
      %1244 = vmatmul.mubr.bf16.gmra.mrb[0].mxu0 %v1047
      %v1245 = vpop.f32.mrb[0].mxu0
      %v1246 = vadd.f32 0.0, %v1245
      %v1247 = vpop.f32.mrb[0].mxu0
      %v1248 = vpop.f32.mrb[0].mxu0
      %v1249 = vadd.f32 0.0, %v1248
      %v1250 = vpop.f32.mrb[0].mxu0
      %1251 = vmatprep.mubr.bf16.mxu0 0
      %1252 = vmatmul.mubr.bf16.gmra.mrb[0].mxu0 %v1048
      %v1253 = vpop.f32.mrb[0].mxu0
      %v1254 = vadd.f32 0.0, %v1253
      %v1255 = vpop.f32.mrb[0].mxu0
      %v1256 = vpop.f32.mrb[0].mxu0
      %v1257 = vadd.f32 0.0, %v1256
      %v1258 = vpop.f32.mrb[0].mxu0
      %1259 = vmatprep.mubr.bf16.mxu0 0
      %1260 = vmatmul.mubr.bf16.gmra.mrb[0].mxu0 %v1049
      %v1261 = vpop.f32.mrb[0].mxu0
      %v1262 = vadd.f32 0.0, %v1261
      %v1263 = vpop.f32.mrb[0].mxu0
      %v1264 = vpop.f32.mrb[0].mxu0
      %v1265 = vadd.f32 0.0, %v1264
      %v1266 = vpop.f32.mrb[0].mxu0
      %1267 = vmatprep.mubr.bf16.mxu0 0
      %1268 = vmatmul.mubr.bf16.gmra.mrb[0].mxu0 %v1050
      %v1269 = vpop.f32.mrb[0].mxu0
      %v1270 = vadd.f32 0.0, %v1269
      %v1271 = vpop.f32.mrb[0].mxu0
      %v1272 = vpop.f32.mrb[0].mxu0
      %v1273 = vadd.f32 0.0, %v1272
      %v1274 = vpop.f32.mrb[0].mxu0
      %1275 = vdwg.mxu0
      %v1276 = vunpack.c.l.b16 %v598
      %v1277 = vunpack.c.l.b16 %v607
      %v1278 = vunpack.c.l.b16 %v620
      %v1279 = vunpack.c.l.b16 %v629
      %v1280 = vunpack.c.l.b16 %v642
      %v1281 = vunpack.c.l.b16 %v651
      %v1282 = vunpack.c.l.b16 %v664
      %v1283 = vunpack.c.l.b16 %v673
      %v1284 = vunpack.c.l.b16 %v686
      %v1285 = vunpack.c.l.b16 %v695
      %v1286 = vunpack.c.l.b16 %v708
      %v1287 = vunpack.c.l.b16 %v717
      %v1288 = vunpack.c.l.b16 %v730
      %v1289 = vunpack.c.l.b16 %v739
      %v1290 = vunpack.c.l.b16 %v752
      %v1291 = vunpack.c.l.b16 %v761
      %v1292 = vunpack.c.l.b16 %v774
      %v1293 = vunpack.c.l.b16 %v783
      %v1294 = vunpack.c.l.b16 %v796
      %v1295 = vunpack.c.l.b16 %v805
      %v1296 = vunpack.c.l.b16 %v818
      %v1297 = vunpack.c.l.b16 %v827
      %v1298 = vunpack.c.l.b16 %v840
      %v1299 = vunpack.c.l.b16 %v849
      %v1300 = vunpack.c.l.b16 %v862
      %v1301 = vunpack.c.l.b16 %v871
      %v1302 = vunpack.c.l.b16 %v884
      %v1303 = vunpack.c.l.b16 %v893
      %v1304 = vunpack.c.l.b16 %v906
      %v1305 = vunpack.c.l.b16 %v915
      %v1306 = vunpack.c.l.b16 %v928
      %v1307 = vunpack.c.l.b16 %v937
      %v1308 = vpack.c.b16 %v1277, %v1276
      %v1309 = vpack.c.b16 %v1279, %v1278
      %v1310 = vpack.c.b16 %v1281, %v1280
      %v1311 = vpack.c.b16 %v1283, %v1282
      %v1312 = vpack.c.b16 %v1285, %v1284
      %v1313 = vpack.c.b16 %v1287, %v1286
      %v1314 = vpack.c.b16 %v1289, %v1288
      %v1315 = vpack.c.b16 %v1291, %v1290
      %v1316 = vpack.c.b16 %v1293, %v1292
      %v1317 = vpack.c.b16 %v1295, %v1294
      %v1318 = vpack.c.b16 %v1297, %v1296
      %v1319 = vpack.c.b16 %v1299, %v1298
      %v1320 = vpack.c.b16 %v1301, %v1300
      %v1321 = vpack.c.b16 %v1303, %v1302
      %v1322 = vpack.c.b16 %v1305, %v1304
      %v1323 = vpack.c.b16 %v1307, %v1306
      %v1356 = vunpack.c.l.b16 %v938
      %v1357 = vunpack.c.l.b16 %v939
      %v1358 = vunpack.c.l.b16 %v940
      %v1359 = vunpack.c.l.b16 %v941
      %v1360 = vunpack.c.l.b16 %v942
      %v1361 = vunpack.c.l.b16 %v943
      %v1362 = vunpack.c.l.b16 %v944
      %v1363 = vunpack.c.l.b16 %v945
      %v1364 = vunpack.c.l.b16 %v946
      %v1365 = vunpack.c.l.b16 %v947
      %v1366 = vunpack.c.l.b16 %v948
      %v1367 = vunpack.c.l.b16 %v949
      %v1368 = vunpack.c.l.b16 %v950
      %v1369 = vunpack.c.l.b16 %v951
      %v1370 = vunpack.c.l.b16 %v952
      %v1371 = vunpack.c.l.b16 %v953
      %v1372 = vpack.c.b16 %v1357, %v1356
      %v1373 = vpack.c.b16 %v1359, %v1358
      %v1374 = vpack.c.b16 %v1361, %v1360
      %v1375 = vpack.c.b16 %v1363, %v1362
      %v1376 = vpack.c.b16 %v1365, %v1364
      %v1377 = vpack.c.b16 %v1367, %v1366
      %v1378 = vpack.c.b16 %v1369, %v1368
      %v1379 = vpack.c.b16 %v1371, %v1370
      %1388 = vmatprep.subr.bf16.mxu0 0
      %1389 = vmatpush1.bf16.msra.mxu0 %v1372
      %1390 = vmatprep.subr.bf16.mxu0 0
      %1391 = vmatpush1.bf16.msra.mxu0 %v1373
      %1392 = vmatprep.subr.bf16.mxu0 0
      %1393 = vmatpush1.bf16.msra.mxu0 %v1374
      %1394 = vmatprep.subr.bf16.mxu0 0
      %1395 = vmatpush1.bf16.msra.mxu0 %v1375
      %1396 = vmatprep.subr.bf16.mxu0 0
      %1397 = vmatpush1.bf16.msra.mxu0 %v1376
      %1398 = vmatprep.subr.bf16.mxu0 0
      %1399 = vmatpush1.bf16.msra.mxu0 %v1377
      %1400 = vmatprep.subr.bf16.mxu0 0
      %1401 = vmatpush1.bf16.msra.mxu0 %v1378
      %1402 = vmatprep.subr.bf16.mxu0 0
      %1403 = vmatpush1.bf16.msra.mxu0 %v1379
      %1404 = vmatprep.subr.bf16.mxu0 0
      %1405 = vmatpush1.bf16.msra.mxu0 0
      %1406 = vmatprep.subr.bf16.mxu0 0
      %1407 = vmatpush1.bf16.msra.mxu0 0
      %1408 = vmatprep.subr.bf16.mxu0 0
      %1409 = vmatpush1.bf16.msra.mxu0 0
      %1410 = vmatprep.subr.bf16.mxu0 0
      %1411 = vmatpush1.bf16.msra.mxu0 0
      %1412 = vmatprep.subr.bf16.mxu0 0
      %1413 = vmatpush1.bf16.msra.mxu0 0
      %1414 = vmatprep.subr.bf16.mxu0 0
      %1415 = vmatpush1.bf16.msra.mxu0 0
      %1416 = vmatprep.subr.bf16.mxu0 0
      %1417 = vmatpush1.bf16.msra.mxu0 0
      %1418 = vmatprep.subr.bf16.mxu0 0
      %1419 = vmatpush1.bf16.msra.mxu0 0
      %1420 = vmatprep.mubr.bf16.mxu0 0
      %1421 = vmatmul.mubr.bf16.gmra.mrb[0].mxu0 %v1308
      %v1422 = vpop.f32.mrb[0].mxu0
      %v1423 = vadd.f32 %v1150, %v1422
      %v1424 = vpop.f32.mrb[0].mxu0
      %v1425 = vpop.f32.mrb[0].mxu0
      %v1426 = vadd.f32 %v1153, %v1425
      %v1427 = vpop.f32.mrb[0].mxu0
      %1428 = vmatprep.mubr.bf16.mxu0 0
      %1429 = vmatmul.mubr.bf16.gmra.mrb[0].mxu0 %v1309
      %v1430 = vpop.f32.mrb[0].mxu0
      %v1431 = vadd.f32 %v1158, %v1430
      %v1432 = vpop.f32.mrb[0].mxu0
      %v1433 = vpop.f32.mrb[0].mxu0
      %v1434 = vadd.f32 %v1161, %v1433
      %v1435 = vpop.f32.mrb[0].mxu0
      %1436 = vmatprep.mubr.bf16.mxu0 0
      %1437 = vmatmul.mubr.bf16.gmra.mrb[0].mxu0 %v1310
      %v1438 = vpop.f32.mrb[0].mxu0
      %v1439 = vadd.f32 %v1166, %v1438
      %v1440 = vpop.f32.mrb[0].mxu0
      %v1441 = vpop.f32.mrb[0].mxu0
      %v1442 = vadd.f32 %v1169, %v1441
      %v1443 = vpop.f32.mrb[0].mxu0
      %1444 = vmatprep.mubr.bf16.mxu0 0
      %1445 = vmatmul.mubr.bf16.gmra.mrb[0].mxu0 %v1311
      %v1446 = vpop.f32.mrb[0].mxu0
      %v1447 = vadd.f32 %v1174, %v1446
      %v1448 = vpop.f32.mrb[0].mxu0
      %v1449 = vpop.f32.mrb[0].mxu0
      %v1450 = vadd.f32 %v1177, %v1449
      %v1451 = vpop.f32.mrb[0].mxu0
      %1452 = vmatprep.mubr.bf16.mxu0 0
      %1453 = vmatmul.mubr.bf16.gmra.mrb[0].mxu0 %v1312
      %v1454 = vpop.f32.mrb[0].mxu0
      %v1455 = vadd.f32 %v1182, %v1454
      %v1456 = vpop.f32.mrb[0].mxu0
      %v1457 = vpop.f32.mrb[0].mxu0
      %v1458 = vadd.f32 %v1185, %v1457
      %v1459 = vpop.f32.mrb[0].mxu0
      %1460 = vmatprep.mubr.bf16.mxu0 0
      %1461 = vmatmul.mubr.bf16.gmra.mrb[0].mxu0 %v1313
      %v1462 = vpop.f32.mrb[0].mxu0
      %v1463 = vadd.f32 %v1190, %v1462
      %v1464 = vpop.f32.mrb[0].mxu0
      %v1465 = vpop.f32.mrb[0].mxu0
      %v1466 = vadd.f32 %v1193, %v1465
      %v1467 = vpop.f32.mrb[0].mxu0
      %1468 = vmatprep.mubr.bf16.mxu0 0
      %1469 = vmatmul.mubr.bf16.gmra.mrb[0].mxu0 %v1314
      %v1470 = vpop.f32.mrb[0].mxu0
      %v1471 = vadd.f32 %v1198, %v1470
      %v1472 = vpop.f32.mrb[0].mxu0
      %v1473 = vpop.f32.mrb[0].mxu0
      %v1474 = vadd.f32 %v1201, %v1473
      %v1475 = vpop.f32.mrb[0].mxu0
      %1476 = vmatprep.mubr.bf16.mxu0 0
      %1477 = vmatmul.mubr.bf16.gmra.mrb[0].mxu0 %v1315
      %v1478 = vpop.f32.mrb[0].mxu0
      %v1479 = vadd.f32 %v1206, %v1478
      %v1480 = vpop.f32.mrb[0].mxu0
      %v1481 = vpop.f32.mrb[0].mxu0
      %v1482 = vadd.f32 %v1209, %v1481
      %v1483 = vpop.f32.mrb[0].mxu0
      %1484 = vmatprep.mubr.bf16.mxu0 0
      %1485 = vmatmul.mubr.bf16.gmra.mrb[0].mxu0 %v1316
      %v1486 = vpop.f32.mrb[0].mxu0
      %v1487 = vadd.f32 %v1214, %v1486
      %v1488 = vpop.f32.mrb[0].mxu0
      %v1489 = vpop.f32.mrb[0].mxu0
      %v1490 = vadd.f32 %v1217, %v1489
      %v1491 = vpop.f32.mrb[0].mxu0
      %1492 = vmatprep.mubr.bf16.mxu0 0
      %1493 = vmatmul.mubr.bf16.gmra.mrb[0].mxu0 %v1317
      %v1494 = vpop.f32.mrb[0].mxu0
      %v1495 = vadd.f32 %v1222, %v1494
      %v1496 = vpop.f32.mrb[0].mxu0
      %v1497 = vpop.f32.mrb[0].mxu0
      %v1498 = vadd.f32 %v1225, %v1497
      %v1499 = vpop.f32.mrb[0].mxu0
      %1500 = vmatprep.mubr.bf16.mxu0 0
      %1501 = vmatmul.mubr.bf16.gmra.mrb[0].mxu0 %v1318
      %v1502 = vpop.f32.mrb[0].mxu0
      %v1503 = vadd.f32 %v1230, %v1502
      %v1504 = vpop.f32.mrb[0].mxu0
      %v1505 = vpop.f32.mrb[0].mxu0
      %v1506 = vadd.f32 %v1233, %v1505
      %v1507 = vpop.f32.mrb[0].mxu0
      %1508 = vmatprep.mubr.bf16.mxu0 0
      %1509 = vmatmul.mubr.bf16.gmra.mrb[0].mxu0 %v1319
      %v1510 = vpop.f32.mrb[0].mxu0
      %v1511 = vadd.f32 %v1238, %v1510
      %v1512 = vpop.f32.mrb[0].mxu0
      %v1513 = vpop.f32.mrb[0].mxu0
      %v1514 = vadd.f32 %v1241, %v1513
      %v1515 = vpop.f32.mrb[0].mxu0
      %1516 = vmatprep.mubr.bf16.mxu0 0
      %1517 = vmatmul.mubr.bf16.gmra.mrb[0].mxu0 %v1320
      %v1518 = vpop.f32.mrb[0].mxu0
      %v1519 = vadd.f32 %v1246, %v1518
      %v1520 = vpop.f32.mrb[0].mxu0
      %v1521 = vpop.f32.mrb[0].mxu0
      %v1522 = vadd.f32 %v1249, %v1521
      %v1523 = vpop.f32.mrb[0].mxu0
      %1524 = vmatprep.mubr.bf16.mxu0 0
      %1525 = vmatmul.mubr.bf16.gmra.mrb[0].mxu0 %v1321
      %v1526 = vpop.f32.mrb[0].mxu0
      %v1527 = vadd.f32 %v1254, %v1526
      %v1528 = vpop.f32.mrb[0].mxu0
      %v1529 = vpop.f32.mrb[0].mxu0
      %v1530 = vadd.f32 %v1257, %v1529
      %v1531 = vpop.f32.mrb[0].mxu0
      %1532 = vmatprep.mubr.bf16.mxu0 0
      %1533 = vmatmul.mubr.bf16.gmra.mrb[0].mxu0 %v1322
      %v1534 = vpop.f32.mrb[0].mxu0
      %v1535 = vadd.f32 %v1262, %v1534
      %v1536 = vpop.f32.mrb[0].mxu0
      %v1537 = vpop.f32.mrb[0].mxu0
      %v1538 = vadd.f32 %v1265, %v1537
      %v1539 = vpop.f32.mrb[0].mxu0
      %1540 = vmatprep.mubr.bf16.mxu0 0
      %1541 = vmatmul.mubr.bf16.gmra.mrb[0].mxu0 %v1323
      %v1542 = vpop.f32.mrb[0].mxu0
      %v1543 = vadd.f32 %v1270, %v1542
      %v1544 = vpop.f32.mrb[0].mxu0
      %v1545 = vpop.f32.mrb[0].mxu0
      %v1546 = vadd.f32 %v1273, %v1545
      %v1547 = vpop.f32.mrb[0].mxu0
      %1548 = vdwg.mxu0
      %v1549 = vld [vmem:[#allocation2 + $0x8] sm:$0xf]
      %v1550 = vld [vmem:[#allocation2 + $0xc] sm:$0xf]
      %v1551 = vld [vmem:[#allocation2 + $0x10] sm:$0x1]
      %v1552 = vld [vmem:[#allocation2 + $0x1c] sm:$0xf]
      %v1553 = vld [vmem:[#allocation2 + $0x20] sm:$0xf]
      %v1554 = vld [vmem:[#allocation2 + $0x24] sm:$0x1]
      %v1555 = vld [vmem:[#allocation2 + $0x30] sm:$0xf]
      %v1556 = vld [vmem:[#allocation2 + $0x34] sm:$0xf]
      %v1557 = vld [vmem:[#allocation2 + $0x38] sm:$0x1]
      %v1558 = vld [vmem:[#allocation2 + $0x44] sm:$0xf]
      %v1559 = vld [vmem:[#allocation2 + $0x48] sm:$0xf]
      %v1560 = vld [vmem:[#allocation2 + $0x4c] sm:$0x1]
      %v1561 = vld [vmem:[#allocation2 + $0x58] sm:$0xf]
      %v1562 = vld [vmem:[#allocation2 + $0x5c] sm:$0xf]
      %v1563 = vld [vmem:[#allocation2 + $0x60] sm:$0x1]
      %v1564 = vld [vmem:[#allocation2 + $0x6c] sm:$0xf]
      %v1565 = vld [vmem:[#allocation2 + $0x70] sm:$0xf]
      %v1566 = vld [vmem:[#allocation2 + $0x74] sm:$0x1]
      %v1567 = vld [vmem:[#allocation2 + $0x80] sm:$0xf]
      %v1568 = vld [vmem:[#allocation2 + $0x84] sm:$0xf]
      %v1569 = vld [vmem:[#allocation2 + $0x88] sm:$0x1]
      %v1570 = vld [vmem:[#allocation2 + $0x94] sm:$0xf]
      %v1571 = vld [vmem:[#allocation2 + $0x98] sm:$0xf]
      %v1572 = vld [vmem:[#allocation2 + $0x9c] sm:$0x1]
      %v1573 = vld [vmem:[#allocation2 + $0xa8] sm:$0xf]
      %v1574 = vld [vmem:[#allocation2 + $0xac] sm:$0xf]
      %v1575 = vld [vmem:[#allocation2 + $0xb0] sm:$0x1]
      %v1576 = vld [vmem:[#allocation2 + $0xbc] sm:$0xf]
      %v1577 = vld [vmem:[#allocation2 + $0xc0] sm:$0xf]
      %v1578 = vld [vmem:[#allocation2 + $0xc4] sm:$0x1]
      %v1579 = vld [vmem:[#allocation2 + $0xd0] sm:$0xf]
      %v1580 = vld [vmem:[#allocation2 + $0xd4] sm:$0xf]
      %v1581 = vld [vmem:[#allocation2 + $0xd8] sm:$0x1]
      %v1582 = vld [vmem:[#allocation2 + $0xe4] sm:$0xf]
      %v1583 = vld [vmem:[#allocation2 + $0xe8] sm:$0xf]
      %v1584 = vld [vmem:[#allocation2 + $0xec] sm:$0x1]
      %v1585 = vld [vmem:[#allocation2 + $0xf8] sm:$0xf]
      %v1586 = vld [vmem:[#allocation2 + $0xfc] sm:$0xf]
      %v1587 = vld [vmem:[#allocation2 + $0x100] sm:$0x1]
      %v1588 = vld [vmem:[#allocation2 + $0x10c] sm:$0xf]
      %v1589 = vld [vmem:[#allocation2 + $0x110] sm:$0xf]
      %v1590 = vld [vmem:[#allocation2 + $0x114] sm:$0x1]
      %v1591 = vld [vmem:[#allocation2 + $0x120] sm:$0xf]
      %v1592 = vld [vmem:[#allocation2 + $0x124] sm:$0xf]
      %v1593 = vld [vmem:[#allocation2 + $0x128] sm:$0x1]
      %v1594 = vld [vmem:[#allocation2 + $0x134] sm:$0xf]
      %v1595 = vld [vmem:[#allocation2 + $0x138] sm:$0xf]
      %v1596 = vld [vmem:[#allocation2 + $0x13c] sm:$0x1]
      %vm1597 = vsmask.f32 3328
      %vm1598 = vsmask.f32 7440
      %vm1599 = vmor %vm1597, %vm1598
      %v1601 = vshrl.u32 %v1549, 16
      %v1603 = vrot.slane %v1601, 4
      %v1604 = vshll.u32 %v1549, 16
      %v1606 = vrot.slane %v1604, 5
      %v1607 = vor.u32 %v1603, %v1606
      %v1608 = vrot.slane %v1607, 4
      %v1610 = vshll.u32 %v1550, 16
      %v1612 = vrot.slane %v1610, 5
      %v1613 = vsel %vm1599, %v1608, %v1612
      %v1614 = vshrl.u32 %v1550, 16
      %v1616 = vrot.slane %v1614, 4
      %v1617 = vor.u32 %v1616, %v1612
      %v1618 = vrot.slane %v1617, 4
      %v1620 = vshll.u32 %v1551, 16
      %v1622 = vrot.slane %v1620, 5
      %v1623 = vsel %vm1599, %v1618, %v1622
      %v1625 = vshrl.u32 %v1552, 16
      %v1627 = vrot.slane %v1625, 4
      %v1628 = vshll.u32 %v1552, 16
      %v1630 = vrot.slane %v1628, 5
      %v1631 = vor.u32 %v1627, %v1630
      %v1632 = vrot.slane %v1631, 4
      %v1634 = vshll.u32 %v1553, 16
      %v1636 = vrot.slane %v1634, 5
      %v1637 = vsel %vm1599, %v1632, %v1636
      %v1638 = vshrl.u32 %v1553, 16
      %v1640 = vrot.slane %v1638, 4
      %v1641 = vor.u32 %v1640, %v1636
      %v1642 = vrot.slane %v1641, 4
      %v1644 = vshll.u32 %v1554, 16
      %v1646 = vrot.slane %v1644, 5
      %v1647 = vsel %vm1599, %v1642, %v1646
      %v1649 = vshrl.u32 %v1555, 16
      %v1651 = vrot.slane %v1649, 4
      %v1652 = vshll.u32 %v1555, 16
      %v1654 = vrot.slane %v1652, 5
      %v1655 = vor.u32 %v1651, %v1654
      %v1656 = vrot.slane %v1655, 4
      %v1658 = vshll.u32 %v1556, 16
      %v1660 = vrot.slane %v1658, 5
      %v1661 = vsel %vm1599, %v1656, %v1660
      %v1662 = vshrl.u32 %v1556, 16
      %v1664 = vrot.slane %v1662, 4
      %v1665 = vor.u32 %v1664, %v1660
      %v1666 = vrot.slane %v1665, 4
      %v1668 = vshll.u32 %v1557, 16
      %v1670 = vrot.slane %v1668, 5
      %v1671 = vsel %vm1599, %v1666, %v1670
      %v1673 = vshrl.u32 %v1558, 16
      %v1675 = vrot.slane %v1673, 4
      %v1676 = vshll.u32 %v1558, 16
      %v1678 = vrot.slane %v1676, 5
      %v1679 = vor.u32 %v1675, %v1678
      %v1680 = vrot.slane %v1679, 4
      %v1682 = vshll.u32 %v1559, 16
      %v1684 = vrot.slane %v1682, 5
      %v1685 = vsel %vm1599, %v1680, %v1684
      %v1686 = vshrl.u32 %v1559, 16
      %v1688 = vrot.slane %v1686, 4
      %v1689 = vor.u32 %v1688, %v1684
      %v1690 = vrot.slane %v1689, 4
      %v1692 = vshll.u32 %v1560, 16
      %v1694 = vrot.slane %v1692, 5
      %v1695 = vsel %vm1599, %v1690, %v1694
      %v1697 = vshrl.u32 %v1561, 16
      %v1699 = vrot.slane %v1697, 4
      %v1700 = vshll.u32 %v1561, 16
      %v1702 = vrot.slane %v1700, 5
      %v1703 = vor.u32 %v1699, %v1702
      %v1704 = vrot.slane %v1703, 4
      %v1706 = vshll.u32 %v1562, 16
      %v1708 = vrot.slane %v1706, 5
      %v1709 = vsel %vm1599, %v1704, %v1708
      %v1710 = vshrl.u32 %v1562, 16
      %v1712 = vrot.slane %v1710, 4
      %v1713 = vor.u32 %v1712, %v1708
      %v1714 = vrot.slane %v1713, 4
      %v1716 = vshll.u32 %v1563, 16
      %v1718 = vrot.slane %v1716, 5
      %v1719 = vsel %vm1599, %v1714, %v1718
      %v1721 = vshrl.u32 %v1564, 16
      %v1723 = vrot.slane %v1721, 4
      %v1724 = vshll.u32 %v1564, 16
      %v1726 = vrot.slane %v1724, 5
      %v1727 = vor.u32 %v1723, %v1726
      %v1728 = vrot.slane %v1727, 4
      %v1730 = vshll.u32 %v1565, 16
      %v1732 = vrot.slane %v1730, 5
      %v1733 = vsel %vm1599, %v1728, %v1732
      %v1734 = vshrl.u32 %v1565, 16
      %v1736 = vrot.slane %v1734, 4
      %v1737 = vor.u32 %v1736, %v1732
      %v1738 = vrot.slane %v1737, 4
      %v1740 = vshll.u32 %v1566, 16
      %v1742 = vrot.slane %v1740, 5
      %v1743 = vsel %vm1599, %v1738, %v1742
      %v1745 = vshrl.u32 %v1567, 16
      %v1747 = vrot.slane %v1745, 4
      %v1748 = vshll.u32 %v1567, 16
      %v1750 = vrot.slane %v1748, 5
      %v1751 = vor.u32 %v1747, %v1750
      %v1752 = vrot.slane %v1751, 4
      %v1754 = vshll.u32 %v1568, 16
      %v1756 = vrot.slane %v1754, 5
      %v1757 = vsel %vm1599, %v1752, %v1756
      %v1758 = vshrl.u32 %v1568, 16
      %v1760 = vrot.slane %v1758, 4
      %v1761 = vor.u32 %v1760, %v1756
      %v1762 = vrot.slane %v1761, 4
      %v1764 = vshll.u32 %v1569, 16
      %v1766 = vrot.slane %v1764, 5
      %v1767 = vsel %vm1599, %v1762, %v1766
      %v1769 = vshrl.u32 %v1570, 16
      %v1771 = vrot.slane %v1769, 4
      %v1772 = vshll.u32 %v1570, 16
      %v1774 = vrot.slane %v1772, 5
      %v1775 = vor.u32 %v1771, %v1774
      %v1776 = vrot.slane %v1775, 4
      %v1778 = vshll.u32 %v1571, 16
      %v1780 = vrot.slane %v1778, 5
      %v1781 = vsel %vm1599, %v1776, %v1780
      %v1782 = vshrl.u32 %v1571, 16
      %v1784 = vrot.slane %v1782, 4
      %v1785 = vor.u32 %v1784, %v1780
      %v1786 = vrot.slane %v1785, 4
      %v1788 = vshll.u32 %v1572, 16
      %v1790 = vrot.slane %v1788, 5
      %v1791 = vsel %vm1599, %v1786, %v1790
      %v1793 = vshrl.u32 %v1573, 16
      %v1795 = vrot.slane %v1793, 4
      %v1796 = vshll.u32 %v1573, 16
      %v1798 = vrot.slane %v1796, 5
      %v1799 = vor.u32 %v1795, %v1798
      %v1800 = vrot.slane %v1799, 4
      %v1802 = vshll.u32 %v1574, 16
      %v1804 = vrot.slane %v1802, 5
      %v1805 = vsel %vm1599, %v1800, %v1804
      %v1806 = vshrl.u32 %v1574, 16
      %v1808 = vrot.slane %v1806, 4
      %v1809 = vor.u32 %v1808, %v1804
      %v1810 = vrot.slane %v1809, 4
      %v1812 = vshll.u32 %v1575, 16
      %v1814 = vrot.slane %v1812, 5
      %v1815 = vsel %vm1599, %v1810, %v1814
      %v1817 = vshrl.u32 %v1576, 16
      %v1819 = vrot.slane %v1817, 4
      %v1820 = vshll.u32 %v1576, 16
      %v1822 = vrot.slane %v1820, 5
      %v1823 = vor.u32 %v1819, %v1822
      %v1824 = vrot.slane %v1823, 4
      %v1826 = vshll.u32 %v1577, 16
      %v1828 = vrot.slane %v1826, 5
      %v1829 = vsel %vm1599, %v1824, %v1828
      %v1830 = vshrl.u32 %v1577, 16
      %v1832 = vrot.slane %v1830, 4
      %v1833 = vor.u32 %v1832, %v1828
      %v1834 = vrot.slane %v1833, 4
      %v1836 = vshll.u32 %v1578, 16
      %v1838 = vrot.slane %v1836, 5
      %v1839 = vsel %vm1599, %v1834, %v1838
      %v1841 = vshrl.u32 %v1579, 16
      %v1843 = vrot.slane %v1841, 4
      %v1844 = vshll.u32 %v1579, 16
      %v1846 = vrot.slane %v1844, 5
      %v1847 = vor.u32 %v1843, %v1846
      %v1848 = vrot.slane %v1847, 4
      %v1850 = vshll.u32 %v1580, 16
      %v1852 = vrot.slane %v1850, 5
      %v1853 = vsel %vm1599, %v1848, %v1852
      %v1854 = vshrl.u32 %v1580, 16
      %v1856 = vrot.slane %v1854, 4
      %v1857 = vor.u32 %v1856, %v1852
      %v1858 = vrot.slane %v1857, 4
      %v1860 = vshll.u32 %v1581, 16
      %v1862 = vrot.slane %v1860, 5
      %v1863 = vsel %vm1599, %v1858, %v1862
      %v1865 = vshrl.u32 %v1582, 16
      %v1867 = vrot.slane %v1865, 4
      %v1868 = vshll.u32 %v1582, 16
      %v1870 = vrot.slane %v1868, 5
      %v1871 = vor.u32 %v1867, %v1870
      %v1872 = vrot.slane %v1871, 4
      %v1874 = vshll.u32 %v1583, 16
      %v1876 = vrot.slane %v1874, 5
      %v1877 = vsel %vm1599, %v1872, %v1876
      %v1878 = vshrl.u32 %v1583, 16
      %v1880 = vrot.slane %v1878, 4
      %v1881 = vor.u32 %v1880, %v1876
      %v1882 = vrot.slane %v1881, 4
      %v1884 = vshll.u32 %v1584, 16
      %v1886 = vrot.slane %v1884, 5
      %v1887 = vsel %vm1599, %v1882, %v1886
      %v1889 = vshrl.u32 %v1585, 16
      %v1891 = vrot.slane %v1889, 4
      %v1892 = vshll.u32 %v1585, 16
      %v1894 = vrot.slane %v1892, 5
      %v1895 = vor.u32 %v1891, %v1894
      %v1896 = vrot.slane %v1895, 4
      %v1898 = vshll.u32 %v1586, 16
      %v1900 = vrot.slane %v1898, 5
      %v1901 = vsel %vm1599, %v1896, %v1900
      %v1902 = vshrl.u32 %v1586, 16
      %v1904 = vrot.slane %v1902, 4
      %v1905 = vor.u32 %v1904, %v1900
      %v1906 = vrot.slane %v1905, 4
      %v1908 = vshll.u32 %v1587, 16
      %v1910 = vrot.slane %v1908, 5
      %v1911 = vsel %vm1599, %v1906, %v1910
      %v1913 = vshrl.u32 %v1588, 16
      %v1915 = vrot.slane %v1913, 4
      %v1916 = vshll.u32 %v1588, 16
      %v1918 = vrot.slane %v1916, 5
      %v1919 = vor.u32 %v1915, %v1918
      %v1920 = vrot.slane %v1919, 4
      %v1922 = vshll.u32 %v1589, 16
      %v1924 = vrot.slane %v1922, 5
      %v1925 = vsel %vm1599, %v1920, %v1924
      %v1926 = vshrl.u32 %v1589, 16
      %v1928 = vrot.slane %v1926, 4
      %v1929 = vor.u32 %v1928, %v1924
      %v1930 = vrot.slane %v1929, 4
      %v1932 = vshll.u32 %v1590, 16
      %v1934 = vrot.slane %v1932, 5
      %v1935 = vsel %vm1599, %v1930, %v1934
      %v1937 = vshrl.u32 %v1591, 16
      %v1939 = vrot.slane %v1937, 4
      %v1940 = vshll.u32 %v1591, 16
      %v1942 = vrot.slane %v1940, 5
      %v1943 = vor.u32 %v1939, %v1942
      %v1944 = vrot.slane %v1943, 4
      %v1946 = vshll.u32 %v1592, 16
      %v1948 = vrot.slane %v1946, 5
      %v1949 = vsel %vm1599, %v1944, %v1948
      %v1950 = vshrl.u32 %v1592, 16
      %v1952 = vrot.slane %v1950, 4
      %v1953 = vor.u32 %v1952, %v1948
      %v1954 = vrot.slane %v1953, 4
      %v1956 = vshll.u32 %v1593, 16
      %v1958 = vrot.slane %v1956, 5
      %v1959 = vsel %vm1599, %v1954, %v1958
      %v1961 = vshrl.u32 %v1594, 16
      %v1963 = vrot.slane %v1961, 4
      %v1964 = vshll.u32 %v1594, 16
      %v1966 = vrot.slane %v1964, 5
      %v1967 = vor.u32 %v1963, %v1966
      %v1968 = vrot.slane %v1967, 4
      %v1970 = vshll.u32 %v1595, 16
      %v1972 = vrot.slane %v1970, 5
      %v1973 = vsel %vm1599, %v1968, %v1972
      %v1974 = vshrl.u32 %v1595, 16
      %v1976 = vrot.slane %v1974, 4
      %v1977 = vor.u32 %v1976, %v1972
      %v1978 = vrot.slane %v1977, 4
      %v1980 = vshll.u32 %v1596, 16
      %v1982 = vrot.slane %v1980, 5
      %v1983 = vsel %vm1599, %v1978, %v1982
      %s1984 = scalar_lea.vmem %s1, 128
      %v1985 = vld [vmem:[%s1984] sm:$0xf]
      %v1986 = vld [vmem:[%s1984 + $0x4] sm:$0xf]
      %v1987 = vld [vmem:[%s1984 + $0x8] sm:$0xf]
      %v1988 = vld [vmem:[%s1984 + $0xc] sm:$0xf]
      %v1989 = vld [vmem:[%s1984 + $0x10] sm:$0xf]
      %v1990 = vld [vmem:[%s1984 + $0x14] sm:$0xf]
      %v1991 = vld [vmem:[%s1984 + $0x18] sm:$0xf]
      %v1992 = vld [vmem:[%s1984 + $0x1c] sm:$0xf]
      %v1993 = vld [vmem:[%s1984 + $0x20] sm:$0xf]
      %v1994 = vld [vmem:[%s1984 + $0x24] sm:$0xf]
      %v1995 = vld [vmem:[%s1984 + $0x28] sm:$0xf]
      %v1996 = vld [vmem:[%s1984 + $0x2c] sm:$0xf]
      %v1997 = vld [vmem:[%s1984 + $0x30] sm:$0xf]
      %v1998 = vld [vmem:[%s1984 + $0x34] sm:$0xf]
      %v1999 = vld [vmem:[%s1984 + $0x38] sm:$0xf]
      %v2000 = vld [vmem:[%s1984 + $0x3c] sm:$0xf]
      %v2001 = vunpack.c.l.b16 %v1613
      %v2002 = vunpack.c.l.b16 %v1623
      %v2003 = vunpack.c.l.b16 %v1637
      %v2004 = vunpack.c.l.b16 %v1647
      %v2005 = vunpack.c.l.b16 %v1661
      %v2006 = vunpack.c.l.b16 %v1671
      %v2007 = vunpack.c.l.b16 %v1685
      %v2008 = vunpack.c.l.b16 %v1695
      %v2009 = vunpack.c.l.b16 %v1709
      %v2010 = vunpack.c.l.b16 %v1719
      %v2011 = vunpack.c.l.b16 %v1733
      %v2012 = vunpack.c.l.b16 %v1743
      %v2013 = vunpack.c.l.b16 %v1757
      %v2014 = vunpack.c.l.b16 %v1767
      %v2015 = vunpack.c.l.b16 %v1781
      %v2016 = vunpack.c.l.b16 %v1791
      %v2017 = vunpack.c.l.b16 %v1805
      %v2018 = vunpack.c.l.b16 %v1815
      %v2019 = vunpack.c.l.b16 %v1829
      %v2020 = vunpack.c.l.b16 %v1839
      %v2021 = vunpack.c.l.b16 %v1853
      %v2022 = vunpack.c.l.b16 %v1863
      %v2023 = vunpack.c.l.b16 %v1877
      %v2024 = vunpack.c.l.b16 %v1887
      %v2025 = vunpack.c.l.b16 %v1901
      %v2026 = vunpack.c.l.b16 %v1911
      %v2027 = vunpack.c.l.b16 %v1925
      %v2028 = vunpack.c.l.b16 %v1935
      %v2029 = vunpack.c.l.b16 %v1949
      %v2030 = vunpack.c.l.b16 %v1959
      %v2031 = vunpack.c.l.b16 %v1973
      %v2032 = vunpack.c.l.b16 %v1983
      %v2033 = vpack.c.b16 %v2002, %v2001
      %v2034 = vpack.c.b16 %v2004, %v2003
      %v2035 = vpack.c.b16 %v2006, %v2005
      %v2036 = vpack.c.b16 %v2008, %v2007
      %v2037 = vpack.c.b16 %v2010, %v2009
      %v2038 = vpack.c.b16 %v2012, %v2011
      %v2039 = vpack.c.b16 %v2014, %v2013
      %v2040 = vpack.c.b16 %v2016, %v2015
      %v2041 = vpack.c.b16 %v2018, %v2017
      %v2042 = vpack.c.b16 %v2020, %v2019
      %v2043 = vpack.c.b16 %v2022, %v2021
      %v2044 = vpack.c.b16 %v2024, %v2023
      %v2045 = vpack.c.b16 %v2026, %v2025
      %v2046 = vpack.c.b16 %v2028, %v2027
      %v2047 = vpack.c.b16 %v2030, %v2029
      %v2048 = vpack.c.b16 %v2032, %v2031
      %v2081 = vunpack.c.l.b16 %v1985
      %v2082 = vunpack.c.l.b16 %v1986
      %v2083 = vunpack.c.l.b16 %v1987
      %v2084 = vunpack.c.l.b16 %v1988
      %v2085 = vunpack.c.l.b16 %v1989
      %v2086 = vunpack.c.l.b16 %v1990
      %v2087 = vunpack.c.l.b16 %v1991
      %v2088 = vunpack.c.l.b16 %v1992
      %v2089 = vunpack.c.l.b16 %v1993
      %v2090 = vunpack.c.l.b16 %v1994
      %v2091 = vunpack.c.l.b16 %v1995
      %v2092 = vunpack.c.l.b16 %v1996
      %v2093 = vunpack.c.l.b16 %v1997
      %v2094 = vunpack.c.l.b16 %v1998
      %v2095 = vunpack.c.l.b16 %v1999
      %v2096 = vunpack.c.l.b16 %v2000
      %v2097 = vpack.c.b16 %v2082, %v2081
      %v2098 = vpack.c.b16 %v2084, %v2083
      %v2099 = vpack.c.b16 %v2086, %v2085
      %v2100 = vpack.c.b16 %v2088, %v2087
      %v2101 = vpack.c.b16 %v2090, %v2089
      %v2102 = vpack.c.b16 %v2092, %v2091
      %v2103 = vpack.c.b16 %v2094, %v2093
      %v2104 = vpack.c.b16 %v2096, %v2095
      %2113 = vmatprep.subr.bf16.mxu0 0
      %2114 = vmatpush1.bf16.msra.mxu0 %v2097
      %2115 = vmatprep.subr.bf16.mxu0 0
      %2116 = vmatpush1.bf16.msra.mxu0 %v2098
      %2117 = vmatprep.subr.bf16.mxu0 0
      %2118 = vmatpush1.bf16.msra.mxu0 %v2099
      %2119 = vmatprep.subr.bf16.mxu0 0
      %2120 = vmatpush1.bf16.msra.mxu0 %v2100
      %2121 = vmatprep.subr.bf16.mxu0 0
      %2122 = vmatpush1.bf16.msra.mxu0 %v2101
      %2123 = vmatprep.subr.bf16.mxu0 0
      %2124 = vmatpush1.bf16.msra.mxu0 %v2102
      %2125 = vmatprep.subr.bf16.mxu0 0
      %2126 = vmatpush1.bf16.msra.mxu0 %v2103
      %2127 = vmatprep.subr.bf16.mxu0 0
      %2128 = vmatpush1.bf16.msra.mxu0 %v2104
      %2129 = vmatprep.subr.bf16.mxu0 0
      %2130 = vmatpush1.bf16.msra.mxu0 0
      %2131 = vmatprep.subr.bf16.mxu0 0
      %2132 = vmatpush1.bf16.msra.mxu0 0
      %2133 = vmatprep.subr.bf16.mxu0 0
      %2134 = vmatpush1.bf16.msra.mxu0 0
      %2135 = vmatprep.subr.bf16.mxu0 0
      %2136 = vmatpush1.bf16.msra.mxu0 0
      %2137 = vmatprep.subr.bf16.mxu0 0
      %2138 = vmatpush1.bf16.msra.mxu0 0
      %2139 = vmatprep.subr.bf16.mxu0 0
      %2140 = vmatpush1.bf16.msra.mxu0 0
      %2141 = vmatprep.subr.bf16.mxu0 0
      %2142 = vmatpush1.bf16.msra.mxu0 0
      %2143 = vmatprep.subr.bf16.mxu0 0
      %2144 = vmatpush1.bf16.msra.mxu0 0
      %2145 = vmatprep.mubr.bf16.mxu0 0
      %2146 = vmatmul.mubr.bf16.gmra.mrb[0].mxu0 %v2033
      %v2147 = vpop.f32.mrb[0].mxu0
      %v2148 = vadd.f32 0.0, %v2147
      %v2149 = vpop.f32.mrb[0].mxu0
      %v2150 = vpop.f32.mrb[0].mxu0
      %v2151 = vadd.f32 0.0, %v2150
      %v2152 = vpop.f32.mrb[0].mxu0
      %2153 = vmatprep.mubr.bf16.mxu0 0
      %2154 = vmatmul.mubr.bf16.gmra.mrb[0].mxu0 %v2034
      %v2155 = vpop.f32.mrb[0].mxu0
      %v2156 = vadd.f32 0.0, %v2155
      %v2157 = vpop.f32.mrb[0].mxu0
      %v2158 = vpop.f32.mrb[0].mxu0
      %v2159 = vadd.f32 0.0, %v2158
      %v2160 = vpop.f32.mrb[0].mxu0
      %2161 = vmatprep.mubr.bf16.mxu0 0
      %2162 = vmatmul.mubr.bf16.gmra.mrb[0].mxu0 %v2035
      %v2163 = vpop.f32.mrb[0].mxu0
      %v2164 = vadd.f32 0.0, %v2163
      %v2165 = vpop.f32.mrb[0].mxu0
      %v2166 = vpop.f32.mrb[0].mxu0
      %v2167 = vadd.f32 0.0, %v2166
      %v2168 = vpop.f32.mrb[0].mxu0
      %2169 = vmatprep.mubr.bf16.mxu0 0
      %2170 = vmatmul.mubr.bf16.gmra.mrb[0].mxu0 %v2036
      %v2171 = vpop.f32.mrb[0].mxu0
      %v2172 = vadd.f32 0.0, %v2171
      %v2173 = vpop.f32.mrb[0].mxu0
      %v2174 = vpop.f32.mrb[0].mxu0
      %v2175 = vadd.f32 0.0, %v2174
      %v2176 = vpop.f32.mrb[0].mxu0
      %2177 = vmatprep.mubr.bf16.mxu0 0
      %2178 = vmatmul.mubr.bf16.gmra.mrb[0].mxu0 %v2037
      %v2179 = vpop.f32.mrb[0].mxu0
      %v2180 = vadd.f32 0.0, %v2179
      %v2181 = vpop.f32.mrb[0].mxu0
      %v2182 = vpop.f32.mrb[0].mxu0
      %v2183 = vadd.f32 0.0, %v2182
      %v2184 = vpop.f32.mrb[0].mxu0
      %2185 = vmatprep.mubr.bf16.mxu0 0
      %2186 = vmatmul.mubr.bf16.gmra.mrb[0].mxu0 %v2038
      %v2187 = vpop.f32.mrb[0].mxu0
      %v2188 = vadd.f32 0.0, %v2187
      %v2189 = vpop.f32.mrb[0].mxu0
      %v2190 = vpop.f32.mrb[0].mxu0
      %v2191 = vadd.f32 0.0, %v2190
      %v2192 = vpop.f32.mrb[0].mxu0
      %2193 = vmatprep.mubr.bf16.mxu0 0
      %2194 = vmatmul.mubr.bf16.gmra.mrb[0].mxu0 %v2039
      %v2195 = vpop.f32.mrb[0].mxu0
      %v2196 = vadd.f32 0.0, %v2195
      %v2197 = vpop.f32.mrb[0].mxu0
      %v2198 = vpop.f32.mrb[0].mxu0
      %v2199 = vadd.f32 0.0, %v2198
      %v2200 = vpop.f32.mrb[0].mxu0
      %2201 = vmatprep.mubr.bf16.mxu0 0
      %2202 = vmatmul.mubr.bf16.gmra.mrb[0].mxu0 %v2040
      %v2203 = vpop.f32.mrb[0].mxu0
      %v2204 = vadd.f32 0.0, %v2203
      %v2205 = vpop.f32.mrb[0].mxu0
      %v2206 = vpop.f32.mrb[0].mxu0
      %v2207 = vadd.f32 0.0, %v2206
      %v2208 = vpop.f32.mrb[0].mxu0
      %2209 = vmatprep.mubr.bf16.mxu0 0
      %2210 = vmatmul.mubr.bf16.gmra.mrb[0].mxu0 %v2041
      %v2211 = vpop.f32.mrb[0].mxu0
      %v2212 = vadd.f32 0.0, %v2211
      %v2213 = vpop.f32.mrb[0].mxu0
      %v2214 = vpop.f32.mrb[0].mxu0
      %v2215 = vadd.f32 0.0, %v2214
      %v2216 = vpop.f32.mrb[0].mxu0
      %2217 = vmatprep.mubr.bf16.mxu0 0
      %2218 = vmatmul.mubr.bf16.gmra.mrb[0].mxu0 %v2042
      %v2219 = vpop.f32.mrb[0].mxu0
      %v2220 = vadd.f32 0.0, %v2219
      %v2221 = vpop.f32.mrb[0].mxu0
      %v2222 = vpop.f32.mrb[0].mxu0
      %v2223 = vadd.f32 0.0, %v2222
      %v2224 = vpop.f32.mrb[0].mxu0
      %2225 = vmatprep.mubr.bf16.mxu0 0
      %2226 = vmatmul.mubr.bf16.gmra.mrb[0].mxu0 %v2043
      %v2227 = vpop.f32.mrb[0].mxu0
      %v2228 = vadd.f32 0.0, %v2227
      %v2229 = vpop.f32.mrb[0].mxu0
      %v2230 = vpop.f32.mrb[0].mxu0
      %v2231 = vadd.f32 0.0, %v2230
      %v2232 = vpop.f32.mrb[0].mxu0
      %2233 = vmatprep.mubr.bf16.mxu0 0
      %2234 = vmatmul.mubr.bf16.gmra.mrb[0].mxu0 %v2044
      %v2235 = vpop.f32.mrb[0].mxu0
      %v2236 = vadd.f32 0.0, %v2235
      %v2237 = vpop.f32.mrb[0].mxu0
      %v2238 = vpop.f32.mrb[0].mxu0
      %v2239 = vadd.f32 0.0, %v2238
      %v2240 = vpop.f32.mrb[0].mxu0
      %2241 = vmatprep.mubr.bf16.mxu0 0
      %2242 = vmatmul.mubr.bf16.gmra.mrb[0].mxu0 %v2045
      %v2243 = vpop.f32.mrb[0].mxu0
      %v2244 = vadd.f32 0.0, %v2243
      %v2245 = vpop.f32.mrb[0].mxu0
      %v2246 = vpop.f32.mrb[0].mxu0
      %v2247 = vadd.f32 0.0, %v2246
      %v2248 = vpop.f32.mrb[0].mxu0
      %2249 = vmatprep.mubr.bf16.mxu0 0
      %2250 = vmatmul.mubr.bf16.gmra.mrb[0].mxu0 %v2046
      %v2251 = vpop.f32.mrb[0].mxu0
      %v2252 = vadd.f32 0.0, %v2251
      %v2253 = vpop.f32.mrb[0].mxu0
      %v2254 = vpop.f32.mrb[0].mxu0
      %v2255 = vadd.f32 0.0, %v2254
      %v2256 = vpop.f32.mrb[0].mxu0
      %2257 = vmatprep.mubr.bf16.mxu0 0
      %2258 = vmatmul.mubr.bf16.gmra.mrb[0].mxu0 %v2047
      %v2259 = vpop.f32.mrb[0].mxu0
      %v2260 = vadd.f32 0.0, %v2259
      %v2261 = vpop.f32.mrb[0].mxu0
      %v2262 = vpop.f32.mrb[0].mxu0
      %v2263 = vadd.f32 0.0, %v2262
      %v2264 = vpop.f32.mrb[0].mxu0
      %2265 = vmatprep.mubr.bf16.mxu0 0
      %2266 = vmatmul.mubr.bf16.gmra.mrb[0].mxu0 %v2048
      %v2267 = vpop.f32.mrb[0].mxu0
      %v2268 = vadd.f32 0.0, %v2267
      %v2269 = vpop.f32.mrb[0].mxu0
      %v2270 = vpop.f32.mrb[0].mxu0
      %v2271 = vadd.f32 0.0, %v2270
      %v2272 = vpop.f32.mrb[0].mxu0
      %2273 = vdwg.mxu0
      %v2274 = vadd.f32 %v1423, %v2148
      %v2275 = vadd.f32 %v1426, %v2151
      %v2276 = vadd.f32 %v1431, %v2156
      %v2277 = vadd.f32 %v1434, %v2159
      %v2278 = vadd.f32 %v1439, %v2164
      %v2279 = vadd.f32 %v1442, %v2167
      %v2280 = vadd.f32 %v1447, %v2172
      %v2281 = vadd.f32 %v1450, %v2175
      %v2282 = vadd.f32 %v1455, %v2180
      %v2283 = vadd.f32 %v1458, %v2183
      %v2284 = vadd.f32 %v1463, %v2188
      %v2285 = vadd.f32 %v1466, %v2191
      %v2286 = vadd.f32 %v1471, %v2196
      %v2287 = vadd.f32 %v1474, %v2199
      %v2288 = vadd.f32 %v1479, %v2204
      %v2289 = vadd.f32 %v1482, %v2207
      %v2290 = vadd.f32 %v1487, %v2212
      %v2291 = vadd.f32 %v1490, %v2215
      %v2292 = vadd.f32 %v1495, %v2220
      %v2293 = vadd.f32 %v1498, %v2223
      %v2294 = vadd.f32 %v1503, %v2228
      %v2295 = vadd.f32 %v1506, %v2231
      %v2296 = vadd.f32 %v1511, %v2236
      %v2297 = vadd.f32 %v1514, %v2239
      %v2298 = vadd.f32 %v1519, %v2244
      %v2299 = vadd.f32 %v1522, %v2247
      %v2300 = vadd.f32 %v1527, %v2252
      %v2301 = vadd.f32 %v1530, %v2255
      %v2302 = vadd.f32 %v1535, %v2260
      %v2303 = vadd.f32 %v1538, %v2263
      %v2304 = vadd.f32 %v1543, %v2268
      %v2305 = vadd.f32 %v1546, %v2271
      %v2306 = vld [vmem:[%s244 + $0x4] sm:$0x8]
      %v2307 = vld [vmem:[%s244 + $0x8] sm:$0xf]
      %v2308 = vld [vmem:[%s244 + $0xc] sm:$0xf]
      %v2309 = vld [vmem:[%s244 + $0x18] sm:$0x8]
      %v2310 = vld [vmem:[%s244 + $0x1c] sm:$0xf]
      %v2311 = vld [vmem:[%s244 + $0x20] sm:$0xf]
      %v2312 = vld [vmem:[%s244 + $0x2c] sm:$0x8]
      %v2313 = vld [vmem:[%s244 + $0x30] sm:$0xf]
      %v2314 = vld [vmem:[%s244 + $0x34] sm:$0xf]
      %v2315 = vld [vmem:[%s244 + $0x40] sm:$0x8]
      %v2316 = vld [vmem:[%s244 + $0x44] sm:$0xf]
      %v2317 = vld [vmem:[%s244 + $0x48] sm:$0xf]
      %v2318 = vld [vmem:[%s244 + $0x54] sm:$0x8]
      %v2319 = vld [vmem:[%s244 + $0x58] sm:$0xf]
      %v2320 = vld [vmem:[%s244 + $0x5c] sm:$0xf]
      %v2321 = vld [vmem:[%s244 + $0x68] sm:$0x8]
      %v2322 = vld [vmem:[%s244 + $0x6c] sm:$0xf]
      %v2323 = vld [vmem:[%s244 + $0x70] sm:$0xf]
      %v2324 = vld [vmem:[%s244 + $0x7c] sm:$0x8]
      %v2325 = vld [vmem:[%s244 + $0x80] sm:$0xf]
      %v2326 = vld [vmem:[%s244 + $0x84] sm:$0xf]
      %v2327 = vld [vmem:[%s244 + $0x90] sm:$0x8]
      %v2328 = vld [vmem:[%s244 + $0x94] sm:$0xf]
      %v2329 = vld [vmem:[%s244 + $0x98] sm:$0xf]
      %v2330 = vld [vmem:[%s244 + $0xa4] sm:$0x8]
      %v2331 = vld [vmem:[%s244 + $0xa8] sm:$0xf]
      %v2332 = vld [vmem:[%s244 + $0xac] sm:$0xf]
      %v2333 = vld [vmem:[%s244 + $0xb8] sm:$0x8]
      %v2334 = vld [vmem:[%s244 + $0xbc] sm:$0xf]
      %v2335 = vld [vmem:[%s244 + $0xc0] sm:$0xf]
      %v2336 = vld [vmem:[%s244 + $0xcc] sm:$0x8]
      %v2337 = vld [vmem:[%s244 + $0xd0] sm:$0xf]
      %v2338 = vld [vmem:[%s244 + $0xd4] sm:$0xf]
      %v2339 = vld [vmem:[%s244 + $0xe0] sm:$0x8]
      %v2340 = vld [vmem:[%s244 + $0xe4] sm:$0xf]
      %v2341 = vld [vmem:[%s244 + $0xe8] sm:$0xf]
      %v2342 = vld [vmem:[%s244 + $0xf4] sm:$0x8]
      %v2343 = vld [vmem:[%s244 + $0xf8] sm:$0xf]
      %v2344 = vld [vmem:[%s244 + $0xfc] sm:$0xf]
      %v2345 = vld [vmem:[%s244 + $0x108] sm:$0x8]
      %v2346 = vld [vmem:[%s244 + $0x10c] sm:$0xf]
      %v2347 = vld [vmem:[%s244 + $0x110] sm:$0xf]
      %v2348 = vld [vmem:[%s244 + $0x11c] sm:$0x8]
      %v2349 = vld [vmem:[%s244 + $0x120] sm:$0xf]
      %v2350 = vld [vmem:[%s244 + $0x124] sm:$0xf]
      %v2351 = vld [vmem:[%s244 + $0x130] sm:$0x8]
      %v2352 = vld [vmem:[%s244 + $0x134] sm:$0xf]
      %v2353 = vld [vmem:[%s244 + $0x138] sm:$0xf]
      %v2355 = vshrl.u32 %v2306, 16
      %v2357 = vrot.slane %v2355, 7
      %v2358 = vrot.slane %v2357, 4
      %v2360 = vshrl.u32 %v2307, 16
      %v2362 = vrot.slane %v2360, 7
      %v2363 = vshll.u32 %v2307, 16
      %v2365 = vor.u32 %v2362, %v2363
      %v2366 = vsel %vm585, %v2358, %v2365
      %v2367 = vrot.slane %v2362, 4
      %v2369 = vshrl.u32 %v2308, 16
      %v2371 = vrot.slane %v2369, 7
      %v2372 = vshll.u32 %v2308, 16
      %v2374 = vor.u32 %v2371, %v2372
      %v2375 = vsel %vm585, %v2367, %v2374
      %v2377 = vshrl.u32 %v2309, 16
      %v2379 = vrot.slane %v2377, 7
      %v2380 = vrot.slane %v2379, 4
      %v2382 = vshrl.u32 %v2310, 16
      %v2384 = vrot.slane %v2382, 7
      %v2385 = vshll.u32 %v2310, 16
      %v2387 = vor.u32 %v2384, %v2385
      %v2388 = vsel %vm585, %v2380, %v2387
      %v2389 = vrot.slane %v2384, 4
      %v2391 = vshrl.u32 %v2311, 16
      %v2393 = vrot.slane %v2391, 7
      %v2394 = vshll.u32 %v2311, 16
      %v2396 = vor.u32 %v2393, %v2394
      %v2397 = vsel %vm585, %v2389, %v2396
      %v2399 = vshrl.u32 %v2312, 16
      %v2401 = vrot.slane %v2399, 7
      %v2402 = vrot.slane %v2401, 4
      %v2404 = vshrl.u32 %v2313, 16
      %v2406 = vrot.slane %v2404, 7
      %v2407 = vshll.u32 %v2313, 16
      %v2409 = vor.u32 %v2406, %v2407
      %v2410 = vsel %vm585, %v2402, %v2409
      %v2411 = vrot.slane %v2406, 4
      %v2413 = vshrl.u32 %v2314, 16
      %v2415 = vrot.slane %v2413, 7
      %v2416 = vshll.u32 %v2314, 16
      %v2418 = vor.u32 %v2415, %v2416
      %v2419 = vsel %vm585, %v2411, %v2418
      %v2421 = vshrl.u32 %v2315, 16
      %v2423 = vrot.slane %v2421, 7
      %v2424 = vrot.slane %v2423, 4
      %v2426 = vshrl.u32 %v2316, 16
      %v2428 = vrot.slane %v2426, 7
      %v2429 = vshll.u32 %v2316, 16
      %v2431 = vor.u32 %v2428, %v2429
      %v2432 = vsel %vm585, %v2424, %v2431
      %v2433 = vrot.slane %v2428, 4
      %v2435 = vshrl.u32 %v2317, 16
      %v2437 = vrot.slane %v2435, 7
      %v2438 = vshll.u32 %v2317, 16
      %v2440 = vor.u32 %v2437, %v2438
      %v2441 = vsel %vm585, %v2433, %v2440
      %v2443 = vshrl.u32 %v2318, 16
      %v2445 = vrot.slane %v2443, 7
      %v2446 = vrot.slane %v2445, 4
      %v2448 = vshrl.u32 %v2319, 16
      %v2450 = vrot.slane %v2448, 7
      %v2451 = vshll.u32 %v2319, 16
      %v2453 = vor.u32 %v2450, %v2451
      %v2454 = vsel %vm585, %v2446, %v2453
      %v2455 = vrot.slane %v2450, 4
      %v2457 = vshrl.u32 %v2320, 16
      %v2459 = vrot.slane %v2457, 7
      %v2460 = vshll.u32 %v2320, 16
      %v2462 = vor.u32 %v2459, %v2460
      %v2463 = vsel %vm585, %v2455, %v2462
      %v2465 = vshrl.u32 %v2321, 16
      %v2467 = vrot.slane %v2465, 7
      %v2468 = vrot.slane %v2467, 4
      %v2470 = vshrl.u32 %v2322, 16
      %v2472 = vrot.slane %v2470, 7
      %v2473 = vshll.u32 %v2322, 16
      %v2475 = vor.u32 %v2472, %v2473
      %v2476 = vsel %vm585, %v2468, %v2475
      %v2477 = vrot.slane %v2472, 4
      %v2479 = vshrl.u32 %v2323, 16
      %v2481 = vrot.slane %v2479, 7
      %v2482 = vshll.u32 %v2323, 16
      %v2484 = vor.u32 %v2481, %v2482
      %v2485 = vsel %vm585, %v2477, %v2484
      %v2487 = vshrl.u32 %v2324, 16
      %v2489 = vrot.slane %v2487, 7
      %v2490 = vrot.slane %v2489, 4
      %v2492 = vshrl.u32 %v2325, 16
      %v2494 = vrot.slane %v2492, 7
      %v2495 = vshll.u32 %v2325, 16
      %v2497 = vor.u32 %v2494, %v2495
      %v2498 = vsel %vm585, %v2490, %v2497
      %v2499 = vrot.slane %v2494, 4
      %v2501 = vshrl.u32 %v2326, 16
      %v2503 = vrot.slane %v2501, 7
      %v2504 = vshll.u32 %v2326, 16
      %v2506 = vor.u32 %v2503, %v2504
      %v2507 = vsel %vm585, %v2499, %v2506
      %v2509 = vshrl.u32 %v2327, 16
      %v2511 = vrot.slane %v2509, 7
      %v2512 = vrot.slane %v2511, 4
      %v2514 = vshrl.u32 %v2328, 16
      %v2516 = vrot.slane %v2514, 7
      %v2517 = vshll.u32 %v2328, 16
      %v2519 = vor.u32 %v2516, %v2517
      %v2520 = vsel %vm585, %v2512, %v2519
      %v2521 = vrot.slane %v2516, 4
      %v2523 = vshrl.u32 %v2329, 16
      %v2525 = vrot.slane %v2523, 7
      %v2526 = vshll.u32 %v2329, 16
      %v2528 = vor.u32 %v2525, %v2526
      %v2529 = vsel %vm585, %v2521, %v2528
      %v2531 = vshrl.u32 %v2330, 16
      %v2533 = vrot.slane %v2531, 7
      %v2534 = vrot.slane %v2533, 4
      %v2536 = vshrl.u32 %v2331, 16
      %v2538 = vrot.slane %v2536, 7
      %v2539 = vshll.u32 %v2331, 16
      %v2541 = vor.u32 %v2538, %v2539
      %v2542 = vsel %vm585, %v2534, %v2541
      %v2543 = vrot.slane %v2538, 4
      %v2545 = vshrl.u32 %v2332, 16
      %v2547 = vrot.slane %v2545, 7
      %v2548 = vshll.u32 %v2332, 16
      %v2550 = vor.u32 %v2547, %v2548
      %v2551 = vsel %vm585, %v2543, %v2550
      %v2553 = vshrl.u32 %v2333, 16
      %v2555 = vrot.slane %v2553, 7
      %v2556 = vrot.slane %v2555, 4
      %v2558 = vshrl.u32 %v2334, 16
      %v2560 = vrot.slane %v2558, 7
      %v2561 = vshll.u32 %v2334, 16
      %v2563 = vor.u32 %v2560, %v2561
      %v2564 = vsel %vm585, %v2556, %v2563
      %v2565 = vrot.slane %v2560, 4
      %v2567 = vshrl.u32 %v2335, 16
      %v2569 = vrot.slane %v2567, 7
      %v2570 = vshll.u32 %v2335, 16
      %v2572 = vor.u32 %v2569, %v2570
      %v2573 = vsel %vm585, %v2565, %v2572
      %v2575 = vshrl.u32 %v2336, 16
      %v2577 = vrot.slane %v2575, 7
      %v2578 = vrot.slane %v2577, 4
      %v2580 = vshrl.u32 %v2337, 16
      %v2582 = vrot.slane %v2580, 7
      %v2583 = vshll.u32 %v2337, 16
      %v2585 = vor.u32 %v2582, %v2583
      %v2586 = vsel %vm585, %v2578, %v2585
      %v2587 = vrot.slane %v2582, 4
      %v2589 = vshrl.u32 %v2338, 16
      %v2591 = vrot.slane %v2589, 7
      %v2592 = vshll.u32 %v2338, 16
      %v2594 = vor.u32 %v2591, %v2592
      %v2595 = vsel %vm585, %v2587, %v2594
      %v2597 = vshrl.u32 %v2339, 16
      %v2599 = vrot.slane %v2597, 7
      %v2600 = vrot.slane %v2599, 4
      %v2602 = vshrl.u32 %v2340, 16
      %v2604 = vrot.slane %v2602, 7
      %v2605 = vshll.u32 %v2340, 16
      %v2607 = vor.u32 %v2604, %v2605
      %v2608 = vsel %vm585, %v2600, %v2607
      %v2609 = vrot.slane %v2604, 4
      %v2611 = vshrl.u32 %v2341, 16
      %v2613 = vrot.slane %v2611, 7
      %v2614 = vshll.u32 %v2341, 16
      %v2616 = vor.u32 %v2613, %v2614
      %v2617 = vsel %vm585, %v2609, %v2616
      %v2619 = vshrl.u32 %v2342, 16
      %v2621 = vrot.slane %v2619, 7
      %v2622 = vrot.slane %v2621, 4
      %v2624 = vshrl.u32 %v2343, 16
      %v2626 = vrot.slane %v2624, 7
      %v2627 = vshll.u32 %v2343, 16
      %v2629 = vor.u32 %v2626, %v2627
      %v2630 = vsel %vm585, %v2622, %v2629
      %v2631 = vrot.slane %v2626, 4
      %v2633 = vshrl.u32 %v2344, 16
      %v2635 = vrot.slane %v2633, 7
      %v2636 = vshll.u32 %v2344, 16
      %v2638 = vor.u32 %v2635, %v2636
      %v2639 = vsel %vm585, %v2631, %v2638
      %v2641 = vshrl.u32 %v2345, 16
      %v2643 = vrot.slane %v2641, 7
      %v2644 = vrot.slane %v2643, 4
      %v2646 = vshrl.u32 %v2346, 16
      %v2648 = vrot.slane %v2646, 7
      %v2649 = vshll.u32 %v2346, 16
      %v2651 = vor.u32 %v2648, %v2649
      %v2652 = vsel %vm585, %v2644, %v2651
      %v2653 = vrot.slane %v2648, 4
      %v2655 = vshrl.u32 %v2347, 16
      %v2657 = vrot.slane %v2655, 7
      %v2658 = vshll.u32 %v2347, 16
      %v2660 = vor.u32 %v2657, %v2658
      %v2661 = vsel %vm585, %v2653, %v2660
      %v2663 = vshrl.u32 %v2348, 16
      %v2665 = vrot.slane %v2663, 7
      %v2666 = vrot.slane %v2665, 4
      %v2668 = vshrl.u32 %v2349, 16
      %v2670 = vrot.slane %v2668, 7
      %v2671 = vshll.u32 %v2349, 16
      %v2673 = vor.u32 %v2670, %v2671
      %v2674 = vsel %vm585, %v2666, %v2673
      %v2675 = vrot.slane %v2670, 4
      %v2677 = vshrl.u32 %v2350, 16
      %v2679 = vrot.slane %v2677, 7
      %v2680 = vshll.u32 %v2350, 16
      %v2682 = vor.u32 %v2679, %v2680
      %v2683 = vsel %vm585, %v2675, %v2682
      %v2685 = vshrl.u32 %v2351, 16
      %v2687 = vrot.slane %v2685, 7
      %v2688 = vrot.slane %v2687, 4
      %v2690 = vshrl.u32 %v2352, 16
      %v2692 = vrot.slane %v2690, 7
      %v2693 = vshll.u32 %v2352, 16
      %v2695 = vor.u32 %v2692, %v2693
      %v2696 = vsel %vm585, %v2688, %v2695
      %v2697 = vrot.slane %v2692, 4
      %v2699 = vshrl.u32 %v2353, 16
      %v2701 = vrot.slane %v2699, 7
      %v2702 = vshll.u32 %v2353, 16
      %v2704 = vor.u32 %v2701, %v2702
      %v2705 = vsel %vm585, %v2697, %v2704
      %s2706 = scalar_lea.vmem %s1, 192
      %v2707 = vld [vmem:[%s2706] sm:$0xf]
      %v2708 = vld [vmem:[%s2706 + $0x4] sm:$0xf]
      %v2709 = vld [vmem:[%s2706 + $0x8] sm:$0xf]
      %v2710 = vld [vmem:[%s2706 + $0xc] sm:$0xf]
      %v2711 = vld [vmem:[%s2706 + $0x10] sm:$0xf]
      %v2712 = vld [vmem:[%s2706 + $0x14] sm:$0xf]
      %v2713 = vld [vmem:[%s2706 + $0x18] sm:$0xf]
      %v2714 = vld [vmem:[%s2706 + $0x1c] sm:$0xf]
      %v2715 = vld [vmem:[%s2706 + $0x20] sm:$0xf]
      %v2716 = vld [vmem:[%s2706 + $0x24] sm:$0xf]
      %v2717 = vld [vmem:[%s2706 + $0x28] sm:$0xf]
      %v2718 = vld [vmem:[%s2706 + $0x2c] sm:$0xf]
      %v2719 = vld [vmem:[%s2706 + $0x30] sm:$0xf]
      %v2720 = vld [vmem:[%s2706 + $0x34] sm:$0xf]
      %v2721 = vld [vmem:[%s2706 + $0x38] sm:$0xf]
      %v2722 = vld [vmem:[%s2706 + $0x3c] sm:$0xf]
      %v2723 = vunpack.c.l.b16 %v2366
      %v2724 = vunpack.c.l.b16 %v2375
      %v2725 = vunpack.c.l.b16 %v2388
      %v2726 = vunpack.c.l.b16 %v2397
      %v2727 = vunpack.c.l.b16 %v2410
      %v2728 = vunpack.c.l.b16 %v2419
      %v2729 = vunpack.c.l.b16 %v2432
      %v2730 = vunpack.c.l.b16 %v2441
      %v2731 = vunpack.c.l.b16 %v2454
      %v2732 = vunpack.c.l.b16 %v2463
      %v2733 = vunpack.c.l.b16 %v2476
      %v2734 = vunpack.c.l.b16 %v2485
      %v2735 = vunpack.c.l.b16 %v2498
      %v2736 = vunpack.c.l.b16 %v2507
      %v2737 = vunpack.c.l.b16 %v2520
      %v2738 = vunpack.c.l.b16 %v2529
      %v2739 = vunpack.c.l.b16 %v2542
      %v2740 = vunpack.c.l.b16 %v2551
      %v2741 = vunpack.c.l.b16 %v2564
      %v2742 = vunpack.c.l.b16 %v2573
      %v2743 = vunpack.c.l.b16 %v2586
      %v2744 = vunpack.c.l.b16 %v2595
      %v2745 = vunpack.c.l.b16 %v2608
      %v2746 = vunpack.c.l.b16 %v2617
      %v2747 = vunpack.c.l.b16 %v2630
      %v2748 = vunpack.c.l.b16 %v2639
      %v2749 = vunpack.c.l.b16 %v2652
      %v2750 = vunpack.c.l.b16 %v2661
      %v2751 = vunpack.c.l.b16 %v2674
      %v2752 = vunpack.c.l.b16 %v2683
      %v2753 = vunpack.c.l.b16 %v2696
      %v2754 = vunpack.c.l.b16 %v2705
      %v2755 = vpack.c.b16 %v2724, %v2723
      %v2756 = vpack.c.b16 %v2726, %v2725
      %v2757 = vpack.c.b16 %v2728, %v2727
      %v2758 = vpack.c.b16 %v2730, %v2729
      %v2759 = vpack.c.b16 %v2732, %v2731
      %v2760 = vpack.c.b16 %v2734, %v2733
      %v2761 = vpack.c.b16 %v2736, %v2735
      %v2762 = vpack.c.b16 %v2738, %v2737
      %v2763 = vpack.c.b16 %v2740, %v2739
      %v2764 = vpack.c.b16 %v2742, %v2741
      %v2765 = vpack.c.b16 %v2744, %v2743
      %v2766 = vpack.c.b16 %v2746, %v2745
      %v2767 = vpack.c.b16 %v2748, %v2747
      %v2768 = vpack.c.b16 %v2750, %v2749
      %v2769 = vpack.c.b16 %v2752, %v2751
      %v2770 = vpack.c.b16 %v2754, %v2753
      %v2803 = vunpack.c.l.b16 %v2707
      %v2804 = vunpack.c.l.b16 %v2708
      %v2805 = vunpack.c.l.b16 %v2709
      %v2806 = vunpack.c.l.b16 %v2710
      %v2807 = vunpack.c.l.b16 %v2711
      %v2808 = vunpack.c.l.b16 %v2712
      %v2809 = vunpack.c.l.b16 %v2713
      %v2810 = vunpack.c.l.b16 %v2714
      %v2811 = vunpack.c.l.b16 %v2715
      %v2812 = vunpack.c.l.b16 %v2716
      %v2813 = vunpack.c.l.b16 %v2717
      %v2814 = vunpack.c.l.b16 %v2718
      %v2815 = vunpack.c.l.b16 %v2719
      %v2816 = vunpack.c.l.b16 %v2720
      %v2817 = vunpack.c.l.b16 %v2721
      %v2818 = vunpack.c.l.b16 %v2722
      %v2819 = vpack.c.b16 %v2804, %v2803
      %v2820 = vpack.c.b16 %v2806, %v2805
      %v2821 = vpack.c.b16 %v2808, %v2807
      %v2822 = vpack.c.b16 %v2810, %v2809
      %v2823 = vpack.c.b16 %v2812, %v2811
      %v2824 = vpack.c.b16 %v2814, %v2813
      %v2825 = vpack.c.b16 %v2816, %v2815
      %v2826 = vpack.c.b16 %v2818, %v2817
      %2835 = vmatprep.subr.bf16.mxu0 0
      %2836 = vmatpush1.bf16.msra.mxu0 %v2819
      %2837 = vmatprep.subr.bf16.mxu0 0
      %2838 = vmatpush1.bf16.msra.mxu0 %v2820
      %2839 = vmatprep.subr.bf16.mxu0 0
      %2840 = vmatpush1.bf16.msra.mxu0 %v2821
      %2841 = vmatprep.subr.bf16.mxu0 0
      %2842 = vmatpush1.bf16.msra.mxu0 %v2822
      %2843 = vmatprep.subr.bf16.mxu0 0
      %2844 = vmatpush1.bf16.msra.mxu0 %v2823
      %2845 = vmatprep.subr.bf16.mxu0 0
      %2846 = vmatpush1.bf16.msra.mxu0 %v2824
      %2847 = vmatprep.subr.bf16.mxu0 0
      %2848 = vmatpush1.bf16.msra.mxu0 %v2825
      %2849 = vmatprep.subr.bf16.mxu0 0
      %2850 = vmatpush1.bf16.msra.mxu0 %v2826
      %2851 = vmatprep.subr.bf16.mxu0 0
      %2852 = vmatpush1.bf16.msra.mxu0 0
      %2853 = vmatprep.subr.bf16.mxu0 0
      %2854 = vmatpush1.bf16.msra.mxu0 0
      %2855 = vmatprep.subr.bf16.mxu0 0
      %2856 = vmatpush1.bf16.msra.mxu0 0
      %2857 = vmatprep.subr.bf16.mxu0 0
      %2858 = vmatpush1.bf16.msra.mxu0 0
      %2859 = vmatprep.subr.bf16.mxu0 0
      %2860 = vmatpush1.bf16.msra.mxu0 0
      %2861 = vmatprep.subr.bf16.mxu0 0
      %2862 = vmatpush1.bf16.msra.mxu0 0
      %2863 = vmatprep.subr.bf16.mxu0 0
      %2864 = vmatpush1.bf16.msra.mxu0 0
      %2865 = vmatprep.subr.bf16.mxu0 0
      %2866 = vmatpush1.bf16.msra.mxu0 0
      %2867 = vmatprep.mubr.bf16.mxu0 0
      %2868 = vmatmul.mubr.bf16.gmra.mrb[0].mxu0 %v2755
      %v2869 = vpop.f32.mrb[0].mxu0
      %v2870 = vadd.f32 0.0, %v2869
      %v2871 = vpop.f32.mrb[0].mxu0
      %v2872 = vpop.f32.mrb[0].mxu0
      %v2873 = vadd.f32 0.0, %v2872
      %v2874 = vpop.f32.mrb[0].mxu0
      %2875 = vmatprep.mubr.bf16.mxu0 0
      %2876 = vmatmul.mubr.bf16.gmra.mrb[0].mxu0 %v2756
      %v2877 = vpop.f32.mrb[0].mxu0
      %v2878 = vadd.f32 0.0, %v2877
      %v2879 = vpop.f32.mrb[0].mxu0
      %v2880 = vpop.f32.mrb[0].mxu0
      %v2881 = vadd.f32 0.0, %v2880
      %v2882 = vpop.f32.mrb[0].mxu0
      %2883 = vmatprep.mubr.bf16.mxu0 0
      %2884 = vmatmul.mubr.bf16.gmra.mrb[0].mxu0 %v2757
      %v2885 = vpop.f32.mrb[0].mxu0
      %v2886 = vadd.f32 0.0, %v2885
      %v2887 = vpop.f32.mrb[0].mxu0
      %v2888 = vpop.f32.mrb[0].mxu0
      %v2889 = vadd.f32 0.0, %v2888
      %v2890 = vpop.f32.mrb[0].mxu0
      %2891 = vmatprep.mubr.bf16.mxu0 0
      %2892 = vmatmul.mubr.bf16.gmra.mrb[0].mxu0 %v2758
      %v2893 = vpop.f32.mrb[0].mxu0
      %v2894 = vadd.f32 0.0, %v2893
      %v2895 = vpop.f32.mrb[0].mxu0
      %v2896 = vpop.f32.mrb[0].mxu0
      %v2897 = vadd.f32 0.0, %v2896
      %v2898 = vpop.f32.mrb[0].mxu0
      %2899 = vmatprep.mubr.bf16.mxu0 0
      %2900 = vmatmul.mubr.bf16.gmra.mrb[0].mxu0 %v2759
      %v2901 = vpop.f32.mrb[0].mxu0
      %v2902 = vadd.f32 0.0, %v2901
      %v2903 = vpop.f32.mrb[0].mxu0
      %v2904 = vpop.f32.mrb[0].mxu0
      %v2905 = vadd.f32 0.0, %v2904
      %v2906 = vpop.f32.mrb[0].mxu0
      %2907 = vmatprep.mubr.bf16.mxu0 0
      %2908 = vmatmul.mubr.bf16.gmra.mrb[0].mxu0 %v2760
      %v2909 = vpop.f32.mrb[0].mxu0
      %v2910 = vadd.f32 0.0, %v2909
      %v2911 = vpop.f32.mrb[0].mxu0
      %v2912 = vpop.f32.mrb[0].mxu0
      %v2913 = vadd.f32 0.0, %v2912
      %v2914 = vpop.f32.mrb[0].mxu0
      %2915 = vmatprep.mubr.bf16.mxu0 0
      %2916 = vmatmul.mubr.bf16.gmra.mrb[0].mxu0 %v2761
      %v2917 = vpop.f32.mrb[0].mxu0
      %v2918 = vadd.f32 0.0, %v2917
      %v2919 = vpop.f32.mrb[0].mxu0
      %v2920 = vpop.f32.mrb[0].mxu0
      %v2921 = vadd.f32 0.0, %v2920
      %v2922 = vpop.f32.mrb[0].mxu0
      %2923 = vmatprep.mubr.bf16.mxu0 0
      %2924 = vmatmul.mubr.bf16.gmra.mrb[0].mxu0 %v2762
      %v2925 = vpop.f32.mrb[0].mxu0
      %v2926 = vadd.f32 0.0, %v2925
      %v2927 = vpop.f32.mrb[0].mxu0
      %v2928 = vpop.f32.mrb[0].mxu0
      %v2929 = vadd.f32 0.0, %v2928
      %v2930 = vpop.f32.mrb[0].mxu0
      %2931 = vmatprep.mubr.bf16.mxu0 0
      %2932 = vmatmul.mubr.bf16.gmra.mrb[0].mxu0 %v2763
      %v2933 = vpop.f32.mrb[0].mxu0
      %v2934 = vadd.f32 0.0, %v2933
      %v2935 = vpop.f32.mrb[0].mxu0
      %v2936 = vpop.f32.mrb[0].mxu0
      %v2937 = vadd.f32 0.0, %v2936
      %v2938 = vpop.f32.mrb[0].mxu0
      %2939 = vmatprep.mubr.bf16.mxu0 0
      %2940 = vmatmul.mubr.bf16.gmra.mrb[0].mxu0 %v2764
      %v2941 = vpop.f32.mrb[0].mxu0
      %v2942 = vadd.f32 0.0, %v2941
      %v2943 = vpop.f32.mrb[0].mxu0
      %v2944 = vpop.f32.mrb[0].mxu0
      %v2945 = vadd.f32 0.0, %v2944
      %v2946 = vpop.f32.mrb[0].mxu0
      %2947 = vmatprep.mubr.bf16.mxu0 0
      %2948 = vmatmul.mubr.bf16.gmra.mrb[0].mxu0 %v2765
      %v2949 = vpop.f32.mrb[0].mxu0
      %v2950 = vadd.f32 0.0, %v2949
      %v2951 = vpop.f32.mrb[0].mxu0
      %v2952 = vpop.f32.mrb[0].mxu0
      %v2953 = vadd.f32 0.0, %v2952
      %v2954 = vpop.f32.mrb[0].mxu0
      %2955 = vmatprep.mubr.bf16.mxu0 0
      %2956 = vmatmul.mubr.bf16.gmra.mrb[0].mxu0 %v2766
      %v2957 = vpop.f32.mrb[0].mxu0
      %v2958 = vadd.f32 0.0, %v2957
      %v2959 = vpop.f32.mrb[0].mxu0
      %v2960 = vpop.f32.mrb[0].mxu0
      %v2961 = vadd.f32 0.0, %v2960
      %v2962 = vpop.f32.mrb[0].mxu0
      %2963 = vmatprep.mubr.bf16.mxu0 0
      %2964 = vmatmul.mubr.bf16.gmra.mrb[0].mxu0 %v2767
      %v2965 = vpop.f32.mrb[0].mxu0
      %v2966 = vadd.f32 0.0, %v2965
      %v2967 = vpop.f32.mrb[0].mxu0
      %v2968 = vpop.f32.mrb[0].mxu0
      %v2969 = vadd.f32 0.0, %v2968
      %v2970 = vpop.f32.mrb[0].mxu0
      %2971 = vmatprep.mubr.bf16.mxu0 0
      %2972 = vmatmul.mubr.bf16.gmra.mrb[0].mxu0 %v2768
      %v2973 = vpop.f32.mrb[0].mxu0
      %v2974 = vadd.f32 0.0, %v2973
      %v2975 = vpop.f32.mrb[0].mxu0
      %v2976 = vpop.f32.mrb[0].mxu0
      %v2977 = vadd.f32 0.0, %v2976
      %v2978 = vpop.f32.mrb[0].mxu0
      %2979 = vmatprep.mubr.bf16.mxu0 0
      %2980 = vmatmul.mubr.bf16.gmra.mrb[0].mxu0 %v2769
      %v2981 = vpop.f32.mrb[0].mxu0
      %v2982 = vadd.f32 0.0, %v2981
      %v2983 = vpop.f32.mrb[0].mxu0
      %v2984 = vpop.f32.mrb[0].mxu0
      %v2985 = vadd.f32 0.0, %v2984
      %v2986 = vpop.f32.mrb[0].mxu0
      %2987 = vmatprep.mubr.bf16.mxu0 0
      %2988 = vmatmul.mubr.bf16.gmra.mrb[0].mxu0 %v2770
      %v2989 = vpop.f32.mrb[0].mxu0
      %v2990 = vadd.f32 0.0, %v2989
      %v2991 = vpop.f32.mrb[0].mxu0
      %v2992 = vpop.f32.mrb[0].mxu0
      %v2993 = vadd.f32 0.0, %v2992
      %v2994 = vpop.f32.mrb[0].mxu0
      %2995 = vdwg.mxu0
      %v2996 = vadd.f32 %v2274, %v2870
      %v2997 = vadd.f32 %v2275, %v2873
      %v2998 = vadd.f32 %v2276, %v2878
      %v2999 = vadd.f32 %v2277, %v2881
      %v3000 = vadd.f32 %v2278, %v2886
      %v3001 = vadd.f32 %v2279, %v2889
      %v3002 = vadd.f32 %v2280, %v2894
      %v3003 = vadd.f32 %v2281, %v2897
      %v3004 = vadd.f32 %v2282, %v2902
      %v3005 = vadd.f32 %v2283, %v2905
      %v3006 = vadd.f32 %v2284, %v2910
      %v3007 = vadd.f32 %v2285, %v2913
      %v3008 = vadd.f32 %v2286, %v2918
      %v3009 = vadd.f32 %v2287, %v2921
      %v3010 = vadd.f32 %v2288, %v2926
      %v3011 = vadd.f32 %v2289, %v2929
      %v3012 = vadd.f32 %v2290, %v2934
      %v3013 = vadd.f32 %v2291, %v2937
      %v3014 = vadd.f32 %v2292, %v2942
      %v3015 = vadd.f32 %v2293, %v2945
      %v3016 = vadd.f32 %v2294, %v2950
      %v3017 = vadd.f32 %v2295, %v2953
      %v3018 = vadd.f32 %v2296, %v2958
      %v3019 = vadd.f32 %v2297, %v2961
      %v3020 = vadd.f32 %v2298, %v2966
      %v3021 = vadd.f32 %v2299, %v2969
      %v3022 = vadd.f32 %v2300, %v2974
      %v3023 = vadd.f32 %v2301, %v2977
      %v3024 = vadd.f32 %v2302, %v2982
      %v3025 = vadd.f32 %v2303, %v2985
      %v3026 = vadd.f32 %v2304, %v2990
      %v3027 = vadd.f32 %v2305, %v2993
      %s3028 = scalar_lea.vmem %s1, 256
      %v3029 = vld [vmem:[%s3028] sm:$0xf]
      %v3030 = vld [vmem:[%s3028 + $0x4] sm:$0xf]
      %v3031 = vld [vmem:[%s3028 + $0x8] sm:$0xf]
      %v3032 = vld [vmem:[%s3028 + $0xc] sm:$0xf]
      %v3033 = vld [vmem:[%s3028 + $0x10] sm:$0xf]
      %v3034 = vld [vmem:[%s3028 + $0x14] sm:$0xf]
      %v3035 = vld [vmem:[%s3028 + $0x18] sm:$0xf]
      %v3036 = vld [vmem:[%s3028 + $0x1c] sm:$0xf]
      %v3037 = vld [vmem:[%s3028 + $0x20] sm:$0xf]
      %v3038 = vld [vmem:[%s3028 + $0x24] sm:$0xf]
      %v3039 = vld [vmem:[%s3028 + $0x28] sm:$0xf]
      %v3040 = vld [vmem:[%s3028 + $0x2c] sm:$0xf]
      %v3041 = vld [vmem:[%s3028 + $0x30] sm:$0xf]
      %v3042 = vld [vmem:[%s3028 + $0x34] sm:$0xf]
      %v3043 = vld [vmem:[%s3028 + $0x38] sm:$0xf]
      %v3044 = vld [vmem:[%s3028 + $0x3c] sm:$0xf]
      %v3077 = vunpack.c.l.b16 %v2307
      %v3078 = vunpack.c.l.b16 %v2308
      %v3079 = vunpack.c.l.b16 %v2310
      %v3080 = vunpack.c.l.b16 %v2311
      %v3081 = vunpack.c.l.b16 %v2313
      %v3082 = vunpack.c.l.b16 %v2314
      %v3083 = vunpack.c.l.b16 %v2316
      %v3084 = vunpack.c.l.b16 %v2317
      %v3085 = vunpack.c.l.b16 %v2319
      %v3086 = vunpack.c.l.b16 %v2320
      %v3087 = vunpack.c.l.b16 %v2322
      %v3088 = vunpack.c.l.b16 %v2323
      %v3089 = vunpack.c.l.b16 %v2325
      %v3090 = vunpack.c.l.b16 %v2326
      %v3091 = vunpack.c.l.b16 %v2328
      %v3092 = vunpack.c.l.b16 %v2329
      %v3093 = vunpack.c.l.b16 %v2331
      %v3094 = vunpack.c.l.b16 %v2332
      %v3095 = vunpack.c.l.b16 %v2334
      %v3096 = vunpack.c.l.b16 %v2335
      %v3097 = vunpack.c.l.b16 %v2337
      %v3098 = vunpack.c.l.b16 %v2338
      %v3099 = vunpack.c.l.b16 %v2340
      %v3100 = vunpack.c.l.b16 %v2341
      %v3101 = vunpack.c.l.b16 %v2343
      %v3102 = vunpack.c.l.b16 %v2344
      %v3103 = vunpack.c.l.b16 %v2346
      %v3104 = vunpack.c.l.b16 %v2347
      %v3105 = vunpack.c.l.b16 %v2349
      %v3106 = vunpack.c.l.b16 %v2350
      %v3107 = vunpack.c.l.b16 %v2352
      %v3108 = vunpack.c.l.b16 %v2353
      %v3109 = vpack.c.b16 %v3078, %v3077
      %v3110 = vpack.c.b16 %v3080, %v3079
      %v3111 = vpack.c.b16 %v3082, %v3081
      %v3112 = vpack.c.b16 %v3084, %v3083
      %v3113 = vpack.c.b16 %v3086, %v3085
      %v3114 = vpack.c.b16 %v3088, %v3087
      %v3115 = vpack.c.b16 %v3090, %v3089
      %v3116 = vpack.c.b16 %v3092, %v3091
      %v3117 = vpack.c.b16 %v3094, %v3093
      %v3118 = vpack.c.b16 %v3096, %v3095
      %v3119 = vpack.c.b16 %v3098, %v3097
      %v3120 = vpack.c.b16 %v3100, %v3099
      %v3121 = vpack.c.b16 %v3102, %v3101
      %v3122 = vpack.c.b16 %v3104, %v3103
      %v3123 = vpack.c.b16 %v3106, %v3105
      %v3124 = vpack.c.b16 %v3108, %v3107
      %v3157 = vunpack.c.l.b16 %v3029
      %v3158 = vunpack.c.l.b16 %v3030
      %v3159 = vunpack.c.l.b16 %v3031
      %v3160 = vunpack.c.l.b16 %v3032
      %v3161 = vunpack.c.l.b16 %v3033
      %v3162 = vunpack.c.l.b16 %v3034
      %v3163 = vunpack.c.l.b16 %v3035
      %v3164 = vunpack.c.l.b16 %v3036
      %v3165 = vunpack.c.l.b16 %v3037
      %v3166 = vunpack.c.l.b16 %v3038
      %v3167 = vunpack.c.l.b16 %v3039
      %v3168 = vunpack.c.l.b16 %v3040
      %v3169 = vunpack.c.l.b16 %v3041
      %v3170 = vunpack.c.l.b16 %v3042
      %v3171 = vunpack.c.l.b16 %v3043
      %v3172 = vunpack.c.l.b16 %v3044
      %v3173 = vpack.c.b16 %v3158, %v3157
      %v3174 = vpack.c.b16 %v3160, %v3159
      %v3175 = vpack.c.b16 %v3162, %v3161
      %v3176 = vpack.c.b16 %v3164, %v3163
      %v3177 = vpack.c.b16 %v3166, %v3165
      %v3178 = vpack.c.b16 %v3168, %v3167
      %v3179 = vpack.c.b16 %v3170, %v3169
      %v3180 = vpack.c.b16 %v3172, %v3171
      %3189 = vmatprep.subr.bf16.mxu0 0
      %3190 = vmatpush1.bf16.msra.mxu0 %v3173
      %3191 = vmatprep.subr.bf16.mxu0 0
      %3192 = vmatpush1.bf16.msra.mxu0 %v3174
      %3193 = vmatprep.subr.bf16.mxu0 0
      %3194 = vmatpush1.bf16.msra.mxu0 %v3175
      %3195 = vmatprep.subr.bf16.mxu0 0
      %3196 = vmatpush1.bf16.msra.mxu0 %v3176
      %3197 = vmatprep.subr.bf16.mxu0 0
      %3198 = vmatpush1.bf16.msra.mxu0 %v3177
      %3199 = vmatprep.subr.bf16.mxu0 0
      %3200 = vmatpush1.bf16.msra.mxu0 %v3178
      %3201 = vmatprep.subr.bf16.mxu0 0
      %3202 = vmatpush1.bf16.msra.mxu0 %v3179
      %3203 = vmatprep.subr.bf16.mxu0 0
      %3204 = vmatpush1.bf16.msra.mxu0 %v3180
      %3205 = vmatprep.subr.bf16.mxu0 0
      %3206 = vmatpush1.bf16.msra.mxu0 0
      %3207 = vmatprep.subr.bf16.mxu0 0
      %3208 = vmatpush1.bf16.msra.mxu0 0
      %3209 = vmatprep.subr.bf16.mxu0 0
      %3210 = vmatpush1.bf16.msra.mxu0 0
      %3211 = vmatprep.subr.bf16.mxu0 0
      %3212 = vmatpush1.bf16.msra.mxu0 0
      %3213 = vmatprep.subr.bf16.mxu0 0
      %3214 = vmatpush1.bf16.msra.mxu0 0
      %3215 = vmatprep.subr.bf16.mxu0 0
      %3216 = vmatpush1.bf16.msra.mxu0 0
      %3217 = vmatprep.subr.bf16.mxu0 0
      %3218 = vmatpush1.bf16.msra.mxu0 0
      %3219 = vmatprep.subr.bf16.mxu0 0
      %3220 = vmatpush1.bf16.msra.mxu0 0
      %3221 = vmatprep.mubr.bf16.mxu0 0
      %3222 = vmatmul.mubr.bf16.gmra.mrb[0].mxu0 %v3109
      %v3223 = vpop.f32.mrb[0].mxu0
      %v3224 = vadd.f32 0.0, %v3223
      %v3225 = vpop.f32.mrb[0].mxu0
      %v3226 = vpop.f32.mrb[0].mxu0
      %v3227 = vadd.f32 0.0, %v3226
      %v3228 = vpop.f32.mrb[0].mxu0
      %3229 = vmatprep.mubr.bf16.mxu0 0
      %3230 = vmatmul.mubr.bf16.gmra.mrb[0].mxu0 %v3110
      %v3231 = vpop.f32.mrb[0].mxu0
      %v3232 = vadd.f32 0.0, %v3231
      %v3233 = vpop.f32.mrb[0].mxu0
      %v3234 = vpop.f32.mrb[0].mxu0
      %v3235 = vadd.f32 0.0, %v3234
      %v3236 = vpop.f32.mrb[0].mxu0
      %3237 = vmatprep.mubr.bf16.mxu0 0
      %3238 = vmatmul.mubr.bf16.gmra.mrb[0].mxu0 %v3111
      %v3239 = vpop.f32.mrb[0].mxu0
      %v3240 = vadd.f32 0.0, %v3239
      %v3241 = vpop.f32.mrb[0].mxu0
      %v3242 = vpop.f32.mrb[0].mxu0
      %v3243 = vadd.f32 0.0, %v3242
      %v3244 = vpop.f32.mrb[0].mxu0
      %3245 = vmatprep.mubr.bf16.mxu0 0
      %3246 = vmatmul.mubr.bf16.gmra.mrb[0].mxu0 %v3112
      %v3247 = vpop.f32.mrb[0].mxu0
      %v3248 = vadd.f32 0.0, %v3247
      %v3249 = vpop.f32.mrb[0].mxu0
      %v3250 = vpop.f32.mrb[0].mxu0
      %v3251 = vadd.f32 0.0, %v3250
      %v3252 = vpop.f32.mrb[0].mxu0
      %3253 = vmatprep.mubr.bf16.mxu0 0
      %3254 = vmatmul.mubr.bf16.gmra.mrb[0].mxu0 %v3113
      %v3255 = vpop.f32.mrb[0].mxu0
      %v3256 = vadd.f32 0.0, %v3255
      %v3257 = vpop.f32.mrb[0].mxu0
      %v3258 = vpop.f32.mrb[0].mxu0
      %v3259 = vadd.f32 0.0, %v3258
      %v3260 = vpop.f32.mrb[0].mxu0
      %3261 = vmatprep.mubr.bf16.mxu0 0
      %3262 = vmatmul.mubr.bf16.gmra.mrb[0].mxu0 %v3114
      %v3263 = vpop.f32.mrb[0].mxu0
      %v3264 = vadd.f32 0.0, %v3263
      %v3265 = vpop.f32.mrb[0].mxu0
      %v3266 = vpop.f32.mrb[0].mxu0
      %v3267 = vadd.f32 0.0, %v3266
      %v3268 = vpop.f32.mrb[0].mxu0
      %3269 = vmatprep.mubr.bf16.mxu0 0
      %3270 = vmatmul.mubr.bf16.gmra.mrb[0].mxu0 %v3115
      %v3271 = vpop.f32.mrb[0].mxu0
      %v3272 = vadd.f32 0.0, %v3271
      %v3273 = vpop.f32.mrb[0].mxu0
      %v3274 = vpop.f32.mrb[0].mxu0
      %v3275 = vadd.f32 0.0, %v3274
      %v3276 = vpop.f32.mrb[0].mxu0
      %3277 = vmatprep.mubr.bf16.mxu0 0
      %3278 = vmatmul.mubr.bf16.gmra.mrb[0].mxu0 %v3116
      %v3279 = vpop.f32.mrb[0].mxu0
      %v3280 = vadd.f32 0.0, %v3279
      %v3281 = vpop.f32.mrb[0].mxu0
      %v3282 = vpop.f32.mrb[0].mxu0
      %v3283 = vadd.f32 0.0, %v3282
      %v3284 = vpop.f32.mrb[0].mxu0
      %3285 = vmatprep.mubr.bf16.mxu0 0
      %3286 = vmatmul.mubr.bf16.gmra.mrb[0].mxu0 %v3117
      %v3287 = vpop.f32.mrb[0].mxu0
      %v3288 = vadd.f32 0.0, %v3287
      %v3289 = vpop.f32.mrb[0].mxu0
      %v3290 = vpop.f32.mrb[0].mxu0
      %v3291 = vadd.f32 0.0, %v3290
      %v3292 = vpop.f32.mrb[0].mxu0
      %3293 = vmatprep.mubr.bf16.mxu0 0
      %3294 = vmatmul.mubr.bf16.gmra.mrb[0].mxu0 %v3118
      %v3295 = vpop.f32.mrb[0].mxu0
      %v3296 = vadd.f32 0.0, %v3295
      %v3297 = vpop.f32.mrb[0].mxu0
      %v3298 = vpop.f32.mrb[0].mxu0
      %v3299 = vadd.f32 0.0, %v3298
      %v3300 = vpop.f32.mrb[0].mxu0
      %3301 = vmatprep.mubr.bf16.mxu0 0
      %3302 = vmatmul.mubr.bf16.gmra.mrb[0].mxu0 %v3119
      %v3303 = vpop.f32.mrb[0].mxu0
      %v3304 = vadd.f32 0.0, %v3303
      %v3305 = vpop.f32.mrb[0].mxu0
      %v3306 = vpop.f32.mrb[0].mxu0
      %v3307 = vadd.f32 0.0, %v3306
      %v3308 = vpop.f32.mrb[0].mxu0
      %3309 = vmatprep.mubr.bf16.mxu0 0
      %3310 = vmatmul.mubr.bf16.gmra.mrb[0].mxu0 %v3120
      %v3311 = vpop.f32.mrb[0].mxu0
      %v3312 = vadd.f32 0.0, %v3311
      %v3313 = vpop.f32.mrb[0].mxu0
      %v3314 = vpop.f32.mrb[0].mxu0
      %v3315 = vadd.f32 0.0, %v3314
      %v3316 = vpop.f32.mrb[0].mxu0
      %3317 = vmatprep.mubr.bf16.mxu0 0
      %3318 = vmatmul.mubr.bf16.gmra.mrb[0].mxu0 %v3121
      %v3319 = vpop.f32.mrb[0].mxu0
      %v3320 = vadd.f32 0.0, %v3319
      %v3321 = vpop.f32.mrb[0].mxu0
      %v3322 = vpop.f32.mrb[0].mxu0
      %v3323 = vadd.f32 0.0, %v3322
      %v3324 = vpop.f32.mrb[0].mxu0
      %3325 = vmatprep.mubr.bf16.mxu0 0
      %3326 = vmatmul.mubr.bf16.gmra.mrb[0].mxu0 %v3122
      %v3327 = vpop.f32.mrb[0].mxu0
      %v3328 = vadd.f32 0.0, %v3327
      %v3329 = vpop.f32.mrb[0].mxu0
      %v3330 = vpop.f32.mrb[0].mxu0
      %v3331 = vadd.f32 0.0, %v3330
      %v3332 = vpop.f32.mrb[0].mxu0
      %3333 = vmatprep.mubr.bf16.mxu0 0
      %3334 = vmatmul.mubr.bf16.gmra.mrb[0].mxu0 %v3123
      %v3335 = vpop.f32.mrb[0].mxu0
      %v3336 = vadd.f32 0.0, %v3335
      %v3337 = vpop.f32.mrb[0].mxu0
      %v3338 = vpop.f32.mrb[0].mxu0
      %v3339 = vadd.f32 0.0, %v3338
      %v3340 = vpop.f32.mrb[0].mxu0
      %3341 = vmatprep.mubr.bf16.mxu0 0
      %3342 = vmatmul.mubr.bf16.gmra.mrb[0].mxu0 %v3124
      %v3343 = vpop.f32.mrb[0].mxu0
      %v3344 = vadd.f32 0.0, %v3343
      %v3345 = vpop.f32.mrb[0].mxu0
      %v3346 = vpop.f32.mrb[0].mxu0
      %v3347 = vadd.f32 0.0, %v3346
      %v3348 = vpop.f32.mrb[0].mxu0
      %3349 = vdwg.mxu0
      %v3350 = vadd.f32 %v2996, %v3224
      %v3351 = vadd.f32 %v2997, %v3227
      %v3352 = vadd.f32 %v2998, %v3232
      %v3353 = vadd.f32 %v2999, %v3235
      %v3354 = vadd.f32 %v3000, %v3240
      %v3355 = vadd.f32 %v3001, %v3243
      %v3356 = vadd.f32 %v3002, %v3248
      %v3357 = vadd.f32 %v3003, %v3251
      %v3358 = vadd.f32 %v3004, %v3256
      %v3359 = vadd.f32 %v3005, %v3259
      %v3360 = vadd.f32 %v3006, %v3264
      %v3361 = vadd.f32 %v3007, %v3267
      %v3362 = vadd.f32 %v3008, %v3272
      %v3363 = vadd.f32 %v3009, %v3275
      %v3364 = vadd.f32 %v3010, %v3280
      %v3365 = vadd.f32 %v3011, %v3283
      %v3366 = vadd.f32 %v3012, %v3288
      %v3367 = vadd.f32 %v3013, %v3291
      %v3368 = vadd.f32 %v3014, %v3296
      %v3369 = vadd.f32 %v3015, %v3299
      %v3370 = vadd.f32 %v3016, %v3304
      %v3371 = vadd.f32 %v3017, %v3307
      %v3372 = vadd.f32 %v3018, %v3312
      %v3373 = vadd.f32 %v3019, %v3315
      %v3374 = vadd.f32 %v3020, %v3320
      %v3375 = vadd.f32 %v3021, %v3323
      %v3376 = vadd.f32 %v3022, %v3328
      %v3377 = vadd.f32 %v3023, %v3331
      %v3378 = vadd.f32 %v3024, %v3336
      %v3379 = vadd.f32 %v3025, %v3339
      %v3380 = vadd.f32 %v3026, %v3344
      %v3381 = vadd.f32 %v3027, %v3347
      %v3382 = vld [vmem:[%s244 + $0x8] sm:$0xf]
      %v3383 = vld [vmem:[%s244 + $0xc] sm:$0xf]
      %v3384 = vld [vmem:[%s244 + $0x10] sm:$0x1]
      %v3385 = vld [vmem:[%s244 + $0x1c] sm:$0xf]
      %v3386 = vld [vmem:[%s244 + $0x20] sm:$0xf]
      %v3387 = vld [vmem:[%s244 + $0x24] sm:$0x1]
      %v3388 = vld [vmem:[%s244 + $0x30] sm:$0xf]
      %v3389 = vld [vmem:[%s244 + $0x34] sm:$0xf]
      %v3390 = vld [vmem:[%s244 + $0x38] sm:$0x1]
      %v3391 = vld [vmem:[%s244 + $0x44] sm:$0xf]
      %v3392 = vld [vmem:[%s244 + $0x48] sm:$0xf]
      %v3393 = vld [vmem:[%s244 + $0x4c] sm:$0x1]
      %v3394 = vld [vmem:[%s244 + $0x58] sm:$0xf]
      %v3395 = vld [vmem:[%s244 + $0x5c] sm:$0xf]
      %v3396 = vld [vmem:[%s244 + $0x60] sm:$0x1]
      %v3397 = vld [vmem:[%s244 + $0x6c] sm:$0xf]
      %v3398 = vld [vmem:[%s244 + $0x70] sm:$0xf]
      %v3399 = vld [vmem:[%s244 + $0x74] sm:$0x1]
      %v3400 = vld [vmem:[%s244 + $0x80] sm:$0xf]
      %v3401 = vld [vmem:[%s244 + $0x84] sm:$0xf]
      %v3402 = vld [vmem:[%s244 + $0x88] sm:$0x1]
      %v3403 = vld [vmem:[%s244 + $0x94] sm:$0xf]
      %v3404 = vld [vmem:[%s244 + $0x98] sm:$0xf]
      %v3405 = vld [vmem:[%s244 + $0x9c] sm:$0x1]
      %v3406 = vld [vmem:[%s244 + $0xa8] sm:$0xf]
      %v3407 = vld [vmem:[%s244 + $0xac] sm:$0xf]
      %v3408 = vld [vmem:[%s244 + $0xb0] sm:$0x1]
      %v3409 = vld [vmem:[%s244 + $0xbc] sm:$0xf]
      %v3410 = vld [vmem:[%s244 + $0xc0] sm:$0xf]
      %v3411 = vld [vmem:[%s244 + $0xc4] sm:$0x1]
      %v3412 = vld [vmem:[%s244 + $0xd0] sm:$0xf]
      %v3413 = vld [vmem:[%s244 + $0xd4] sm:$0xf]
      %v3414 = vld [vmem:[%s244 + $0xd8] sm:$0x1]
      %v3415 = vld [vmem:[%s244 + $0xe4] sm:$0xf]
      %v3416 = vld [vmem:[%s244 + $0xe8] sm:$0xf]
      %v3417 = vld [vmem:[%s244 + $0xec] sm:$0x1]
      %v3418 = vld [vmem:[%s244 + $0xf8] sm:$0xf]
      %v3419 = vld [vmem:[%s244 + $0xfc] sm:$0xf]
      %v3420 = vld [vmem:[%s244 + $0x100] sm:$0x1]
      %v3421 = vld [vmem:[%s244 + $0x10c] sm:$0xf]
      %v3422 = vld [vmem:[%s244 + $0x110] sm:$0xf]
      %v3423 = vld [vmem:[%s244 + $0x114] sm:$0x1]
      %v3424 = vld [vmem:[%s244 + $0x120] sm:$0xf]
      %v3425 = vld [vmem:[%s244 + $0x124] sm:$0xf]
      %v3426 = vld [vmem:[%s244 + $0x128] sm:$0x1]
      %v3427 = vld [vmem:[%s244 + $0x134] sm:$0xf]
      %v3428 = vld [vmem:[%s244 + $0x138] sm:$0xf]
      %v3429 = vld [vmem:[%s244 + $0x13c] sm:$0x1]
      %v3431 = vshrl.u32 %v3382, 16
      %v3433 = vrot.slane %v3431, 4
      %v3434 = vshll.u32 %v3382, 16
      %v3436 = vrot.slane %v3434, 5
      %v3437 = vor.u32 %v3433, %v3436
      %v3438 = vrot.slane %v3437, 4
      %v3440 = vshll.u32 %v3383, 16
      %v3442 = vrot.slane %v3440, 5
      %v3443 = vsel %vm1599, %v3438, %v3442
      %v3444 = vshrl.u32 %v3383, 16
      %v3446 = vrot.slane %v3444, 4
      %v3447 = vor.u32 %v3446, %v3442
      %v3448 = vrot.slane %v3447, 4
      %v3450 = vshll.u32 %v3384, 16
      %v3452 = vrot.slane %v3450, 5
      %v3453 = vsel %vm1599, %v3448, %v3452
      %v3455 = vshrl.u32 %v3385, 16
      %v3457 = vrot.slane %v3455, 4
      %v3458 = vshll.u32 %v3385, 16
      %v3460 = vrot.slane %v3458, 5
      %v3461 = vor.u32 %v3457, %v3460
      %v3462 = vrot.slane %v3461, 4
      %v3464 = vshll.u32 %v3386, 16
      %v3466 = vrot.slane %v3464, 5
      %v3467 = vsel %vm1599, %v3462, %v3466
      %v3468 = vshrl.u32 %v3386, 16
      %v3470 = vrot.slane %v3468, 4
      %v3471 = vor.u32 %v3470, %v3466
      %v3472 = vrot.slane %v3471, 4
      %v3474 = vshll.u32 %v3387, 16
      %v3476 = vrot.slane %v3474, 5
      %v3477 = vsel %vm1599, %v3472, %v3476
      %v3479 = vshrl.u32 %v3388, 16
      %v3481 = vrot.slane %v3479, 4
      %v3482 = vshll.u32 %v3388, 16
      %v3484 = vrot.slane %v3482, 5
      %v3485 = vor.u32 %v3481, %v3484
      %v3486 = vrot.slane %v3485, 4
      %v3488 = vshll.u32 %v3389, 16
      %v3490 = vrot.slane %v3488, 5
      %v3491 = vsel %vm1599, %v3486, %v3490
      %v3492 = vshrl.u32 %v3389, 16
      %v3494 = vrot.slane %v3492, 4
      %v3495 = vor.u32 %v3494, %v3490
      %v3496 = vrot.slane %v3495, 4
      %v3498 = vshll.u32 %v3390, 16
      %v3500 = vrot.slane %v3498, 5
      %v3501 = vsel %vm1599, %v3496, %v3500
      %v3503 = vshrl.u32 %v3391, 16
      %v3505 = vrot.slane %v3503, 4
      %v3506 = vshll.u32 %v3391, 16
      %v3508 = vrot.slane %v3506, 5
      %v3509 = vor.u32 %v3505, %v3508
      %v3510 = vrot.slane %v3509, 4
      %v3512 = vshll.u32 %v3392, 16
      %v3514 = vrot.slane %v3512, 5
      %v3515 = vsel %vm1599, %v3510, %v3514
      %v3516 = vshrl.u32 %v3392, 16
      %v3518 = vrot.slane %v3516, 4
      %v3519 = vor.u32 %v3518, %v3514
      %v3520 = vrot.slane %v3519, 4
      %v3522 = vshll.u32 %v3393, 16
      %v3524 = vrot.slane %v3522, 5
      %v3525 = vsel %vm1599, %v3520, %v3524
      %v3527 = vshrl.u32 %v3394, 16
      %v3529 = vrot.slane %v3527, 4
      %v3530 = vshll.u32 %v3394, 16
      %v3532 = vrot.slane %v3530, 5
      %v3533 = vor.u32 %v3529, %v3532
      %v3534 = vrot.slane %v3533, 4
      %v3536 = vshll.u32 %v3395, 16
      %v3538 = vrot.slane %v3536, 5
      %v3539 = vsel %vm1599, %v3534, %v3538
      %v3540 = vshrl.u32 %v3395, 16
      %v3542 = vrot.slane %v3540, 4
      %v3543 = vor.u32 %v3542, %v3538
      %v3544 = vrot.slane %v3543, 4
      %v3546 = vshll.u32 %v3396, 16
      %v3548 = vrot.slane %v3546, 5
      %v3549 = vsel %vm1599, %v3544, %v3548
      %v3551 = vshrl.u32 %v3397, 16
      %v3553 = vrot.slane %v3551, 4
      %v3554 = vshll.u32 %v3397, 16
      %v3556 = vrot.slane %v3554, 5
      %v3557 = vor.u32 %v3553, %v3556
      %v3558 = vrot.slane %v3557, 4
      %v3560 = vshll.u32 %v3398, 16
      %v3562 = vrot.slane %v3560, 5
      %v3563 = vsel %vm1599, %v3558, %v3562
      %v3564 = vshrl.u32 %v3398, 16
      %v3566 = vrot.slane %v3564, 4
      %v3567 = vor.u32 %v3566, %v3562
      %v3568 = vrot.slane %v3567, 4
      %v3570 = vshll.u32 %v3399, 16
      %v3572 = vrot.slane %v3570, 5
      %v3573 = vsel %vm1599, %v3568, %v3572
      %v3575 = vshrl.u32 %v3400, 16
      %v3577 = vrot.slane %v3575, 4
      %v3578 = vshll.u32 %v3400, 16
      %v3580 = vrot.slane %v3578, 5
      %v3581 = vor.u32 %v3577, %v3580
      %v3582 = vrot.slane %v3581, 4
      %v3584 = vshll.u32 %v3401, 16
      %v3586 = vrot.slane %v3584, 5
      %v3587 = vsel %vm1599, %v3582, %v3586
      %v3588 = vshrl.u32 %v3401, 16
      %v3590 = vrot.slane %v3588, 4
      %v3591 = vor.u32 %v3590, %v3586
      %v3592 = vrot.slane %v3591, 4
      %v3594 = vshll.u32 %v3402, 16
      %v3596 = vrot.slane %v3594, 5
      %v3597 = vsel %vm1599, %v3592, %v3596
      %v3599 = vshrl.u32 %v3403, 16
      %v3601 = vrot.slane %v3599, 4
      %v3602 = vshll.u32 %v3403, 16
      %v3604 = vrot.slane %v3602, 5
      %v3605 = vor.u32 %v3601, %v3604
      %v3606 = vrot.slane %v3605, 4
      %v3608 = vshll.u32 %v3404, 16
      %v3610 = vrot.slane %v3608, 5
      %v3611 = vsel %vm1599, %v3606, %v3610
      %v3612 = vshrl.u32 %v3404, 16
      %v3614 = vrot.slane %v3612, 4
      %v3615 = vor.u32 %v3614, %v3610
      %v3616 = vrot.slane %v3615, 4
      %v3618 = vshll.u32 %v3405, 16
      %v3620 = vrot.slane %v3618, 5
      %v3621 = vsel %vm1599, %v3616, %v3620
      %v3623 = vshrl.u32 %v3406, 16
      %v3625 = vrot.slane %v3623, 4
      %v3626 = vshll.u32 %v3406, 16
      %v3628 = vrot.slane %v3626, 5
      %v3629 = vor.u32 %v3625, %v3628
      %v3630 = vrot.slane %v3629, 4
      %v3632 = vshll.u32 %v3407, 16
      %v3634 = vrot.slane %v3632, 5
      %v3635 = vsel %vm1599, %v3630, %v3634
      %v3636 = vshrl.u32 %v3407, 16
      %v3638 = vrot.slane %v3636, 4
      %v3639 = vor.u32 %v3638, %v3634
      %v3640 = vrot.slane %v3639, 4
      %v3642 = vshll.u32 %v3408, 16
      %v3644 = vrot.slane %v3642, 5
      %v3645 = vsel %vm1599, %v3640, %v3644
      %v3647 = vshrl.u32 %v3409, 16
      %v3649 = vrot.slane %v3647, 4
      %v3650 = vshll.u32 %v3409, 16
      %v3652 = vrot.slane %v3650, 5
      %v3653 = vor.u32 %v3649, %v3652
      %v3654 = vrot.slane %v3653, 4
      %v3656 = vshll.u32 %v3410, 16
      %v3658 = vrot.slane %v3656, 5
      %v3659 = vsel %vm1599, %v3654, %v3658
      %v3660 = vshrl.u32 %v3410, 16
      %v3662 = vrot.slane %v3660, 4
      %v3663 = vor.u32 %v3662, %v3658
      %v3664 = vrot.slane %v3663, 4
      %v3666 = vshll.u32 %v3411, 16
      %v3668 = vrot.slane %v3666, 5
      %v3669 = vsel %vm1599, %v3664, %v3668
      %v3671 = vshrl.u32 %v3412, 16
      %v3673 = vrot.slane %v3671, 4
      %v3674 = vshll.u32 %v3412, 16
      %v3676 = vrot.slane %v3674, 5
      %v3677 = vor.u32 %v3673, %v3676
      %v3678 = vrot.slane %v3677, 4
      %v3680 = vshll.u32 %v3413, 16
      %v3682 = vrot.slane %v3680, 5
      %v3683 = vsel %vm1599, %v3678, %v3682
      %v3684 = vshrl.u32 %v3413, 16
      %v3686 = vrot.slane %v3684, 4
      %v3687 = vor.u32 %v3686, %v3682
      %v3688 = vrot.slane %v3687, 4
      %v3690 = vshll.u32 %v3414, 16
      %v3692 = vrot.slane %v3690, 5
      %v3693 = vsel %vm1599, %v3688, %v3692
      %v3695 = vshrl.u32 %v3415, 16
      %v3697 = vrot.slane %v3695, 4
      %v3698 = vshll.u32 %v3415, 16
      %v3700 = vrot.slane %v3698, 5
      %v3701 = vor.u32 %v3697, %v3700
      %v3702 = vrot.slane %v3701, 4
      %v3704 = vshll.u32 %v3416, 16
      %v3706 = vrot.slane %v3704, 5
      %v3707 = vsel %vm1599, %v3702, %v3706
      %v3708 = vshrl.u32 %v3416, 16
      %v3710 = vrot.slane %v3708, 4
      %v3711 = vor.u32 %v3710, %v3706
      %v3712 = vrot.slane %v3711, 4
      %v3714 = vshll.u32 %v3417, 16
      %v3716 = vrot.slane %v3714, 5
      %v3717 = vsel %vm1599, %v3712, %v3716
      %v3719 = vshrl.u32 %v3418, 16
      %v3721 = vrot.slane %v3719, 4
      %v3722 = vshll.u32 %v3418, 16
      %v3724 = vrot.slane %v3722, 5
      %v3725 = vor.u32 %v3721, %v3724
      %v3726 = vrot.slane %v3725, 4
      %v3728 = vshll.u32 %v3419, 16
      %v3730 = vrot.slane %v3728, 5
      %v3731 = vsel %vm1599, %v3726, %v3730
      %v3732 = vshrl.u32 %v3419, 16
      %v3734 = vrot.slane %v3732, 4
      %v3735 = vor.u32 %v3734, %v3730
      %v3736 = vrot.slane %v3735, 4
      %v3738 = vshll.u32 %v3420, 16
      %v3740 = vrot.slane %v3738, 5
      %v3741 = vsel %vm1599, %v3736, %v3740
      %v3743 = vshrl.u32 %v3421, 16
      %v3745 = vrot.slane %v3743, 4
      %v3746 = vshll.u32 %v3421, 16
      %v3748 = vrot.slane %v3746, 5
      %v3749 = vor.u32 %v3745, %v3748
      %v3750 = vrot.slane %v3749, 4
      %v3752 = vshll.u32 %v3422, 16
      %v3754 = vrot.slane %v3752, 5
      %v3755 = vsel %vm1599, %v3750, %v3754
      %v3756 = vshrl.u32 %v3422, 16
      %v3758 = vrot.slane %v3756, 4
      %v3759 = vor.u32 %v3758, %v3754
      %v3760 = vrot.slane %v3759, 4
      %v3762 = vshll.u32 %v3423, 16
      %v3764 = vrot.slane %v3762, 5
      %v3765 = vsel %vm1599, %v3760, %v3764
      %v3767 = vshrl.u32 %v3424, 16
      %v3769 = vrot.slane %v3767, 4
      %v3770 = vshll.u32 %v3424, 16
      %v3772 = vrot.slane %v3770, 5
      %v3773 = vor.u32 %v3769, %v3772
      %v3774 = vrot.slane %v3773, 4
      %v3776 = vshll.u32 %v3425, 16
      %v3778 = vrot.slane %v3776, 5
      %v3779 = vsel %vm1599, %v3774, %v3778
      %v3780 = vshrl.u32 %v3425, 16
      %v3782 = vrot.slane %v3780, 4
      %v3783 = vor.u32 %v3782, %v3778
      %v3784 = vrot.slane %v3783, 4
      %v3786 = vshll.u32 %v3426, 16
      %v3788 = vrot.slane %v3786, 5
      %v3789 = vsel %vm1599, %v3784, %v3788
      %v3791 = vshrl.u32 %v3427, 16
      %v3793 = vrot.slane %v3791, 4
      %v3794 = vshll.u32 %v3427, 16
      %v3796 = vrot.slane %v3794, 5
      %v3797 = vor.u32 %v3793, %v3796
      %v3798 = vrot.slane %v3797, 4
      %v3800 = vshll.u32 %v3428, 16
      %v3802 = vrot.slane %v3800, 5
      %v3803 = vsel %vm1599, %v3798, %v3802
      %v3804 = vshrl.u32 %v3428, 16
      %v3806 = vrot.slane %v3804, 4
      %v3807 = vor.u32 %v3806, %v3802
      %v3808 = vrot.slane %v3807, 4
      %v3810 = vshll.u32 %v3429, 16
      %v3812 = vrot.slane %v3810, 5
      %v3813 = vsel %vm1599, %v3808, %v3812
      %s3814 = scalar_lea.vmem %s1, 320
      %v3815 = vld [vmem:[%s3814] sm:$0xf]
      %v3816 = vld [vmem:[%s3814 + $0x4] sm:$0xf]
      %v3817 = vld [vmem:[%s3814 + $0x8] sm:$0xf]
      %v3818 = vld [vmem:[%s3814 + $0xc] sm:$0xf]
      %v3819 = vld [vmem:[%s3814 + $0x10] sm:$0xf]
      %v3820 = vld [vmem:[%s3814 + $0x14] sm:$0xf]
      %v3821 = vld [vmem:[%s3814 + $0x18] sm:$0xf]
      %v3822 = vld [vmem:[%s3814 + $0x1c] sm:$0xf]
      %v3823 = vld [vmem:[%s3814 + $0x20] sm:$0xf]
      %v3824 = vld [vmem:[%s3814 + $0x24] sm:$0xf]
      %v3825 = vld [vmem:[%s3814 + $0x28] sm:$0xf]
      %v3826 = vld [vmem:[%s3814 + $0x2c] sm:$0xf]
      %v3827 = vld [vmem:[%s3814 + $0x30] sm:$0xf]
      %v3828 = vld [vmem:[%s3814 + $0x34] sm:$0xf]
      %v3829 = vld [vmem:[%s3814 + $0x38] sm:$0xf]
      %v3830 = vld [vmem:[%s3814 + $0x3c] sm:$0xf]
      %v3831 = vunpack.c.l.b16 %v3443
      %v3832 = vunpack.c.l.b16 %v3453
      %v3833 = vunpack.c.l.b16 %v3467
      %v3834 = vunpack.c.l.b16 %v3477
      %v3835 = vunpack.c.l.b16 %v3491
      %v3836 = vunpack.c.l.b16 %v3501
      %v3837 = vunpack.c.l.b16 %v3515
      %v3838 = vunpack.c.l.b16 %v3525
      %v3839 = vunpack.c.l.b16 %v3539
      %v3840 = vunpack.c.l.b16 %v3549
      %v3841 = vunpack.c.l.b16 %v3563
      %v3842 = vunpack.c.l.b16 %v3573
      %v3843 = vunpack.c.l.b16 %v3587
      %v3844 = vunpack.c.l.b16 %v3597
      %v3845 = vunpack.c.l.b16 %v3611
      %v3846 = vunpack.c.l.b16 %v3621
      %v3847 = vunpack.c.l.b16 %v3635
      %v3848 = vunpack.c.l.b16 %v3645
      %v3849 = vunpack.c.l.b16 %v3659
      %v3850 = vunpack.c.l.b16 %v3669
      %v3851 = vunpack.c.l.b16 %v3683
      %v3852 = vunpack.c.l.b16 %v3693
      %v3853 = vunpack.c.l.b16 %v3707
      %v3854 = vunpack.c.l.b16 %v3717
      %v3855 = vunpack.c.l.b16 %v3731
      %v3856 = vunpack.c.l.b16 %v3741
      %v3857 = vunpack.c.l.b16 %v3755
      %v3858 = vunpack.c.l.b16 %v3765
      %v3859 = vunpack.c.l.b16 %v3779
      %v3860 = vunpack.c.l.b16 %v3789
      %v3861 = vunpack.c.l.b16 %v3803
      %v3862 = vunpack.c.l.b16 %v3813
      %v3863 = vpack.c.b16 %v3832, %v3831
      %v3864 = vpack.c.b16 %v3834, %v3833
      %v3865 = vpack.c.b16 %v3836, %v3835
      %v3866 = vpack.c.b16 %v3838, %v3837
      %v3867 = vpack.c.b16 %v3840, %v3839
      %v3868 = vpack.c.b16 %v3842, %v3841
      %v3869 = vpack.c.b16 %v3844, %v3843
      %v3870 = vpack.c.b16 %v3846, %v3845
      %v3871 = vpack.c.b16 %v3848, %v3847
      %v3872 = vpack.c.b16 %v3850, %v3849
      %v3873 = vpack.c.b16 %v3852, %v3851
      %v3874 = vpack.c.b16 %v3854, %v3853
      %v3875 = vpack.c.b16 %v3856, %v3855
      %v3876 = vpack.c.b16 %v3858, %v3857
      %v3877 = vpack.c.b16 %v3860, %v3859
      %v3878 = vpack.c.b16 %v3862, %v3861
      %v3911 = vunpack.c.l.b16 %v3815
      %v3912 = vunpack.c.l.b16 %v3816
      %v3913 = vunpack.c.l.b16 %v3817
      %v3914 = vunpack.c.l.b16 %v3818
      %v3915 = vunpack.c.l.b16 %v3819
      %v3916 = vunpack.c.l.b16 %v3820
      %v3917 = vunpack.c.l.b16 %v3821
      %v3918 = vunpack.c.l.b16 %v3822
      %v3919 = vunpack.c.l.b16 %v3823
      %v3920 = vunpack.c.l.b16 %v3824
      %v3921 = vunpack.c.l.b16 %v3825
      %v3922 = vunpack.c.l.b16 %v3826
      %v3923 = vunpack.c.l.b16 %v3827
      %v3924 = vunpack.c.l.b16 %v3828
      %v3925 = vunpack.c.l.b16 %v3829
      %v3926 = vunpack.c.l.b16 %v3830
      %v3927 = vpack.c.b16 %v3912, %v3911
      %v3928 = vpack.c.b16 %v3914, %v3913
      %v3929 = vpack.c.b16 %v3916, %v3915
      %v3930 = vpack.c.b16 %v3918, %v3917
      %v3931 = vpack.c.b16 %v3920, %v3919
      %v3932 = vpack.c.b16 %v3922, %v3921
      %v3933 = vpack.c.b16 %v3924, %v3923
      %v3934 = vpack.c.b16 %v3926, %v3925
      %3943 = vmatprep.subr.bf16.mxu0 0
      %3944 = vmatpush1.bf16.msra.mxu0 %v3927
      %3945 = vmatprep.subr.bf16.mxu0 0
      %3946 = vmatpush1.bf16.msra.mxu0 %v3928
      %3947 = vmatprep.subr.bf16.mxu0 0
      %3948 = vmatpush1.bf16.msra.mxu0 %v3929
      %3949 = vmatprep.subr.bf16.mxu0 0
      %3950 = vmatpush1.bf16.msra.mxu0 %v3930
      %3951 = vmatprep.subr.bf16.mxu0 0
      %3952 = vmatpush1.bf16.msra.mxu0 %v3931
      %3953 = vmatprep.subr.bf16.mxu0 0
      %3954 = vmatpush1.bf16.msra.mxu0 %v3932
      %3955 = vmatprep.subr.bf16.mxu0 0
      %3956 = vmatpush1.bf16.msra.mxu0 %v3933
      %3957 = vmatprep.subr.bf16.mxu0 0
      %3958 = vmatpush1.bf16.msra.mxu0 %v3934
      %3959 = vmatprep.subr.bf16.mxu0 0
      %3960 = vmatpush1.bf16.msra.mxu0 0
      %3961 = vmatprep.subr.bf16.mxu0 0
      %3962 = vmatpush1.bf16.msra.mxu0 0
      %3963 = vmatprep.subr.bf16.mxu0 0
      %3964 = vmatpush1.bf16.msra.mxu0 0
      %3965 = vmatprep.subr.bf16.mxu0 0
      %3966 = vmatpush1.bf16.msra.mxu0 0
      %3967 = vmatprep.subr.bf16.mxu0 0
      %3968 = vmatpush1.bf16.msra.mxu0 0
      %3969 = vmatprep.subr.bf16.mxu0 0
      %3970 = vmatpush1.bf16.msra.mxu0 0
      %3971 = vmatprep.subr.bf16.mxu0 0
      %3972 = vmatpush1.bf16.msra.mxu0 0
      %3973 = vmatprep.subr.bf16.mxu0 0
      %3974 = vmatpush1.bf16.msra.mxu0 0
      %3975 = vmatprep.mubr.bf16.mxu0 0
      %3976 = vmatmul.mubr.bf16.gmra.mrb[0].mxu0 %v3863
      %v3977 = vpop.f32.mrb[0].mxu0
      %v3978 = vadd.f32 0.0, %v3977
      %v3979 = vpop.f32.mrb[0].mxu0
      %v3980 = vpop.f32.mrb[0].mxu0
      %v3981 = vadd.f32 0.0, %v3980
      %v3982 = vpop.f32.mrb[0].mxu0
      %3983 = vmatprep.mubr.bf16.mxu0 0
      %3984 = vmatmul.mubr.bf16.gmra.mrb[0].mxu0 %v3864
      %v3985 = vpop.f32.mrb[0].mxu0
      %v3986 = vadd.f32 0.0, %v3985
      %v3987 = vpop.f32.mrb[0].mxu0
      %v3988 = vpop.f32.mrb[0].mxu0
      %v3989 = vadd.f32 0.0, %v3988
      %v3990 = vpop.f32.mrb[0].mxu0
      %3991 = vmatprep.mubr.bf16.mxu0 0
      %3992 = vmatmul.mubr.bf16.gmra.mrb[0].mxu0 %v3865
      %v3993 = vpop.f32.mrb[0].mxu0
      %v3994 = vadd.f32 0.0, %v3993
      %v3995 = vpop.f32.mrb[0].mxu0
      %v3996 = vpop.f32.mrb[0].mxu0
      %v3997 = vadd.f32 0.0, %v3996
      %v3998 = vpop.f32.mrb[0].mxu0
      %3999 = vmatprep.mubr.bf16.mxu0 0
      %4000 = vmatmul.mubr.bf16.gmra.mrb[0].mxu0 %v3866
      %v4001 = vpop.f32.mrb[0].mxu0
      %v4002 = vadd.f32 0.0, %v4001
      %v4003 = vpop.f32.mrb[0].mxu0
      %v4004 = vpop.f32.mrb[0].mxu0
      %v4005 = vadd.f32 0.0, %v4004
      %v4006 = vpop.f32.mrb[0].mxu0
      %4007 = vmatprep.mubr.bf16.mxu0 0
      %4008 = vmatmul.mubr.bf16.gmra.mrb[0].mxu0 %v3867
      %v4009 = vpop.f32.mrb[0].mxu0
      %v4010 = vadd.f32 0.0, %v4009
      %v4011 = vpop.f32.mrb[0].mxu0
      %v4012 = vpop.f32.mrb[0].mxu0
      %v4013 = vadd.f32 0.0, %v4012
      %v4014 = vpop.f32.mrb[0].mxu0
      %4015 = vmatprep.mubr.bf16.mxu0 0
      %4016 = vmatmul.mubr.bf16.gmra.mrb[0].mxu0 %v3868
      %v4017 = vpop.f32.mrb[0].mxu0
      %v4018 = vadd.f32 0.0, %v4017
      %v4019 = vpop.f32.mrb[0].mxu0
      %v4020 = vpop.f32.mrb[0].mxu0
      %v4021 = vadd.f32 0.0, %v4020
      %v4022 = vpop.f32.mrb[0].mxu0
      %4023 = vmatprep.mubr.bf16.mxu0 0
      %4024 = vmatmul.mubr.bf16.gmra.mrb[0].mxu0 %v3869
      %v4025 = vpop.f32.mrb[0].mxu0
      %v4026 = vadd.f32 0.0, %v4025
      %v4027 = vpop.f32.mrb[0].mxu0
      %v4028 = vpop.f32.mrb[0].mxu0
      %v4029 = vadd.f32 0.0, %v4028
      %v4030 = vpop.f32.mrb[0].mxu0
      %4031 = vmatprep.mubr.bf16.mxu0 0
      %4032 = vmatmul.mubr.bf16.gmra.mrb[0].mxu0 %v3870
      %v4033 = vpop.f32.mrb[0].mxu0
      %v4034 = vadd.f32 0.0, %v4033
      %v4035 = vpop.f32.mrb[0].mxu0
      %v4036 = vpop.f32.mrb[0].mxu0
      %v4037 = vadd.f32 0.0, %v4036
      %v4038 = vpop.f32.mrb[0].mxu0
      %4039 = vmatprep.mubr.bf16.mxu0 0
      %4040 = vmatmul.mubr.bf16.gmra.mrb[0].mxu0 %v3871
      %v4041 = vpop.f32.mrb[0].mxu0
      %v4042 = vadd.f32 0.0, %v4041
      %v4043 = vpop.f32.mrb[0].mxu0
      %v4044 = vpop.f32.mrb[0].mxu0
      %v4045 = vadd.f32 0.0, %v4044
      %v4046 = vpop.f32.mrb[0].mxu0
      %4047 = vmatprep.mubr.bf16.mxu0 0
      %4048 = vmatmul.mubr.bf16.gmra.mrb[0].mxu0 %v3872
      %v4049 = vpop.f32.mrb[0].mxu0
      %v4050 = vadd.f32 0.0, %v4049
      %v4051 = vpop.f32.mrb[0].mxu0
      %v4052 = vpop.f32.mrb[0].mxu0
      %v4053 = vadd.f32 0.0, %v4052
      %v4054 = vpop.f32.mrb[0].mxu0
      %4055 = vmatprep.mubr.bf16.mxu0 0
      %4056 = vmatmul.mubr.bf16.gmra.mrb[0].mxu0 %v3873
      %v4057 = vpop.f32.mrb[0].mxu0
      %v4058 = vadd.f32 0.0, %v4057
      %v4059 = vpop.f32.mrb[0].mxu0
      %v4060 = vpop.f32.mrb[0].mxu0
      %v4061 = vadd.f32 0.0, %v4060
      %v4062 = vpop.f32.mrb[0].mxu0
      %4063 = vmatprep.mubr.bf16.mxu0 0
      %4064 = vmatmul.mubr.bf16.gmra.mrb[0].mxu0 %v3874
      %v4065 = vpop.f32.mrb[0].mxu0
      %v4066 = vadd.f32 0.0, %v4065
      %v4067 = vpop.f32.mrb[0].mxu0
      %v4068 = vpop.f32.mrb[0].mxu0
      %v4069 = vadd.f32 0.0, %v4068
      %v4070 = vpop.f32.mrb[0].mxu0
      %4071 = vmatprep.mubr.bf16.mxu0 0
      %4072 = vmatmul.mubr.bf16.gmra.mrb[0].mxu0 %v3875
      %v4073 = vpop.f32.mrb[0].mxu0
      %v4074 = vadd.f32 0.0, %v4073
      %v4075 = vpop.f32.mrb[0].mxu0
      %v4076 = vpop.f32.mrb[0].mxu0
      %v4077 = vadd.f32 0.0, %v4076
      %v4078 = vpop.f32.mrb[0].mxu0
      %4079 = vmatprep.mubr.bf16.mxu0 0
      %4080 = vmatmul.mubr.bf16.gmra.mrb[0].mxu0 %v3876
      %v4081 = vpop.f32.mrb[0].mxu0
      %v4082 = vadd.f32 0.0, %v4081
      %v4083 = vpop.f32.mrb[0].mxu0
      %v4084 = vpop.f32.mrb[0].mxu0
      %v4085 = vadd.f32 0.0, %v4084
      %v4086 = vpop.f32.mrb[0].mxu0
      %4087 = vmatprep.mubr.bf16.mxu0 0
      %4088 = vmatmul.mubr.bf16.gmra.mrb[0].mxu0 %v3877
      %v4089 = vpop.f32.mrb[0].mxu0
      %v4090 = vadd.f32 0.0, %v4089
      %v4091 = vpop.f32.mrb[0].mxu0
      %v4092 = vpop.f32.mrb[0].mxu0
      %v4093 = vadd.f32 0.0, %v4092
      %v4094 = vpop.f32.mrb[0].mxu0
      %4095 = vmatprep.mubr.bf16.mxu0 0
      %4096 = vmatmul.mubr.bf16.gmra.mrb[0].mxu0 %v3878
      %v4097 = vpop.f32.mrb[0].mxu0
      %v4098 = vadd.f32 0.0, %v4097
      %v4099 = vpop.f32.mrb[0].mxu0
      %v4100 = vpop.f32.mrb[0].mxu0
      %v4101 = vadd.f32 0.0, %v4100
      %v4102 = vpop.f32.mrb[0].mxu0
      %4103 = vdwg.mxu0
      %v4104 = vadd.f32 %v3350, %v3978
      %v4105 = vadd.f32 %v3351, %v3981
      %v4106 = vadd.f32 %v3352, %v3986
      %v4107 = vadd.f32 %v3353, %v3989
      %v4108 = vadd.f32 %v3354, %v3994
      %v4109 = vadd.f32 %v3355, %v3997
      %v4110 = vadd.f32 %v3356, %v4002
      %v4111 = vadd.f32 %v3357, %v4005
      %v4112 = vadd.f32 %v3358, %v4010
      %v4113 = vadd.f32 %v3359, %v4013
      %v4114 = vadd.f32 %v3360, %v4018
      %v4115 = vadd.f32 %v3361, %v4021
      %v4116 = vadd.f32 %v3362, %v4026
      %v4117 = vadd.f32 %v3363, %v4029
      %v4118 = vadd.f32 %v3364, %v4034
      %v4119 = vadd.f32 %v3365, %v4037
      %v4120 = vadd.f32 %v3366, %v4042
      %v4121 = vadd.f32 %v3367, %v4045
      %v4122 = vadd.f32 %v3368, %v4050
      %v4123 = vadd.f32 %v3369, %v4053
      %v4124 = vadd.f32 %v3370, %v4058
      %v4125 = vadd.f32 %v3371, %v4061
      %v4126 = vadd.f32 %v3372, %v4066
      %v4127 = vadd.f32 %v3373, %v4069
      %v4128 = vadd.f32 %v3374, %v4074
      %v4129 = vadd.f32 %v3375, %v4077
      %v4130 = vadd.f32 %v3376, %v4082
      %v4131 = vadd.f32 %v3377, %v4085
      %v4132 = vadd.f32 %v3378, %v4090
      %v4133 = vadd.f32 %v3379, %v4093
      %v4134 = vadd.f32 %v3380, %v4098
      %v4135 = vadd.f32 %v3381, %v4101
      %s4136 = scalar_lea.vmem [#allocation2], 40
      %v4137 = vld [vmem:[%s4136 + $0x4] sm:$0x8]
      %v4138 = vld [vmem:[%s4136 + $0x8] sm:$0xf]
      %v4139 = vld [vmem:[%s4136 + $0xc] sm:$0xf]
      %v4140 = vld [vmem:[%s4136 + $0x18] sm:$0x8]
      %v4141 = vld [vmem:[%s4136 + $0x1c] sm:$0xf]
      %v4142 = vld [vmem:[%s4136 + $0x20] sm:$0xf]
      %v4143 = vld [vmem:[%s4136 + $0x2c] sm:$0x8]
      %v4144 = vld [vmem:[%s4136 + $0x30] sm:$0xf]
      %v4145 = vld [vmem:[%s4136 + $0x34] sm:$0xf]
      %v4146 = vld [vmem:[%s4136 + $0x40] sm:$0x8]
      %v4147 = vld [vmem:[%s4136 + $0x44] sm:$0xf]
      %v4148 = vld [vmem:[%s4136 + $0x48] sm:$0xf]
      %v4149 = vld [vmem:[%s4136 + $0x54] sm:$0x8]
      %v4150 = vld [vmem:[%s4136 + $0x58] sm:$0xf]
      %v4151 = vld [vmem:[%s4136 + $0x5c] sm:$0xf]
      %v4152 = vld [vmem:[%s4136 + $0x68] sm:$0x8]
      %v4153 = vld [vmem:[%s4136 + $0x6c] sm:$0xf]
      %v4154 = vld [vmem:[%s4136 + $0x70] sm:$0xf]
      %v4155 = vld [vmem:[%s4136 + $0x7c] sm:$0x8]
      %v4156 = vld [vmem:[%s4136 + $0x80] sm:$0xf]
      %v4157 = vld [vmem:[%s4136 + $0x84] sm:$0xf]
      %v4158 = vld [vmem:[%s4136 + $0x90] sm:$0x8]
      %v4159 = vld [vmem:[%s4136 + $0x94] sm:$0xf]
      %v4160 = vld [vmem:[%s4136 + $0x98] sm:$0xf]
      %v4161 = vld [vmem:[%s4136 + $0xa4] sm:$0x8]
      %v4162 = vld [vmem:[%s4136 + $0xa8] sm:$0xf]
      %v4163 = vld [vmem:[%s4136 + $0xac] sm:$0xf]
      %v4164 = vld [vmem:[%s4136 + $0xb8] sm:$0x8]
      %v4165 = vld [vmem:[%s4136 + $0xbc] sm:$0xf]
      %v4166 = vld [vmem:[%s4136 + $0xc0] sm:$0xf]
      %v4167 = vld [vmem:[%s4136 + $0xcc] sm:$0x8]
      %v4168 = vld [vmem:[%s4136 + $0xd0] sm:$0xf]
      %v4169 = vld [vmem:[%s4136 + $0xd4] sm:$0xf]
      %v4170 = vld [vmem:[%s4136 + $0xe0] sm:$0x8]
      %v4171 = vld [vmem:[%s4136 + $0xe4] sm:$0xf]
      %v4172 = vld [vmem:[%s4136 + $0xe8] sm:$0xf]
      %v4173 = vld [vmem:[%s4136 + $0xf4] sm:$0x8]
      %v4174 = vld [vmem:[%s4136 + $0xf8] sm:$0xf]
      %v4175 = vld [vmem:[%s4136 + $0xfc] sm:$0xf]
      %v4176 = vld [vmem:[%s4136 + $0x108] sm:$0x8]
      %v4177 = vld [vmem:[%s4136 + $0x10c] sm:$0xf]
      %v4178 = vld [vmem:[%s4136 + $0x110] sm:$0xf]
      %v4179 = vld [vmem:[%s4136 + $0x11c] sm:$0x8]
      %v4180 = vld [vmem:[%s4136 + $0x120] sm:$0xf]
      %v4181 = vld [vmem:[%s4136 + $0x124] sm:$0xf]
      %v4182 = vld [vmem:[%s4136 + $0x130] sm:$0x8]
      %v4183 = vld [vmem:[%s4136 + $0x134] sm:$0xf]
      %v4184 = vld [vmem:[%s4136 + $0x138] sm:$0xf]
      %v4186 = vshrl.u32 %v4137, 16
      %v4188 = vrot.slane %v4186, 7
      %v4189 = vrot.slane %v4188, 4
      %v4191 = vshrl.u32 %v4138, 16
      %v4193 = vrot.slane %v4191, 7
      %v4194 = vshll.u32 %v4138, 16
      %v4196 = vor.u32 %v4193, %v4194
      %v4197 = vsel %vm585, %v4189, %v4196
      %v4198 = vrot.slane %v4193, 4
      %v4200 = vshrl.u32 %v4139, 16
      %v4202 = vrot.slane %v4200, 7
      %v4203 = vshll.u32 %v4139, 16
      %v4205 = vor.u32 %v4202, %v4203
      %v4206 = vsel %vm585, %v4198, %v4205
      %v4208 = vshrl.u32 %v4140, 16
      %v4210 = vrot.slane %v4208, 7
      %v4211 = vrot.slane %v4210, 4
      %v4213 = vshrl.u32 %v4141, 16
      %v4215 = vrot.slane %v4213, 7
      %v4216 = vshll.u32 %v4141, 16
      %v4218 = vor.u32 %v4215, %v4216
      %v4219 = vsel %vm585, %v4211, %v4218
      %v4220 = vrot.slane %v4215, 4
      %v4222 = vshrl.u32 %v4142, 16
      %v4224 = vrot.slane %v4222, 7
      %v4225 = vshll.u32 %v4142, 16
      %v4227 = vor.u32 %v4224, %v4225
      %v4228 = vsel %vm585, %v4220, %v4227
      %v4230 = vshrl.u32 %v4143, 16
      %v4232 = vrot.slane %v4230, 7
      %v4233 = vrot.slane %v4232, 4
      %v4235 = vshrl.u32 %v4144, 16
      %v4237 = vrot.slane %v4235, 7
      %v4238 = vshll.u32 %v4144, 16
      %v4240 = vor.u32 %v4237, %v4238
      %v4241 = vsel %vm585, %v4233, %v4240
      %v4242 = vrot.slane %v4237, 4
      %v4244 = vshrl.u32 %v4145, 16
      %v4246 = vrot.slane %v4244, 7
      %v4247 = vshll.u32 %v4145, 16
      %v4249 = vor.u32 %v4246, %v4247
      %v4250 = vsel %vm585, %v4242, %v4249
      %v4252 = vshrl.u32 %v4146, 16
      %v4254 = vrot.slane %v4252, 7
      %v4255 = vrot.slane %v4254, 4
      %v4257 = vshrl.u32 %v4147, 16
      %v4259 = vrot.slane %v4257, 7
      %v4260 = vshll.u32 %v4147, 16
      %v4262 = vor.u32 %v4259, %v4260
      %v4263 = vsel %vm585, %v4255, %v4262
      %v4264 = vrot.slane %v4259, 4
      %v4266 = vshrl.u32 %v4148, 16
      %v4268 = vrot.slane %v4266, 7
      %v4269 = vshll.u32 %v4148, 16
      %v4271 = vor.u32 %v4268, %v4269
      %v4272 = vsel %vm585, %v4264, %v4271
      %v4274 = vshrl.u32 %v4149, 16
      %v4276 = vrot.slane %v4274, 7
      %v4277 = vrot.slane %v4276, 4
      %v4279 = vshrl.u32 %v4150, 16
      %v4281 = vrot.slane %v4279, 7
      %v4282 = vshll.u32 %v4150, 16
      %v4284 = vor.u32 %v4281, %v4282
      %v4285 = vsel %vm585, %v4277, %v4284
      %v4286 = vrot.slane %v4281, 4
      %v4288 = vshrl.u32 %v4151, 16
      %v4290 = vrot.slane %v4288, 7
      %v4291 = vshll.u32 %v4151, 16
      %v4293 = vor.u32 %v4290, %v4291
      %v4294 = vsel %vm585, %v4286, %v4293
      %v4296 = vshrl.u32 %v4152, 16
      %v4298 = vrot.slane %v4296, 7
      %v4299 = vrot.slane %v4298, 4
      %v4301 = vshrl.u32 %v4153, 16
      %v4303 = vrot.slane %v4301, 7
      %v4304 = vshll.u32 %v4153, 16
      %v4306 = vor.u32 %v4303, %v4304
      %v4307 = vsel %vm585, %v4299, %v4306
      %v4308 = vrot.slane %v4303, 4
      %v4310 = vshrl.u32 %v4154, 16
      %v4312 = vrot.slane %v4310, 7
      %v4313 = vshll.u32 %v4154, 16
      %v4315 = vor.u32 %v4312, %v4313
      %v4316 = vsel %vm585, %v4308, %v4315
      %v4318 = vshrl.u32 %v4155, 16
      %v4320 = vrot.slane %v4318, 7
      %v4321 = vrot.slane %v4320, 4
      %v4323 = vshrl.u32 %v4156, 16
      %v4325 = vrot.slane %v4323, 7
      %v4326 = vshll.u32 %v4156, 16
      %v4328 = vor.u32 %v4325, %v4326
      %v4329 = vsel %vm585, %v4321, %v4328
      %v4330 = vrot.slane %v4325, 4
      %v4332 = vshrl.u32 %v4157, 16
      %v4334 = vrot.slane %v4332, 7
      %v4335 = vshll.u32 %v4157, 16
      %v4337 = vor.u32 %v4334, %v4335
      %v4338 = vsel %vm585, %v4330, %v4337
      %v4340 = vshrl.u32 %v4158, 16
      %v4342 = vrot.slane %v4340, 7
      %v4343 = vrot.slane %v4342, 4
      %v4345 = vshrl.u32 %v4159, 16
      %v4347 = vrot.slane %v4345, 7
      %v4348 = vshll.u32 %v4159, 16
      %v4350 = vor.u32 %v4347, %v4348
      %v4351 = vsel %vm585, %v4343, %v4350
      %v4352 = vrot.slane %v4347, 4
      %v4354 = vshrl.u32 %v4160, 16
      %v4356 = vrot.slane %v4354, 7
      %v4357 = vshll.u32 %v4160, 16
      %v4359 = vor.u32 %v4356, %v4357
      %v4360 = vsel %vm585, %v4352, %v4359
      %v4362 = vshrl.u32 %v4161, 16
      %v4364 = vrot.slane %v4362, 7
      %v4365 = vrot.slane %v4364, 4
      %v4367 = vshrl.u32 %v4162, 16
      %v4369 = vrot.slane %v4367, 7
      %v4370 = vshll.u32 %v4162, 16
      %v4372 = vor.u32 %v4369, %v4370
      %v4373 = vsel %vm585, %v4365, %v4372
      %v4374 = vrot.slane %v4369, 4
      %v4376 = vshrl.u32 %v4163, 16
      %v4378 = vrot.slane %v4376, 7
      %v4379 = vshll.u32 %v4163, 16
      %v4381 = vor.u32 %v4378, %v4379
      %v4382 = vsel %vm585, %v4374, %v4381
      %v4384 = vshrl.u32 %v4164, 16
      %v4386 = vrot.slane %v4384, 7
      %v4387 = vrot.slane %v4386, 4
      %v4389 = vshrl.u32 %v4165, 16
      %v4391 = vrot.slane %v4389, 7
      %v4392 = vshll.u32 %v4165, 16
      %v4394 = vor.u32 %v4391, %v4392
      %v4395 = vsel %vm585, %v4387, %v4394
      %v4396 = vrot.slane %v4391, 4
      %v4398 = vshrl.u32 %v4166, 16
      %v4400 = vrot.slane %v4398, 7
      %v4401 = vshll.u32 %v4166, 16
      %v4403 = vor.u32 %v4400, %v4401
      %v4404 = vsel %vm585, %v4396, %v4403
      %v4406 = vshrl.u32 %v4167, 16
      %v4408 = vrot.slane %v4406, 7
      %v4409 = vrot.slane %v4408, 4
      %v4411 = vshrl.u32 %v4168, 16
      %v4413 = vrot.slane %v4411, 7
      %v4414 = vshll.u32 %v4168, 16
      %v4416 = vor.u32 %v4413, %v4414
      %v4417 = vsel %vm585, %v4409, %v4416
      %v4418 = vrot.slane %v4413, 4
      %v4420 = vshrl.u32 %v4169, 16
      %v4422 = vrot.slane %v4420, 7
      %v4423 = vshll.u32 %v4169, 16
      %v4425 = vor.u32 %v4422, %v4423
      %v4426 = vsel %vm585, %v4418, %v4425
      %v4428 = vshrl.u32 %v4170, 16
      %v4430 = vrot.slane %v4428, 7
      %v4431 = vrot.slane %v4430, 4
      %v4433 = vshrl.u32 %v4171, 16
      %v4435 = vrot.slane %v4433, 7
      %v4436 = vshll.u32 %v4171, 16
      %v4438 = vor.u32 %v4435, %v4436
      %v4439 = vsel %vm585, %v4431, %v4438
      %v4440 = vrot.slane %v4435, 4
      %v4442 = vshrl.u32 %v4172, 16
      %v4444 = vrot.slane %v4442, 7
      %v4445 = vshll.u32 %v4172, 16
      %v4447 = vor.u32 %v4444, %v4445
      %v4448 = vsel %vm585, %v4440, %v4447
      %v4450 = vshrl.u32 %v4173, 16
      %v4452 = vrot.slane %v4450, 7
      %v4453 = vrot.slane %v4452, 4
      %v4455 = vshrl.u32 %v4174, 16
      %v4457 = vrot.slane %v4455, 7
      %v4458 = vshll.u32 %v4174, 16
      %v4460 = vor.u32 %v4457, %v4458
      %v4461 = vsel %vm585, %v4453, %v4460
      %v4462 = vrot.slane %v4457, 4
      %v4464 = vshrl.u32 %v4175, 16
      %v4466 = vrot.slane %v4464, 7
      %v4467 = vshll.u32 %v4175, 16
      %v4469 = vor.u32 %v4466, %v4467
      %v4470 = vsel %vm585, %v4462, %v4469
      %v4472 = vshrl.u32 %v4176, 16
      %v4474 = vrot.slane %v4472, 7
      %v4475 = vrot.slane %v4474, 4
      %v4477 = vshrl.u32 %v4177, 16
      %v4479 = vrot.slane %v4477, 7
      %v4480 = vshll.u32 %v4177, 16
      %v4482 = vor.u32 %v4479, %v4480
      %v4483 = vsel %vm585, %v4475, %v4482
      %v4484 = vrot.slane %v4479, 4
      %v4486 = vshrl.u32 %v4178, 16
      %v4488 = vrot.slane %v4486, 7
      %v4489 = vshll.u32 %v4178, 16
      %v4491 = vor.u32 %v4488, %v4489
      %v4492 = vsel %vm585, %v4484, %v4491
      %v4494 = vshrl.u32 %v4179, 16
      %v4496 = vrot.slane %v4494, 7
      %v4497 = vrot.slane %v4496, 4
      %v4499 = vshrl.u32 %v4180, 16
      %v4501 = vrot.slane %v4499, 7
      %v4502 = vshll.u32 %v4180, 16
      %v4504 = vor.u32 %v4501, %v4502
      %v4505 = vsel %vm585, %v4497, %v4504
      %v4506 = vrot.slane %v4501, 4
      %v4508 = vshrl.u32 %v4181, 16
      %v4510 = vrot.slane %v4508, 7
      %v4511 = vshll.u32 %v4181, 16
      %v4513 = vor.u32 %v4510, %v4511
      %v4514 = vsel %vm585, %v4506, %v4513
      %v4516 = vshrl.u32 %v4182, 16
      %v4518 = vrot.slane %v4516, 7
      %v4519 = vrot.slane %v4518, 4
      %v4521 = vshrl.u32 %v4183, 16
      %v4523 = vrot.slane %v4521, 7
      %v4524 = vshll.u32 %v4183, 16
      %v4526 = vor.u32 %v4523, %v4524
      %v4527 = vsel %vm585, %v4519, %v4526
      %v4528 = vrot.slane %v4523, 4
      %v4530 = vshrl.u32 %v4184, 16
      %v4532 = vrot.slane %v4530, 7
      %v4533 = vshll.u32 %v4184, 16
      %v4535 = vor.u32 %v4532, %v4533
      %v4536 = vsel %vm585, %v4528, %v4535
      %s4537 = scalar_lea.vmem %s1, 384
      %v4538 = vld [vmem:[%s4537] sm:$0xf]
      %v4539 = vld [vmem:[%s4537 + $0x4] sm:$0xf]
      %v4540 = vld [vmem:[%s4537 + $0x8] sm:$0xf]
      %v4541 = vld [vmem:[%s4537 + $0xc] sm:$0xf]
      %v4542 = vld [vmem:[%s4537 + $0x10] sm:$0xf]
      %v4543 = vld [vmem:[%s4537 + $0x14] sm:$0xf]
      %v4544 = vld [vmem:[%s4537 + $0x18] sm:$0xf]
      %v4545 = vld [vmem:[%s4537 + $0x1c] sm:$0xf]
      %v4546 = vld [vmem:[%s4537 + $0x20] sm:$0xf]
      %v4547 = vld [vmem:[%s4537 + $0x24] sm:$0xf]
      %v4548 = vld [vmem:[%s4537 + $0x28] sm:$0xf]
      %v4549 = vld [vmem:[%s4537 + $0x2c] sm:$0xf]
      %v4550 = vld [vmem:[%s4537 + $0x30] sm:$0xf]
      %v4551 = vld [vmem:[%s4537 + $0x34] sm:$0xf]
      %v4552 = vld [vmem:[%s4537 + $0x38] sm:$0xf]
      %v4553 = vld [vmem:[%s4537 + $0x3c] sm:$0xf]
      %v4554 = vunpack.c.l.b16 %v4197
      %v4555 = vunpack.c.l.b16 %v4206
      %v4556 = vunpack.c.l.b16 %v4219
      %v4557 = vunpack.c.l.b16 %v4228
      %v4558 = vunpack.c.l.b16 %v4241
      %v4559 = vunpack.c.l.b16 %v4250
      %v4560 = vunpack.c.l.b16 %v4263
      %v4561 = vunpack.c.l.b16 %v4272
      %v4562 = vunpack.c.l.b16 %v4285
      %v4563 = vunpack.c.l.b16 %v4294
      %v4564 = vunpack.c.l.b16 %v4307
      %v4565 = vunpack.c.l.b16 %v4316
      %v4566 = vunpack.c.l.b16 %v4329
      %v4567 = vunpack.c.l.b16 %v4338
      %v4568 = vunpack.c.l.b16 %v4351
      %v4569 = vunpack.c.l.b16 %v4360
      %v4570 = vunpack.c.l.b16 %v4373
      %v4571 = vunpack.c.l.b16 %v4382
      %v4572 = vunpack.c.l.b16 %v4395
      %v4573 = vunpack.c.l.b16 %v4404
      %v4574 = vunpack.c.l.b16 %v4417
      %v4575 = vunpack.c.l.b16 %v4426
      %v4576 = vunpack.c.l.b16 %v4439
      %v4577 = vunpack.c.l.b16 %v4448
      %v4578 = vunpack.c.l.b16 %v4461
      %v4579 = vunpack.c.l.b16 %v4470
      %v4580 = vunpack.c.l.b16 %v4483
      %v4581 = vunpack.c.l.b16 %v4492
      %v4582 = vunpack.c.l.b16 %v4505
      %v4583 = vunpack.c.l.b16 %v4514
      %v4584 = vunpack.c.l.b16 %v4527
      %v4585 = vunpack.c.l.b16 %v4536
      %v4586 = vpack.c.b16 %v4555, %v4554
      %v4587 = vpack.c.b16 %v4557, %v4556
      %v4588 = vpack.c.b16 %v4559, %v4558
      %v4589 = vpack.c.b16 %v4561, %v4560
      %v4590 = vpack.c.b16 %v4563, %v4562
      %v4591 = vpack.c.b16 %v4565, %v4564
      %v4592 = vpack.c.b16 %v4567, %v4566
      %v4593 = vpack.c.b16 %v4569, %v4568
      %v4594 = vpack.c.b16 %v4571, %v4570
      %v4595 = vpack.c.b16 %v4573, %v4572
      %v4596 = vpack.c.b16 %v4575, %v4574
      %v4597 = vpack.c.b16 %v4577, %v4576
      %v4598 = vpack.c.b16 %v4579, %v4578
      %v4599 = vpack.c.b16 %v4581, %v4580
      %v4600 = vpack.c.b16 %v4583, %v4582
      %v4601 = vpack.c.b16 %v4585, %v4584
      %v4634 = vunpack.c.l.b16 %v4538
      %v4635 = vunpack.c.l.b16 %v4539
      %v4636 = vunpack.c.l.b16 %v4540
      %v4637 = vunpack.c.l.b16 %v4541
      %v4638 = vunpack.c.l.b16 %v4542
      %v4639 = vunpack.c.l.b16 %v4543
      %v4640 = vunpack.c.l.b16 %v4544
      %v4641 = vunpack.c.l.b16 %v4545
      %v4642 = vunpack.c.l.b16 %v4546
      %v4643 = vunpack.c.l.b16 %v4547
      %v4644 = vunpack.c.l.b16 %v4548
      %v4645 = vunpack.c.l.b16 %v4549
      %v4646 = vunpack.c.l.b16 %v4550
      %v4647 = vunpack.c.l.b16 %v4551
      %v4648 = vunpack.c.l.b16 %v4552
      %v4649 = vunpack.c.l.b16 %v4553
      %v4650 = vpack.c.b16 %v4635, %v4634
      %v4651 = vpack.c.b16 %v4637, %v4636
      %v4652 = vpack.c.b16 %v4639, %v4638
      %v4653 = vpack.c.b16 %v4641, %v4640
      %v4654 = vpack.c.b16 %v4643, %v4642
      %v4655 = vpack.c.b16 %v4645, %v4644
      %v4656 = vpack.c.b16 %v4647, %v4646
      %v4657 = vpack.c.b16 %v4649, %v4648
      %4666 = vmatprep.subr.bf16.mxu0 0
      %4667 = vmatpush1.bf16.msra.mxu0 %v4650
      %4668 = vmatprep.subr.bf16.mxu0 0
      %4669 = vmatpush1.bf16.msra.mxu0 %v4651
      %4670 = vmatprep.subr.bf16.mxu0 0
      %4671 = vmatpush1.bf16.msra.mxu0 %v4652
      %4672 = vmatprep.subr.bf16.mxu0 0
      %4673 = vmatpush1.bf16.msra.mxu0 %v4653
      %4674 = vmatprep.subr.bf16.mxu0 0
      %4675 = vmatpush1.bf16.msra.mxu0 %v4654
      %4676 = vmatprep.subr.bf16.mxu0 0
      %4677 = vmatpush1.bf16.msra.mxu0 %v4655
      %4678 = vmatprep.subr.bf16.mxu0 0
      %4679 = vmatpush1.bf16.msra.mxu0 %v4656
      %4680 = vmatprep.subr.bf16.mxu0 0
      %4681 = vmatpush1.bf16.msra.mxu0 %v4657
      %4682 = vmatprep.subr.bf16.mxu0 0
      %4683 = vmatpush1.bf16.msra.mxu0 0
      %4684 = vmatprep.subr.bf16.mxu0 0
      %4685 = vmatpush1.bf16.msra.mxu0 0
      %4686 = vmatprep.subr.bf16.mxu0 0
      %4687 = vmatpush1.bf16.msra.mxu0 0
      %4688 = vmatprep.subr.bf16.mxu0 0
      %4689 = vmatpush1.bf16.msra.mxu0 0
      %4690 = vmatprep.subr.bf16.mxu0 0
      %4691 = vmatpush1.bf16.msra.mxu0 0
      %4692 = vmatprep.subr.bf16.mxu0 0
      %4693 = vmatpush1.bf16.msra.mxu0 0
      %4694 = vmatprep.subr.bf16.mxu0 0
      %4695 = vmatpush1.bf16.msra.mxu0 0
      %4696 = vmatprep.subr.bf16.mxu0 0
      %4697 = vmatpush1.bf16.msra.mxu0 0
      %4698 = vmatprep.mubr.bf16.mxu0 0
      %4699 = vmatmul.mubr.bf16.gmra.mrb[0].mxu0 %v4586
      %v4700 = vpop.f32.mrb[0].mxu0
      %v4701 = vadd.f32 0.0, %v4700
      %v4702 = vpop.f32.mrb[0].mxu0
      %v4703 = vpop.f32.mrb[0].mxu0
      %v4704 = vadd.f32 0.0, %v4703
      %v4705 = vpop.f32.mrb[0].mxu0
      %4706 = vmatprep.mubr.bf16.mxu0 0
      %4707 = vmatmul.mubr.bf16.gmra.mrb[0].mxu0 %v4587
      %v4708 = vpop.f32.mrb[0].mxu0
      %v4709 = vadd.f32 0.0, %v4708
      %v4710 = vpop.f32.mrb[0].mxu0
      %v4711 = vpop.f32.mrb[0].mxu0
      %v4712 = vadd.f32 0.0, %v4711
      %v4713 = vpop.f32.mrb[0].mxu0
      %4714 = vmatprep.mubr.bf16.mxu0 0
      %4715 = vmatmul.mubr.bf16.gmra.mrb[0].mxu0 %v4588
      %v4716 = vpop.f32.mrb[0].mxu0
      %v4717 = vadd.f32 0.0, %v4716
      %v4718 = vpop.f32.mrb[0].mxu0
      %v4719 = vpop.f32.mrb[0].mxu0
      %v4720 = vadd.f32 0.0, %v4719
      %v4721 = vpop.f32.mrb[0].mxu0
      %4722 = vmatprep.mubr.bf16.mxu0 0
      %4723 = vmatmul.mubr.bf16.gmra.mrb[0].mxu0 %v4589
      %v4724 = vpop.f32.mrb[0].mxu0
      %v4725 = vadd.f32 0.0, %v4724
      %v4726 = vpop.f32.mrb[0].mxu0
      %v4727 = vpop.f32.mrb[0].mxu0
      %v4728 = vadd.f32 0.0, %v4727
      %v4729 = vpop.f32.mrb[0].mxu0
      %4730 = vmatprep.mubr.bf16.mxu0 0
      %4731 = vmatmul.mubr.bf16.gmra.mrb[0].mxu0 %v4590
      %v4732 = vpop.f32.mrb[0].mxu0
      %v4733 = vadd.f32 0.0, %v4732
      %v4734 = vpop.f32.mrb[0].mxu0
      %v4735 = vpop.f32.mrb[0].mxu0
      %v4736 = vadd.f32 0.0, %v4735
      %v4737 = vpop.f32.mrb[0].mxu0
      %4738 = vmatprep.mubr.bf16.mxu0 0
      %4739 = vmatmul.mubr.bf16.gmra.mrb[0].mxu0 %v4591
      %v4740 = vpop.f32.mrb[0].mxu0
      %v4741 = vadd.f32 0.0, %v4740
      %v4742 = vpop.f32.mrb[0].mxu0
      %v4743 = vpop.f32.mrb[0].mxu0
      %v4744 = vadd.f32 0.0, %v4743
      %v4745 = vpop.f32.mrb[0].mxu0
      %4746 = vmatprep.mubr.bf16.mxu0 0
      %4747 = vmatmul.mubr.bf16.gmra.mrb[0].mxu0 %v4592
      %v4748 = vpop.f32.mrb[0].mxu0
      %v4749 = vadd.f32 0.0, %v4748
      %v4750 = vpop.f32.mrb[0].mxu0
      %v4751 = vpop.f32.mrb[0].mxu0
      %v4752 = vadd.f32 0.0, %v4751
      %v4753 = vpop.f32.mrb[0].mxu0
      %4754 = vmatprep.mubr.bf16.mxu0 0
      %4755 = vmatmul.mubr.bf16.gmra.mrb[0].mxu0 %v4593
      %v4756 = vpop.f32.mrb[0].mxu0
      %v4757 = vadd.f32 0.0, %v4756
      %v4758 = vpop.f32.mrb[0].mxu0
      %v4759 = vpop.f32.mrb[0].mxu0
      %v4760 = vadd.f32 0.0, %v4759
      %v4761 = vpop.f32.mrb[0].mxu0
      %4762 = vmatprep.mubr.bf16.mxu0 0
      %4763 = vmatmul.mubr.bf16.gmra.mrb[0].mxu0 %v4594
      %v4764 = vpop.f32.mrb[0].mxu0
      %v4765 = vadd.f32 0.0, %v4764
      %v4766 = vpop.f32.mrb[0].mxu0
      %v4767 = vpop.f32.mrb[0].mxu0
      %v4768 = vadd.f32 0.0, %v4767
      %v4769 = vpop.f32.mrb[0].mxu0
      %4770 = vmatprep.mubr.bf16.mxu0 0
      %4771 = vmatmul.mubr.bf16.gmra.mrb[0].mxu0 %v4595
      %v4772 = vpop.f32.mrb[0].mxu0
      %v4773 = vadd.f32 0.0, %v4772
      %v4774 = vpop.f32.mrb[0].mxu0
      %v4775 = vpop.f32.mrb[0].mxu0
      %v4776 = vadd.f32 0.0, %v4775
      %v4777 = vpop.f32.mrb[0].mxu0
      %4778 = vmatprep.mubr.bf16.mxu0 0
      %4779 = vmatmul.mubr.bf16.gmra.mrb[0].mxu0 %v4596
      %v4780 = vpop.f32.mrb[0].mxu0
      %v4781 = vadd.f32 0.0, %v4780
      %v4782 = vpop.f32.mrb[0].mxu0
      %v4783 = vpop.f32.mrb[0].mxu0
      %v4784 = vadd.f32 0.0, %v4783
      %v4785 = vpop.f32.mrb[0].mxu0
      %4786 = vmatprep.mubr.bf16.mxu0 0
      %4787 = vmatmul.mubr.bf16.gmra.mrb[0].mxu0 %v4597
      %v4788 = vpop.f32.mrb[0].mxu0
      %v4789 = vadd.f32 0.0, %v4788
      %v4790 = vpop.f32.mrb[0].mxu0
      %v4791 = vpop.f32.mrb[0].mxu0
      %v4792 = vadd.f32 0.0, %v4791
      %v4793 = vpop.f32.mrb[0].mxu0
      %4794 = vmatprep.mubr.bf16.mxu0 0
      %4795 = vmatmul.mubr.bf16.gmra.mrb[0].mxu0 %v4598
      %v4796 = vpop.f32.mrb[0].mxu0
      %v4797 = vadd.f32 0.0, %v4796
      %v4798 = vpop.f32.mrb[0].mxu0
      %v4799 = vpop.f32.mrb[0].mxu0
      %v4800 = vadd.f32 0.0, %v4799
      %v4801 = vpop.f32.mrb[0].mxu0
      %4802 = vmatprep.mubr.bf16.mxu0 0
      %4803 = vmatmul.mubr.bf16.gmra.mrb[0].mxu0 %v4599
      %v4804 = vpop.f32.mrb[0].mxu0
      %v4805 = vadd.f32 0.0, %v4804
      %v4806 = vpop.f32.mrb[0].mxu0
      %v4807 = vpop.f32.mrb[0].mxu0
      %v4808 = vadd.f32 0.0, %v4807
      %v4809 = vpop.f32.mrb[0].mxu0
      %4810 = vmatprep.mubr.bf16.mxu0 0
      %4811 = vmatmul.mubr.bf16.gmra.mrb[0].mxu0 %v4600
      %v4812 = vpop.f32.mrb[0].mxu0
      %v4813 = vadd.f32 0.0, %v4812
      %v4814 = vpop.f32.mrb[0].mxu0
      %v4815 = vpop.f32.mrb[0].mxu0
      %v4816 = vadd.f32 0.0, %v4815
      %v4817 = vpop.f32.mrb[0].mxu0
      %4818 = vmatprep.mubr.bf16.mxu0 0
      %4819 = vmatmul.mubr.bf16.gmra.mrb[0].mxu0 %v4601
      %v4820 = vpop.f32.mrb[0].mxu0
      %v4821 = vadd.f32 0.0, %v4820
      %v4822 = vpop.f32.mrb[0].mxu0
      %v4823 = vpop.f32.mrb[0].mxu0
      %v4824 = vadd.f32 0.0, %v4823
      %v4825 = vpop.f32.mrb[0].mxu0
      %4826 = vdwg.mxu0
      %v4827 = vadd.f32 %v4104, %v4701
      %v4828 = vadd.f32 %v4105, %v4704
      %v4829 = vadd.f32 %v4106, %v4709
      %v4830 = vadd.f32 %v4107, %v4712
      %v4831 = vadd.f32 %v4108, %v4717
      %v4832 = vadd.f32 %v4109, %v4720
      %v4833 = vadd.f32 %v4110, %v4725
      %v4834 = vadd.f32 %v4111, %v4728
      %v4835 = vadd.f32 %v4112, %v4733
      %v4836 = vadd.f32 %v4113, %v4736
      %v4837 = vadd.f32 %v4114, %v4741
      %v4838 = vadd.f32 %v4115, %v4744
      %v4839 = vadd.f32 %v4116, %v4749
      %v4840 = vadd.f32 %v4117, %v4752
      %v4841 = vadd.f32 %v4118, %v4757
      %v4842 = vadd.f32 %v4119, %v4760
      %v4843 = vadd.f32 %v4120, %v4765
      %v4844 = vadd.f32 %v4121, %v4768
      %v4845 = vadd.f32 %v4122, %v4773
      %v4846 = vadd.f32 %v4123, %v4776
      %v4847 = vadd.f32 %v4124, %v4781
      %v4848 = vadd.f32 %v4125, %v4784
      %v4849 = vadd.f32 %v4126, %v4789
      %v4850 = vadd.f32 %v4127, %v4792
      %v4851 = vadd.f32 %v4128, %v4797
      %v4852 = vadd.f32 %v4129, %v4800
      %v4853 = vadd.f32 %v4130, %v4805
      %v4854 = vadd.f32 %v4131, %v4808
      %v4855 = vadd.f32 %v4132, %v4813
      %v4856 = vadd.f32 %v4133, %v4816
      %v4857 = vadd.f32 %v4134, %v4821
      %v4858 = vadd.f32 %v4135, %v4824
      %s4859 = scalar_lea.vmem %s1, 448
      %v4860 = vld [vmem:[%s4859] sm:$0xf]
      %v4861 = vld [vmem:[%s4859 + $0x4] sm:$0xf]
      %v4862 = vld [vmem:[%s4859 + $0x8] sm:$0xf]
      %v4863 = vld [vmem:[%s4859 + $0xc] sm:$0xf]
      %v4864 = vld [vmem:[%s4859 + $0x10] sm:$0xf]
      %v4865 = vld [vmem:[%s4859 + $0x14] sm:$0xf]
      %v4866 = vld [vmem:[%s4859 + $0x18] sm:$0xf]
      %v4867 = vld [vmem:[%s4859 + $0x1c] sm:$0xf]
      %v4868 = vld [vmem:[%s4859 + $0x20] sm:$0xf]
      %v4869 = vld [vmem:[%s4859 + $0x24] sm:$0xf]
      %v4870 = vld [vmem:[%s4859 + $0x28] sm:$0xf]
      %v4871 = vld [vmem:[%s4859 + $0x2c] sm:$0xf]
      %v4872 = vld [vmem:[%s4859 + $0x30] sm:$0xf]
      %v4873 = vld [vmem:[%s4859 + $0x34] sm:$0xf]
      %v4874 = vld [vmem:[%s4859 + $0x38] sm:$0xf]
      %v4875 = vld [vmem:[%s4859 + $0x3c] sm:$0xf]
      %v4908 = vunpack.c.l.b16 %v4138
      %v4909 = vunpack.c.l.b16 %v4139
      %v4910 = vunpack.c.l.b16 %v4141
      %v4911 = vunpack.c.l.b16 %v4142
      %v4912 = vunpack.c.l.b16 %v4144
      %v4913 = vunpack.c.l.b16 %v4145
      %v4914 = vunpack.c.l.b16 %v4147
      %v4915 = vunpack.c.l.b16 %v4148
      %v4916 = vunpack.c.l.b16 %v4150
      %v4917 = vunpack.c.l.b16 %v4151
      %v4918 = vunpack.c.l.b16 %v4153
      %v4919 = vunpack.c.l.b16 %v4154
      %v4920 = vunpack.c.l.b16 %v4156
      %v4921 = vunpack.c.l.b16 %v4157
      %v4922 = vunpack.c.l.b16 %v4159
      %v4923 = vunpack.c.l.b16 %v4160
      %v4924 = vunpack.c.l.b16 %v4162
      %v4925 = vunpack.c.l.b16 %v4163
      %v4926 = vunpack.c.l.b16 %v4165
      %v4927 = vunpack.c.l.b16 %v4166
      %v4928 = vunpack.c.l.b16 %v4168
      %v4929 = vunpack.c.l.b16 %v4169
      %v4930 = vunpack.c.l.b16 %v4171
      %v4931 = vunpack.c.l.b16 %v4172
      %v4932 = vunpack.c.l.b16 %v4174
      %v4933 = vunpack.c.l.b16 %v4175
      %v4934 = vunpack.c.l.b16 %v4177
      %v4935 = vunpack.c.l.b16 %v4178
      %v4936 = vunpack.c.l.b16 %v4180
      %v4937 = vunpack.c.l.b16 %v4181
      %v4938 = vunpack.c.l.b16 %v4183
      %v4939 = vunpack.c.l.b16 %v4184
      %v4940 = vpack.c.b16 %v4909, %v4908
      %v4941 = vpack.c.b16 %v4911, %v4910
      %v4942 = vpack.c.b16 %v4913, %v4912
      %v4943 = vpack.c.b16 %v4915, %v4914
      %v4944 = vpack.c.b16 %v4917, %v4916
      %v4945 = vpack.c.b16 %v4919, %v4918
      %v4946 = vpack.c.b16 %v4921, %v4920
      %v4947 = vpack.c.b16 %v4923, %v4922
      %v4948 = vpack.c.b16 %v4925, %v4924
      %v4949 = vpack.c.b16 %v4927, %v4926
      %v4950 = vpack.c.b16 %v4929, %v4928
      %v4951 = vpack.c.b16 %v4931, %v4930
      %v4952 = vpack.c.b16 %v4933, %v4932
      %v4953 = vpack.c.b16 %v4935, %v4934
      %v4954 = vpack.c.b16 %v4937, %v4936
      %v4955 = vpack.c.b16 %v4939, %v4938
      %v4988 = vunpack.c.l.b16 %v4860
      %v4989 = vunpack.c.l.b16 %v4861
      %v4990 = vunpack.c.l.b16 %v4862
      %v4991 = vunpack.c.l.b16 %v4863
      %v4992 = vunpack.c.l.b16 %v4864
      %v4993 = vunpack.c.l.b16 %v4865
      %v4994 = vunpack.c.l.b16 %v4866
      %v4995 = vunpack.c.l.b16 %v4867
      %v4996 = vunpack.c.l.b16 %v4868
      %v4997 = vunpack.c.l.b16 %v4869
      %v4998 = vunpack.c.l.b16 %v4870
      %v4999 = vunpack.c.l.b16 %v4871
      %v5000 = vunpack.c.l.b16 %v4872
      %v5001 = vunpack.c.l.b16 %v4873
      %v5002 = vunpack.c.l.b16 %v4874
      %v5003 = vunpack.c.l.b16 %v4875
      %v5004 = vpack.c.b16 %v4989, %v4988
      %v5005 = vpack.c.b16 %v4991, %v4990
      %v5006 = vpack.c.b16 %v4993, %v4992
      %v5007 = vpack.c.b16 %v4995, %v4994
      %v5008 = vpack.c.b16 %v4997, %v4996
      %v5009 = vpack.c.b16 %v4999, %v4998
      %v5010 = vpack.c.b16 %v5001, %v5000
      %v5011 = vpack.c.b16 %v5003, %v5002
      %5020 = vmatprep.subr.bf16.mxu0 0
      %5021 = vmatpush1.bf16.msra.mxu0 %v5004
      %5022 = vmatprep.subr.bf16.mxu0 0
      %5023 = vmatpush1.bf16.msra.mxu0 %v5005
      %5024 = vmatprep.subr.bf16.mxu0 0
      %5025 = vmatpush1.bf16.msra.mxu0 %v5006
      %5026 = vmatprep.subr.bf16.mxu0 0
      %5027 = vmatpush1.bf16.msra.mxu0 %v5007
      %5028 = vmatprep.subr.bf16.mxu0 0
      %5029 = vmatpush1.bf16.msra.mxu0 %v5008
      %5030 = vmatprep.subr.bf16.mxu0 0
      %5031 = vmatpush1.bf16.msra.mxu0 %v5009
      %5032 = vmatprep.subr.bf16.mxu0 0
      %5033 = vmatpush1.bf16.msra.mxu0 %v5010
      %5034 = vmatprep.subr.bf16.mxu0 0
      %5035 = vmatpush1.bf16.msra.mxu0 %v5011
      %5036 = vmatprep.subr.bf16.mxu0 0
      %5037 = vmatpush1.bf16.msra.mxu0 0
      %5038 = vmatprep.subr.bf16.mxu0 0
      %5039 = vmatpush1.bf16.msra.mxu0 0
      %5040 = vmatprep.subr.bf16.mxu0 0
      %5041 = vmatpush1.bf16.msra.mxu0 0
      %5042 = vmatprep.subr.bf16.mxu0 0
      %5043 = vmatpush1.bf16.msra.mxu0 0
      %5044 = vmatprep.subr.bf16.mxu0 0
      %5045 = vmatpush1.bf16.msra.mxu0 0
      %5046 = vmatprep.subr.bf16.mxu0 0
      %5047 = vmatpush1.bf16.msra.mxu0 0
      %5048 = vmatprep.subr.bf16.mxu0 0
      %5049 = vmatpush1.bf16.msra.mxu0 0
      %5050 = vmatprep.subr.bf16.mxu0 0
      %5051 = vmatpush1.bf16.msra.mxu0 0
      %5052 = vmatprep.mubr.bf16.mxu0 0
      %5053 = vmatmul.mubr.bf16.gmra.mrb[0].mxu0 %v4940
      %v5054 = vpop.f32.mrb[0].mxu0
      %v5055 = vadd.f32 0.0, %v5054
      %v5056 = vpop.f32.mrb[0].mxu0
      %v5057 = vpop.f32.mrb[0].mxu0
      %v5058 = vadd.f32 0.0, %v5057
      %v5059 = vpop.f32.mrb[0].mxu0
      %5060 = vmatprep.mubr.bf16.mxu0 0
      %5061 = vmatmul.mubr.bf16.gmra.mrb[0].mxu0 %v4941
      %v5062 = vpop.f32.mrb[0].mxu0
      %v5063 = vadd.f32 0.0, %v5062
      %v5064 = vpop.f32.mrb[0].mxu0
      %v5065 = vpop.f32.mrb[0].mxu0
      %v5066 = vadd.f32 0.0, %v5065
      %v5067 = vpop.f32.mrb[0].mxu0
      %5068 = vmatprep.mubr.bf16.mxu0 0
      %5069 = vmatmul.mubr.bf16.gmra.mrb[0].mxu0 %v4942
      %v5070 = vpop.f32.mrb[0].mxu0
      %v5071 = vadd.f32 0.0, %v5070
      %v5072 = vpop.f32.mrb[0].mxu0
      %v5073 = vpop.f32.mrb[0].mxu0
      %v5074 = vadd.f32 0.0, %v5073
      %v5075 = vpop.f32.mrb[0].mxu0
      %5076 = vmatprep.mubr.bf16.mxu0 0
      %5077 = vmatmul.mubr.bf16.gmra.mrb[0].mxu0 %v4943
      %v5078 = vpop.f32.mrb[0].mxu0
      %v5079 = vadd.f32 0.0, %v5078
      %v5080 = vpop.f32.mrb[0].mxu0
      %v5081 = vpop.f32.mrb[0].mxu0
      %v5082 = vadd.f32 0.0, %v5081
      %v5083 = vpop.f32.mrb[0].mxu0
      %5084 = vmatprep.mubr.bf16.mxu0 0
      %5085 = vmatmul.mubr.bf16.gmra.mrb[0].mxu0 %v4944
      %v5086 = vpop.f32.mrb[0].mxu0
      %v5087 = vadd.f32 0.0, %v5086
      %v5088 = vpop.f32.mrb[0].mxu0
      %v5089 = vpop.f32.mrb[0].mxu0
      %v5090 = vadd.f32 0.0, %v5089
      %v5091 = vpop.f32.mrb[0].mxu0
      %5092 = vmatprep.mubr.bf16.mxu0 0
      %5093 = vmatmul.mubr.bf16.gmra.mrb[0].mxu0 %v4945
      %v5094 = vpop.f32.mrb[0].mxu0
      %v5095 = vadd.f32 0.0, %v5094
      %v5096 = vpop.f32.mrb[0].mxu0
      %v5097 = vpop.f32.mrb[0].mxu0
      %v5098 = vadd.f32 0.0, %v5097
      %v5099 = vpop.f32.mrb[0].mxu0
      %5100 = vmatprep.mubr.bf16.mxu0 0
      %5101 = vmatmul.mubr.bf16.gmra.mrb[0].mxu0 %v4946
      %v5102 = vpop.f32.mrb[0].mxu0
      %v5103 = vadd.f32 0.0, %v5102
      %v5104 = vpop.f32.mrb[0].mxu0
      %v5105 = vpop.f32.mrb[0].mxu0
      %v5106 = vadd.f32 0.0, %v5105
      %v5107 = vpop.f32.mrb[0].mxu0
      %5108 = vmatprep.mubr.bf16.mxu0 0
      %5109 = vmatmul.mubr.bf16.gmra.mrb[0].mxu0 %v4947
      %v5110 = vpop.f32.mrb[0].mxu0
      %v5111 = vadd.f32 0.0, %v5110
      %v5112 = vpop.f32.mrb[0].mxu0
      %v5113 = vpop.f32.mrb[0].mxu0
      %v5114 = vadd.f32 0.0, %v5113
      %v5115 = vpop.f32.mrb[0].mxu0
      %5116 = vmatprep.mubr.bf16.mxu0 0
      %5117 = vmatmul.mubr.bf16.gmra.mrb[0].mxu0 %v4948
      %v5118 = vpop.f32.mrb[0].mxu0
      %v5119 = vadd.f32 0.0, %v5118
      %v5120 = vpop.f32.mrb[0].mxu0
      %v5121 = vpop.f32.mrb[0].mxu0
      %v5122 = vadd.f32 0.0, %v5121
      %v5123 = vpop.f32.mrb[0].mxu0
      %5124 = vmatprep.mubr.bf16.mxu0 0
      %5125 = vmatmul.mubr.bf16.gmra.mrb[0].mxu0 %v4949
      %v5126 = vpop.f32.mrb[0].mxu0
      %v5127 = vadd.f32 0.0, %v5126
      %v5128 = vpop.f32.mrb[0].mxu0
      %v5129 = vpop.f32.mrb[0].mxu0
      %v5130 = vadd.f32 0.0, %v5129
      %v5131 = vpop.f32.mrb[0].mxu0
      %5132 = vmatprep.mubr.bf16.mxu0 0
      %5133 = vmatmul.mubr.bf16.gmra.mrb[0].mxu0 %v4950
      %v5134 = vpop.f32.mrb[0].mxu0
      %v5135 = vadd.f32 0.0, %v5134
      %v5136 = vpop.f32.mrb[0].mxu0
      %v5137 = vpop.f32.mrb[0].mxu0
      %v5138 = vadd.f32 0.0, %v5137
      %v5139 = vpop.f32.mrb[0].mxu0
      %5140 = vmatprep.mubr.bf16.mxu0 0
      %5141 = vmatmul.mubr.bf16.gmra.mrb[0].mxu0 %v4951
      %v5142 = vpop.f32.mrb[0].mxu0
      %v5143 = vadd.f32 0.0, %v5142
      %v5144 = vpop.f32.mrb[0].mxu0
      %v5145 = vpop.f32.mrb[0].mxu0
      %v5146 = vadd.f32 0.0, %v5145
      %v5147 = vpop.f32.mrb[0].mxu0
      %5148 = vmatprep.mubr.bf16.mxu0 0
      %5149 = vmatmul.mubr.bf16.gmra.mrb[0].mxu0 %v4952
      %v5150 = vpop.f32.mrb[0].mxu0
      %v5151 = vadd.f32 0.0, %v5150
      %v5152 = vpop.f32.mrb[0].mxu0
      %v5153 = vpop.f32.mrb[0].mxu0
      %v5154 = vadd.f32 0.0, %v5153
      %v5155 = vpop.f32.mrb[0].mxu0
      %5156 = vmatprep.mubr.bf16.mxu0 0
      %5157 = vmatmul.mubr.bf16.gmra.mrb[0].mxu0 %v4953
      %v5158 = vpop.f32.mrb[0].mxu0
      %v5159 = vadd.f32 0.0, %v5158
      %v5160 = vpop.f32.mrb[0].mxu0
      %v5161 = vpop.f32.mrb[0].mxu0
      %v5162 = vadd.f32 0.0, %v5161
      %v5163 = vpop.f32.mrb[0].mxu0
      %5164 = vmatprep.mubr.bf16.mxu0 0
      %5165 = vmatmul.mubr.bf16.gmra.mrb[0].mxu0 %v4954
      %v5166 = vpop.f32.mrb[0].mxu0
      %v5167 = vadd.f32 0.0, %v5166
      %v5168 = vpop.f32.mrb[0].mxu0
      %v5169 = vpop.f32.mrb[0].mxu0
      %v5170 = vadd.f32 0.0, %v5169
      %v5171 = vpop.f32.mrb[0].mxu0
      %5172 = vmatprep.mubr.bf16.mxu0 0
      %5173 = vmatmul.mubr.bf16.gmra.mrb[0].mxu0 %v4955
      %v5174 = vpop.f32.mrb[0].mxu0
      %v5175 = vadd.f32 0.0, %v5174
      %v5176 = vpop.f32.mrb[0].mxu0
      %v5177 = vpop.f32.mrb[0].mxu0
      %v5178 = vadd.f32 0.0, %v5177
      %v5179 = vpop.f32.mrb[0].mxu0
      %5180 = vdwg.mxu0
      %v5181 = vadd.f32 %v4827, %v5055
      %v5182 = vadd.f32 %v4828, %v5058
      %v5183 = vadd.f32 %v4829, %v5063
      %v5184 = vadd.f32 %v4830, %v5066
      %v5185 = vadd.f32 %v4831, %v5071
      %v5186 = vadd.f32 %v4832, %v5074
      %v5187 = vadd.f32 %v4833, %v5079
      %v5188 = vadd.f32 %v4834, %v5082
      %v5189 = vadd.f32 %v4835, %v5087
      %v5190 = vadd.f32 %v4836, %v5090
      %v5191 = vadd.f32 %v4837, %v5095
      %v5192 = vadd.f32 %v4838, %v5098
      %v5193 = vadd.f32 %v4839, %v5103
      %v5194 = vadd.f32 %v4840, %v5106
      %v5195 = vadd.f32 %v4841, %v5111
      %v5196 = vadd.f32 %v4842, %v5114
      %v5197 = vadd.f32 %v4843, %v5119
      %v5198 = vadd.f32 %v4844, %v5122
      %v5199 = vadd.f32 %v4845, %v5127
      %v5200 = vadd.f32 %v4846, %v5130
      %v5201 = vadd.f32 %v4847, %v5135
      %v5202 = vadd.f32 %v4848, %v5138
      %v5203 = vadd.f32 %v4849, %v5143
      %v5204 = vadd.f32 %v4850, %v5146
      %v5205 = vadd.f32 %v4851, %v5151
      %v5206 = vadd.f32 %v4852, %v5154
      %v5207 = vadd.f32 %v4853, %v5159
      %v5208 = vadd.f32 %v4854, %v5162
      %v5209 = vadd.f32 %v4855, %v5167
      %v5210 = vadd.f32 %v4856, %v5170
      %v5211 = vadd.f32 %v4857, %v5175
      %v5212 = vadd.f32 %v4858, %v5178
      %v5213 = vld [vmem:[%s4136 + $0x8] sm:$0xf]
      %v5214 = vld [vmem:[%s4136 + $0xc] sm:$0xf]
      %v5215 = vld [vmem:[%s4136 + $0x10] sm:$0x1]
      %v5216 = vld [vmem:[%s4136 + $0x1c] sm:$0xf]
      %v5217 = vld [vmem:[%s4136 + $0x20] sm:$0xf]
      %v5218 = vld [vmem:[%s4136 + $0x24] sm:$0x1]
      %v5219 = vld [vmem:[%s4136 + $0x30] sm:$0xf]
      %v5220 = vld [vmem:[%s4136 + $0x34] sm:$0xf]
      %v5221 = vld [vmem:[%s4136 + $0x38] sm:$0x1]
      %v5222 = vld [vmem:[%s4136 + $0x44] sm:$0xf]
      %v5223 = vld [vmem:[%s4136 + $0x48] sm:$0xf]
      %v5224 = vld [vmem:[%s4136 + $0x4c] sm:$0x1]
      %v5225 = vld [vmem:[%s4136 + $0x58] sm:$0xf]
      %v5226 = vld [vmem:[%s4136 + $0x5c] sm:$0xf]
      %v5227 = vld [vmem:[%s4136 + $0x60] sm:$0x1]
      %v5228 = vld [vmem:[%s4136 + $0x6c] sm:$0xf]
      %v5229 = vld [vmem:[%s4136 + $0x70] sm:$0xf]
      %v5230 = vld [vmem:[%s4136 + $0x74] sm:$0x1]
      %v5231 = vld [vmem:[%s4136 + $0x80] sm:$0xf]
      %v5232 = vld [vmem:[%s4136 + $0x84] sm:$0xf]
      %v5233 = vld [vmem:[%s4136 + $0x88] sm:$0x1]
      %v5234 = vld [vmem:[%s4136 + $0x94] sm:$0xf]
      %v5235 = vld [vmem:[%s4136 + $0x98] sm:$0xf]
      %v5236 = vld [vmem:[%s4136 + $0x9c] sm:$0x1]
      %v5237 = vld [vmem:[%s4136 + $0xa8] sm:$0xf]
      %v5238 = vld [vmem:[%s4136 + $0xac] sm:$0xf]
      %v5239 = vld [vmem:[%s4136 + $0xb0] sm:$0x1]
      %v5240 = vld [vmem:[%s4136 + $0xbc] sm:$0xf]
      %v5241 = vld [vmem:[%s4136 + $0xc0] sm:$0xf]
      %v5242 = vld [vmem:[%s4136 + $0xc4] sm:$0x1]
      %v5243 = vld [vmem:[%s4136 + $0xd0] sm:$0xf]
      %v5244 = vld [vmem:[%s4136 + $0xd4] sm:$0xf]
      %v5245 = vld [vmem:[%s4136 + $0xd8] sm:$0x1]
      %v5246 = vld [vmem:[%s4136 + $0xe4] sm:$0xf]
      %v5247 = vld [vmem:[%s4136 + $0xe8] sm:$0xf]
      %v5248 = vld [vmem:[%s4136 + $0xec] sm:$0x1]
      %v5249 = vld [vmem:[%s4136 + $0xf8] sm:$0xf]
      %v5250 = vld [vmem:[%s4136 + $0xfc] sm:$0xf]
      %v5251 = vld [vmem:[%s4136 + $0x100] sm:$0x1]
      %v5252 = vld [vmem:[%s4136 + $0x10c] sm:$0xf]
      %v5253 = vld [vmem:[%s4136 + $0x110] sm:$0xf]
      %v5254 = vld [vmem:[%s4136 + $0x114] sm:$0x1]
      %v5255 = vld [vmem:[%s4136 + $0x120] sm:$0xf]
      %v5256 = vld [vmem:[%s4136 + $0x124] sm:$0xf]
      %v5257 = vld [vmem:[%s4136 + $0x128] sm:$0x1]
      %v5258 = vld [vmem:[%s4136 + $0x134] sm:$0xf]
      %v5259 = vld [vmem:[%s4136 + $0x138] sm:$0xf]
      %v5260 = vld [vmem:[%s4136 + $0x13c] sm:$0x1]
      %v5262 = vshrl.u32 %v5213, 16
      %v5264 = vrot.slane %v5262, 4
      %v5265 = vshll.u32 %v5213, 16
      %v5267 = vrot.slane %v5265, 5
      %v5268 = vor.u32 %v5264, %v5267
      %v5269 = vrot.slane %v5268, 4
      %v5271 = vshll.u32 %v5214, 16
      %v5273 = vrot.slane %v5271, 5
      %v5274 = vsel %vm1599, %v5269, %v5273
      %v5275 = vshrl.u32 %v5214, 16
      %v5277 = vrot.slane %v5275, 4
      %v5278 = vor.u32 %v5277, %v5273
      %v5279 = vrot.slane %v5278, 4
      %v5281 = vshll.u32 %v5215, 16
      %v5283 = vrot.slane %v5281, 5
      %v5284 = vsel %vm1599, %v5279, %v5283
      %v5286 = vshrl.u32 %v5216, 16
      %v5288 = vrot.slane %v5286, 4
      %v5289 = vshll.u32 %v5216, 16
      %v5291 = vrot.slane %v5289, 5
      %v5292 = vor.u32 %v5288, %v5291
      %v5293 = vrot.slane %v5292, 4
      %v5295 = vshll.u32 %v5217, 16
      %v5297 = vrot.slane %v5295, 5
      %v5298 = vsel %vm1599, %v5293, %v5297
      %v5299 = vshrl.u32 %v5217, 16
      %v5301 = vrot.slane %v5299, 4
      %v5302 = vor.u32 %v5301, %v5297
      %v5303 = vrot.slane %v5302, 4
      %v5305 = vshll.u32 %v5218, 16
      %v5307 = vrot.slane %v5305, 5
      %v5308 = vsel %vm1599, %v5303, %v5307
      %v5310 = vshrl.u32 %v5219, 16
      %v5312 = vrot.slane %v5310, 4
      %v5313 = vshll.u32 %v5219, 16
      %v5315 = vrot.slane %v5313, 5
      %v5316 = vor.u32 %v5312, %v5315
      %v5317 = vrot.slane %v5316, 4
      %v5319 = vshll.u32 %v5220, 16
      %v5321 = vrot.slane %v5319, 5
      %v5322 = vsel %vm1599, %v5317, %v5321
      %v5323 = vshrl.u32 %v5220, 16
      %v5325 = vrot.slane %v5323, 4
      %v5326 = vor.u32 %v5325, %v5321
      %v5327 = vrot.slane %v5326, 4
      %v5329 = vshll.u32 %v5221, 16
      %v5331 = vrot.slane %v5329, 5
      %v5332 = vsel %vm1599, %v5327, %v5331
      %v5334 = vshrl.u32 %v5222, 16
      %v5336 = vrot.slane %v5334, 4
      %v5337 = vshll.u32 %v5222, 16
      %v5339 = vrot.slane %v5337, 5
      %v5340 = vor.u32 %v5336, %v5339
      %v5341 = vrot.slane %v5340, 4
      %v5343 = vshll.u32 %v5223, 16
      %v5345 = vrot.slane %v5343, 5
      %v5346 = vsel %vm1599, %v5341, %v5345
      %v5347 = vshrl.u32 %v5223, 16
      %v5349 = vrot.slane %v5347, 4
      %v5350 = vor.u32 %v5349, %v5345
      %v5351 = vrot.slane %v5350, 4
      %v5353 = vshll.u32 %v5224, 16
      %v5355 = vrot.slane %v5353, 5
      %v5356 = vsel %vm1599, %v5351, %v5355
      %v5358 = vshrl.u32 %v5225, 16
      %v5360 = vrot.slane %v5358, 4
      %v5361 = vshll.u32 %v5225, 16
      %v5363 = vrot.slane %v5361, 5
      %v5364 = vor.u32 %v5360, %v5363
      %v5365 = vrot.slane %v5364, 4
      %v5367 = vshll.u32 %v5226, 16
      %v5369 = vrot.slane %v5367, 5
      %v5370 = vsel %vm1599, %v5365, %v5369
      %v5371 = vshrl.u32 %v5226, 16
      %v5373 = vrot.slane %v5371, 4
      %v5374 = vor.u32 %v5373, %v5369
      %v5375 = vrot.slane %v5374, 4
      %v5377 = vshll.u32 %v5227, 16
      %v5379 = vrot.slane %v5377, 5
      %v5380 = vsel %vm1599, %v5375, %v5379
      %v5382 = vshrl.u32 %v5228, 16
      %v5384 = vrot.slane %v5382, 4
      %v5385 = vshll.u32 %v5228, 16
      %v5387 = vrot.slane %v5385, 5
      %v5388 = vor.u32 %v5384, %v5387
      %v5389 = vrot.slane %v5388, 4
      %v5391 = vshll.u32 %v5229, 16
      %v5393 = vrot.slane %v5391, 5
      %v5394 = vsel %vm1599, %v5389, %v5393
      %v5395 = vshrl.u32 %v5229, 16
      %v5397 = vrot.slane %v5395, 4
      %v5398 = vor.u32 %v5397, %v5393
      %v5399 = vrot.slane %v5398, 4
      %v5401 = vshll.u32 %v5230, 16
      %v5403 = vrot.slane %v5401, 5
      %v5404 = vsel %vm1599, %v5399, %v5403
      %v5406 = vshrl.u32 %v5231, 16
      %v5408 = vrot.slane %v5406, 4
      %v5409 = vshll.u32 %v5231, 16
      %v5411 = vrot.slane %v5409, 5
      %v5412 = vor.u32 %v5408, %v5411
      %v5413 = vrot.slane %v5412, 4
      %v5415 = vshll.u32 %v5232, 16
      %v5417 = vrot.slane %v5415, 5
      %v5418 = vsel %vm1599, %v5413, %v5417
      %v5419 = vshrl.u32 %v5232, 16
      %v5421 = vrot.slane %v5419, 4
      %v5422 = vor.u32 %v5421, %v5417
      %v5423 = vrot.slane %v5422, 4
      %v5425 = vshll.u32 %v5233, 16
      %v5427 = vrot.slane %v5425, 5
      %v5428 = vsel %vm1599, %v5423, %v5427
      %v5430 = vshrl.u32 %v5234, 16
      %v5432 = vrot.slane %v5430, 4
      %v5433 = vshll.u32 %v5234, 16
      %v5435 = vrot.slane %v5433, 5
      %v5436 = vor.u32 %v5432, %v5435
      %v5437 = vrot.slane %v5436, 4
      %v5439 = vshll.u32 %v5235, 16
      %v5441 = vrot.slane %v5439, 5
      %v5442 = vsel %vm1599, %v5437, %v5441
      %v5443 = vshrl.u32 %v5235, 16
      %v5445 = vrot.slane %v5443, 4
      %v5446 = vor.u32 %v5445, %v5441
      %v5447 = vrot.slane %v5446, 4
      %v5449 = vshll.u32 %v5236, 16
      %v5451 = vrot.slane %v5449, 5
      %v5452 = vsel %vm1599, %v5447, %v5451
      %v5454 = vshrl.u32 %v5237, 16
      %v5456 = vrot.slane %v5454, 4
      %v5457 = vshll.u32 %v5237, 16
      %v5459 = vrot.slane %v5457, 5
      %v5460 = vor.u32 %v5456, %v5459
      %v5461 = vrot.slane %v5460, 4
      %v5463 = vshll.u32 %v5238, 16
      %v5465 = vrot.slane %v5463, 5
      %v5466 = vsel %vm1599, %v5461, %v5465
      %v5467 = vshrl.u32 %v5238, 16
      %v5469 = vrot.slane %v5467, 4
      %v5470 = vor.u32 %v5469, %v5465
      %v5471 = vrot.slane %v5470, 4
      %v5473 = vshll.u32 %v5239, 16
      %v5475 = vrot.slane %v5473, 5
      %v5476 = vsel %vm1599, %v5471, %v5475
      %v5478 = vshrl.u32 %v5240, 16
      %v5480 = vrot.slane %v5478, 4
      %v5481 = vshll.u32 %v5240, 16
      %v5483 = vrot.slane %v5481, 5
      %v5484 = vor.u32 %v5480, %v5483
      %v5485 = vrot.slane %v5484, 4
      %v5487 = vshll.u32 %v5241, 16
      %v5489 = vrot.slane %v5487, 5
      %v5490 = vsel %vm1599, %v5485, %v5489
      %v5491 = vshrl.u32 %v5241, 16
      %v5493 = vrot.slane %v5491, 4
      %v5494 = vor.u32 %v5493, %v5489
      %v5495 = vrot.slane %v5494, 4
      %v5497 = vshll.u32 %v5242, 16
      %v5499 = vrot.slane %v5497, 5
      %v5500 = vsel %vm1599, %v5495, %v5499
      %v5502 = vshrl.u32 %v5243, 16
      %v5504 = vrot.slane %v5502, 4
      %v5505 = vshll.u32 %v5243, 16
      %v5507 = vrot.slane %v5505, 5
      %v5508 = vor.u32 %v5504, %v5507
      %v5509 = vrot.slane %v5508, 4
      %v5511 = vshll.u32 %v5244, 16
      %v5513 = vrot.slane %v5511, 5
      %v5514 = vsel %vm1599, %v5509, %v5513
      %v5515 = vshrl.u32 %v5244, 16
      %v5517 = vrot.slane %v5515, 4
      %v5518 = vor.u32 %v5517, %v5513
      %v5519 = vrot.slane %v5518, 4
      %v5521 = vshll.u32 %v5245, 16
      %v5523 = vrot.slane %v5521, 5
      %v5524 = vsel %vm1599, %v5519, %v5523
      %v5526 = vshrl.u32 %v5246, 16
      %v5528 = vrot.slane %v5526, 4
      %v5529 = vshll.u32 %v5246, 16
      %v5531 = vrot.slane %v5529, 5
      %v5532 = vor.u32 %v5528, %v5531
      %v5533 = vrot.slane %v5532, 4
      %v5535 = vshll.u32 %v5247, 16
      %v5537 = vrot.slane %v5535, 5
      %v5538 = vsel %vm1599, %v5533, %v5537
      %v5539 = vshrl.u32 %v5247, 16
      %v5541 = vrot.slane %v5539, 4
      %v5542 = vor.u32 %v5541, %v5537
      %v5543 = vrot.slane %v5542, 4
      %v5545 = vshll.u32 %v5248, 16
      %v5547 = vrot.slane %v5545, 5
      %v5548 = vsel %vm1599, %v5543, %v5547
      %v5550 = vshrl.u32 %v5249, 16
      %v5552 = vrot.slane %v5550, 4
      %v5553 = vshll.u32 %v5249, 16
      %v5555 = vrot.slane %v5553, 5
      %v5556 = vor.u32 %v5552, %v5555
      %v5557 = vrot.slane %v5556, 4
      %v5559 = vshll.u32 %v5250, 16
      %v5561 = vrot.slane %v5559, 5
      %v5562 = vsel %vm1599, %v5557, %v5561
      %v5563 = vshrl.u32 %v5250, 16
      %v5565 = vrot.slane %v5563, 4
      %v5566 = vor.u32 %v5565, %v5561
      %v5567 = vrot.slane %v5566, 4
      %v5569 = vshll.u32 %v5251, 16
      %v5571 = vrot.slane %v5569, 5
      %v5572 = vsel %vm1599, %v5567, %v5571
      %v5574 = vshrl.u32 %v5252, 16
      %v5576 = vrot.slane %v5574, 4
      %v5577 = vshll.u32 %v5252, 16
      %v5579 = vrot.slane %v5577, 5
      %v5580 = vor.u32 %v5576, %v5579
      %v5581 = vrot.slane %v5580, 4
      %v5583 = vshll.u32 %v5253, 16
      %v5585 = vrot.slane %v5583, 5
      %v5586 = vsel %vm1599, %v5581, %v5585
      %v5587 = vshrl.u32 %v5253, 16
      %v5589 = vrot.slane %v5587, 4
      %v5590 = vor.u32 %v5589, %v5585
      %v5591 = vrot.slane %v5590, 4
      %v5593 = vshll.u32 %v5254, 16
      %v5595 = vrot.slane %v5593, 5
      %v5596 = vsel %vm1599, %v5591, %v5595
      %v5598 = vshrl.u32 %v5255, 16
      %v5600 = vrot.slane %v5598, 4
      %v5601 = vshll.u32 %v5255, 16
      %v5603 = vrot.slane %v5601, 5
      %v5604 = vor.u32 %v5600, %v5603
      %v5605 = vrot.slane %v5604, 4
      %v5607 = vshll.u32 %v5256, 16
      %v5609 = vrot.slane %v5607, 5
      %v5610 = vsel %vm1599, %v5605, %v5609
      %v5611 = vshrl.u32 %v5256, 16
      %v5613 = vrot.slane %v5611, 4
      %v5614 = vor.u32 %v5613, %v5609
      %v5615 = vrot.slane %v5614, 4
      %v5617 = vshll.u32 %v5257, 16
      %v5619 = vrot.slane %v5617, 5
      %v5620 = vsel %vm1599, %v5615, %v5619
      %v5622 = vshrl.u32 %v5258, 16
      %v5624 = vrot.slane %v5622, 4
      %v5625 = vshll.u32 %v5258, 16
      %v5627 = vrot.slane %v5625, 5
      %v5628 = vor.u32 %v5624, %v5627
      %v5629 = vrot.slane %v5628, 4
      %v5631 = vshll.u32 %v5259, 16
      %v5633 = vrot.slane %v5631, 5
      %v5634 = vsel %vm1599, %v5629, %v5633
      %v5635 = vshrl.u32 %v5259, 16
      %v5637 = vrot.slane %v5635, 4
      %v5638 = vor.u32 %v5637, %v5633
      %v5639 = vrot.slane %v5638, 4
      %v5641 = vshll.u32 %v5260, 16
      %v5643 = vrot.slane %v5641, 5
      %v5644 = vsel %vm1599, %v5639, %v5643
      %s5645 = scalar_lea.vmem %s1, 512
      %v5646 = vld [vmem:[%s5645] sm:$0xf]
      %v5647 = vld [vmem:[%s5645 + $0x4] sm:$0xf]
      %v5648 = vld [vmem:[%s5645 + $0x8] sm:$0xf]
      %v5649 = vld [vmem:[%s5645 + $0xc] sm:$0xf]
      %v5650 = vld [vmem:[%s5645 + $0x10] sm:$0xf]
      %v5651 = vld [vmem:[%s5645 + $0x14] sm:$0xf]
      %v5652 = vld [vmem:[%s5645 + $0x18] sm:$0xf]
      %v5653 = vld [vmem:[%s5645 + $0x1c] sm:$0xf]
      %v5654 = vld [vmem:[%s5645 + $0x20] sm:$0xf]
      %v5655 = vld [vmem:[%s5645 + $0x24] sm:$0xf]
      %v5656 = vld [vmem:[%s5645 + $0x28] sm:$0xf]
      %v5657 = vld [vmem:[%s5645 + $0x2c] sm:$0xf]
      %v5658 = vld [vmem:[%s5645 + $0x30] sm:$0xf]
      %v5659 = vld [vmem:[%s5645 + $0x34] sm:$0xf]
      %v5660 = vld [vmem:[%s5645 + $0x38] sm:$0xf]
      %v5661 = vld [vmem:[%s5645 + $0x3c] sm:$0xf]
      %v5662 = vunpack.c.l.b16 %v5274
      %v5663 = vunpack.c.l.b16 %v5284
      %v5664 = vunpack.c.l.b16 %v5298
      %v5665 = vunpack.c.l.b16 %v5308
      %v5666 = vunpack.c.l.b16 %v5322
      %v5667 = vunpack.c.l.b16 %v5332
      %v5668 = vunpack.c.l.b16 %v5346
      %v5669 = vunpack.c.l.b16 %v5356
      %v5670 = vunpack.c.l.b16 %v5370
      %v5671 = vunpack.c.l.b16 %v5380
      %v5672 = vunpack.c.l.b16 %v5394
      %v5673 = vunpack.c.l.b16 %v5404
      %v5674 = vunpack.c.l.b16 %v5418
      %v5675 = vunpack.c.l.b16 %v5428
      %v5676 = vunpack.c.l.b16 %v5442
      %v5677 = vunpack.c.l.b16 %v5452
      %v5678 = vunpack.c.l.b16 %v5466
      %v5679 = vunpack.c.l.b16 %v5476
      %v5680 = vunpack.c.l.b16 %v5490
      %v5681 = vunpack.c.l.b16 %v5500
      %v5682 = vunpack.c.l.b16 %v5514
      %v5683 = vunpack.c.l.b16 %v5524
      %v5684 = vunpack.c.l.b16 %v5538
      %v5685 = vunpack.c.l.b16 %v5548
      %v5686 = vunpack.c.l.b16 %v5562
      %v5687 = vunpack.c.l.b16 %v5572
      %v5688 = vunpack.c.l.b16 %v5586
      %v5689 = vunpack.c.l.b16 %v5596
      %v5690 = vunpack.c.l.b16 %v5610
      %v5691 = vunpack.c.l.b16 %v5620
      %v5692 = vunpack.c.l.b16 %v5634
      %v5693 = vunpack.c.l.b16 %v5644
      %v5694 = vpack.c.b16 %v5663, %v5662
      %v5695 = vpack.c.b16 %v5665, %v5664
      %v5696 = vpack.c.b16 %v5667, %v5666
      %v5697 = vpack.c.b16 %v5669, %v5668
      %v5698 = vpack.c.b16 %v5671, %v5670
      %v5699 = vpack.c.b16 %v5673, %v5672
      %v5700 = vpack.c.b16 %v5675, %v5674
      %v5701 = vpack.c.b16 %v5677, %v5676
      %v5702 = vpack.c.b16 %v5679, %v5678
      %v5703 = vpack.c.b16 %v5681, %v5680
      %v5704 = vpack.c.b16 %v5683, %v5682
      %v5705 = vpack.c.b16 %v5685, %v5684
      %v5706 = vpack.c.b16 %v5687, %v5686
      %v5707 = vpack.c.b16 %v5689, %v5688
      %v5708 = vpack.c.b16 %v5691, %v5690
      %v5709 = vpack.c.b16 %v5693, %v5692
      %v5742 = vunpack.c.l.b16 %v5646
      %v5743 = vunpack.c.l.b16 %v5647
      %v5744 = vunpack.c.l.b16 %v5648
      %v5745 = vunpack.c.l.b16 %v5649
      %v5746 = vunpack.c.l.b16 %v5650
      %v5747 = vunpack.c.l.b16 %v5651
      %v5748 = vunpack.c.l.b16 %v5652
      %v5749 = vunpack.c.l.b16 %v5653
      %v5750 = vunpack.c.l.b16 %v5654
      %v5751 = vunpack.c.l.b16 %v5655
      %v5752 = vunpack.c.l.b16 %v5656
      %v5753 = vunpack.c.l.b16 %v5657
      %v5754 = vunpack.c.l.b16 %v5658
      %v5755 = vunpack.c.l.b16 %v5659
      %v5756 = vunpack.c.l.b16 %v5660
      %v5757 = vunpack.c.l.b16 %v5661
      %v5758 = vpack.c.b16 %v5743, %v5742
      %v5759 = vpack.c.b16 %v5745, %v5744
      %v5760 = vpack.c.b16 %v5747, %v5746
      %v5761 = vpack.c.b16 %v5749, %v5748
      %v5762 = vpack.c.b16 %v5751, %v5750
      %v5763 = vpack.c.b16 %v5753, %v5752
      %v5764 = vpack.c.b16 %v5755, %v5754
      %v5765 = vpack.c.b16 %v5757, %v5756
      %5774 = vmatprep.subr.bf16.mxu0 0
      %5775 = vmatpush1.bf16.msra.mxu0 %v5758
      %5776 = vmatprep.subr.bf16.mxu0 0
      %5777 = vmatpush1.bf16.msra.mxu0 %v5759
      %5778 = vmatprep.subr.bf16.mxu0 0
      %5779 = vmatpush1.bf16.msra.mxu0 %v5760
      %5780 = vmatprep.subr.bf16.mxu0 0
      %5781 = vmatpush1.bf16.msra.mxu0 %v5761
      %5782 = vmatprep.subr.bf16.mxu0 0
      %5783 = vmatpush1.bf16.msra.mxu0 %v5762
      %5784 = vmatprep.subr.bf16.mxu0 0
      %5785 = vmatpush1.bf16.msra.mxu0 %v5763
      %5786 = vmatprep.subr.bf16.mxu0 0
      %5787 = vmatpush1.bf16.msra.mxu0 %v5764
      %5788 = vmatprep.subr.bf16.mxu0 0
      %5789 = vmatpush1.bf16.msra.mxu0 %v5765
      %5790 = vmatprep.subr.bf16.mxu0 0
      %5791 = vmatpush1.bf16.msra.mxu0 0
      %5792 = vmatprep.subr.bf16.mxu0 0
      %5793 = vmatpush1.bf16.msra.mxu0 0
      %5794 = vmatprep.subr.bf16.mxu0 0
      %5795 = vmatpush1.bf16.msra.mxu0 0
      %5796 = vmatprep.subr.bf16.mxu0 0
      %5797 = vmatpush1.bf16.msra.mxu0 0
      %5798 = vmatprep.subr.bf16.mxu0 0
      %5799 = vmatpush1.bf16.msra.mxu0 0
      %5800 = vmatprep.subr.bf16.mxu0 0
      %5801 = vmatpush1.bf16.msra.mxu0 0
      %5802 = vmatprep.subr.bf16.mxu0 0
      %5803 = vmatpush1.bf16.msra.mxu0 0
      %5804 = vmatprep.subr.bf16.mxu0 0
      %5805 = vmatpush1.bf16.msra.mxu0 0
      %5806 = vmatprep.mubr.bf16.mxu0 0
      %5807 = vmatmul.mubr.bf16.gmra.mrb[0].mxu0 %v5694
      %v5808 = vpop.f32.mrb[0].mxu0
      %v5809 = vadd.f32 0.0, %v5808
      %v5810 = vpop.f32.mrb[0].mxu0
      %v5811 = vpop.f32.mrb[0].mxu0
      %v5812 = vadd.f32 0.0, %v5811
      %v5813 = vpop.f32.mrb[0].mxu0
      %5814 = vmatprep.mubr.bf16.mxu0 0
      %5815 = vmatmul.mubr.bf16.gmra.mrb[0].mxu0 %v5695
      %v5816 = vpop.f32.mrb[0].mxu0
      %v5817 = vadd.f32 0.0, %v5816
      %v5818 = vpop.f32.mrb[0].mxu0
      %v5819 = vpop.f32.mrb[0].mxu0
      %v5820 = vadd.f32 0.0, %v5819
      %v5821 = vpop.f32.mrb[0].mxu0
      %5822 = vmatprep.mubr.bf16.mxu0 0
      %5823 = vmatmul.mubr.bf16.gmra.mrb[0].mxu0 %v5696
      %v5824 = vpop.f32.mrb[0].mxu0
      %v5825 = vadd.f32 0.0, %v5824
      %v5826 = vpop.f32.mrb[0].mxu0
      %v5827 = vpop.f32.mrb[0].mxu0
      %v5828 = vadd.f32 0.0, %v5827
      %v5829 = vpop.f32.mrb[0].mxu0
      %5830 = vmatprep.mubr.bf16.mxu0 0
      %5831 = vmatmul.mubr.bf16.gmra.mrb[0].mxu0 %v5697
      %v5832 = vpop.f32.mrb[0].mxu0
      %v5833 = vadd.f32 0.0, %v5832
      %v5834 = vpop.f32.mrb[0].mxu0
      %v5835 = vpop.f32.mrb[0].mxu0
      %v5836 = vadd.f32 0.0, %v5835
      %v5837 = vpop.f32.mrb[0].mxu0
      %5838 = vmatprep.mubr.bf16.mxu0 0
      %5839 = vmatmul.mubr.bf16.gmra.mrb[0].mxu0 %v5698
      %v5840 = vpop.f32.mrb[0].mxu0
      %v5841 = vadd.f32 0.0, %v5840
      %v5842 = vpop.f32.mrb[0].mxu0
      %v5843 = vpop.f32.mrb[0].mxu0
      %v5844 = vadd.f32 0.0, %v5843
      %v5845 = vpop.f32.mrb[0].mxu0
      %5846 = vmatprep.mubr.bf16.mxu0 0
      %5847 = vmatmul.mubr.bf16.gmra.mrb[0].mxu0 %v5699
      %v5848 = vpop.f32.mrb[0].mxu0
      %v5849 = vadd.f32 0.0, %v5848
      %v5850 = vpop.f32.mrb[0].mxu0
      %v5851 = vpop.f32.mrb[0].mxu0
      %v5852 = vadd.f32 0.0, %v5851
      %v5853 = vpop.f32.mrb[0].mxu0
      %5854 = vmatprep.mubr.bf16.mxu0 0
      %5855 = vmatmul.mubr.bf16.gmra.mrb[0].mxu0 %v5700
      %v5856 = vpop.f32.mrb[0].mxu0
      %v5857 = vadd.f32 0.0, %v5856
      %v5858 = vpop.f32.mrb[0].mxu0
      %v5859 = vpop.f32.mrb[0].mxu0
      %v5860 = vadd.f32 0.0, %v5859
      %v5861 = vpop.f32.mrb[0].mxu0
      %5862 = vmatprep.mubr.bf16.mxu0 0
      %5863 = vmatmul.mubr.bf16.gmra.mrb[0].mxu0 %v5701
      %v5864 = vpop.f32.mrb[0].mxu0
      %v5865 = vadd.f32 0.0, %v5864
      %v5866 = vpop.f32.mrb[0].mxu0
      %v5867 = vpop.f32.mrb[0].mxu0
      %v5868 = vadd.f32 0.0, %v5867
      %v5869 = vpop.f32.mrb[0].mxu0
      %5870 = vmatprep.mubr.bf16.mxu0 0
      %5871 = vmatmul.mubr.bf16.gmra.mrb[0].mxu0 %v5702
      %v5872 = vpop.f32.mrb[0].mxu0
      %v5873 = vadd.f32 0.0, %v5872
      %v5874 = vpop.f32.mrb[0].mxu0
      %v5875 = vpop.f32.mrb[0].mxu0
      %v5876 = vadd.f32 0.0, %v5875
      %v5877 = vpop.f32.mrb[0].mxu0
      %5878 = vmatprep.mubr.bf16.mxu0 0
      %5879 = vmatmul.mubr.bf16.gmra.mrb[0].mxu0 %v5703
      %v5880 = vpop.f32.mrb[0].mxu0
      %v5881 = vadd.f32 0.0, %v5880
      %v5882 = vpop.f32.mrb[0].mxu0
      %v5883 = vpop.f32.mrb[0].mxu0
      %v5884 = vadd.f32 0.0, %v5883
      %v5885 = vpop.f32.mrb[0].mxu0
      %5886 = vmatprep.mubr.bf16.mxu0 0
      %5887 = vmatmul.mubr.bf16.gmra.mrb[0].mxu0 %v5704
      %v5888 = vpop.f32.mrb[0].mxu0
      %v5889 = vadd.f32 0.0, %v5888
      %v5890 = vpop.f32.mrb[0].mxu0
      %v5891 = vpop.f32.mrb[0].mxu0
      %v5892 = vadd.f32 0.0, %v5891
      %v5893 = vpop.f32.mrb[0].mxu0
      %5894 = vmatprep.mubr.bf16.mxu0 0
      %5895 = vmatmul.mubr.bf16.gmra.mrb[0].mxu0 %v5705
      %v5896 = vpop.f32.mrb[0].mxu0
      %v5897 = vadd.f32 0.0, %v5896
      %v5898 = vpop.f32.mrb[0].mxu0
      %v5899 = vpop.f32.mrb[0].mxu0
      %v5900 = vadd.f32 0.0, %v5899
      %v5901 = vpop.f32.mrb[0].mxu0
      %5902 = vmatprep.mubr.bf16.mxu0 0
      %5903 = vmatmul.mubr.bf16.gmra.mrb[0].mxu0 %v5706
      %v5904 = vpop.f32.mrb[0].mxu0
      %v5905 = vadd.f32 0.0, %v5904
      %v5906 = vpop.f32.mrb[0].mxu0
      %v5907 = vpop.f32.mrb[0].mxu0
      %v5908 = vadd.f32 0.0, %v5907
      %v5909 = vpop.f32.mrb[0].mxu0
      %5910 = vmatprep.mubr.bf16.mxu0 0
      %5911 = vmatmul.mubr.bf16.gmra.mrb[0].mxu0 %v5707
      %v5912 = vpop.f32.mrb[0].mxu0
      %v5913 = vadd.f32 0.0, %v5912
      %v5914 = vpop.f32.mrb[0].mxu0
      %v5915 = vpop.f32.mrb[0].mxu0
      %v5916 = vadd.f32 0.0, %v5915
      %v5917 = vpop.f32.mrb[0].mxu0
      %5918 = vmatprep.mubr.bf16.mxu0 0
      %5919 = vmatmul.mubr.bf16.gmra.mrb[0].mxu0 %v5708
      %v5920 = vpop.f32.mrb[0].mxu0
      %v5921 = vadd.f32 0.0, %v5920
      %v5922 = vpop.f32.mrb[0].mxu0
      %v5923 = vpop.f32.mrb[0].mxu0
      %v5924 = vadd.f32 0.0, %v5923
      %v5925 = vpop.f32.mrb[0].mxu0
      %5926 = vmatprep.mubr.bf16.mxu0 0
      %5927 = vmatmul.mubr.bf16.gmra.mrb[0].mxu0 %v5709
      %v5928 = vpop.f32.mrb[0].mxu0
      %v5929 = vadd.f32 0.0, %v5928
      %v5930 = vpop.f32.mrb[0].mxu0
      %v5931 = vpop.f32.mrb[0].mxu0
      %v5932 = vadd.f32 0.0, %v5931
      %v5933 = vpop.f32.mrb[0].mxu0
      %5934 = vdwg.mxu0
      %v5935 = vadd.f32 %v5181, %v5809
      %v5936 = vadd.f32 %v5182, %v5812
      %v5937 = vadd.f32 %v5183, %v5817
      %v5938 = vadd.f32 %v5184, %v5820
      %v5939 = vadd.f32 %v5185, %v5825
      %v5940 = vadd.f32 %v5186, %v5828
      %v5941 = vadd.f32 %v5187, %v5833
      %v5942 = vadd.f32 %v5188, %v5836
      %v5943 = vadd.f32 %v5189, %v5841
      %v5944 = vadd.f32 %v5190, %v5844
      %v5945 = vadd.f32 %v5191, %v5849
      %v5946 = vadd.f32 %v5192, %v5852
      %v5947 = vadd.f32 %v5193, %v5857
      %v5948 = vadd.f32 %v5194, %v5860
      %v5949 = vadd.f32 %v5195, %v5865
      %v5950 = vadd.f32 %v5196, %v5868
      %v5951 = vadd.f32 %v5197, %v5873
      %v5952 = vadd.f32 %v5198, %v5876
      %v5953 = vadd.f32 %v5199, %v5881
      %v5954 = vadd.f32 %v5200, %v5884
      %v5955 = vadd.f32 %v5201, %v5889
      %v5956 = vadd.f32 %v5202, %v5892
      %v5957 = vadd.f32 %v5203, %v5897
      %v5958 = vadd.f32 %v5204, %v5900
      %v5959 = vadd.f32 %v5205, %v5905
      %v5960 = vadd.f32 %v5206, %v5908
      %v5961 = vadd.f32 %v5207, %v5913
      %v5962 = vadd.f32 %v5208, %v5916
      %v5963 = vadd.f32 %v5209, %v5921
      %v5964 = vadd.f32 %v5210, %v5924
      %v5965 = vadd.f32 %v5211, %v5929
      %v5966 = vadd.f32 %v5212, %v5932
      %v5967 = vld [vmem:[%s2] sm:$0x1]
      %v5969 = vlaneseq
      %v5970 = vshrl.u32 %v5969, 7
      %v5971 = vsub.s32 0, %v5970
      %v5972 = vrot.slane %v5967, %v5971
      %v5974 = vadd.f32 %v5935, %v5972
      %v5975 = vadd.f32 %v5936, %v5972
      %v5976 = vadd.f32 %v5937, %v5972
      %v5977 = vadd.f32 %v5938, %v5972
      %v5978 = vadd.f32 %v5939, %v5972
      %v5979 = vadd.f32 %v5940, %v5972
      %v5980 = vadd.f32 %v5941, %v5972
      %v5981 = vadd.f32 %v5942, %v5972
      %v5982 = vadd.f32 %v5943, %v5972
      %v5983 = vadd.f32 %v5944, %v5972
      %v5984 = vadd.f32 %v5945, %v5972
      %v5985 = vadd.f32 %v5946, %v5972
      %v5986 = vadd.f32 %v5947, %v5972
      %v5987 = vadd.f32 %v5948, %v5972
      %v5988 = vadd.f32 %v5949, %v5972
      %v5989 = vadd.f32 %v5950, %v5972
      %v5990 = vadd.f32 %v5951, %v5972
      %v5991 = vadd.f32 %v5952, %v5972
      %v5992 = vadd.f32 %v5953, %v5972
      %v5993 = vadd.f32 %v5954, %v5972
      %v5994 = vadd.f32 %v5955, %v5972
      %v5995 = vadd.f32 %v5956, %v5972
      %v5996 = vadd.f32 %v5957, %v5972
      %v5997 = vadd.f32 %v5958, %v5972
      %v5998 = vadd.f32 %v5959, %v5972
      %v5999 = vadd.f32 %v5960, %v5972
      %v6000 = vadd.f32 %v5961, %v5972
      %v6001 = vadd.f32 %v5962, %v5972
      %v6002 = vadd.f32 %v5963, %v5972
      %v6003 = vadd.f32 %v5964, %v5972
      %v6004 = vadd.f32 %v5965, %v5972
      %v6005 = vadd.f32 %v5966, %v5972
      %vm6006 = vcmp.gt.f32.partialorder %v5974, 0.0
      %vm6007 = vcmp.gt.f32.partialorder %v5975, 0.0
      %vm6008 = vcmp.gt.f32.partialorder %v5976, 0.0
      %vm6009 = vcmp.gt.f32.partialorder %v5977, 0.0
      %vm6010 = vcmp.gt.f32.partialorder %v5978, 0.0
      %vm6011 = vcmp.gt.f32.partialorder %v5979, 0.0
      %vm6012 = vcmp.gt.f32.partialorder %v5980, 0.0
      %vm6013 = vcmp.gt.f32.partialorder %v5981, 0.0
      %vm6014 = vcmp.gt.f32.partialorder %v5982, 0.0
      %vm6015 = vcmp.gt.f32.partialorder %v5983, 0.0
      %vm6016 = vcmp.gt.f32.partialorder %v5984, 0.0
      %vm6017 = vcmp.gt.f32.partialorder %v5985, 0.0
      %vm6018 = vcmp.gt.f32.partialorder %v5986, 0.0
      %vm6019 = vcmp.gt.f32.partialorder %v5987, 0.0
      %vm6020 = vcmp.gt.f32.partialorder %v5988, 0.0
      %vm6021 = vcmp.gt.f32.partialorder %v5989, 0.0
      %vm6022 = vcmp.gt.f32.partialorder %v5990, 0.0
      %vm6023 = vcmp.gt.f32.partialorder %v5991, 0.0
      %vm6024 = vcmp.gt.f32.partialorder %v5992, 0.0
      %vm6025 = vcmp.gt.f32.partialorder %v5993, 0.0
      %vm6026 = vcmp.gt.f32.partialorder %v5994, 0.0
      %vm6027 = vcmp.gt.f32.partialorder %v5995, 0.0
      %vm6028 = vcmp.gt.f32.partialorder %v5996, 0.0
      %vm6029 = vcmp.gt.f32.partialorder %v5997, 0.0
      %vm6030 = vcmp.gt.f32.partialorder %v5998, 0.0
      %vm6031 = vcmp.gt.f32.partialorder %v5999, 0.0
      %vm6032 = vcmp.gt.f32.partialorder %v6000, 0.0
      %vm6033 = vcmp.gt.f32.partialorder %v6001, 0.0
      %vm6034 = vcmp.gt.f32.partialorder %v6002, 0.0
      %vm6035 = vcmp.gt.f32.partialorder %v6003, 0.0
      %vm6036 = vcmp.gt.f32.partialorder %v6004, 0.0
      %vm6037 = vcmp.gt.f32.partialorder %v6005, 0.0
      %v6038 = vmul.f32 %v5974, 0.1
      %v6039 = vmul.f32 %v5975, 0.1
      %v6040 = vmul.f32 %v5976, 0.1
      %v6041 = vmul.f32 %v5977, 0.1
      %v6042 = vmul.f32 %v5978, 0.1
      %v6043 = vmul.f32 %v5979, 0.1
      %v6044 = vmul.f32 %v5980, 0.1
      %v6045 = vmul.f32 %v5981, 0.1
      %v6046 = vmul.f32 %v5982, 0.1
      %v6047 = vmul.f32 %v5983, 0.1
      %v6048 = vmul.f32 %v5984, 0.1
      %v6049 = vmul.f32 %v5985, 0.1
      %v6050 = vmul.f32 %v5986, 0.1
      %v6051 = vmul.f32 %v5987, 0.1
      %v6052 = vmul.f32 %v5988, 0.1
      %v6053 = vmul.f32 %v5989, 0.1
      %v6054 = vmul.f32 %v5990, 0.1
      %v6055 = vmul.f32 %v5991, 0.1
      %v6056 = vmul.f32 %v5992, 0.1
      %v6057 = vmul.f32 %v5993, 0.1
      %v6058 = vmul.f32 %v5994, 0.1
      %v6059 = vmul.f32 %v5995, 0.1
      %v6060 = vmul.f32 %v5996, 0.1
      %v6061 = vmul.f32 %v5997, 0.1
      %v6062 = vmul.f32 %v5998, 0.1
      %v6063 = vmul.f32 %v5999, 0.1
      %v6064 = vmul.f32 %v6000, 0.1
      %v6065 = vmul.f32 %v6001, 0.1
      %v6066 = vmul.f32 %v6002, 0.1
      %v6067 = vmul.f32 %v6003, 0.1
      %v6068 = vmul.f32 %v6004, 0.1
      %v6069 = vmul.f32 %v6005, 0.1
      %v6070 = vsel %vm6006, %v5974, %v6038
      %v6071 = vsel %vm6007, %v5975, %v6039
      %v6072 = vsel %vm6008, %v5976, %v6040
      %v6073 = vsel %vm6009, %v5977, %v6041
      %v6074 = vsel %vm6010, %v5978, %v6042
      %v6075 = vsel %vm6011, %v5979, %v6043
      %v6076 = vsel %vm6012, %v5980, %v6044
      %v6077 = vsel %vm6013, %v5981, %v6045
      %v6078 = vsel %vm6014, %v5982, %v6046
      %v6079 = vsel %vm6015, %v5983, %v6047
      %v6080 = vsel %vm6016, %v5984, %v6048
      %v6081 = vsel %vm6017, %v5985, %v6049
      %v6082 = vsel %vm6018, %v5986, %v6050
      %v6083 = vsel %vm6019, %v5987, %v6051
      %v6084 = vsel %vm6020, %v5988, %v6052
      %v6085 = vsel %vm6021, %v5989, %v6053
      %v6086 = vsel %vm6022, %v5990, %v6054
      %v6087 = vsel %vm6023, %v5991, %v6055
      %v6088 = vsel %vm6024, %v5992, %v6056
      %v6089 = vsel %vm6025, %v5993, %v6057
      %v6090 = vsel %vm6026, %v5994, %v6058
      %v6091 = vsel %vm6027, %v5995, %v6059
      %v6092 = vsel %vm6028, %v5996, %v6060
      %v6093 = vsel %vm6029, %v5997, %v6061
      %v6094 = vsel %vm6030, %v5998, %v6062
      %v6095 = vsel %vm6031, %v5999, %v6063
      %v6096 = vsel %vm6032, %v6000, %v6064
      %v6097 = vsel %vm6033, %v6001, %v6065
      %v6098 = vsel %vm6034, %v6002, %v6066
      %v6099 = vsel %vm6035, %v6003, %v6067
      %v6100 = vsel %vm6036, %v6004, %v6068
      %v6101 = vsel %vm6037, %v6005, %v6069
      %v6102 = vpack.c.bf16 %v6071, %v6070
      %v6103 = vpack.c.bf16 %v6073, %v6072
      %v6104 = vpack.c.bf16 %v6075, %v6074
      %v6105 = vpack.c.bf16 %v6077, %v6076
      %v6106 = vpack.c.bf16 %v6079, %v6078
      %v6107 = vpack.c.bf16 %v6081, %v6080
      %v6108 = vpack.c.bf16 %v6083, %v6082
      %v6109 = vpack.c.bf16 %v6085, %v6084
      %v6110 = vpack.c.bf16 %v6087, %v6086
      %v6111 = vpack.c.bf16 %v6089, %v6088
      %v6112 = vpack.c.bf16 %v6091, %v6090
      %v6113 = vpack.c.bf16 %v6093, %v6092
      %v6114 = vpack.c.bf16 %v6095, %v6094
      %v6115 = vpack.c.bf16 %v6097, %v6096
      %v6116 = vpack.c.bf16 %v6099, %v6098
      %v6117 = vpack.c.bf16 %v6101, %v6100
      %v6134 = vunpack.c.l.b16 %v6102
      %v6135 = vunpack.c.h.b16 %v6102
      %v6136 = vunpack.c.l.b16 %v6103
      %v6137 = vunpack.c.h.b16 %v6103
      %v6138 = vunpack.c.l.b16 %v6104
      %v6139 = vunpack.c.h.b16 %v6104
      %v6140 = vunpack.c.l.b16 %v6105
      %v6141 = vunpack.c.h.b16 %v6105
      %v6142 = vunpack.c.l.b16 %v6106
      %v6143 = vunpack.c.h.b16 %v6106
      %v6144 = vunpack.c.l.b16 %v6107
      %v6145 = vunpack.c.h.b16 %v6107
      %v6146 = vunpack.c.l.b16 %v6108
      %v6147 = vunpack.c.h.b16 %v6108
      %v6148 = vunpack.c.l.b16 %v6109
      %v6149 = vunpack.c.h.b16 %v6109
      %v6150 = vunpack.c.l.b16 %v6110
      %v6151 = vunpack.c.h.b16 %v6110
      %v6152 = vunpack.c.l.b16 %v6111
      %v6153 = vunpack.c.h.b16 %v6111
      %v6154 = vunpack.c.l.b16 %v6112
      %v6155 = vunpack.c.h.b16 %v6112
      %v6156 = vunpack.c.l.b16 %v6113
      %v6157 = vunpack.c.h.b16 %v6113
      %v6158 = vunpack.c.l.b16 %v6114
      %v6159 = vunpack.c.h.b16 %v6114
      %v6160 = vunpack.c.l.b16 %v6115
      %v6161 = vunpack.c.h.b16 %v6115
      %v6162 = vunpack.c.l.b16 %v6116
      %v6163 = vunpack.c.h.b16 %v6116
      %v6164 = vunpack.c.l.b16 %v6117
      %v6165 = vunpack.c.h.b16 %v6117
      %v6166 = vpack.c.b16 %v6134, %v6134
      %v6167 = vpack.c.b16 %v6135, %v6135
      %v6168 = vpack.c.b16 %v6136, %v6136
      %v6169 = vpack.c.b16 %v6137, %v6137
      %v6170 = vpack.c.b16 %v6138, %v6138
      %v6171 = vpack.c.b16 %v6139, %v6139
      %v6172 = vpack.c.b16 %v6140, %v6140
      %v6173 = vpack.c.b16 %v6141, %v6141
      %v6174 = vpack.c.b16 %v6142, %v6142
      %v6175 = vpack.c.b16 %v6143, %v6143
      %v6176 = vpack.c.b16 %v6144, %v6144
      %v6177 = vpack.c.b16 %v6145, %v6145
      %v6178 = vpack.c.b16 %v6146, %v6146
      %v6179 = vpack.c.b16 %v6147, %v6147
      %v6180 = vpack.c.b16 %v6148, %v6148
      %v6181 = vpack.c.b16 %v6149, %v6149
      %v6182 = vpack.c.b16 %v6150, %v6150
      %v6183 = vpack.c.b16 %v6151, %v6151
      %v6184 = vpack.c.b16 %v6152, %v6152
      %v6185 = vpack.c.b16 %v6153, %v6153
      %v6186 = vpack.c.b16 %v6154, %v6154
      %v6187 = vpack.c.b16 %v6155, %v6155
      %v6188 = vpack.c.b16 %v6156, %v6156
      %v6189 = vpack.c.b16 %v6157, %v6157
      %v6190 = vpack.c.b16 %v6158, %v6158
      %v6191 = vpack.c.b16 %v6159, %v6159
      %v6192 = vpack.c.b16 %v6160, %v6160
      %v6193 = vpack.c.b16 %v6161, %v6161
      %v6194 = vpack.c.b16 %v6162, %v6162
      %v6195 = vpack.c.b16 %v6163, %v6163
      %v6196 = vpack.c.b16 %v6164, %v6164
      %v6197 = vpack.c.b16 %v6165, %v6165
      %6198 = vrot.lane.b32.xlu0 %v6166, 8
      %v6199 = vpop.permute.xlu0 %6198
      %6200 = vrot.lane.b32.xlu0 %v6167, 8
      %v6201 = vpop.permute.xlu0 %6200
      %6202 = vrot.lane.b32.xlu0 %v6168, 8
      %v6203 = vpop.permute.xlu0 %6202
      %6204 = vrot.lane.b32.xlu0 %v6169, 8
      %v6205 = vpop.permute.xlu0 %6204
      %6206 = vrot.lane.b32.xlu0 %v6170, 8
      %v6207 = vpop.permute.xlu0 %6206
      %6208 = vrot.lane.b32.xlu0 %v6171, 8
      %v6209 = vpop.permute.xlu0 %6208
      %6210 = vrot.lane.b32.xlu0 %v6172, 8
      %v6211 = vpop.permute.xlu0 %6210
      %6212 = vrot.lane.b32.xlu0 %v6173, 8
      %v6213 = vpop.permute.xlu0 %6212
      %6214 = vrot.lane.b32.xlu0 %v6174, 8
      %v6215 = vpop.permute.xlu0 %6214
      %6216 = vrot.lane.b32.xlu0 %v6175, 8
      %v6217 = vpop.permute.xlu0 %6216
      %6218 = vrot.lane.b32.xlu0 %v6176, 8
      %v6219 = vpop.permute.xlu0 %6218
      %6220 = vrot.lane.b32.xlu0 %v6177, 8
      %v6221 = vpop.permute.xlu0 %6220
      %6222 = vrot.lane.b32.xlu0 %v6178, 8
      %v6223 = vpop.permute.xlu0 %6222
      %6224 = vrot.lane.b32.xlu0 %v6179, 8
      %v6225 = vpop.permute.xlu0 %6224
      %6226 = vrot.lane.b32.xlu0 %v6180, 8
      %v6227 = vpop.permute.xlu0 %6226
      %6228 = vrot.lane.b32.xlu0 %v6181, 8
      %v6229 = vpop.permute.xlu0 %6228
      %6230 = vrot.lane.b32.xlu0 %v6182, 8
      %v6231 = vpop.permute.xlu0 %6230
      %6232 = vrot.lane.b32.xlu0 %v6183, 8
      %v6233 = vpop.permute.xlu0 %6232
      %6234 = vrot.lane.b32.xlu0 %v6184, 8
      %v6235 = vpop.permute.xlu0 %6234
      %6236 = vrot.lane.b32.xlu0 %v6185, 8
      %v6237 = vpop.permute.xlu0 %6236
      %6238 = vrot.lane.b32.xlu0 %v6186, 8
      %v6239 = vpop.permute.xlu0 %6238
      %6240 = vrot.lane.b32.xlu0 %v6187, 8
      %v6241 = vpop.permute.xlu0 %6240
      %6242 = vrot.lane.b32.xlu0 %v6188, 8
      %v6243 = vpop.permute.xlu0 %6242
      %6244 = vrot.lane.b32.xlu0 %v6189, 8
      %v6245 = vpop.permute.xlu0 %6244
      %6246 = vrot.lane.b32.xlu0 %v6190, 8
      %v6247 = vpop.permute.xlu0 %6246
      %6248 = vrot.lane.b32.xlu0 %v6191, 8
      %v6249 = vpop.permute.xlu0 %6248
      %6250 = vrot.lane.b32.xlu0 %v6192, 8
      %v6251 = vpop.permute.xlu0 %6250
      %6252 = vrot.lane.b32.xlu0 %v6193, 8
      %v6253 = vpop.permute.xlu0 %6252
      %6254 = vrot.lane.b32.xlu0 %v6194, 8
      %v6255 = vpop.permute.xlu0 %6254
      %6256 = vrot.lane.b32.xlu0 %v6195, 8
      %v6257 = vpop.permute.xlu0 %6256
      %6258 = vrot.lane.b32.xlu0 %v6196, 8
      %v6259 = vpop.permute.xlu0 %6258
      %6260 = vrot.lane.b32.xlu0 %v6197, 8
      %v6261 = vpop.permute.xlu0 %6260
      %vm6294 = vcmask 93248
      %6295 = vst.msk [vmem:[%s244 + $0x8] sm:$0xf] %vm6294, %v6199
      %6296 = vst.msk [vmem:[%s244 + $0xc] sm:$0xf] %vm6294, %v6201
      %6297 = vst.msk [vmem:[%s244 + $0x1c] sm:$0xf] %vm6294, %v6203
      %6298 = vst.msk [vmem:[%s244 + $0x20] sm:$0xf] %vm6294, %v6205
      %6299 = vst.msk [vmem:[%s244 + $0x30] sm:$0xf] %vm6294, %v6207
      %6300 = vst.msk [vmem:[%s244 + $0x34] sm:$0xf] %vm6294, %v6209
      %6301 = vst.msk [vmem:[%s244 + $0x44] sm:$0xf] %vm6294, %v6211
      %6302 = vst.msk [vmem:[%s244 + $0x48] sm:$0xf] %vm6294, %v6213
      %6303 = vst.msk [vmem:[%s244 + $0x58] sm:$0xf] %vm6294, %v6215
      %6304 = vst.msk [vmem:[%s244 + $0x5c] sm:$0xf] %vm6294, %v6217
      %6305 = vst.msk [vmem:[%s244 + $0x6c] sm:$0xf] %vm6294, %v6219
      %6306 = vst.msk [vmem:[%s244 + $0x70] sm:$0xf] %vm6294, %v6221
      %6307 = vst.msk [vmem:[%s244 + $0x80] sm:$0xf] %vm6294, %v6223
      %6308 = vst.msk [vmem:[%s244 + $0x84] sm:$0xf] %vm6294, %v6225
      %6309 = vst.msk [vmem:[%s244 + $0x94] sm:$0xf] %vm6294, %v6227
      %6310 = vst.msk [vmem:[%s244 + $0x98] sm:$0xf] %vm6294, %v6229
      %6311 = vst.msk [vmem:[%s244 + $0xa8] sm:$0xf] %vm6294, %v6231
      %6312 = vst.msk [vmem:[%s244 + $0xac] sm:$0xf] %vm6294, %v6233
      %6313 = vst.msk [vmem:[%s244 + $0xbc] sm:$0xf] %vm6294, %v6235
      %6314 = vst.msk [vmem:[%s244 + $0xc0] sm:$0xf] %vm6294, %v6237
      %6315 = vst.msk [vmem:[%s244 + $0xd0] sm:$0xf] %vm6294, %v6239
      %6316 = vst.msk [vmem:[%s244 + $0xd4] sm:$0xf] %vm6294, %v6241
      %6317 = vst.msk [vmem:[%s244 + $0xe4] sm:$0xf] %vm6294, %v6243
      %6318 = vst.msk [vmem:[%s244 + $0xe8] sm:$0xf] %vm6294, %v6245
      %6319 = vst.msk [vmem:[%s244 + $0xf8] sm:$0xf] %vm6294, %v6247
      %6320 = vst.msk [vmem:[%s244 + $0xfc] sm:$0xf] %vm6294, %v6249
      %6321 = vst.msk [vmem:[%s244 + $0x10c] sm:$0xf] %vm6294, %v6251
      %6322 = vst.msk [vmem:[%s244 + $0x110] sm:$0xf] %vm6294, %v6253
      %6323 = vst.msk [vmem:[%s244 + $0x120] sm:$0xf] %vm6294, %v6255
      %6324 = vst.msk [vmem:[%s244 + $0x124] sm:$0xf] %vm6294, %v6257
      %6325 = vst.msk [vmem:[%s244 + $0x134] sm:$0xf] %vm6294, %v6259
      %6326 = vst.msk [vmem:[%s244 + $0x138] sm:$0xf] %vm6294, %v6261
      %v6327 = vld [vmem:[#allocation2 + $0x4] sm:$0x8]
      %v6328 = vld [vmem:[#allocation2 + $0x8] sm:$0xf]
      %v6329 = vld [vmem:[#allocation2 + $0xc] sm:$0xf]
      %v6330 = vld [vmem:[#allocation2 + $0x18] sm:$0x8]
      %v6331 = vld [vmem:[#allocation2 + $0x1c] sm:$0xf]
      %v6332 = vld [vmem:[#allocation2 + $0x20] sm:$0xf]
      %v6333 = vld [vmem:[#allocation2 + $0x2c] sm:$0x8]
      %v6334 = vld [vmem:[#allocation2 + $0x30] sm:$0xf]
      %v6335 = vld [vmem:[#allocation2 + $0x34] sm:$0xf]
      %v6336 = vld [vmem:[#allocation2 + $0x40] sm:$0x8]
      %v6337 = vld [vmem:[#allocation2 + $0x44] sm:$0xf]
      %v6338 = vld [vmem:[#allocation2 + $0x48] sm:$0xf]
      %v6339 = vld [vmem:[#allocation2 + $0x54] sm:$0x8]
      %v6340 = vld [vmem:[#allocation2 + $0x58] sm:$0xf]
      %v6341 = vld [vmem:[#allocation2 + $0x5c] sm:$0xf]
      %v6342 = vld [vmem:[#allocation2 + $0x68] sm:$0x8]
      %v6343 = vld [vmem:[#allocation2 + $0x6c] sm:$0xf]
      %v6344 = vld [vmem:[#allocation2 + $0x70] sm:$0xf]
      %v6345 = vld [vmem:[#allocation2 + $0x7c] sm:$0x8]
      %v6346 = vld [vmem:[#allocation2 + $0x80] sm:$0xf]
      %v6347 = vld [vmem:[#allocation2 + $0x84] sm:$0xf]
      %v6348 = vld [vmem:[#allocation2 + $0x90] sm:$0x8]
      %v6349 = vld [vmem:[#allocation2 + $0x94] sm:$0xf]
      %v6350 = vld [vmem:[#allocation2 + $0x98] sm:$0xf]
      %v6351 = vld [vmem:[#allocation2 + $0xa4] sm:$0x8]
      %v6352 = vld [vmem:[#allocation2 + $0xa8] sm:$0xf]
      %v6353 = vld [vmem:[#allocation2 + $0xac] sm:$0xf]
      %v6354 = vld [vmem:[#allocation2 + $0xb8] sm:$0x8]
      %v6355 = vld [vmem:[#allocation2 + $0xbc] sm:$0xf]
      %v6356 = vld [vmem:[#allocation2 + $0xc0] sm:$0xf]
      %v6357 = vld [vmem:[#allocation2 + $0xcc] sm:$0x8]
      %v6358 = vld [vmem:[#allocation2 + $0xd0] sm:$0xf]
      %v6359 = vld [vmem:[#allocation2 + $0xd4] sm:$0xf]
      %v6360 = vld [vmem:[#allocation2 + $0xe0] sm:$0x8]
      %v6361 = vld [vmem:[#allocation2 + $0xe4] sm:$0xf]
      %v6362 = vld [vmem:[#allocation2 + $0xe8] sm:$0xf]
      %v6363 = vld [vmem:[#allocation2 + $0xf4] sm:$0x8]
      %v6364 = vld [vmem:[#allocation2 + $0xf8] sm:$0xf]
      %v6365 = vld [vmem:[#allocation2 + $0xfc] sm:$0xf]
      %v6366 = vld [vmem:[#allocation2 + $0x108] sm:$0x8]
      %v6367 = vld [vmem:[#allocation2 + $0x10c] sm:$0xf]
      %v6368 = vld [vmem:[#allocation2 + $0x110] sm:$0xf]
      %v6369 = vld [vmem:[#allocation2 + $0x11c] sm:$0x8]
      %v6370 = vld [vmem:[#allocation2 + $0x120] sm:$0xf]
      %v6371 = vld [vmem:[#allocation2 + $0x124] sm:$0xf]
      %v6372 = vld [vmem:[#allocation2 + $0x130] sm:$0x8]
      %v6373 = vld [vmem:[#allocation2 + $0x134] sm:$0xf]
      %v6374 = vld [vmem:[#allocation2 + $0x138] sm:$0xf]
      %v6376 = vshrl.u32 %v6327, 16
      %v6378 = vrot.slane %v6376, 7
      %v6379 = vrot.slane %v6378, 4
      %v6381 = vshrl.u32 %v6328, 16
      %v6383 = vrot.slane %v6381, 7
      %v6384 = vshll.u32 %v6328, 16
      %v6386 = vor.u32 %v6383, %v6384
      %v6387 = vsel %vm585, %v6379, %v6386
      %v6388 = vrot.slane %v6383, 4
      %v6390 = vshrl.u32 %v6329, 16
      %v6392 = vrot.slane %v6390, 7
      %v6393 = vshll.u32 %v6329, 16
      %v6395 = vor.u32 %v6392, %v6393
      %v6396 = vsel %vm585, %v6388, %v6395
      %v6398 = vshrl.u32 %v6330, 16
      %v6400 = vrot.slane %v6398, 7
      %v6401 = vrot.slane %v6400, 4
      %v6403 = vshrl.u32 %v6331, 16
      %v6405 = vrot.slane %v6403, 7
      %v6406 = vshll.u32 %v6331, 16
      %v6408 = vor.u32 %v6405, %v6406
      %v6409 = vsel %vm585, %v6401, %v6408
      %v6410 = vrot.slane %v6405, 4
      %v6412 = vshrl.u32 %v6332, 16
      %v6414 = vrot.slane %v6412, 7
      %v6415 = vshll.u32 %v6332, 16
      %v6417 = vor.u32 %v6414, %v6415
      %v6418 = vsel %vm585, %v6410, %v6417
      %v6420 = vshrl.u32 %v6333, 16
      %v6422 = vrot.slane %v6420, 7
      %v6423 = vrot.slane %v6422, 4
      %v6425 = vshrl.u32 %v6334, 16
      %v6427 = vrot.slane %v6425, 7
      %v6428 = vshll.u32 %v6334, 16
      %v6430 = vor.u32 %v6427, %v6428
      %v6431 = vsel %vm585, %v6423, %v6430
      %v6432 = vrot.slane %v6427, 4
      %v6434 = vshrl.u32 %v6335, 16
      %v6436 = vrot.slane %v6434, 7
      %v6437 = vshll.u32 %v6335, 16
      %v6439 = vor.u32 %v6436, %v6437
      %v6440 = vsel %vm585, %v6432, %v6439
      %v6442 = vshrl.u32 %v6336, 16
      %v6444 = vrot.slane %v6442, 7
      %v6445 = vrot.slane %v6444, 4
      %v6447 = vshrl.u32 %v6337, 16
      %v6449 = vrot.slane %v6447, 7
      %v6450 = vshll.u32 %v6337, 16
      %v6452 = vor.u32 %v6449, %v6450
      %v6453 = vsel %vm585, %v6445, %v6452
      %v6454 = vrot.slane %v6449, 4
      %v6456 = vshrl.u32 %v6338, 16
      %v6458 = vrot.slane %v6456, 7
      %v6459 = vshll.u32 %v6338, 16
      %v6461 = vor.u32 %v6458, %v6459
      %v6462 = vsel %vm585, %v6454, %v6461
      %v6464 = vshrl.u32 %v6339, 16
      %v6466 = vrot.slane %v6464, 7
      %v6467 = vrot.slane %v6466, 4
      %v6469 = vshrl.u32 %v6340, 16
      %v6471 = vrot.slane %v6469, 7
      %v6472 = vshll.u32 %v6340, 16
      %v6474 = vor.u32 %v6471, %v6472
      %v6475 = vsel %vm585, %v6467, %v6474
      %v6476 = vrot.slane %v6471, 4
      %v6478 = vshrl.u32 %v6341, 16
      %v6480 = vrot.slane %v6478, 7
      %v6481 = vshll.u32 %v6341, 16
      %v6483 = vor.u32 %v6480, %v6481
      %v6484 = vsel %vm585, %v6476, %v6483
      %v6486 = vshrl.u32 %v6342, 16
      %v6488 = vrot.slane %v6486, 7
      %v6489 = vrot.slane %v6488, 4
      %v6491 = vshrl.u32 %v6343, 16
      %v6493 = vrot.slane %v6491, 7
      %v6494 = vshll.u32 %v6343, 16
      %v6496 = vor.u32 %v6493, %v6494
      %v6497 = vsel %vm585, %v6489, %v6496
      %v6498 = vrot.slane %v6493, 4
      %v6500 = vshrl.u32 %v6344, 16
      %v6502 = vrot.slane %v6500, 7
      %v6503 = vshll.u32 %v6344, 16
      %v6505 = vor.u32 %v6502, %v6503
      %v6506 = vsel %vm585, %v6498, %v6505
      %v6508 = vshrl.u32 %v6345, 16
      %v6510 = vrot.slane %v6508, 7
      %v6511 = vrot.slane %v6510, 4
      %v6513 = vshrl.u32 %v6346, 16
      %v6515 = vrot.slane %v6513, 7
      %v6516 = vshll.u32 %v6346, 16
      %v6518 = vor.u32 %v6515, %v6516
      %v6519 = vsel %vm585, %v6511, %v6518
      %v6520 = vrot.slane %v6515, 4
      %v6522 = vshrl.u32 %v6347, 16
      %v6524 = vrot.slane %v6522, 7
      %v6525 = vshll.u32 %v6347, 16
      %v6527 = vor.u32 %v6524, %v6525
      %v6528 = vsel %vm585, %v6520, %v6527
      %v6530 = vshrl.u32 %v6348, 16
      %v6532 = vrot.slane %v6530, 7
      %v6533 = vrot.slane %v6532, 4
      %v6535 = vshrl.u32 %v6349, 16
      %v6537 = vrot.slane %v6535, 7
      %v6538 = vshll.u32 %v6349, 16
      %v6540 = vor.u32 %v6537, %v6538
      %v6541 = vsel %vm585, %v6533, %v6540
      %v6542 = vrot.slane %v6537, 4
      %v6544 = vshrl.u32 %v6350, 16
      %v6546 = vrot.slane %v6544, 7
      %v6547 = vshll.u32 %v6350, 16
      %v6549 = vor.u32 %v6546, %v6547
      %v6550 = vsel %vm585, %v6542, %v6549
      %v6552 = vshrl.u32 %v6351, 16
      %v6554 = vrot.slane %v6552, 7
      %v6555 = vrot.slane %v6554, 4
      %v6557 = vshrl.u32 %v6352, 16
      %v6559 = vrot.slane %v6557, 7
      %v6560 = vshll.u32 %v6352, 16
      %v6562 = vor.u32 %v6559, %v6560
      %v6563 = vsel %vm585, %v6555, %v6562
      %v6564 = vrot.slane %v6559, 4
      %v6566 = vshrl.u32 %v6353, 16
      %v6568 = vrot.slane %v6566, 7
      %v6569 = vshll.u32 %v6353, 16
      %v6571 = vor.u32 %v6568, %v6569
      %v6572 = vsel %vm585, %v6564, %v6571
      %v6574 = vshrl.u32 %v6354, 16
      %v6576 = vrot.slane %v6574, 7
      %v6577 = vrot.slane %v6576, 4
      %v6579 = vshrl.u32 %v6355, 16
      %v6581 = vrot.slane %v6579, 7
      %v6582 = vshll.u32 %v6355, 16
      %v6584 = vor.u32 %v6581, %v6582
      %v6585 = vsel %vm585, %v6577, %v6584
      %v6586 = vrot.slane %v6581, 4
      %v6588 = vshrl.u32 %v6356, 16
      %v6590 = vrot.slane %v6588, 7
      %v6591 = vshll.u32 %v6356, 16
      %v6593 = vor.u32 %v6590, %v6591
      %v6594 = vsel %vm585, %v6586, %v6593
      %v6596 = vshrl.u32 %v6357, 16
      %v6598 = vrot.slane %v6596, 7
      %v6599 = vrot.slane %v6598, 4
      %v6601 = vshrl.u32 %v6358, 16
      %v6603 = vrot.slane %v6601, 7
      %v6604 = vshll.u32 %v6358, 16
      %v6606 = vor.u32 %v6603, %v6604
      %v6607 = vsel %vm585, %v6599, %v6606
      %v6608 = vrot.slane %v6603, 4
      %v6610 = vshrl.u32 %v6359, 16
      %v6612 = vrot.slane %v6610, 7
      %v6613 = vshll.u32 %v6359, 16
      %v6615 = vor.u32 %v6612, %v6613
      %v6616 = vsel %vm585, %v6608, %v6615
      %v6618 = vshrl.u32 %v6360, 16
      %v6620 = vrot.slane %v6618, 7
      %v6621 = vrot.slane %v6620, 4
      %v6623 = vshrl.u32 %v6361, 16
      %v6625 = vrot.slane %v6623, 7
      %v6626 = vshll.u32 %v6361, 16
      %v6628 = vor.u32 %v6625, %v6626
      %v6629 = vsel %vm585, %v6621, %v6628
      %v6630 = vrot.slane %v6625, 4
      %v6632 = vshrl.u32 %v6362, 16
      %v6634 = vrot.slane %v6632, 7
      %v6635 = vshll.u32 %v6362, 16
      %v6637 = vor.u32 %v6634, %v6635
      %v6638 = vsel %vm585, %v6630, %v6637
      %v6640 = vshrl.u32 %v6363, 16
      %v6642 = vrot.slane %v6640, 7
      %v6643 = vrot.slane %v6642, 4
      %v6645 = vshrl.u32 %v6364, 16
      %v6647 = vrot.slane %v6645, 7
      %v6648 = vshll.u32 %v6364, 16
      %v6650 = vor.u32 %v6647, %v6648
      %v6651 = vsel %vm585, %v6643, %v6650
      %v6652 = vrot.slane %v6647, 4
      %v6654 = vshrl.u32 %v6365, 16
      %v6656 = vrot.slane %v6654, 7
      %v6657 = vshll.u32 %v6365, 16
      %v6659 = vor.u32 %v6656, %v6657
      %v6660 = vsel %vm585, %v6652, %v6659
      %v6662 = vshrl.u32 %v6366, 16
      %v6664 = vrot.slane %v6662, 7
      %v6665 = vrot.slane %v6664, 4
      %v6667 = vshrl.u32 %v6367, 16
      %v6669 = vrot.slane %v6667, 7
      %v6670 = vshll.u32 %v6367, 16
      %v6672 = vor.u32 %v6669, %v6670
      %v6673 = vsel %vm585, %v6665, %v6672
      %v6674 = vrot.slane %v6669, 4
      %v6676 = vshrl.u32 %v6368, 16
      %v6678 = vrot.slane %v6676, 7
      %v6679 = vshll.u32 %v6368, 16
      %v6681 = vor.u32 %v6678, %v6679
      %v6682 = vsel %vm585, %v6674, %v6681
      %v6684 = vshrl.u32 %v6369, 16
      %v6686 = vrot.slane %v6684, 7
      %v6687 = vrot.slane %v6686, 4
      %v6689 = vshrl.u32 %v6370, 16
      %v6691 = vrot.slane %v6689, 7
      %v6692 = vshll.u32 %v6370, 16
      %v6694 = vor.u32 %v6691, %v6692
      %v6695 = vsel %vm585, %v6687, %v6694
      %v6696 = vrot.slane %v6691, 4
      %v6698 = vshrl.u32 %v6371, 16
      %v6700 = vrot.slane %v6698, 7
      %v6701 = vshll.u32 %v6371, 16
      %v6703 = vor.u32 %v6700, %v6701
      %v6704 = vsel %vm585, %v6696, %v6703
      %v6706 = vshrl.u32 %v6372, 16
      %v6708 = vrot.slane %v6706, 7
      %v6709 = vrot.slane %v6708, 4
      %v6711 = vshrl.u32 %v6373, 16
      %v6713 = vrot.slane %v6711, 7
      %v6714 = vshll.u32 %v6373, 16
      %v6716 = vor.u32 %v6713, %v6714
      %v6717 = vsel %vm585, %v6709, %v6716
      %v6718 = vrot.slane %v6713, 4
      %v6720 = vshrl.u32 %v6374, 16
      %v6722 = vrot.slane %v6720, 7
      %v6723 = vshll.u32 %v6374, 16
      %v6725 = vor.u32 %v6722, %v6723
      %v6726 = vsel %vm585, %v6718, %v6725
      %s6727 = scalar_lea.vmem %s1, 576
      %v6728 = vld [vmem:[%s6727] sm:$0xf]
      %v6729 = vld [vmem:[%s6727 + $0x4] sm:$0xf]
      %v6730 = vld [vmem:[%s6727 + $0x8] sm:$0xf]
      %v6731 = vld [vmem:[%s6727 + $0xc] sm:$0xf]
      %v6732 = vld [vmem:[%s6727 + $0x10] sm:$0xf]
      %v6733 = vld [vmem:[%s6727 + $0x14] sm:$0xf]
      %v6734 = vld [vmem:[%s6727 + $0x18] sm:$0xf]
      %v6735 = vld [vmem:[%s6727 + $0x1c] sm:$0xf]
      %v6736 = vld [vmem:[%s6727 + $0x20] sm:$0xf]
      %v6737 = vld [vmem:[%s6727 + $0x24] sm:$0xf]
      %v6738 = vld [vmem:[%s6727 + $0x28] sm:$0xf]
      %v6739 = vld [vmem:[%s6727 + $0x2c] sm:$0xf]
      %v6740 = vld [vmem:[%s6727 + $0x30] sm:$0xf]
      %v6741 = vld [vmem:[%s6727 + $0x34] sm:$0xf]
      %v6742 = vld [vmem:[%s6727 + $0x38] sm:$0xf]
      %v6743 = vld [vmem:[%s6727 + $0x3c] sm:$0xf]
      %s6744 = scalar_lea.vmem %s1, 640
      %v6745 = vld [vmem:[%s6744] sm:$0xf]
      %v6746 = vld [vmem:[%s6744 + $0x4] sm:$0xf]
      %v6747 = vld [vmem:[%s6744 + $0x8] sm:$0xf]
      %v6748 = vld [vmem:[%s6744 + $0xc] sm:$0xf]
      %v6749 = vld [vmem:[%s6744 + $0x10] sm:$0xf]
      %v6750 = vld [vmem:[%s6744 + $0x14] sm:$0xf]
      %v6751 = vld [vmem:[%s6744 + $0x18] sm:$0xf]
      %v6752 = vld [vmem:[%s6744 + $0x1c] sm:$0xf]
      %v6753 = vld [vmem:[%s6744 + $0x20] sm:$0xf]
      %v6754 = vld [vmem:[%s6744 + $0x24] sm:$0xf]
      %v6755 = vld [vmem:[%s6744 + $0x28] sm:$0xf]
      %v6756 = vld [vmem:[%s6744 + $0x2c] sm:$0xf]
      %v6757 = vld [vmem:[%s6744 + $0x30] sm:$0xf]
      %v6758 = vld [vmem:[%s6744 + $0x34] sm:$0xf]
      %v6759 = vld [vmem:[%s6744 + $0x38] sm:$0xf]
      %v6760 = vld [vmem:[%s6744 + $0x3c] sm:$0xf]
      %v6793 = vunpack.c.l.b16 %v6328
      %v6794 = vunpack.c.l.b16 %v6329
      %v6795 = vunpack.c.l.b16 %v6331
      %v6796 = vunpack.c.l.b16 %v6332
      %v6797 = vunpack.c.l.b16 %v6334
      %v6798 = vunpack.c.l.b16 %v6335
      %v6799 = vunpack.c.l.b16 %v6337
      %v6800 = vunpack.c.l.b16 %v6338
      %v6801 = vunpack.c.l.b16 %v6340
      %v6802 = vunpack.c.l.b16 %v6341
      %v6803 = vunpack.c.l.b16 %v6343
      %v6804 = vunpack.c.l.b16 %v6344
      %v6805 = vunpack.c.l.b16 %v6346
      %v6806 = vunpack.c.l.b16 %v6347
      %v6807 = vunpack.c.l.b16 %v6349
      %v6808 = vunpack.c.l.b16 %v6350
      %v6809 = vunpack.c.l.b16 %v6352
      %v6810 = vunpack.c.l.b16 %v6353
      %v6811 = vunpack.c.l.b16 %v6355
      %v6812 = vunpack.c.l.b16 %v6356
      %v6813 = vunpack.c.l.b16 %v6358
      %v6814 = vunpack.c.l.b16 %v6359
      %v6815 = vunpack.c.l.b16 %v6361
      %v6816 = vunpack.c.l.b16 %v6362
      %v6817 = vunpack.c.l.b16 %v6364
      %v6818 = vunpack.c.l.b16 %v6365
      %v6819 = vunpack.c.l.b16 %v6367
      %v6820 = vunpack.c.l.b16 %v6368
      %v6821 = vunpack.c.l.b16 %v6370
      %v6822 = vunpack.c.l.b16 %v6371
      %v6823 = vunpack.c.l.b16 %v6373
      %v6824 = vunpack.c.l.b16 %v6374
      %v6825 = vpack.c.b16 %v6794, %v6793
      %v6826 = vpack.c.b16 %v6796, %v6795
      %v6827 = vpack.c.b16 %v6798, %v6797
      %v6828 = vpack.c.b16 %v6800, %v6799
      %v6829 = vpack.c.b16 %v6802, %v6801
      %v6830 = vpack.c.b16 %v6804, %v6803
      %v6831 = vpack.c.b16 %v6806, %v6805
      %v6832 = vpack.c.b16 %v6808, %v6807
      %v6833 = vpack.c.b16 %v6810, %v6809
      %v6834 = vpack.c.b16 %v6812, %v6811
      %v6835 = vpack.c.b16 %v6814, %v6813
      %v6836 = vpack.c.b16 %v6816, %v6815
      %v6837 = vpack.c.b16 %v6818, %v6817
      %v6838 = vpack.c.b16 %v6820, %v6819
      %v6839 = vpack.c.b16 %v6822, %v6821
      %v6840 = vpack.c.b16 %v6824, %v6823
      %v6873 = vunpack.c.l.b16 %v6745
      %v6874 = vunpack.c.l.b16 %v6746
      %v6875 = vunpack.c.l.b16 %v6747
      %v6876 = vunpack.c.l.b16 %v6748
      %v6877 = vunpack.c.l.b16 %v6749
      %v6878 = vunpack.c.l.b16 %v6750
      %v6879 = vunpack.c.l.b16 %v6751
      %v6880 = vunpack.c.l.b16 %v6752
      %v6881 = vunpack.c.l.b16 %v6753
      %v6882 = vunpack.c.l.b16 %v6754
      %v6883 = vunpack.c.l.b16 %v6755
      %v6884 = vunpack.c.l.b16 %v6756
      %v6885 = vunpack.c.l.b16 %v6757
      %v6886 = vunpack.c.l.b16 %v6758
      %v6887 = vunpack.c.l.b16 %v6759
      %v6888 = vunpack.c.l.b16 %v6760
      %v6889 = vpack.c.b16 %v6874, %v6873
      %v6890 = vpack.c.b16 %v6876, %v6875
      %v6891 = vpack.c.b16 %v6878, %v6877
      %v6892 = vpack.c.b16 %v6880, %v6879
      %v6893 = vpack.c.b16 %v6882, %v6881
      %v6894 = vpack.c.b16 %v6884, %v6883
      %v6895 = vpack.c.b16 %v6886, %v6885
      %v6896 = vpack.c.b16 %v6888, %v6887
      %6905 = vmatprep.subr.bf16.mxu0 0
      %6906 = vmatpush1.bf16.msra.mxu0 %v6889
      %6907 = vmatprep.subr.bf16.mxu0 0
      %6908 = vmatpush1.bf16.msra.mxu0 %v6890
      %6909 = vmatprep.subr.bf16.mxu0 0
      %6910 = vmatpush1.bf16.msra.mxu0 %v6891
      %6911 = vmatprep.subr.bf16.mxu0 0
      %6912 = vmatpush1.bf16.msra.mxu0 %v6892
      %6913 = vmatprep.subr.bf16.mxu0 0
      %6914 = vmatpush1.bf16.msra.mxu0 %v6893
      %6915 = vmatprep.subr.bf16.mxu0 0
      %6916 = vmatpush1.bf16.msra.mxu0 %v6894
      %6917 = vmatprep.subr.bf16.mxu0 0
      %6918 = vmatpush1.bf16.msra.mxu0 %v6895
      %6919 = vmatprep.subr.bf16.mxu0 0
      %6920 = vmatpush1.bf16.msra.mxu0 %v6896
      %6921 = vmatprep.subr.bf16.mxu0 0
      %6922 = vmatpush1.bf16.msra.mxu0 0
      %6923 = vmatprep.subr.bf16.mxu0 0
      %6924 = vmatpush1.bf16.msra.mxu0 0
      %6925 = vmatprep.subr.bf16.mxu0 0
      %6926 = vmatpush1.bf16.msra.mxu0 0
      %6927 = vmatprep.subr.bf16.mxu0 0
      %6928 = vmatpush1.bf16.msra.mxu0 0
      %6929 = vmatprep.subr.bf16.mxu0 0
      %6930 = vmatpush1.bf16.msra.mxu0 0
      %6931 = vmatprep.subr.bf16.mxu0 0
      %6932 = vmatpush1.bf16.msra.mxu0 0
      %6933 = vmatprep.subr.bf16.mxu0 0
      %6934 = vmatpush1.bf16.msra.mxu0 0
      %6935 = vmatprep.subr.bf16.mxu0 0
      %6936 = vmatpush1.bf16.msra.mxu0 0
      %6937 = vmatprep.mubr.bf16.mxu0 0
      %6938 = vmatmul.mubr.bf16.gmra.mrb[0].mxu0 %v6825
      %v6939 = vpop.f32.mrb[0].mxu0
      %v6940 = vadd.f32 0.0, %v6939
      %v6941 = vpop.f32.mrb[0].mxu0
      %v6942 = vpop.f32.mrb[0].mxu0
      %v6943 = vadd.f32 0.0, %v6942
      %v6944 = vpop.f32.mrb[0].mxu0
      %6945 = vmatprep.mubr.bf16.mxu0 0
      %6946 = vmatmul.mubr.bf16.gmra.mrb[0].mxu0 %v6826
      %v6947 = vpop.f32.mrb[0].mxu0
      %v6948 = vadd.f32 0.0, %v6947
      %v6949 = vpop.f32.mrb[0].mxu0
      %v6950 = vpop.f32.mrb[0].mxu0
      %v6951 = vadd.f32 0.0, %v6950
      %v6952 = vpop.f32.mrb[0].mxu0
      %6953 = vmatprep.mubr.bf16.mxu0 0
      %6954 = vmatmul.mubr.bf16.gmra.mrb[0].mxu0 %v6827
      %v6955 = vpop.f32.mrb[0].mxu0
      %v6956 = vadd.f32 0.0, %v6955
      %v6957 = vpop.f32.mrb[0].mxu0
      %v6958 = vpop.f32.mrb[0].mxu0
      %v6959 = vadd.f32 0.0, %v6958
      %v6960 = vpop.f32.mrb[0].mxu0
      %6961 = vmatprep.mubr.bf16.mxu0 0
      %6962 = vmatmul.mubr.bf16.gmra.mrb[0].mxu0 %v6828
      %v6963 = vpop.f32.mrb[0].mxu0
      %v6964 = vadd.f32 0.0, %v6963
      %v6965 = vpop.f32.mrb[0].mxu0
      %v6966 = vpop.f32.mrb[0].mxu0
      %v6967 = vadd.f32 0.0, %v6966
      %v6968 = vpop.f32.mrb[0].mxu0
      %6969 = vmatprep.mubr.bf16.mxu0 0
      %6970 = vmatmul.mubr.bf16.gmra.mrb[0].mxu0 %v6829
      %v6971 = vpop.f32.mrb[0].mxu0
      %v6972 = vadd.f32 0.0, %v6971
      %v6973 = vpop.f32.mrb[0].mxu0
      %v6974 = vpop.f32.mrb[0].mxu0
      %v6975 = vadd.f32 0.0, %v6974
      %v6976 = vpop.f32.mrb[0].mxu0
      %6977 = vmatprep.mubr.bf16.mxu0 0
      %6978 = vmatmul.mubr.bf16.gmra.mrb[0].mxu0 %v6830
      %v6979 = vpop.f32.mrb[0].mxu0
      %v6980 = vadd.f32 0.0, %v6979
      %v6981 = vpop.f32.mrb[0].mxu0
      %v6982 = vpop.f32.mrb[0].mxu0
      %v6983 = vadd.f32 0.0, %v6982
      %v6984 = vpop.f32.mrb[0].mxu0
      %6985 = vmatprep.mubr.bf16.mxu0 0
      %6986 = vmatmul.mubr.bf16.gmra.mrb[0].mxu0 %v6831
      %v6987 = vpop.f32.mrb[0].mxu0
      %v6988 = vadd.f32 0.0, %v6987
      %v6989 = vpop.f32.mrb[0].mxu0
      %v6990 = vpop.f32.mrb[0].mxu0
      %v6991 = vadd.f32 0.0, %v6990
      %v6992 = vpop.f32.mrb[0].mxu0
      %6993 = vmatprep.mubr.bf16.mxu0 0
      %6994 = vmatmul.mubr.bf16.gmra.mrb[0].mxu0 %v6832
      %v6995 = vpop.f32.mrb[0].mxu0
      %v6996 = vadd.f32 0.0, %v6995
      %v6997 = vpop.f32.mrb[0].mxu0
      %v6998 = vpop.f32.mrb[0].mxu0
      %v6999 = vadd.f32 0.0, %v6998
      %v7000 = vpop.f32.mrb[0].mxu0
      %7001 = vmatprep.mubr.bf16.mxu0 0
      %7002 = vmatmul.mubr.bf16.gmra.mrb[0].mxu0 %v6833
      %v7003 = vpop.f32.mrb[0].mxu0
      %v7004 = vadd.f32 0.0, %v7003
      %v7005 = vpop.f32.mrb[0].mxu0
      %v7006 = vpop.f32.mrb[0].mxu0
      %v7007 = vadd.f32 0.0, %v7006
      %v7008 = vpop.f32.mrb[0].mxu0
      %7009 = vmatprep.mubr.bf16.mxu0 0
      %7010 = vmatmul.mubr.bf16.gmra.mrb[0].mxu0 %v6834
      %v7011 = vpop.f32.mrb[0].mxu0
      %v7012 = vadd.f32 0.0, %v7011
      %v7013 = vpop.f32.mrb[0].mxu0
      %v7014 = vpop.f32.mrb[0].mxu0
      %v7015 = vadd.f32 0.0, %v7014
      %v7016 = vpop.f32.mrb[0].mxu0
      %7017 = vmatprep.mubr.bf16.mxu0 0
      %7018 = vmatmul.mubr.bf16.gmra.mrb[0].mxu0 %v6835
      %v7019 = vpop.f32.mrb[0].mxu0
      %v7020 = vadd.f32 0.0, %v7019
      %v7021 = vpop.f32.mrb[0].mxu0
      %v7022 = vpop.f32.mrb[0].mxu0
      %v7023 = vadd.f32 0.0, %v7022
      %v7024 = vpop.f32.mrb[0].mxu0
      %7025 = vmatprep.mubr.bf16.mxu0 0
      %7026 = vmatmul.mubr.bf16.gmra.mrb[0].mxu0 %v6836
      %v7027 = vpop.f32.mrb[0].mxu0
      %v7028 = vadd.f32 0.0, %v7027
      %v7029 = vpop.f32.mrb[0].mxu0
      %v7030 = vpop.f32.mrb[0].mxu0
      %v7031 = vadd.f32 0.0, %v7030
      %v7032 = vpop.f32.mrb[0].mxu0
      %7033 = vmatprep.mubr.bf16.mxu0 0
      %7034 = vmatmul.mubr.bf16.gmra.mrb[0].mxu0 %v6837
      %v7035 = vpop.f32.mrb[0].mxu0
      %v7036 = vadd.f32 0.0, %v7035
      %v7037 = vpop.f32.mrb[0].mxu0
      %v7038 = vpop.f32.mrb[0].mxu0
      %v7039 = vadd.f32 0.0, %v7038
      %v7040 = vpop.f32.mrb[0].mxu0
      %7041 = vmatprep.mubr.bf16.mxu0 0
      %7042 = vmatmul.mubr.bf16.gmra.mrb[0].mxu0 %v6838
      %v7043 = vpop.f32.mrb[0].mxu0
      %v7044 = vadd.f32 0.0, %v7043
      %v7045 = vpop.f32.mrb[0].mxu0
      %v7046 = vpop.f32.mrb[0].mxu0
      %v7047 = vadd.f32 0.0, %v7046
      %v7048 = vpop.f32.mrb[0].mxu0
      %7049 = vmatprep.mubr.bf16.mxu0 0
      %7050 = vmatmul.mubr.bf16.gmra.mrb[0].mxu0 %v6839
      %v7051 = vpop.f32.mrb[0].mxu0
      %v7052 = vadd.f32 0.0, %v7051
      %v7053 = vpop.f32.mrb[0].mxu0
      %v7054 = vpop.f32.mrb[0].mxu0
      %v7055 = vadd.f32 0.0, %v7054
      %v7056 = vpop.f32.mrb[0].mxu0
      %7057 = vmatprep.mubr.bf16.mxu0 0
      %7058 = vmatmul.mubr.bf16.gmra.mrb[0].mxu0 %v6840
      %v7059 = vpop.f32.mrb[0].mxu0
      %v7060 = vadd.f32 0.0, %v7059
      %v7061 = vpop.f32.mrb[0].mxu0
      %v7062 = vpop.f32.mrb[0].mxu0
      %v7063 = vadd.f32 0.0, %v7062
      %v7064 = vpop.f32.mrb[0].mxu0
      %7065 = vdwg.mxu0
      %v7066 = vunpack.c.l.b16 %v6387
      %v7067 = vunpack.c.l.b16 %v6396
      %v7068 = vunpack.c.l.b16 %v6409
      %v7069 = vunpack.c.l.b16 %v6418
      %v7070 = vunpack.c.l.b16 %v6431
      %v7071 = vunpack.c.l.b16 %v6440
      %v7072 = vunpack.c.l.b16 %v6453
      %v7073 = vunpack.c.l.b16 %v6462
      %v7074 = vunpack.c.l.b16 %v6475
      %v7075 = vunpack.c.l.b16 %v6484
      %v7076 = vunpack.c.l.b16 %v6497
      %v7077 = vunpack.c.l.b16 %v6506
      %v7078 = vunpack.c.l.b16 %v6519
      %v7079 = vunpack.c.l.b16 %v6528
      %v7080 = vunpack.c.l.b16 %v6541
      %v7081 = vunpack.c.l.b16 %v6550
      %v7082 = vunpack.c.l.b16 %v6563
      %v7083 = vunpack.c.l.b16 %v6572
      %v7084 = vunpack.c.l.b16 %v6585
      %v7085 = vunpack.c.l.b16 %v6594
      %v7086 = vunpack.c.l.b16 %v6607
      %v7087 = vunpack.c.l.b16 %v6616
      %v7088 = vunpack.c.l.b16 %v6629
      %v7089 = vunpack.c.l.b16 %v6638
      %v7090 = vunpack.c.l.b16 %v6651
      %v7091 = vunpack.c.l.b16 %v6660
      %v7092 = vunpack.c.l.b16 %v6673
      %v7093 = vunpack.c.l.b16 %v6682
      %v7094 = vunpack.c.l.b16 %v6695
      %v7095 = vunpack.c.l.b16 %v6704
      %v7096 = vunpack.c.l.b16 %v6717
      %v7097 = vunpack.c.l.b16 %v6726
      %v7098 = vpack.c.b16 %v7067, %v7066
      %v7099 = vpack.c.b16 %v7069, %v7068
      %v7100 = vpack.c.b16 %v7071, %v7070
      %v7101 = vpack.c.b16 %v7073, %v7072
      %v7102 = vpack.c.b16 %v7075, %v7074
      %v7103 = vpack.c.b16 %v7077, %v7076
      %v7104 = vpack.c.b16 %v7079, %v7078
      %v7105 = vpack.c.b16 %v7081, %v7080
      %v7106 = vpack.c.b16 %v7083, %v7082
      %v7107 = vpack.c.b16 %v7085, %v7084
      %v7108 = vpack.c.b16 %v7087, %v7086
      %v7109 = vpack.c.b16 %v7089, %v7088
      %v7110 = vpack.c.b16 %v7091, %v7090
      %v7111 = vpack.c.b16 %v7093, %v7092
      %v7112 = vpack.c.b16 %v7095, %v7094
      %v7113 = vpack.c.b16 %v7097, %v7096
      %v7146 = vunpack.c.l.b16 %v6728
      %v7147 = vunpack.c.l.b16 %v6729
      %v7148 = vunpack.c.l.b16 %v6730
      %v7149 = vunpack.c.l.b16 %v6731
      %v7150 = vunpack.c.l.b16 %v6732
      %v7151 = vunpack.c.l.b16 %v6733
      %v7152 = vunpack.c.l.b16 %v6734
      %v7153 = vunpack.c.l.b16 %v6735
      %v7154 = vunpack.c.l.b16 %v6736
      %v7155 = vunpack.c.l.b16 %v6737
      %v7156 = vunpack.c.l.b16 %v6738
      %v7157 = vunpack.c.l.b16 %v6739
      %v7158 = vunpack.c.l.b16 %v6740
      %v7159 = vunpack.c.l.b16 %v6741
      %v7160 = vunpack.c.l.b16 %v6742
      %v7161 = vunpack.c.l.b16 %v6743
      %v7162 = vpack.c.b16 %v7147, %v7146
      %v7163 = vpack.c.b16 %v7149, %v7148
      %v7164 = vpack.c.b16 %v7151, %v7150
      %v7165 = vpack.c.b16 %v7153, %v7152
      %v7166 = vpack.c.b16 %v7155, %v7154
      %v7167 = vpack.c.b16 %v7157, %v7156
      %v7168 = vpack.c.b16 %v7159, %v7158
      %v7169 = vpack.c.b16 %v7161, %v7160
      %7178 = vmatprep.subr.bf16.mxu0 0
      %7179 = vmatpush1.bf16.msra.mxu0 %v7162
      %7180 = vmatprep.subr.bf16.mxu0 0
      %7181 = vmatpush1.bf16.msra.mxu0 %v7163
      %7182 = vmatprep.subr.bf16.mxu0 0
      %7183 = vmatpush1.bf16.msra.mxu0 %v7164
      %7184 = vmatprep.subr.bf16.mxu0 0
      %7185 = vmatpush1.bf16.msra.mxu0 %v7165
      %7186 = vmatprep.subr.bf16.mxu0 0
      %7187 = vmatpush1.bf16.msra.mxu0 %v7166
      %7188 = vmatprep.subr.bf16.mxu0 0
      %7189 = vmatpush1.bf16.msra.mxu0 %v7167
      %7190 = vmatprep.subr.bf16.mxu0 0
      %7191 = vmatpush1.bf16.msra.mxu0 %v7168
      %7192 = vmatprep.subr.bf16.mxu0 0
      %7193 = vmatpush1.bf16.msra.mxu0 %v7169
      %7194 = vmatprep.subr.bf16.mxu0 0
      %7195 = vmatpush1.bf16.msra.mxu0 0
      %7196 = vmatprep.subr.bf16.mxu0 0
      %7197 = vmatpush1.bf16.msra.mxu0 0
      %7198 = vmatprep.subr.bf16.mxu0 0
      %7199 = vmatpush1.bf16.msra.mxu0 0
      %7200 = vmatprep.subr.bf16.mxu0 0
      %7201 = vmatpush1.bf16.msra.mxu0 0
      %7202 = vmatprep.subr.bf16.mxu0 0
      %7203 = vmatpush1.bf16.msra.mxu0 0
      %7204 = vmatprep.subr.bf16.mxu0 0
      %7205 = vmatpush1.bf16.msra.mxu0 0
      %7206 = vmatprep.subr.bf16.mxu0 0
      %7207 = vmatpush1.bf16.msra.mxu0 0
      %7208 = vmatprep.subr.bf16.mxu0 0
      %7209 = vmatpush1.bf16.msra.mxu0 0
      %7210 = vmatprep.mubr.bf16.mxu0 0
      %7211 = vmatmul.mubr.bf16.gmra.mrb[0].mxu0 %v7098
      %v7212 = vpop.f32.mrb[0].mxu0
      %v7213 = vadd.f32 %v6940, %v7212
      %v7214 = vpop.f32.mrb[0].mxu0
      %v7215 = vpop.f32.mrb[0].mxu0
      %v7216 = vadd.f32 %v6943, %v7215
      %v7217 = vpop.f32.mrb[0].mxu0
      %7218 = vmatprep.mubr.bf16.mxu0 0
      %7219 = vmatmul.mubr.bf16.gmra.mrb[0].mxu0 %v7099
      %v7220 = vpop.f32.mrb[0].mxu0
      %v7221 = vadd.f32 %v6948, %v7220
      %v7222 = vpop.f32.mrb[0].mxu0
      %v7223 = vpop.f32.mrb[0].mxu0
      %v7224 = vadd.f32 %v6951, %v7223
      %v7225 = vpop.f32.mrb[0].mxu0
      %7226 = vmatprep.mubr.bf16.mxu0 0
      %7227 = vmatmul.mubr.bf16.gmra.mrb[0].mxu0 %v7100
      %v7228 = vpop.f32.mrb[0].mxu0
      %v7229 = vadd.f32 %v6956, %v7228
      %v7230 = vpop.f32.mrb[0].mxu0
      %v7231 = vpop.f32.mrb[0].mxu0
      %v7232 = vadd.f32 %v6959, %v7231
      %v7233 = vpop.f32.mrb[0].mxu0
      %7234 = vmatprep.mubr.bf16.mxu0 0
      %7235 = vmatmul.mubr.bf16.gmra.mrb[0].mxu0 %v7101
      %v7236 = vpop.f32.mrb[0].mxu0
      %v7237 = vadd.f32 %v6964, %v7236
      %v7238 = vpop.f32.mrb[0].mxu0
      %v7239 = vpop.f32.mrb[0].mxu0
      %v7240 = vadd.f32 %v6967, %v7239
      %v7241 = vpop.f32.mrb[0].mxu0
      %7242 = vmatprep.mubr.bf16.mxu0 0
      %7243 = vmatmul.mubr.bf16.gmra.mrb[0].mxu0 %v7102
      %v7244 = vpop.f32.mrb[0].mxu0
      %v7245 = vadd.f32 %v6972, %v7244
      %v7246 = vpop.f32.mrb[0].mxu0
      %v7247 = vpop.f32.mrb[0].mxu0
      %v7248 = vadd.f32 %v6975, %v7247
      %v7249 = vpop.f32.mrb[0].mxu0
      %7250 = vmatprep.mubr.bf16.mxu0 0
      %7251 = vmatmul.mubr.bf16.gmra.mrb[0].mxu0 %v7103
      %v7252 = vpop.f32.mrb[0].mxu0
      %v7253 = vadd.f32 %v6980, %v7252
      %v7254 = vpop.f32.mrb[0].mxu0
      %v7255 = vpop.f32.mrb[0].mxu0
      %v7256 = vadd.f32 %v6983, %v7255
      %v7257 = vpop.f32.mrb[0].mxu0
      %7258 = vmatprep.mubr.bf16.mxu0 0
      %7259 = vmatmul.mubr.bf16.gmra.mrb[0].mxu0 %v7104
      %v7260 = vpop.f32.mrb[0].mxu0
      %v7261 = vadd.f32 %v6988, %v7260
      %v7262 = vpop.f32.mrb[0].mxu0
      %v7263 = vpop.f32.mrb[0].mxu0
      %v7264 = vadd.f32 %v6991, %v7263
      %v7265 = vpop.f32.mrb[0].mxu0
      %7266 = vmatprep.mubr.bf16.mxu0 0
      %7267 = vmatmul.mubr.bf16.gmra.mrb[0].mxu0 %v7105
      %v7268 = vpop.f32.mrb[0].mxu0
      %v7269 = vadd.f32 %v6996, %v7268
      %v7270 = vpop.f32.mrb[0].mxu0
      %v7271 = vpop.f32.mrb[0].mxu0
      %v7272 = vadd.f32 %v6999, %v7271
      %v7273 = vpop.f32.mrb[0].mxu0
      %7274 = vmatprep.mubr.bf16.mxu0 0
      %7275 = vmatmul.mubr.bf16.gmra.mrb[0].mxu0 %v7106
      %v7276 = vpop.f32.mrb[0].mxu0
      %v7277 = vadd.f32 %v7004, %v7276
      %v7278 = vpop.f32.mrb[0].mxu0
      %v7279 = vpop.f32.mrb[0].mxu0
      %v7280 = vadd.f32 %v7007, %v7279
      %v7281 = vpop.f32.mrb[0].mxu0
      %7282 = vmatprep.mubr.bf16.mxu0 0
      %7283 = vmatmul.mubr.bf16.gmra.mrb[0].mxu0 %v7107
      %v7284 = vpop.f32.mrb[0].mxu0
      %v7285 = vadd.f32 %v7012, %v7284
      %v7286 = vpop.f32.mrb[0].mxu0
      %v7287 = vpop.f32.mrb[0].mxu0
      %v7288 = vadd.f32 %v7015, %v7287
      %v7289 = vpop.f32.mrb[0].mxu0
      %7290 = vmatprep.mubr.bf16.mxu0 0
      %7291 = vmatmul.mubr.bf16.gmra.mrb[0].mxu0 %v7108
      %v7292 = vpop.f32.mrb[0].mxu0
      %v7293 = vadd.f32 %v7020, %v7292
      %v7294 = vpop.f32.mrb[0].mxu0
      %v7295 = vpop.f32.mrb[0].mxu0
      %v7296 = vadd.f32 %v7023, %v7295
      %v7297 = vpop.f32.mrb[0].mxu0
      %7298 = vmatprep.mubr.bf16.mxu0 0
      %7299 = vmatmul.mubr.bf16.gmra.mrb[0].mxu0 %v7109
      %v7300 = vpop.f32.mrb[0].mxu0
      %v7301 = vadd.f32 %v7028, %v7300
      %v7302 = vpop.f32.mrb[0].mxu0
      %v7303 = vpop.f32.mrb[0].mxu0
      %v7304 = vadd.f32 %v7031, %v7303
      %v7305 = vpop.f32.mrb[0].mxu0
      %7306 = vmatprep.mubr.bf16.mxu0 0
      %7307 = vmatmul.mubr.bf16.gmra.mrb[0].mxu0 %v7110
      %v7308 = vpop.f32.mrb[0].mxu0
      %v7309 = vadd.f32 %v7036, %v7308
      %v7310 = vpop.f32.mrb[0].mxu0
      %v7311 = vpop.f32.mrb[0].mxu0
      %v7312 = vadd.f32 %v7039, %v7311
      %v7313 = vpop.f32.mrb[0].mxu0
      %7314 = vmatprep.mubr.bf16.mxu0 0
      %7315 = vmatmul.mubr.bf16.gmra.mrb[0].mxu0 %v7111
      %v7316 = vpop.f32.mrb[0].mxu0
      %v7317 = vadd.f32 %v7044, %v7316
      %v7318 = vpop.f32.mrb[0].mxu0
      %v7319 = vpop.f32.mrb[0].mxu0
      %v7320 = vadd.f32 %v7047, %v7319
      %v7321 = vpop.f32.mrb[0].mxu0
      %7322 = vmatprep.mubr.bf16.mxu0 0
      %7323 = vmatmul.mubr.bf16.gmra.mrb[0].mxu0 %v7112
      %v7324 = vpop.f32.mrb[0].mxu0
      %v7325 = vadd.f32 %v7052, %v7324
      %v7326 = vpop.f32.mrb[0].mxu0
      %v7327 = vpop.f32.mrb[0].mxu0
      %v7328 = vadd.f32 %v7055, %v7327
      %v7329 = vpop.f32.mrb[0].mxu0
      %7330 = vmatprep.mubr.bf16.mxu0 0
      %7331 = vmatmul.mubr.bf16.gmra.mrb[0].mxu0 %v7113
      %v7332 = vpop.f32.mrb[0].mxu0
      %v7333 = vadd.f32 %v7060, %v7332
      %v7334 = vpop.f32.mrb[0].mxu0
      %v7335 = vpop.f32.mrb[0].mxu0
      %v7336 = vadd.f32 %v7063, %v7335
      %v7337 = vpop.f32.mrb[0].mxu0
      %7338 = vdwg.mxu0
      %v7339 = vld [vmem:[#allocation2 + $0x8] sm:$0xf]
      %v7340 = vld [vmem:[#allocation2 + $0xc] sm:$0xf]
      %v7341 = vld [vmem:[#allocation2 + $0x10] sm:$0x1]
      %v7342 = vld [vmem:[#allocation2 + $0x1c] sm:$0xf]
      %v7343 = vld [vmem:[#allocation2 + $0x20] sm:$0xf]
      %v7344 = vld [vmem:[#allocation2 + $0x24] sm:$0x1]
      %v7345 = vld [vmem:[#allocation2 + $0x30] sm:$0xf]
      %v7346 = vld [vmem:[#allocation2 + $0x34] sm:$0xf]
      %v7347 = vld [vmem:[#allocation2 + $0x38] sm:$0x1]
      %v7348 = vld [vmem:[#allocation2 + $0x44] sm:$0xf]
      %v7349 = vld [vmem:[#allocation2 + $0x48] sm:$0xf]
      %v7350 = vld [vmem:[#allocation2 + $0x4c] sm:$0x1]
      %v7351 = vld [vmem:[#allocation2 + $0x58] sm:$0xf]
      %v7352 = vld [vmem:[#allocation2 + $0x5c] sm:$0xf]
      %v7353 = vld [vmem:[#allocation2 + $0x60] sm:$0x1]
      %v7354 = vld [vmem:[#allocation2 + $0x6c] sm:$0xf]
      %v7355 = vld [vmem:[#allocation2 + $0x70] sm:$0xf]
      %v7356 = vld [vmem:[#allocation2 + $0x74] sm:$0x1]
      %v7357 = vld [vmem:[#allocation2 + $0x80] sm:$0xf]
      %v7358 = vld [vmem:[#allocation2 + $0x84] sm:$0xf]
      %v7359 = vld [vmem:[#allocation2 + $0x88] sm:$0x1]
      %v7360 = vld [vmem:[#allocation2 + $0x94] sm:$0xf]
      %v7361 = vld [vmem:[#allocation2 + $0x98] sm:$0xf]
      %v7362 = vld [vmem:[#allocation2 + $0x9c] sm:$0x1]
      %v7363 = vld [vmem:[#allocation2 + $0xa8] sm:$0xf]
      %v7364 = vld [vmem:[#allocation2 + $0xac] sm:$0xf]
      %v7365 = vld [vmem:[#allocation2 + $0xb0] sm:$0x1]
      %v7366 = vld [vmem:[#allocation2 + $0xbc] sm:$0xf]
      %v7367 = vld [vmem:[#allocation2 + $0xc0] sm:$0xf]
      %v7368 = vld [vmem:[#allocation2 + $0xc4] sm:$0x1]
      %v7369 = vld [vmem:[#allocation2 + $0xd0] sm:$0xf]
      %v7370 = vld [vmem:[#allocation2 + $0xd4] sm:$0xf]
      %v7371 = vld [vmem:[#allocation2 + $0xd8] sm:$0x1]
      %v7372 = vld [vmem:[#allocation2 + $0xe4] sm:$0xf]
      %v7373 = vld [vmem:[#allocation2 + $0xe8] sm:$0xf]
      %v7374 = vld [vmem:[#allocation2 + $0xec] sm:$0x1]
      %v7375 = vld [vmem:[#allocation2 + $0xf8] sm:$0xf]
      %v7376 = vld [vmem:[#allocation2 + $0xfc] sm:$0xf]
      %v7377 = vld [vmem:[#allocation2 + $0x100] sm:$0x1]
      %v7378 = vld [vmem:[#allocation2 + $0x10c] sm:$0xf]
      %v7379 = vld [vmem:[#allocation2 + $0x110] sm:$0xf]
      %v7380 = vld [vmem:[#allocation2 + $0x114] sm:$0x1]
      %v7381 = vld [vmem:[#allocation2 + $0x120] sm:$0xf]
      %v7382 = vld [vmem:[#allocation2 + $0x124] sm:$0xf]
      %v7383 = vld [vmem:[#allocation2 + $0x128] sm:$0x1]
      %v7384 = vld [vmem:[#allocation2 + $0x134] sm:$0xf]
      %v7385 = vld [vmem:[#allocation2 + $0x138] sm:$0xf]
      %v7386 = vld [vmem:[#allocation2 + $0x13c] sm:$0x1]
      %v7388 = vshrl.u32 %v7339, 16
      %v7390 = vrot.slane %v7388, 4
      %v7391 = vshll.u32 %v7339, 16
      %v7393 = vrot.slane %v7391, 5
      %v7394 = vor.u32 %v7390, %v7393
      %v7395 = vrot.slane %v7394, 4
      %v7397 = vshll.u32 %v7340, 16
      %v7399 = vrot.slane %v7397, 5
      %v7400 = vsel %vm1599, %v7395, %v7399
      %v7401 = vshrl.u32 %v7340, 16
      %v7403 = vrot.slane %v7401, 4
      %v7404 = vor.u32 %v7403, %v7399
      %v7405 = vrot.slane %v7404, 4
      %v7407 = vshll.u32 %v7341, 16
      %v7409 = vrot.slane %v7407, 5
      %v7410 = vsel %vm1599, %v7405, %v7409
      %v7412 = vshrl.u32 %v7342, 16
      %v7414 = vrot.slane %v7412, 4
      %v7415 = vshll.u32 %v7342, 16
      %v7417 = vrot.slane %v7415, 5
      %v7418 = vor.u32 %v7414, %v7417
      %v7419 = vrot.slane %v7418, 4
      %v7421 = vshll.u32 %v7343, 16
      %v7423 = vrot.slane %v7421, 5
      %v7424 = vsel %vm1599, %v7419, %v7423
      %v7425 = vshrl.u32 %v7343, 16
      %v7427 = vrot.slane %v7425, 4
      %v7428 = vor.u32 %v7427, %v7423
      %v7429 = vrot.slane %v7428, 4
      %v7431 = vshll.u32 %v7344, 16
      %v7433 = vrot.slane %v7431, 5
      %v7434 = vsel %vm1599, %v7429, %v7433
      %v7436 = vshrl.u32 %v7345, 16
      %v7438 = vrot.slane %v7436, 4
      %v7439 = vshll.u32 %v7345, 16
      %v7441 = vrot.slane %v7439, 5
      %v7442 = vor.u32 %v7438, %v7441
      %v7443 = vrot.slane %v7442, 4
      %v7445 = vshll.u32 %v7346, 16
      %v7447 = vrot.slane %v7445, 5
      %v7448 = vsel %vm1599, %v7443, %v7447
      %v7449 = vshrl.u32 %v7346, 16
      %v7451 = vrot.slane %v7449, 4
      %v7452 = vor.u32 %v7451, %v7447
      %v7453 = vrot.slane %v7452, 4
      %v7455 = vshll.u32 %v7347, 16
      %v7457 = vrot.slane %v7455, 5
      %v7458 = vsel %vm1599, %v7453, %v7457
      %v7460 = vshrl.u32 %v7348, 16
      %v7462 = vrot.slane %v7460, 4
      %v7463 = vshll.u32 %v7348, 16
      %v7465 = vrot.slane %v7463, 5
      %v7466 = vor.u32 %v7462, %v7465
      %v7467 = vrot.slane %v7466, 4
      %v7469 = vshll.u32 %v7349, 16
      %v7471 = vrot.slane %v7469, 5
      %v7472 = vsel %vm1599, %v7467, %v7471
      %v7473 = vshrl.u32 %v7349, 16
      %v7475 = vrot.slane %v7473, 4
      %v7476 = vor.u32 %v7475, %v7471
      %v7477 = vrot.slane %v7476, 4
      %v7479 = vshll.u32 %v7350, 16
      %v7481 = vrot.slane %v7479, 5
      %v7482 = vsel %vm1599, %v7477, %v7481
      %v7484 = vshrl.u32 %v7351, 16
      %v7486 = vrot.slane %v7484, 4
      %v7487 = vshll.u32 %v7351, 16
      %v7489 = vrot.slane %v7487, 5
      %v7490 = vor.u32 %v7486, %v7489
      %v7491 = vrot.slane %v7490, 4
      %v7493 = vshll.u32 %v7352, 16
      %v7495 = vrot.slane %v7493, 5
      %v7496 = vsel %vm1599, %v7491, %v7495
      %v7497 = vshrl.u32 %v7352, 16
      %v7499 = vrot.slane %v7497, 4
      %v7500 = vor.u32 %v7499, %v7495
      %v7501 = vrot.slane %v7500, 4
      %v7503 = vshll.u32 %v7353, 16
      %v7505 = vrot.slane %v7503, 5
      %v7506 = vsel %vm1599, %v7501, %v7505
      %v7508 = vshrl.u32 %v7354, 16
      %v7510 = vrot.slane %v7508, 4
      %v7511 = vshll.u32 %v7354, 16
      %v7513 = vrot.slane %v7511, 5
      %v7514 = vor.u32 %v7510, %v7513
      %v7515 = vrot.slane %v7514, 4
      %v7517 = vshll.u32 %v7355, 16
      %v7519 = vrot.slane %v7517, 5
      %v7520 = vsel %vm1599, %v7515, %v7519
      %v7521 = vshrl.u32 %v7355, 16
      %v7523 = vrot.slane %v7521, 4
      %v7524 = vor.u32 %v7523, %v7519
      %v7525 = vrot.slane %v7524, 4
      %v7527 = vshll.u32 %v7356, 16
      %v7529 = vrot.slane %v7527, 5
      %v7530 = vsel %vm1599, %v7525, %v7529
      %v7532 = vshrl.u32 %v7357, 16
      %v7534 = vrot.slane %v7532, 4
      %v7535 = vshll.u32 %v7357, 16
      %v7537 = vrot.slane %v7535, 5
      %v7538 = vor.u32 %v7534, %v7537
      %v7539 = vrot.slane %v7538, 4
      %v7541 = vshll.u32 %v7358, 16
      %v7543 = vrot.slane %v7541, 5
      %v7544 = vsel %vm1599, %v7539, %v7543
      %v7545 = vshrl.u32 %v7358, 16
      %v7547 = vrot.slane %v7545, 4
      %v7548 = vor.u32 %v7547, %v7543
      %v7549 = vrot.slane %v7548, 4
      %v7551 = vshll.u32 %v7359, 16
      %v7553 = vrot.slane %v7551, 5
      %v7554 = vsel %vm1599, %v7549, %v7553
      %v7556 = vshrl.u32 %v7360, 16
      %v7558 = vrot.slane %v7556, 4
      %v7559 = vshll.u32 %v7360, 16
      %v7561 = vrot.slane %v7559, 5
      %v7562 = vor.u32 %v7558, %v7561
      %v7563 = vrot.slane %v7562, 4
      %v7565 = vshll.u32 %v7361, 16
      %v7567 = vrot.slane %v7565, 5
      %v7568 = vsel %vm1599, %v7563, %v7567
      %v7569 = vshrl.u32 %v7361, 16
      %v7571 = vrot.slane %v7569, 4
      %v7572 = vor.u32 %v7571, %v7567
      %v7573 = vrot.slane %v7572, 4
      %v7575 = vshll.u32 %v7362, 16
      %v7577 = vrot.slane %v7575, 5
      %v7578 = vsel %vm1599, %v7573, %v7577
      %v7580 = vshrl.u32 %v7363, 16
      %v7582 = vrot.slane %v7580, 4
      %v7583 = vshll.u32 %v7363, 16
      %v7585 = vrot.slane %v7583, 5
      %v7586 = vor.u32 %v7582, %v7585
      %v7587 = vrot.slane %v7586, 4
      %v7589 = vshll.u32 %v7364, 16
      %v7591 = vrot.slane %v7589, 5
      %v7592 = vsel %vm1599, %v7587, %v7591
      %v7593 = vshrl.u32 %v7364, 16
      %v7595 = vrot.slane %v7593, 4
      %v7596 = vor.u32 %v7595, %v7591
      %v7597 = vrot.slane %v7596, 4
      %v7599 = vshll.u32 %v7365, 16
      %v7601 = vrot.slane %v7599, 5
      %v7602 = vsel %vm1599, %v7597, %v7601
      %v7604 = vshrl.u32 %v7366, 16
      %v7606 = vrot.slane %v7604, 4
      %v7607 = vshll.u32 %v7366, 16
      %v7609 = vrot.slane %v7607, 5
      %v7610 = vor.u32 %v7606, %v7609
      %v7611 = vrot.slane %v7610, 4
      %v7613 = vshll.u32 %v7367, 16
      %v7615 = vrot.slane %v7613, 5
      %v7616 = vsel %vm1599, %v7611, %v7615
      %v7617 = vshrl.u32 %v7367, 16
      %v7619 = vrot.slane %v7617, 4
      %v7620 = vor.u32 %v7619, %v7615
      %v7621 = vrot.slane %v7620, 4
      %v7623 = vshll.u32 %v7368, 16
      %v7625 = vrot.slane %v7623, 5
      %v7626 = vsel %vm1599, %v7621, %v7625
      %v7628 = vshrl.u32 %v7369, 16
      %v7630 = vrot.slane %v7628, 4
      %v7631 = vshll.u32 %v7369, 16
      %v7633 = vrot.slane %v7631, 5
      %v7634 = vor.u32 %v7630, %v7633
      %v7635 = vrot.slane %v7634, 4
      %v7637 = vshll.u32 %v7370, 16
      %v7639 = vrot.slane %v7637, 5
      %v7640 = vsel %vm1599, %v7635, %v7639
      %v7641 = vshrl.u32 %v7370, 16
      %v7643 = vrot.slane %v7641, 4
      %v7644 = vor.u32 %v7643, %v7639
      %v7645 = vrot.slane %v7644, 4
      %v7647 = vshll.u32 %v7371, 16
      %v7649 = vrot.slane %v7647, 5
      %v7650 = vsel %vm1599, %v7645, %v7649
      %v7652 = vshrl.u32 %v7372, 16
      %v7654 = vrot.slane %v7652, 4
      %v7655 = vshll.u32 %v7372, 16
      %v7657 = vrot.slane %v7655, 5
      %v7658 = vor.u32 %v7654, %v7657
      %v7659 = vrot.slane %v7658, 4
      %v7661 = vshll.u32 %v7373, 16
      %v7663 = vrot.slane %v7661, 5
      %v7664 = vsel %vm1599, %v7659, %v7663
      %v7665 = vshrl.u32 %v7373, 16
      %v7667 = vrot.slane %v7665, 4
      %v7668 = vor.u32 %v7667, %v7663
      %v7669 = vrot.slane %v7668, 4
      %v7671 = vshll.u32 %v7374, 16
      %v7673 = vrot.slane %v7671, 5
      %v7674 = vsel %vm1599, %v7669, %v7673
      %v7676 = vshrl.u32 %v7375, 16
      %v7678 = vrot.slane %v7676, 4
      %v7679 = vshll.u32 %v7375, 16
      %v7681 = vrot.slane %v7679, 5
      %v7682 = vor.u32 %v7678, %v7681
      %v7683 = vrot.slane %v7682, 4
      %v7685 = vshll.u32 %v7376, 16
      %v7687 = vrot.slane %v7685, 5
      %v7688 = vsel %vm1599, %v7683, %v7687
      %v7689 = vshrl.u32 %v7376, 16
      %v7691 = vrot.slane %v7689, 4
      %v7692 = vor.u32 %v7691, %v7687
      %v7693 = vrot.slane %v7692, 4
      %v7695 = vshll.u32 %v7377, 16
      %v7697 = vrot.slane %v7695, 5
      %v7698 = vsel %vm1599, %v7693, %v7697
      %v7700 = vshrl.u32 %v7378, 16
      %v7702 = vrot.slane %v7700, 4
      %v7703 = vshll.u32 %v7378, 16
      %v7705 = vrot.slane %v7703, 5
      %v7706 = vor.u32 %v7702, %v7705
      %v7707 = vrot.slane %v7706, 4
      %v7709 = vshll.u32 %v7379, 16
      %v7711 = vrot.slane %v7709, 5
      %v7712 = vsel %vm1599, %v7707, %v7711
      %v7713 = vshrl.u32 %v7379, 16
      %v7715 = vrot.slane %v7713, 4
      %v7716 = vor.u32 %v7715, %v7711
      %v7717 = vrot.slane %v7716, 4
      %v7719 = vshll.u32 %v7380, 16
      %v7721 = vrot.slane %v7719, 5
      %v7722 = vsel %vm1599, %v7717, %v7721
      %v7724 = vshrl.u32 %v7381, 16
      %v7726 = vrot.slane %v7724, 4
      %v7727 = vshll.u32 %v7381, 16
      %v7729 = vrot.slane %v7727, 5
      %v7730 = vor.u32 %v7726, %v7729
      %v7731 = vrot.slane %v7730, 4
      %v7733 = vshll.u32 %v7382, 16
      %v7735 = vrot.slane %v7733, 5
      %v7736 = vsel %vm1599, %v7731, %v7735
      %v7737 = vshrl.u32 %v7382, 16
      %v7739 = vrot.slane %v7737, 4
      %v7740 = vor.u32 %v7739, %v7735
      %v7741 = vrot.slane %v7740, 4
      %v7743 = vshll.u32 %v7383, 16
      %v7745 = vrot.slane %v7743, 5
      %v7746 = vsel %vm1599, %v7741, %v7745
      %v7748 = vshrl.u32 %v7384, 16
      %v7750 = vrot.slane %v7748, 4
      %v7751 = vshll.u32 %v7384, 16
      %v7753 = vrot.slane %v7751, 5
      %v7754 = vor.u32 %v7750, %v7753
      %v7755 = vrot.slane %v7754, 4
      %v7757 = vshll.u32 %v7385, 16
      %v7759 = vrot.slane %v7757, 5
      %v7760 = vsel %vm1599, %v7755, %v7759
      %v7761 = vshrl.u32 %v7385, 16
      %v7763 = vrot.slane %v7761, 4
      %v7764 = vor.u32 %v7763, %v7759
      %v7765 = vrot.slane %v7764, 4
      %v7767 = vshll.u32 %v7386, 16
      %v7769 = vrot.slane %v7767, 5
      %v7770 = vsel %vm1599, %v7765, %v7769
      %s7771 = scalar_lea.vmem %s1, 704
      %v7772 = vld [vmem:[%s7771] sm:$0xf]
      %v7773 = vld [vmem:[%s7771 + $0x4] sm:$0xf]
      %v7774 = vld [vmem:[%s7771 + $0x8] sm:$0xf]
      %v7775 = vld [vmem:[%s7771 + $0xc] sm:$0xf]
      %v7776 = vld [vmem:[%s7771 + $0x10] sm:$0xf]
      %v7777 = vld [vmem:[%s7771 + $0x14] sm:$0xf]
      %v7778 = vld [vmem:[%s7771 + $0x18] sm:$0xf]
      %v7779 = vld [vmem:[%s7771 + $0x1c] sm:$0xf]
      %v7780 = vld [vmem:[%s7771 + $0x20] sm:$0xf]
      %v7781 = vld [vmem:[%s7771 + $0x24] sm:$0xf]
      %v7782 = vld [vmem:[%s7771 + $0x28] sm:$0xf]
      %v7783 = vld [vmem:[%s7771 + $0x2c] sm:$0xf]
      %v7784 = vld [vmem:[%s7771 + $0x30] sm:$0xf]
      %v7785 = vld [vmem:[%s7771 + $0x34] sm:$0xf]
      %v7786 = vld [vmem:[%s7771 + $0x38] sm:$0xf]
      %v7787 = vld [vmem:[%s7771 + $0x3c] sm:$0xf]
      %v7788 = vunpack.c.l.b16 %v7400
      %v7789 = vunpack.c.l.b16 %v7410
      %v7790 = vunpack.c.l.b16 %v7424
      %v7791 = vunpack.c.l.b16 %v7434
      %v7792 = vunpack.c.l.b16 %v7448
      %v7793 = vunpack.c.l.b16 %v7458
      %v7794 = vunpack.c.l.b16 %v7472
      %v7795 = vunpack.c.l.b16 %v7482
      %v7796 = vunpack.c.l.b16 %v7496
      %v7797 = vunpack.c.l.b16 %v7506
      %v7798 = vunpack.c.l.b16 %v7520
      %v7799 = vunpack.c.l.b16 %v7530
      %v7800 = vunpack.c.l.b16 %v7544
      %v7801 = vunpack.c.l.b16 %v7554
      %v7802 = vunpack.c.l.b16 %v7568
      %v7803 = vunpack.c.l.b16 %v7578
      %v7804 = vunpack.c.l.b16 %v7592
      %v7805 = vunpack.c.l.b16 %v7602
      %v7806 = vunpack.c.l.b16 %v7616
      %v7807 = vunpack.c.l.b16 %v7626
      %v7808 = vunpack.c.l.b16 %v7640
      %v7809 = vunpack.c.l.b16 %v7650
      %v7810 = vunpack.c.l.b16 %v7664
      %v7811 = vunpack.c.l.b16 %v7674
      %v7812 = vunpack.c.l.b16 %v7688
      %v7813 = vunpack.c.l.b16 %v7698
      %v7814 = vunpack.c.l.b16 %v7712
      %v7815 = vunpack.c.l.b16 %v7722
      %v7816 = vunpack.c.l.b16 %v7736
      %v7817 = vunpack.c.l.b16 %v7746
      %v7818 = vunpack.c.l.b16 %v7760
      %v7819 = vunpack.c.l.b16 %v7770
      %v7820 = vpack.c.b16 %v7789, %v7788
      %v7821 = vpack.c.b16 %v7791, %v7790
      %v7822 = vpack.c.b16 %v7793, %v7792
      %v7823 = vpack.c.b16 %v7795, %v7794
      %v7824 = vpack.c.b16 %v7797, %v7796
      %v7825 = vpack.c.b16 %v7799, %v7798
      %v7826 = vpack.c.b16 %v7801, %v7800
      %v7827 = vpack.c.b16 %v7803, %v7802
      %v7828 = vpack.c.b16 %v7805, %v7804
      %v7829 = vpack.c.b16 %v7807, %v7806
      %v7830 = vpack.c.b16 %v7809, %v7808
      %v7831 = vpack.c.b16 %v7811, %v7810
      %v7832 = vpack.c.b16 %v7813, %v7812
      %v7833 = vpack.c.b16 %v7815, %v7814
      %v7834 = vpack.c.b16 %v7817, %v7816
      %v7835 = vpack.c.b16 %v7819, %v7818
      %v7868 = vunpack.c.l.b16 %v7772
      %v7869 = vunpack.c.l.b16 %v7773
      %v7870 = vunpack.c.l.b16 %v7774
      %v7871 = vunpack.c.l.b16 %v7775
      %v7872 = vunpack.c.l.b16 %v7776
      %v7873 = vunpack.c.l.b16 %v7777
      %v7874 = vunpack.c.l.b16 %v7778
      %v7875 = vunpack.c.l.b16 %v7779
      %v7876 = vunpack.c.l.b16 %v7780
      %v7877 = vunpack.c.l.b16 %v7781
      %v7878 = vunpack.c.l.b16 %v7782
      %v7879 = vunpack.c.l.b16 %v7783
      %v7880 = vunpack.c.l.b16 %v7784
      %v7881 = vunpack.c.l.b16 %v7785
      %v7882 = vunpack.c.l.b16 %v7786
      %v7883 = vunpack.c.l.b16 %v7787
      %v7884 = vpack.c.b16 %v7869, %v7868
      %v7885 = vpack.c.b16 %v7871, %v7870
      %v7886 = vpack.c.b16 %v7873, %v7872
      %v7887 = vpack.c.b16 %v7875, %v7874
      %v7888 = vpack.c.b16 %v7877, %v7876
      %v7889 = vpack.c.b16 %v7879, %v7878
      %v7890 = vpack.c.b16 %v7881, %v7880
      %v7891 = vpack.c.b16 %v7883, %v7882
      %7900 = vmatprep.subr.bf16.mxu0 0
      %7901 = vmatpush1.bf16.msra.mxu0 %v7884
      %7902 = vmatprep.subr.bf16.mxu0 0
      %7903 = vmatpush1.bf16.msra.mxu0 %v7885
      %7904 = vmatprep.subr.bf16.mxu0 0
      %7905 = vmatpush1.bf16.msra.mxu0 %v7886
      %7906 = vmatprep.subr.bf16.mxu0 0
      %7907 = vmatpush1.bf16.msra.mxu0 %v7887
      %7908 = vmatprep.subr.bf16.mxu0 0
      %7909 = vmatpush1.bf16.msra.mxu0 %v7888
      %7910 = vmatprep.subr.bf16.mxu0 0
      %7911 = vmatpush1.bf16.msra.mxu0 %v7889
      %7912 = vmatprep.subr.bf16.mxu0 0
      %7913 = vmatpush1.bf16.msra.mxu0 %v7890
      %7914 = vmatprep.subr.bf16.mxu0 0
      %7915 = vmatpush1.bf16.msra.mxu0 %v7891
      %7916 = vmatprep.subr.bf16.mxu0 0
      %7917 = vmatpush1.bf16.msra.mxu0 0
      %7918 = vmatprep.subr.bf16.mxu0 0
      %7919 = vmatpush1.bf16.msra.mxu0 0
      %7920 = vmatprep.subr.bf16.mxu0 0
      %7921 = vmatpush1.bf16.msra.mxu0 0
      %7922 = vmatprep.subr.bf16.mxu0 0
      %7923 = vmatpush1.bf16.msra.mxu0 0
      %7924 = vmatprep.subr.bf16.mxu0 0
      %7925 = vmatpush1.bf16.msra.mxu0 0
      %7926 = vmatprep.subr.bf16.mxu0 0
      %7927 = vmatpush1.bf16.msra.mxu0 0
      %7928 = vmatprep.subr.bf16.mxu0 0
      %7929 = vmatpush1.bf16.msra.mxu0 0
      %7930 = vmatprep.subr.bf16.mxu0 0
      %7931 = vmatpush1.bf16.msra.mxu0 0
      %7932 = vmatprep.mubr.bf16.mxu0 0
      %7933 = vmatmul.mubr.bf16.gmra.mrb[0].mxu0 %v7820
      %v7934 = vpop.f32.mrb[0].mxu0
      %v7935 = vadd.f32 0.0, %v7934
      %v7936 = vpop.f32.mrb[0].mxu0
      %v7937 = vpop.f32.mrb[0].mxu0
      %v7938 = vadd.f32 0.0, %v7937
      %v7939 = vpop.f32.mrb[0].mxu0
      %7940 = vmatprep.mubr.bf16.mxu0 0
      %7941 = vmatmul.mubr.bf16.gmra.mrb[0].mxu0 %v7821
      %v7942 = vpop.f32.mrb[0].mxu0
      %v7943 = vadd.f32 0.0, %v7942
      %v7944 = vpop.f32.mrb[0].mxu0
      %v7945 = vpop.f32.mrb[0].mxu0
      %v7946 = vadd.f32 0.0, %v7945
      %v7947 = vpop.f32.mrb[0].mxu0
      %7948 = vmatprep.mubr.bf16.mxu0 0
      %7949 = vmatmul.mubr.bf16.gmra.mrb[0].mxu0 %v7822
      %v7950 = vpop.f32.mrb[0].mxu0
      %v7951 = vadd.f32 0.0, %v7950
      %v7952 = vpop.f32.mrb[0].mxu0
      %v7953 = vpop.f32.mrb[0].mxu0
      %v7954 = vadd.f32 0.0, %v7953
      %v7955 = vpop.f32.mrb[0].mxu0
      %7956 = vmatprep.mubr.bf16.mxu0 0
      %7957 = vmatmul.mubr.bf16.gmra.mrb[0].mxu0 %v7823
      %v7958 = vpop.f32.mrb[0].mxu0
      %v7959 = vadd.f32 0.0, %v7958
      %v7960 = vpop.f32.mrb[0].mxu0
      %v7961 = vpop.f32.mrb[0].mxu0
      %v7962 = vadd.f32 0.0, %v7961
      %v7963 = vpop.f32.mrb[0].mxu0
      %7964 = vmatprep.mubr.bf16.mxu0 0
      %7965 = vmatmul.mubr.bf16.gmra.mrb[0].mxu0 %v7824
      %v7966 = vpop.f32.mrb[0].mxu0
      %v7967 = vadd.f32 0.0, %v7966
      %v7968 = vpop.f32.mrb[0].mxu0
      %v7969 = vpop.f32.mrb[0].mxu0
      %v7970 = vadd.f32 0.0, %v7969
      %v7971 = vpop.f32.mrb[0].mxu0
      %7972 = vmatprep.mubr.bf16.mxu0 0
      %7973 = vmatmul.mubr.bf16.gmra.mrb[0].mxu0 %v7825
      %v7974 = vpop.f32.mrb[0].mxu0
      %v7975 = vadd.f32 0.0, %v7974
      %v7976 = vpop.f32.mrb[0].mxu0
      %v7977 = vpop.f32.mrb[0].mxu0
      %v7978 = vadd.f32 0.0, %v7977
      %v7979 = vpop.f32.mrb[0].mxu0
      %7980 = vmatprep.mubr.bf16.mxu0 0
      %7981 = vmatmul.mubr.bf16.gmra.mrb[0].mxu0 %v7826
      %v7982 = vpop.f32.mrb[0].mxu0
      %v7983 = vadd.f32 0.0, %v7982
      %v7984 = vpop.f32.mrb[0].mxu0
      %v7985 = vpop.f32.mrb[0].mxu0
      %v7986 = vadd.f32 0.0, %v7985
      %v7987 = vpop.f32.mrb[0].mxu0
      %7988 = vmatprep.mubr.bf16.mxu0 0
      %7989 = vmatmul.mubr.bf16.gmra.mrb[0].mxu0 %v7827
      %v7990 = vpop.f32.mrb[0].mxu0
      %v7991 = vadd.f32 0.0, %v7990
      %v7992 = vpop.f32.mrb[0].mxu0
      %v7993 = vpop.f32.mrb[0].mxu0
      %v7994 = vadd.f32 0.0, %v7993
      %v7995 = vpop.f32.mrb[0].mxu0
      %7996 = vmatprep.mubr.bf16.mxu0 0
      %7997 = vmatmul.mubr.bf16.gmra.mrb[0].mxu0 %v7828
      %v7998 = vpop.f32.mrb[0].mxu0
      %v7999 = vadd.f32 0.0, %v7998
      %v8000 = vpop.f32.mrb[0].mxu0
      %v8001 = vpop.f32.mrb[0].mxu0
      %v8002 = vadd.f32 0.0, %v8001
      %v8003 = vpop.f32.mrb[0].mxu0
      %8004 = vmatprep.mubr.bf16.mxu0 0
      %8005 = vmatmul.mubr.bf16.gmra.mrb[0].mxu0 %v7829
      %v8006 = vpop.f32.mrb[0].mxu0
      %v8007 = vadd.f32 0.0, %v8006
      %v8008 = vpop.f32.mrb[0].mxu0
      %v8009 = vpop.f32.mrb[0].mxu0
      %v8010 = vadd.f32 0.0, %v8009
      %v8011 = vpop.f32.mrb[0].mxu0
      %8012 = vmatprep.mubr.bf16.mxu0 0
      %8013 = vmatmul.mubr.bf16.gmra.mrb[0].mxu0 %v7830
      %v8014 = vpop.f32.mrb[0].mxu0
      %v8015 = vadd.f32 0.0, %v8014
      %v8016 = vpop.f32.mrb[0].mxu0
      %v8017 = vpop.f32.mrb[0].mxu0
      %v8018 = vadd.f32 0.0, %v8017
      %v8019 = vpop.f32.mrb[0].mxu0
      %8020 = vmatprep.mubr.bf16.mxu0 0
      %8021 = vmatmul.mubr.bf16.gmra.mrb[0].mxu0 %v7831
      %v8022 = vpop.f32.mrb[0].mxu0
      %v8023 = vadd.f32 0.0, %v8022
      %v8024 = vpop.f32.mrb[0].mxu0
      %v8025 = vpop.f32.mrb[0].mxu0
      %v8026 = vadd.f32 0.0, %v8025
      %v8027 = vpop.f32.mrb[0].mxu0
      %8028 = vmatprep.mubr.bf16.mxu0 0
      %8029 = vmatmul.mubr.bf16.gmra.mrb[0].mxu0 %v7832
      %v8030 = vpop.f32.mrb[0].mxu0
      %v8031 = vadd.f32 0.0, %v8030
      %v8032 = vpop.f32.mrb[0].mxu0
      %v8033 = vpop.f32.mrb[0].mxu0
      %v8034 = vadd.f32 0.0, %v8033
      %v8035 = vpop.f32.mrb[0].mxu0
      %8036 = vmatprep.mubr.bf16.mxu0 0
      %8037 = vmatmul.mubr.bf16.gmra.mrb[0].mxu0 %v7833
      %v8038 = vpop.f32.mrb[0].mxu0
      %v8039 = vadd.f32 0.0, %v8038
      %v8040 = vpop.f32.mrb[0].mxu0
      %v8041 = vpop.f32.mrb[0].mxu0
      %v8042 = vadd.f32 0.0, %v8041
      %v8043 = vpop.f32.mrb[0].mxu0
      %8044 = vmatprep.mubr.bf16.mxu0 0
      %8045 = vmatmul.mubr.bf16.gmra.mrb[0].mxu0 %v7834
      %v8046 = vpop.f32.mrb[0].mxu0
      %v8047 = vadd.f32 0.0, %v8046
      %v8048 = vpop.f32.mrb[0].mxu0
      %v8049 = vpop.f32.mrb[0].mxu0
      %v8050 = vadd.f32 0.0, %v8049
      %v8051 = vpop.f32.mrb[0].mxu0
      %8052 = vmatprep.mubr.bf16.mxu0 0
      %8053 = vmatmul.mubr.bf16.gmra.mrb[0].mxu0 %v7835
      %v8054 = vpop.f32.mrb[0].mxu0
      %v8055 = vadd.f32 0.0, %v8054
      %v8056 = vpop.f32.mrb[0].mxu0
      %v8057 = vpop.f32.mrb[0].mxu0
      %v8058 = vadd.f32 0.0, %v8057
      %v8059 = vpop.f32.mrb[0].mxu0
      %8060 = vdwg.mxu0
      %v8061 = vadd.f32 %v7213, %v7935
      %v8062 = vadd.f32 %v7216, %v7938
      %v8063 = vadd.f32 %v7221, %v7943
      %v8064 = vadd.f32 %v7224, %v7946
      %v8065 = vadd.f32 %v7229, %v7951
      %v8066 = vadd.f32 %v7232, %v7954
      %v8067 = vadd.f32 %v7237, %v7959
      %v8068 = vadd.f32 %v7240, %v7962
      %v8069 = vadd.f32 %v7245, %v7967
      %v8070 = vadd.f32 %v7248, %v7970
      %v8071 = vadd.f32 %v7253, %v7975
      %v8072 = vadd.f32 %v7256, %v7978
      %v8073 = vadd.f32 %v7261, %v7983
      %v8074 = vadd.f32 %v7264, %v7986
      %v8075 = vadd.f32 %v7269, %v7991
      %v8076 = vadd.f32 %v7272, %v7994
      %v8077 = vadd.f32 %v7277, %v7999
      %v8078 = vadd.f32 %v7280, %v8002
      %v8079 = vadd.f32 %v7285, %v8007
      %v8080 = vadd.f32 %v7288, %v8010
      %v8081 = vadd.f32 %v7293, %v8015
      %v8082 = vadd.f32 %v7296, %v8018
      %v8083 = vadd.f32 %v7301, %v8023
      %v8084 = vadd.f32 %v7304, %v8026
      %v8085 = vadd.f32 %v7309, %v8031
      %v8086 = vadd.f32 %v7312, %v8034
      %v8087 = vadd.f32 %v7317, %v8039
      %v8088 = vadd.f32 %v7320, %v8042
      %v8089 = vadd.f32 %v7325, %v8047
      %v8090 = vadd.f32 %v7328, %v8050
      %v8091 = vadd.f32 %v7333, %v8055
      %v8092 = vadd.f32 %v7336, %v8058
      %v8093 = vld [vmem:[%s244 + $0x4] sm:$0x8]
      %v8094 = vld [vmem:[%s244 + $0x8] sm:$0xf]
      %v8095 = vld [vmem:[%s244 + $0xc] sm:$0xf]
      %v8096 = vld [vmem:[%s244 + $0x18] sm:$0x8]
      %v8097 = vld [vmem:[%s244 + $0x1c] sm:$0xf]
      %v8098 = vld [vmem:[%s244 + $0x20] sm:$0xf]
      %v8099 = vld [vmem:[%s244 + $0x2c] sm:$0x8]
      %v8100 = vld [vmem:[%s244 + $0x30] sm:$0xf]
      %v8101 = vld [vmem:[%s244 + $0x34] sm:$0xf]
      %v8102 = vld [vmem:[%s244 + $0x40] sm:$0x8]
      %v8103 = vld [vmem:[%s244 + $0x44] sm:$0xf]
      %v8104 = vld [vmem:[%s244 + $0x48] sm:$0xf]
      %v8105 = vld [vmem:[%s244 + $0x54] sm:$0x8]
      %v8106 = vld [vmem:[%s244 + $0x58] sm:$0xf]
      %v8107 = vld [vmem:[%s244 + $0x5c] sm:$0xf]
      %v8108 = vld [vmem:[%s244 + $0x68] sm:$0x8]
      %v8109 = vld [vmem:[%s244 + $0x6c] sm:$0xf]
      %v8110 = vld [vmem:[%s244 + $0x70] sm:$0xf]
      %v8111 = vld [vmem:[%s244 + $0x7c] sm:$0x8]
      %v8112 = vld [vmem:[%s244 + $0x80] sm:$0xf]
      %v8113 = vld [vmem:[%s244 + $0x84] sm:$0xf]
      %v8114 = vld [vmem:[%s244 + $0x90] sm:$0x8]
      %v8115 = vld [vmem:[%s244 + $0x94] sm:$0xf]
      %v8116 = vld [vmem:[%s244 + $0x98] sm:$0xf]
      %v8117 = vld [vmem:[%s244 + $0xa4] sm:$0x8]
      %v8118 = vld [vmem:[%s244 + $0xa8] sm:$0xf]
      %v8119 = vld [vmem:[%s244 + $0xac] sm:$0xf]
      %v8120 = vld [vmem:[%s244 + $0xb8] sm:$0x8]
      %v8121 = vld [vmem:[%s244 + $0xbc] sm:$0xf]
      %v8122 = vld [vmem:[%s244 + $0xc0] sm:$0xf]
      %v8123 = vld [vmem:[%s244 + $0xcc] sm:$0x8]
      %v8124 = vld [vmem:[%s244 + $0xd0] sm:$0xf]
      %v8125 = vld [vmem:[%s244 + $0xd4] sm:$0xf]
      %v8126 = vld [vmem:[%s244 + $0xe0] sm:$0x8]
      %v8127 = vld [vmem:[%s244 + $0xe4] sm:$0xf]
      %v8128 = vld [vmem:[%s244 + $0xe8] sm:$0xf]
      %v8129 = vld [vmem:[%s244 + $0xf4] sm:$0x8]
      %v8130 = vld [vmem:[%s244 + $0xf8] sm:$0xf]
      %v8131 = vld [vmem:[%s244 + $0xfc] sm:$0xf]
      %v8132 = vld [vmem:[%s244 + $0x108] sm:$0x8]
      %v8133 = vld [vmem:[%s244 + $0x10c] sm:$0xf]
      %v8134 = vld [vmem:[%s244 + $0x110] sm:$0xf]
      %v8135 = vld [vmem:[%s244 + $0x11c] sm:$0x8]
      %v8136 = vld [vmem:[%s244 + $0x120] sm:$0xf]
      %v8137 = vld [vmem:[%s244 + $0x124] sm:$0xf]
      %v8138 = vld [vmem:[%s244 + $0x130] sm:$0x8]
      %v8139 = vld [vmem:[%s244 + $0x134] sm:$0xf]
      %v8140 = vld [vmem:[%s244 + $0x138] sm:$0xf]
      %v8142 = vshrl.u32 %v8093, 16
      %v8144 = vrot.slane %v8142, 7
      %v8145 = vrot.slane %v8144, 4
      %v8147 = vshrl.u32 %v8094, 16
      %v8149 = vrot.slane %v8147, 7
      %v8150 = vshll.u32 %v8094, 16
      %v8152 = vor.u32 %v8149, %v8150
      %v8153 = vsel %vm585, %v8145, %v8152
      %v8154 = vrot.slane %v8149, 4
      %v8156 = vshrl.u32 %v8095, 16
      %v8158 = vrot.slane %v8156, 7
      %v8159 = vshll.u32 %v8095, 16
      %v8161 = vor.u32 %v8158, %v8159
      %v8162 = vsel %vm585, %v8154, %v8161
      %v8164 = vshrl.u32 %v8096, 16
      %v8166 = vrot.slane %v8164, 7
      %v8167 = vrot.slane %v8166, 4
      %v8169 = vshrl.u32 %v8097, 16
      %v8171 = vrot.slane %v8169, 7
      %v8172 = vshll.u32 %v8097, 16
      %v8174 = vor.u32 %v8171, %v8172
      %v8175 = vsel %vm585, %v8167, %v8174
      %v8176 = vrot.slane %v8171, 4
      %v8178 = vshrl.u32 %v8098, 16
      %v8180 = vrot.slane %v8178, 7
      %v8181 = vshll.u32 %v8098, 16
      %v8183 = vor.u32 %v8180, %v8181
      %v8184 = vsel %vm585, %v8176, %v8183
      %v8186 = vshrl.u32 %v8099, 16
      %v8188 = vrot.slane %v8186, 7
      %v8189 = vrot.slane %v8188, 4
      %v8191 = vshrl.u32 %v8100, 16
      %v8193 = vrot.slane %v8191, 7
      %v8194 = vshll.u32 %v8100, 16
      %v8196 = vor.u32 %v8193, %v8194
      %v8197 = vsel %vm585, %v8189, %v8196
      %v8198 = vrot.slane %v8193, 4
      %v8200 = vshrl.u32 %v8101, 16
      %v8202 = vrot.slane %v8200, 7
      %v8203 = vshll.u32 %v8101, 16
      %v8205 = vor.u32 %v8202, %v8203
      %v8206 = vsel %vm585, %v8198, %v8205
      %v8208 = vshrl.u32 %v8102, 16
      %v8210 = vrot.slane %v8208, 7
      %v8211 = vrot.slane %v8210, 4
      %v8213 = vshrl.u32 %v8103, 16
      %v8215 = vrot.slane %v8213, 7
      %v8216 = vshll.u32 %v8103, 16
      %v8218 = vor.u32 %v8215, %v8216
      %v8219 = vsel %vm585, %v8211, %v8218
      %v8220 = vrot.slane %v8215, 4
      %v8222 = vshrl.u32 %v8104, 16
      %v8224 = vrot.slane %v8222, 7
      %v8225 = vshll.u32 %v8104, 16
      %v8227 = vor.u32 %v8224, %v8225
      %v8228 = vsel %vm585, %v8220, %v8227
      %v8230 = vshrl.u32 %v8105, 16
      %v8232 = vrot.slane %v8230, 7
      %v8233 = vrot.slane %v8232, 4
      %v8235 = vshrl.u32 %v8106, 16
      %v8237 = vrot.slane %v8235, 7
      %v8238 = vshll.u32 %v8106, 16
      %v8240 = vor.u32 %v8237, %v8238
      %v8241 = vsel %vm585, %v8233, %v8240
      %v8242 = vrot.slane %v8237, 4
      %v8244 = vshrl.u32 %v8107, 16
      %v8246 = vrot.slane %v8244, 7
      %v8247 = vshll.u32 %v8107, 16
      %v8249 = vor.u32 %v8246, %v8247
      %v8250 = vsel %vm585, %v8242, %v8249
      %v8252 = vshrl.u32 %v8108, 16
      %v8254 = vrot.slane %v8252, 7
      %v8255 = vrot.slane %v8254, 4
      %v8257 = vshrl.u32 %v8109, 16
      %v8259 = vrot.slane %v8257, 7
      %v8260 = vshll.u32 %v8109, 16
      %v8262 = vor.u32 %v8259, %v8260
      %v8263 = vsel %vm585, %v8255, %v8262
      %v8264 = vrot.slane %v8259, 4
      %v8266 = vshrl.u32 %v8110, 16
      %v8268 = vrot.slane %v8266, 7
      %v8269 = vshll.u32 %v8110, 16
      %v8271 = vor.u32 %v8268, %v8269
      %v8272 = vsel %vm585, %v8264, %v8271
      %v8274 = vshrl.u32 %v8111, 16
      %v8276 = vrot.slane %v8274, 7
      %v8277 = vrot.slane %v8276, 4
      %v8279 = vshrl.u32 %v8112, 16
      %v8281 = vrot.slane %v8279, 7
      %v8282 = vshll.u32 %v8112, 16
      %v8284 = vor.u32 %v8281, %v8282
      %v8285 = vsel %vm585, %v8277, %v8284
      %v8286 = vrot.slane %v8281, 4
      %v8288 = vshrl.u32 %v8113, 16
      %v8290 = vrot.slane %v8288, 7
      %v8291 = vshll.u32 %v8113, 16
      %v8293 = vor.u32 %v8290, %v8291
      %v8294 = vsel %vm585, %v8286, %v8293
      %v8296 = vshrl.u32 %v8114, 16
      %v8298 = vrot.slane %v8296, 7
      %v8299 = vrot.slane %v8298, 4
      %v8301 = vshrl.u32 %v8115, 16
      %v8303 = vrot.slane %v8301, 7
      %v8304 = vshll.u32 %v8115, 16
      %v8306 = vor.u32 %v8303, %v8304
      %v8307 = vsel %vm585, %v8299, %v8306
      %v8308 = vrot.slane %v8303, 4
      %v8310 = vshrl.u32 %v8116, 16
      %v8312 = vrot.slane %v8310, 7
      %v8313 = vshll.u32 %v8116, 16
      %v8315 = vor.u32 %v8312, %v8313
      %v8316 = vsel %vm585, %v8308, %v8315
      %v8318 = vshrl.u32 %v8117, 16
      %v8320 = vrot.slane %v8318, 7
      %v8321 = vrot.slane %v8320, 4
      %v8323 = vshrl.u32 %v8118, 16
      %v8325 = vrot.slane %v8323, 7
      %v8326 = vshll.u32 %v8118, 16
      %v8328 = vor.u32 %v8325, %v8326
      %v8329 = vsel %vm585, %v8321, %v8328
      %v8330 = vrot.slane %v8325, 4
      %v8332 = vshrl.u32 %v8119, 16
      %v8334 = vrot.slane %v8332, 7
      %v8335 = vshll.u32 %v8119, 16
      %v8337 = vor.u32 %v8334, %v8335
      %v8338 = vsel %vm585, %v8330, %v8337
      %v8340 = vshrl.u32 %v8120, 16
      %v8342 = vrot.slane %v8340, 7
      %v8343 = vrot.slane %v8342, 4
      %v8345 = vshrl.u32 %v8121, 16
      %v8347 = vrot.slane %v8345, 7
      %v8348 = vshll.u32 %v8121, 16
      %v8350 = vor.u32 %v8347, %v8348
      %v8351 = vsel %vm585, %v8343, %v8350
      %v8352 = vrot.slane %v8347, 4
      %v8354 = vshrl.u32 %v8122, 16
      %v8356 = vrot.slane %v8354, 7
      %v8357 = vshll.u32 %v8122, 16
      %v8359 = vor.u32 %v8356, %v8357
      %v8360 = vsel %vm585, %v8352, %v8359
      %v8362 = vshrl.u32 %v8123, 16
      %v8364 = vrot.slane %v8362, 7
      %v8365 = vrot.slane %v8364, 4
      %v8367 = vshrl.u32 %v8124, 16
      %v8369 = vrot.slane %v8367, 7
      %v8370 = vshll.u32 %v8124, 16
      %v8372 = vor.u32 %v8369, %v8370
      %v8373 = vsel %vm585, %v8365, %v8372
      %v8374 = vrot.slane %v8369, 4
      %v8376 = vshrl.u32 %v8125, 16
      %v8378 = vrot.slane %v8376, 7
      %v8379 = vshll.u32 %v8125, 16
      %v8381 = vor.u32 %v8378, %v8379
      %v8382 = vsel %vm585, %v8374, %v8381
      %v8384 = vshrl.u32 %v8126, 16
      %v8386 = vrot.slane %v8384, 7
      %v8387 = vrot.slane %v8386, 4
      %v8389 = vshrl.u32 %v8127, 16
      %v8391 = vrot.slane %v8389, 7
      %v8392 = vshll.u32 %v8127, 16
      %v8394 = vor.u32 %v8391, %v8392
      %v8395 = vsel %vm585, %v8387, %v8394
      %v8396 = vrot.slane %v8391, 4
      %v8398 = vshrl.u32 %v8128, 16
      %v8400 = vrot.slane %v8398, 7
      %v8401 = vshll.u32 %v8128, 16
      %v8403 = vor.u32 %v8400, %v8401
      %v8404 = vsel %vm585, %v8396, %v8403
      %v8406 = vshrl.u32 %v8129, 16
      %v8408 = vrot.slane %v8406, 7
      %v8409 = vrot.slane %v8408, 4
      %v8411 = vshrl.u32 %v8130, 16
      %v8413 = vrot.slane %v8411, 7
      %v8414 = vshll.u32 %v8130, 16
      %v8416 = vor.u32 %v8413, %v8414
      %v8417 = vsel %vm585, %v8409, %v8416
      %v8418 = vrot.slane %v8413, 4
      %v8420 = vshrl.u32 %v8131, 16
      %v8422 = vrot.slane %v8420, 7
      %v8423 = vshll.u32 %v8131, 16
      %v8425 = vor.u32 %v8422, %v8423
      %v8426 = vsel %vm585, %v8418, %v8425
      %v8428 = vshrl.u32 %v8132, 16
      %v8430 = vrot.slane %v8428, 7
      %v8431 = vrot.slane %v8430, 4
      %v8433 = vshrl.u32 %v8133, 16
      %v8435 = vrot.slane %v8433, 7
      %v8436 = vshll.u32 %v8133, 16
      %v8438 = vor.u32 %v8435, %v8436
      %v8439 = vsel %vm585, %v8431, %v8438
      %v8440 = vrot.slane %v8435, 4
      %v8442 = vshrl.u32 %v8134, 16
      %v8444 = vrot.slane %v8442, 7
      %v8445 = vshll.u32 %v8134, 16
      %v8447 = vor.u32 %v8444, %v8445
      %v8448 = vsel %vm585, %v8440, %v8447
      %v8450 = vshrl.u32 %v8135, 16
      %v8452 = vrot.slane %v8450, 7
      %v8453 = vrot.slane %v8452, 4
      %v8455 = vshrl.u32 %v8136, 16
      %v8457 = vrot.slane %v8455, 7
      %v8458 = vshll.u32 %v8136, 16
      %v8460 = vor.u32 %v8457, %v8458
      %v8461 = vsel %vm585, %v8453, %v8460
      %v8462 = vrot.slane %v8457, 4
      %v8464 = vshrl.u32 %v8137, 16
      %v8466 = vrot.slane %v8464, 7
      %v8467 = vshll.u32 %v8137, 16
      %v8469 = vor.u32 %v8466, %v8467
      %v8470 = vsel %vm585, %v8462, %v8469
      %v8472 = vshrl.u32 %v8138, 16
      %v8474 = vrot.slane %v8472, 7
      %v8475 = vrot.slane %v8474, 4
      %v8477 = vshrl.u32 %v8139, 16
      %v8479 = vrot.slane %v8477, 7
      %v8480 = vshll.u32 %v8139, 16
      %v8482 = vor.u32 %v8479, %v8480
      %v8483 = vsel %vm585, %v8475, %v8482
      %v8484 = vrot.slane %v8479, 4
      %v8486 = vshrl.u32 %v8140, 16
      %v8488 = vrot.slane %v8486, 7
      %v8489 = vshll.u32 %v8140, 16
      %v8491 = vor.u32 %v8488, %v8489
      %v8492 = vsel %vm585, %v8484, %v8491
      %s8493 = scalar_lea.vmem %s1, 768
      %v8494 = vld [vmem:[%s8493] sm:$0xf]
      %v8495 = vld [vmem:[%s8493 + $0x4] sm:$0xf]
      %v8496 = vld [vmem:[%s8493 + $0x8] sm:$0xf]
      %v8497 = vld [vmem:[%s8493 + $0xc] sm:$0xf]
      %v8498 = vld [vmem:[%s8493 + $0x10] sm:$0xf]
      %v8499 = vld [vmem:[%s8493 + $0x14] sm:$0xf]
      %v8500 = vld [vmem:[%s8493 + $0x18] sm:$0xf]
      %v8501 = vld [vmem:[%s8493 + $0x1c] sm:$0xf]
      %v8502 = vld [vmem:[%s8493 + $0x20] sm:$0xf]
      %v8503 = vld [vmem:[%s8493 + $0x24] sm:$0xf]
      %v8504 = vld [vmem:[%s8493 + $0x28] sm:$0xf]
      %v8505 = vld [vmem:[%s8493 + $0x2c] sm:$0xf]
      %v8506 = vld [vmem:[%s8493 + $0x30] sm:$0xf]
      %v8507 = vld [vmem:[%s8493 + $0x34] sm:$0xf]
      %v8508 = vld [vmem:[%s8493 + $0x38] sm:$0xf]
      %v8509 = vld [vmem:[%s8493 + $0x3c] sm:$0xf]
      %v8510 = vunpack.c.l.b16 %v8153
      %v8511 = vunpack.c.l.b16 %v8162
      %v8512 = vunpack.c.l.b16 %v8175
      %v8513 = vunpack.c.l.b16 %v8184
      %v8514 = vunpack.c.l.b16 %v8197
      %v8515 = vunpack.c.l.b16 %v8206
      %v8516 = vunpack.c.l.b16 %v8219
      %v8517 = vunpack.c.l.b16 %v8228
      %v8518 = vunpack.c.l.b16 %v8241
      %v8519 = vunpack.c.l.b16 %v8250
      %v8520 = vunpack.c.l.b16 %v8263
      %v8521 = vunpack.c.l.b16 %v8272
      %v8522 = vunpack.c.l.b16 %v8285
      %v8523 = vunpack.c.l.b16 %v8294
      %v8524 = vunpack.c.l.b16 %v8307
      %v8525 = vunpack.c.l.b16 %v8316
      %v8526 = vunpack.c.l.b16 %v8329
      %v8527 = vunpack.c.l.b16 %v8338
      %v8528 = vunpack.c.l.b16 %v8351
      %v8529 = vunpack.c.l.b16 %v8360
      %v8530 = vunpack.c.l.b16 %v8373
      %v8531 = vunpack.c.l.b16 %v8382
      %v8532 = vunpack.c.l.b16 %v8395
      %v8533 = vunpack.c.l.b16 %v8404
      %v8534 = vunpack.c.l.b16 %v8417
      %v8535 = vunpack.c.l.b16 %v8426
      %v8536 = vunpack.c.l.b16 %v8439
      %v8537 = vunpack.c.l.b16 %v8448
      %v8538 = vunpack.c.l.b16 %v8461
      %v8539 = vunpack.c.l.b16 %v8470
      %v8540 = vunpack.c.l.b16 %v8483
      %v8541 = vunpack.c.l.b16 %v8492
      %v8542 = vpack.c.b16 %v8511, %v8510
      %v8543 = vpack.c.b16 %v8513, %v8512
      %v8544 = vpack.c.b16 %v8515, %v8514
      %v8545 = vpack.c.b16 %v8517, %v8516
      %v8546 = vpack.c.b16 %v8519, %v8518
      %v8547 = vpack.c.b16 %v8521, %v8520
      %v8548 = vpack.c.b16 %v8523, %v8522
      %v8549 = vpack.c.b16 %v8525, %v8524
      %v8550 = vpack.c.b16 %v8527, %v8526
      %v8551 = vpack.c.b16 %v8529, %v8528
      %v8552 = vpack.c.b16 %v8531, %v8530
      %v8553 = vpack.c.b16 %v8533, %v8532
      %v8554 = vpack.c.b16 %v8535, %v8534
      %v8555 = vpack.c.b16 %v8537, %v8536
      %v8556 = vpack.c.b16 %v8539, %v8538
      %v8557 = vpack.c.b16 %v8541, %v8540
      %v8590 = vunpack.c.l.b16 %v8494
      %v8591 = vunpack.c.l.b16 %v8495
      %v8592 = vunpack.c.l.b16 %v8496
      %v8593 = vunpack.c.l.b16 %v8497
      %v8594 = vunpack.c.l.b16 %v8498
      %v8595 = vunpack.c.l.b16 %v8499
      %v8596 = vunpack.c.l.b16 %v8500
      %v8597 = vunpack.c.l.b16 %v8501
      %v8598 = vunpack.c.l.b16 %v8502
      %v8599 = vunpack.c.l.b16 %v8503
      %v8600 = vunpack.c.l.b16 %v8504
      %v8601 = vunpack.c.l.b16 %v8505
      %v8602 = vunpack.c.l.b16 %v8506
      %v8603 = vunpack.c.l.b16 %v8507
      %v8604 = vunpack.c.l.b16 %v8508
      %v8605 = vunpack.c.l.b16 %v8509
      %v8606 = vpack.c.b16 %v8591, %v8590
      %v8607 = vpack.c.b16 %v8593, %v8592
      %v8608 = vpack.c.b16 %v8595, %v8594
      %v8609 = vpack.c.b16 %v8597, %v8596
      %v8610 = vpack.c.b16 %v8599, %v8598
      %v8611 = vpack.c.b16 %v8601, %v8600
      %v8612 = vpack.c.b16 %v8603, %v8602
      %v8613 = vpack.c.b16 %v8605, %v8604
      %8622 = vmatprep.subr.bf16.mxu0 0
      %8623 = vmatpush1.bf16.msra.mxu0 %v8606
      %8624 = vmatprep.subr.bf16.mxu0 0
      %8625 = vmatpush1.bf16.msra.mxu0 %v8607
      %8626 = vmatprep.subr.bf16.mxu0 0
      %8627 = vmatpush1.bf16.msra.mxu0 %v8608
      %8628 = vmatprep.subr.bf16.mxu0 0
      %8629 = vmatpush1.bf16.msra.mxu0 %v8609
      %8630 = vmatprep.subr.bf16.mxu0 0
      %8631 = vmatpush1.bf16.msra.mxu0 %v8610
      %8632 = vmatprep.subr.bf16.mxu0 0
      %8633 = vmatpush1.bf16.msra.mxu0 %v8611
      %8634 = vmatprep.subr.bf16.mxu0 0
      %8635 = vmatpush1.bf16.msra.mxu0 %v8612
      %8636 = vmatprep.subr.bf16.mxu0 0
      %8637 = vmatpush1.bf16.msra.mxu0 %v8613
      %8638 = vmatprep.subr.bf16.mxu0 0
      %8639 = vmatpush1.bf16.msra.mxu0 0
      %8640 = vmatprep.subr.bf16.mxu0 0
      %8641 = vmatpush1.bf16.msra.mxu0 0
      %8642 = vmatprep.subr.bf16.mxu0 0
      %8643 = vmatpush1.bf16.msra.mxu0 0
      %8644 = vmatprep.subr.bf16.mxu0 0
      %8645 = vmatpush1.bf16.msra.mxu0 0
      %8646 = vmatprep.subr.bf16.mxu0 0
      %8647 = vmatpush1.bf16.msra.mxu0 0
      %8648 = vmatprep.subr.bf16.mxu0 0
      %8649 = vmatpush1.bf16.msra.mxu0 0
      %8650 = vmatprep.subr.bf16.mxu0 0
      %8651 = vmatpush1.bf16.msra.mxu0 0
      %8652 = vmatprep.subr.bf16.mxu0 0
      %8653 = vmatpush1.bf16.msra.mxu0 0
      %8654 = vmatprep.mubr.bf16.mxu0 0
      %8655 = vmatmul.mubr.bf16.gmra.mrb[0].mxu0 %v8542
      %v8656 = vpop.f32.mrb[0].mxu0
      %v8657 = vadd.f32 0.0, %v8656
      %v8658 = vpop.f32.mrb[0].mxu0
      %v8659 = vpop.f32.mrb[0].mxu0
      %v8660 = vadd.f32 0.0, %v8659
      %v8661 = vpop.f32.mrb[0].mxu0
      %8662 = vmatprep.mubr.bf16.mxu0 0
      %8663 = vmatmul.mubr.bf16.gmra.mrb[0].mxu0 %v8543
      %v8664 = vpop.f32.mrb[0].mxu0
      %v8665 = vadd.f32 0.0, %v8664
      %v8666 = vpop.f32.mrb[0].mxu0
      %v8667 = vpop.f32.mrb[0].mxu0
      %v8668 = vadd.f32 0.0, %v8667
      %v8669 = vpop.f32.mrb[0].mxu0
      %8670 = vmatprep.mubr.bf16.mxu0 0
      %8671 = vmatmul.mubr.bf16.gmra.mrb[0].mxu0 %v8544
      %v8672 = vpop.f32.mrb[0].mxu0
      %v8673 = vadd.f32 0.0, %v8672
      %v8674 = vpop.f32.mrb[0].mxu0
      %v8675 = vpop.f32.mrb[0].mxu0
      %v8676 = vadd.f32 0.0, %v8675
      %v8677 = vpop.f32.mrb[0].mxu0
      %8678 = vmatprep.mubr.bf16.mxu0 0
      %8679 = vmatmul.mubr.bf16.gmra.mrb[0].mxu0 %v8545
      %v8680 = vpop.f32.mrb[0].mxu0
      %v8681 = vadd.f32 0.0, %v8680
      %v8682 = vpop.f32.mrb[0].mxu0
      %v8683 = vpop.f32.mrb[0].mxu0
      %v8684 = vadd.f32 0.0, %v8683
      %v8685 = vpop.f32.mrb[0].mxu0
      %8686 = vmatprep.mubr.bf16.mxu0 0
      %8687 = vmatmul.mubr.bf16.gmra.mrb[0].mxu0 %v8546
      %v8688 = vpop.f32.mrb[0].mxu0
      %v8689 = vadd.f32 0.0, %v8688
      %v8690 = vpop.f32.mrb[0].mxu0
      %v8691 = vpop.f32.mrb[0].mxu0
      %v8692 = vadd.f32 0.0, %v8691
      %v8693 = vpop.f32.mrb[0].mxu0
      %8694 = vmatprep.mubr.bf16.mxu0 0
      %8695 = vmatmul.mubr.bf16.gmra.mrb[0].mxu0 %v8547
      %v8696 = vpop.f32.mrb[0].mxu0
      %v8697 = vadd.f32 0.0, %v8696
      %v8698 = vpop.f32.mrb[0].mxu0
      %v8699 = vpop.f32.mrb[0].mxu0
      %v8700 = vadd.f32 0.0, %v8699
      %v8701 = vpop.f32.mrb[0].mxu0
      %8702 = vmatprep.mubr.bf16.mxu0 0
      %8703 = vmatmul.mubr.bf16.gmra.mrb[0].mxu0 %v8548
      %v8704 = vpop.f32.mrb[0].mxu0
      %v8705 = vadd.f32 0.0, %v8704
      %v8706 = vpop.f32.mrb[0].mxu0
      %v8707 = vpop.f32.mrb[0].mxu0
      %v8708 = vadd.f32 0.0, %v8707
      %v8709 = vpop.f32.mrb[0].mxu0
      %8710 = vmatprep.mubr.bf16.mxu0 0
      %8711 = vmatmul.mubr.bf16.gmra.mrb[0].mxu0 %v8549
      %v8712 = vpop.f32.mrb[0].mxu0
      %v8713 = vadd.f32 0.0, %v8712
      %v8714 = vpop.f32.mrb[0].mxu0
      %v8715 = vpop.f32.mrb[0].mxu0
      %v8716 = vadd.f32 0.0, %v8715
      %v8717 = vpop.f32.mrb[0].mxu0
      %8718 = vmatprep.mubr.bf16.mxu0 0
      %8719 = vmatmul.mubr.bf16.gmra.mrb[0].mxu0 %v8550
      %v8720 = vpop.f32.mrb[0].mxu0
      %v8721 = vadd.f32 0.0, %v8720
      %v8722 = vpop.f32.mrb[0].mxu0
      %v8723 = vpop.f32.mrb[0].mxu0
      %v8724 = vadd.f32 0.0, %v8723
      %v8725 = vpop.f32.mrb[0].mxu0
      %8726 = vmatprep.mubr.bf16.mxu0 0
      %8727 = vmatmul.mubr.bf16.gmra.mrb[0].mxu0 %v8551
      %v8728 = vpop.f32.mrb[0].mxu0
      %v8729 = vadd.f32 0.0, %v8728
      %v8730 = vpop.f32.mrb[0].mxu0
      %v8731 = vpop.f32.mrb[0].mxu0
      %v8732 = vadd.f32 0.0, %v8731
      %v8733 = vpop.f32.mrb[0].mxu0
      %8734 = vmatprep.mubr.bf16.mxu0 0
      %8735 = vmatmul.mubr.bf16.gmra.mrb[0].mxu0 %v8552
      %v8736 = vpop.f32.mrb[0].mxu0
      %v8737 = vadd.f32 0.0, %v8736
      %v8738 = vpop.f32.mrb[0].mxu0
      %v8739 = vpop.f32.mrb[0].mxu0
      %v8740 = vadd.f32 0.0, %v8739
      %v8741 = vpop.f32.mrb[0].mxu0
      %8742 = vmatprep.mubr.bf16.mxu0 0
      %8743 = vmatmul.mubr.bf16.gmra.mrb[0].mxu0 %v8553
      %v8744 = vpop.f32.mrb[0].mxu0
      %v8745 = vadd.f32 0.0, %v8744
      %v8746 = vpop.f32.mrb[0].mxu0
      %v8747 = vpop.f32.mrb[0].mxu0
      %v8748 = vadd.f32 0.0, %v8747
      %v8749 = vpop.f32.mrb[0].mxu0
      %8750 = vmatprep.mubr.bf16.mxu0 0
      %8751 = vmatmul.mubr.bf16.gmra.mrb[0].mxu0 %v8554
      %v8752 = vpop.f32.mrb[0].mxu0
      %v8753 = vadd.f32 0.0, %v8752
      %v8754 = vpop.f32.mrb[0].mxu0
      %v8755 = vpop.f32.mrb[0].mxu0
      %v8756 = vadd.f32 0.0, %v8755
      %v8757 = vpop.f32.mrb[0].mxu0
      %8758 = vmatprep.mubr.bf16.mxu0 0
      %8759 = vmatmul.mubr.bf16.gmra.mrb[0].mxu0 %v8555
      %v8760 = vpop.f32.mrb[0].mxu0
      %v8761 = vadd.f32 0.0, %v8760
      %v8762 = vpop.f32.mrb[0].mxu0
      %v8763 = vpop.f32.mrb[0].mxu0
      %v8764 = vadd.f32 0.0, %v8763
      %v8765 = vpop.f32.mrb[0].mxu0
      %8766 = vmatprep.mubr.bf16.mxu0 0
      %8767 = vmatmul.mubr.bf16.gmra.mrb[0].mxu0 %v8556
      %v8768 = vpop.f32.mrb[0].mxu0
      %v8769 = vadd.f32 0.0, %v8768
      %v8770 = vpop.f32.mrb[0].mxu0
      %v8771 = vpop.f32.mrb[0].mxu0
      %v8772 = vadd.f32 0.0, %v8771
      %v8773 = vpop.f32.mrb[0].mxu0
      %8774 = vmatprep.mubr.bf16.mxu0 0
      %8775 = vmatmul.mubr.bf16.gmra.mrb[0].mxu0 %v8557
      %v8776 = vpop.f32.mrb[0].mxu0
      %v8777 = vadd.f32 0.0, %v8776
      %v8778 = vpop.f32.mrb[0].mxu0
      %v8779 = vpop.f32.mrb[0].mxu0
      %v8780 = vadd.f32 0.0, %v8779
      %v8781 = vpop.f32.mrb[0].mxu0
      %8782 = vdwg.mxu0
      %v8783 = vadd.f32 %v8061, %v8657
      %v8784 = vadd.f32 %v8062, %v8660
      %v8785 = vadd.f32 %v8063, %v8665
      %v8786 = vadd.f32 %v8064, %v8668
      %v8787 = vadd.f32 %v8065, %v8673
      %v8788 = vadd.f32 %v8066, %v8676
      %v8789 = vadd.f32 %v8067, %v8681
      %v8790 = vadd.f32 %v8068, %v8684
      %v8791 = vadd.f32 %v8069, %v8689
      %v8792 = vadd.f32 %v8070, %v8692
      %v8793 = vadd.f32 %v8071, %v8697
      %v8794 = vadd.f32 %v8072, %v8700
      %v8795 = vadd.f32 %v8073, %v8705
      %v8796 = vadd.f32 %v8074, %v8708
      %v8797 = vadd.f32 %v8075, %v8713
      %v8798 = vadd.f32 %v8076, %v8716
      %v8799 = vadd.f32 %v8077, %v8721
      %v8800 = vadd.f32 %v8078, %v8724
      %v8801 = vadd.f32 %v8079, %v8729
      %v8802 = vadd.f32 %v8080, %v8732
      %v8803 = vadd.f32 %v8081, %v8737
      %v8804 = vadd.f32 %v8082, %v8740
      %v8805 = vadd.f32 %v8083, %v8745
      %v8806 = vadd.f32 %v8084, %v8748
      %v8807 = vadd.f32 %v8085, %v8753
      %v8808 = vadd.f32 %v8086, %v8756
      %v8809 = vadd.f32 %v8087, %v8761
      %v8810 = vadd.f32 %v8088, %v8764
      %v8811 = vadd.f32 %v8089, %v8769
      %v8812 = vadd.f32 %v8090, %v8772
      %v8813 = vadd.f32 %v8091, %v8777
      %v8814 = vadd.f32 %v8092, %v8780
      %s8815 = scalar_lea.vmem %s1, 832
      %v8816 = vld [vmem:[%s8815] sm:$0xf]
      %v8817 = vld [vmem:[%s8815 + $0x4] sm:$0xf]
      %v8818 = vld [vmem:[%s8815 + $0x8] sm:$0xf]
      %v8819 = vld [vmem:[%s8815 + $0xc] sm:$0xf]
      %v8820 = vld [vmem:[%s8815 + $0x10] sm:$0xf]
      %v8821 = vld [vmem:[%s8815 + $0x14] sm:$0xf]
      %v8822 = vld [vmem:[%s8815 + $0x18] sm:$0xf]
      %v8823 = vld [vmem:[%s8815 + $0x1c] sm:$0xf]
      %v8824 = vld [vmem:[%s8815 + $0x20] sm:$0xf]
      %v8825 = vld [vmem:[%s8815 + $0x24] sm:$0xf]
      %v8826 = vld [vmem:[%s8815 + $0x28] sm:$0xf]
      %v8827 = vld [vmem:[%s8815 + $0x2c] sm:$0xf]
      %v8828 = vld [vmem:[%s8815 + $0x30] sm:$0xf]
      %v8829 = vld [vmem:[%s8815 + $0x34] sm:$0xf]
      %v8830 = vld [vmem:[%s8815 + $0x38] sm:$0xf]
      %v8831 = vld [vmem:[%s8815 + $0x3c] sm:$0xf]
      %v8864 = vunpack.c.l.b16 %v8094
      %v8865 = vunpack.c.l.b16 %v8095
      %v8866 = vunpack.c.l.b16 %v8097
      %v8867 = vunpack.c.l.b16 %v8098
      %v8868 = vunpack.c.l.b16 %v8100
      %v8869 = vunpack.c.l.b16 %v8101
      %v8870 = vunpack.c.l.b16 %v8103
      %v8871 = vunpack.c.l.b16 %v8104
      %v8872 = vunpack.c.l.b16 %v8106
      %v8873 = vunpack.c.l.b16 %v8107
      %v8874 = vunpack.c.l.b16 %v8109
      %v8875 = vunpack.c.l.b16 %v8110
      %v8876 = vunpack.c.l.b16 %v8112
      %v8877 = vunpack.c.l.b16 %v8113
      %v8878 = vunpack.c.l.b16 %v8115
      %v8879 = vunpack.c.l.b16 %v8116
      %v8880 = vunpack.c.l.b16 %v8118
      %v8881 = vunpack.c.l.b16 %v8119
      %v8882 = vunpack.c.l.b16 %v8121
      %v8883 = vunpack.c.l.b16 %v8122
      %v8884 = vunpack.c.l.b16 %v8124
      %v8885 = vunpack.c.l.b16 %v8125
      %v8886 = vunpack.c.l.b16 %v8127
      %v8887 = vunpack.c.l.b16 %v8128
      %v8888 = vunpack.c.l.b16 %v8130
      %v8889 = vunpack.c.l.b16 %v8131
      %v8890 = vunpack.c.l.b16 %v8133
      %v8891 = vunpack.c.l.b16 %v8134
      %v8892 = vunpack.c.l.b16 %v8136
      %v8893 = vunpack.c.l.b16 %v8137
      %v8894 = vunpack.c.l.b16 %v8139
      %v8895 = vunpack.c.l.b16 %v8140
      %v8896 = vpack.c.b16 %v8865, %v8864
      %v8897 = vpack.c.b16 %v8867, %v8866
      %v8898 = vpack.c.b16 %v8869, %v8868
      %v8899 = vpack.c.b16 %v8871, %v8870
      %v8900 = vpack.c.b16 %v8873, %v8872
      %v8901 = vpack.c.b16 %v8875, %v8874
      %v8902 = vpack.c.b16 %v8877, %v8876
      %v8903 = vpack.c.b16 %v8879, %v8878
      %v8904 = vpack.c.b16 %v8881, %v8880
      %v8905 = vpack.c.b16 %v8883, %v8882
      %v8906 = vpack.c.b16 %v8885, %v8884
      %v8907 = vpack.c.b16 %v8887, %v8886
      %v8908 = vpack.c.b16 %v8889, %v8888
      %v8909 = vpack.c.b16 %v8891, %v8890
      %v8910 = vpack.c.b16 %v8893, %v8892
      %v8911 = vpack.c.b16 %v8895, %v8894
      %v8944 = vunpack.c.l.b16 %v8816
      %v8945 = vunpack.c.l.b16 %v8817
      %v8946 = vunpack.c.l.b16 %v8818
      %v8947 = vunpack.c.l.b16 %v8819
      %v8948 = vunpack.c.l.b16 %v8820
      %v8949 = vunpack.c.l.b16 %v8821
      %v8950 = vunpack.c.l.b16 %v8822
      %v8951 = vunpack.c.l.b16 %v8823
      %v8952 = vunpack.c.l.b16 %v8824
      %v8953 = vunpack.c.l.b16 %v8825
      %v8954 = vunpack.c.l.b16 %v8826
      %v8955 = vunpack.c.l.b16 %v8827
      %v8956 = vunpack.c.l.b16 %v8828
      %v8957 = vunpack.c.l.b16 %v8829
      %v8958 = vunpack.c.l.b16 %v8830
      %v8959 = vunpack.c.l.b16 %v8831
      %v8960 = vpack.c.b16 %v8945, %v8944
      %v8961 = vpack.c.b16 %v8947, %v8946
      %v8962 = vpack.c.b16 %v8949, %v8948
      %v8963 = vpack.c.b16 %v8951, %v8950
      %v8964 = vpack.c.b16 %v8953, %v8952
      %v8965 = vpack.c.b16 %v8955, %v8954
      %v8966 = vpack.c.b16 %v8957, %v8956
      %v8967 = vpack.c.b16 %v8959, %v8958
      %8976 = vmatprep.subr.bf16.mxu0 0
      %8977 = vmatpush1.bf16.msra.mxu0 %v8960
      %8978 = vmatprep.subr.bf16.mxu0 0
      %8979 = vmatpush1.bf16.msra.mxu0 %v8961
      %8980 = vmatprep.subr.bf16.mxu0 0
      %8981 = vmatpush1.bf16.msra.mxu0 %v8962
      %8982 = vmatprep.subr.bf16.mxu0 0
      %8983 = vmatpush1.bf16.msra.mxu0 %v8963
      %8984 = vmatprep.subr.bf16.mxu0 0
      %8985 = vmatpush1.bf16.msra.mxu0 %v8964
      %8986 = vmatprep.subr.bf16.mxu0 0
      %8987 = vmatpush1.bf16.msra.mxu0 %v8965
      %8988 = vmatprep.subr.bf16.mxu0 0
      %8989 = vmatpush1.bf16.msra.mxu0 %v8966
      %8990 = vmatprep.subr.bf16.mxu0 0
      %8991 = vmatpush1.bf16.msra.mxu0 %v8967
      %8992 = vmatprep.subr.bf16.mxu0 0
      %8993 = vmatpush1.bf16.msra.mxu0 0
      %8994 = vmatprep.subr.bf16.mxu0 0
      %8995 = vmatpush1.bf16.msra.mxu0 0
      %8996 = vmatprep.subr.bf16.mxu0 0
      %8997 = vmatpush1.bf16.msra.mxu0 0
      %8998 = vmatprep.subr.bf16.mxu0 0
      %8999 = vmatpush1.bf16.msra.mxu0 0
      %9000 = vmatprep.subr.bf16.mxu0 0
      %9001 = vmatpush1.bf16.msra.mxu0 0
      %9002 = vmatprep.subr.bf16.mxu0 0
      %9003 = vmatpush1.bf16.msra.mxu0 0
      %9004 = vmatprep.subr.bf16.mxu0 0
      %9005 = vmatpush1.bf16.msra.mxu0 0
      %9006 = vmatprep.subr.bf16.mxu0 0
      %9007 = vmatpush1.bf16.msra.mxu0 0
      %9008 = vmatprep.mubr.bf16.mxu0 0
      %9009 = vmatmul.mubr.bf16.gmra.mrb[0].mxu0 %v8896
      %v9010 = vpop.f32.mrb[0].mxu0
      %v9011 = vadd.f32 0.0, %v9010
      %v9012 = vpop.f32.mrb[0].mxu0
      %v9013 = vpop.f32.mrb[0].mxu0
      %v9014 = vadd.f32 0.0, %v9013
      %v9015 = vpop.f32.mrb[0].mxu0
      %9016 = vmatprep.mubr.bf16.mxu0 0
      %9017 = vmatmul.mubr.bf16.gmra.mrb[0].mxu0 %v8897
      %v9018 = vpop.f32.mrb[0].mxu0
      %v9019 = vadd.f32 0.0, %v9018
      %v9020 = vpop.f32.mrb[0].mxu0
      %v9021 = vpop.f32.mrb[0].mxu0
      %v9022 = vadd.f32 0.0, %v9021
      %v9023 = vpop.f32.mrb[0].mxu0
      %9024 = vmatprep.mubr.bf16.mxu0 0
      %9025 = vmatmul.mubr.bf16.gmra.mrb[0].mxu0 %v8898
      %v9026 = vpop.f32.mrb[0].mxu0
      %v9027 = vadd.f32 0.0, %v9026
      %v9028 = vpop.f32.mrb[0].mxu0
      %v9029 = vpop.f32.mrb[0].mxu0
      %v9030 = vadd.f32 0.0, %v9029
      %v9031 = vpop.f32.mrb[0].mxu0
      %9032 = vmatprep.mubr.bf16.mxu0 0
      %9033 = vmatmul.mubr.bf16.gmra.mrb[0].mxu0 %v8899
      %v9034 = vpop.f32.mrb[0].mxu0
      %v9035 = vadd.f32 0.0, %v9034
      %v9036 = vpop.f32.mrb[0].mxu0
      %v9037 = vpop.f32.mrb[0].mxu0
      %v9038 = vadd.f32 0.0, %v9037
      %v9039 = vpop.f32.mrb[0].mxu0
      %9040 = vmatprep.mubr.bf16.mxu0 0
      %9041 = vmatmul.mubr.bf16.gmra.mrb[0].mxu0 %v8900
      %v9042 = vpop.f32.mrb[0].mxu0
      %v9043 = vadd.f32 0.0, %v9042
      %v9044 = vpop.f32.mrb[0].mxu0
      %v9045 = vpop.f32.mrb[0].mxu0
      %v9046 = vadd.f32 0.0, %v9045
      %v9047 = vpop.f32.mrb[0].mxu0
      %9048 = vmatprep.mubr.bf16.mxu0 0
      %9049 = vmatmul.mubr.bf16.gmra.mrb[0].mxu0 %v8901
      %v9050 = vpop.f32.mrb[0].mxu0
      %v9051 = vadd.f32 0.0, %v9050
      %v9052 = vpop.f32.mrb[0].mxu0
      %v9053 = vpop.f32.mrb[0].mxu0
      %v9054 = vadd.f32 0.0, %v9053
      %v9055 = vpop.f32.mrb[0].mxu0
      %9056 = vmatprep.mubr.bf16.mxu0 0
      %9057 = vmatmul.mubr.bf16.gmra.mrb[0].mxu0 %v8902
      %v9058 = vpop.f32.mrb[0].mxu0
      %v9059 = vadd.f32 0.0, %v9058
      %v9060 = vpop.f32.mrb[0].mxu0
      %v9061 = vpop.f32.mrb[0].mxu0
      %v9062 = vadd.f32 0.0, %v9061
      %v9063 = vpop.f32.mrb[0].mxu0
      %9064 = vmatprep.mubr.bf16.mxu0 0
      %9065 = vmatmul.mubr.bf16.gmra.mrb[0].mxu0 %v8903
      %v9066 = vpop.f32.mrb[0].mxu0
      %v9067 = vadd.f32 0.0, %v9066
      %v9068 = vpop.f32.mrb[0].mxu0
      %v9069 = vpop.f32.mrb[0].mxu0
      %v9070 = vadd.f32 0.0, %v9069
      %v9071 = vpop.f32.mrb[0].mxu0
      %9072 = vmatprep.mubr.bf16.mxu0 0
      %9073 = vmatmul.mubr.bf16.gmra.mrb[0].mxu0 %v8904
      %v9074 = vpop.f32.mrb[0].mxu0
      %v9075 = vadd.f32 0.0, %v9074
      %v9076 = vpop.f32.mrb[0].mxu0
      %v9077 = vpop.f32.mrb[0].mxu0
      %v9078 = vadd.f32 0.0, %v9077
      %v9079 = vpop.f32.mrb[0].mxu0
      %9080 = vmatprep.mubr.bf16.mxu0 0
      %9081 = vmatmul.mubr.bf16.gmra.mrb[0].mxu0 %v8905
      %v9082 = vpop.f32.mrb[0].mxu0
      %v9083 = vadd.f32 0.0, %v9082
      %v9084 = vpop.f32.mrb[0].mxu0
      %v9085 = vpop.f32.mrb[0].mxu0
      %v9086 = vadd.f32 0.0, %v9085
      %v9087 = vpop.f32.mrb[0].mxu0
      %9088 = vmatprep.mubr.bf16.mxu0 0
      %9089 = vmatmul.mubr.bf16.gmra.mrb[0].mxu0 %v8906
      %v9090 = vpop.f32.mrb[0].mxu0
      %v9091 = vadd.f32 0.0, %v9090
      %v9092 = vpop.f32.mrb[0].mxu0
      %v9093 = vpop.f32.mrb[0].mxu0
      %v9094 = vadd.f32 0.0, %v9093
      %v9095 = vpop.f32.mrb[0].mxu0
      %9096 = vmatprep.mubr.bf16.mxu0 0
      %9097 = vmatmul.mubr.bf16.gmra.mrb[0].mxu0 %v8907
      %v9098 = vpop.f32.mrb[0].mxu0
      %v9099 = vadd.f32 0.0, %v9098
      %v9100 = vpop.f32.mrb[0].mxu0
      %v9101 = vpop.f32.mrb[0].mxu0
      %v9102 = vadd.f32 0.0, %v9101
      %v9103 = vpop.f32.mrb[0].mxu0
      %9104 = vmatprep.mubr.bf16.mxu0 0
      %9105 = vmatmul.mubr.bf16.gmra.mrb[0].mxu0 %v8908
      %v9106 = vpop.f32.mrb[0].mxu0
      %v9107 = vadd.f32 0.0, %v9106
      %v9108 = vpop.f32.mrb[0].mxu0
      %v9109 = vpop.f32.mrb[0].mxu0
      %v9110 = vadd.f32 0.0, %v9109
      %v9111 = vpop.f32.mrb[0].mxu0
      %9112 = vmatprep.mubr.bf16.mxu0 0
      %9113 = vmatmul.mubr.bf16.gmra.mrb[0].mxu0 %v8909
      %v9114 = vpop.f32.mrb[0].mxu0
      %v9115 = vadd.f32 0.0, %v9114
      %v9116 = vpop.f32.mrb[0].mxu0
      %v9117 = vpop.f32.mrb[0].mxu0
      %v9118 = vadd.f32 0.0, %v9117
      %v9119 = vpop.f32.mrb[0].mxu0
      %9120 = vmatprep.mubr.bf16.mxu0 0
      %9121 = vmatmul.mubr.bf16.gmra.mrb[0].mxu0 %v8910
      %v9122 = vpop.f32.mrb[0].mxu0
      %v9123 = vadd.f32 0.0, %v9122
      %v9124 = vpop.f32.mrb[0].mxu0
      %v9125 = vpop.f32.mrb[0].mxu0
      %v9126 = vadd.f32 0.0, %v9125
      %v9127 = vpop.f32.mrb[0].mxu0
      %9128 = vmatprep.mubr.bf16.mxu0 0
      %9129 = vmatmul.mubr.bf16.gmra.mrb[0].mxu0 %v8911
      %v9130 = vpop.f32.mrb[0].mxu0
      %v9131 = vadd.f32 0.0, %v9130
      %v9132 = vpop.f32.mrb[0].mxu0
      %v9133 = vpop.f32.mrb[0].mxu0
      %v9134 = vadd.f32 0.0, %v9133
      %v9135 = vpop.f32.mrb[0].mxu0
      %9136 = vdwg.mxu0
      %v9137 = vadd.f32 %v8783, %v9011
      %v9138 = vadd.f32 %v8784, %v9014
      %v9139 = vadd.f32 %v8785, %v9019
      %v9140 = vadd.f32 %v8786, %v9022
      %v9141 = vadd.f32 %v8787, %v9027
      %v9142 = vadd.f32 %v8788, %v9030
      %v9143 = vadd.f32 %v8789, %v9035
      %v9144 = vadd.f32 %v8790, %v9038
      %v9145 = vadd.f32 %v8791, %v9043
      %v9146 = vadd.f32 %v8792, %v9046
      %v9147 = vadd.f32 %v8793, %v9051
      %v9148 = vadd.f32 %v8794, %v9054
      %v9149 = vadd.f32 %v8795, %v9059
      %v9150 = vadd.f32 %v8796, %v9062
      %v9151 = vadd.f32 %v8797, %v9067
      %v9152 = vadd.f32 %v8798, %v9070
      %v9153 = vadd.f32 %v8799, %v9075
      %v9154 = vadd.f32 %v8800, %v9078
      %v9155 = vadd.f32 %v8801, %v9083
      %v9156 = vadd.f32 %v8802, %v9086
      %v9157 = vadd.f32 %v8803, %v9091
      %v9158 = vadd.f32 %v8804, %v9094
      %v9159 = vadd.f32 %v8805, %v9099
      %v9160 = vadd.f32 %v8806, %v9102
      %v9161 = vadd.f32 %v8807, %v9107
      %v9162 = vadd.f32 %v8808, %v9110
      %v9163 = vadd.f32 %v8809, %v9115
      %v9164 = vadd.f32 %v8810, %v9118
      %v9165 = vadd.f32 %v8811, %v9123
      %v9166 = vadd.f32 %v8812, %v9126
      %v9167 = vadd.f32 %v8813, %v9131
      %v9168 = vadd.f32 %v8814, %v9134
      %v9169 = vld [vmem:[%s244 + $0x8] sm:$0xf]
      %v9170 = vld [vmem:[%s244 + $0xc] sm:$0xf]
      %v9171 = vld [vmem:[%s244 + $0x10] sm:$0x1]
      %v9172 = vld [vmem:[%s244 + $0x1c] sm:$0xf]
      %v9173 = vld [vmem:[%s244 + $0x20] sm:$0xf]
      %v9174 = vld [vmem:[%s244 + $0x24] sm:$0x1]
      %v9175 = vld [vmem:[%s244 + $0x30] sm:$0xf]
      %v9176 = vld [vmem:[%s244 + $0x34] sm:$0xf]
      %v9177 = vld [vmem:[%s244 + $0x38] sm:$0x1]
      %v9178 = vld [vmem:[%s244 + $0x44] sm:$0xf]
      %v9179 = vld [vmem:[%s244 + $0x48] sm:$0xf]
      %v9180 = vld [vmem:[%s244 + $0x4c] sm:$0x1]
      %v9181 = vld [vmem:[%s244 + $0x58] sm:$0xf]
      %v9182 = vld [vmem:[%s244 + $0x5c] sm:$0xf]
      %v9183 = vld [vmem:[%s244 + $0x60] sm:$0x1]
      %v9184 = vld [vmem:[%s244 + $0x6c] sm:$0xf]
      %v9185 = vld [vmem:[%s244 + $0x70] sm:$0xf]
      %v9186 = vld [vmem:[%s244 + $0x74] sm:$0x1]
      %v9187 = vld [vmem:[%s244 + $0x80] sm:$0xf]
      %v9188 = vld [vmem:[%s244 + $0x84] sm:$0xf]
      %v9189 = vld [vmem:[%s244 + $0x88] sm:$0x1]
      %v9190 = vld [vmem:[%s244 + $0x94] sm:$0xf]
      %v9191 = vld [vmem:[%s244 + $0x98] sm:$0xf]
      %v9192 = vld [vmem:[%s244 + $0x9c] sm:$0x1]
      %v9193 = vld [vmem:[%s244 + $0xa8] sm:$0xf]
      %v9194 = vld [vmem:[%s244 + $0xac] sm:$0xf]
      %v9195 = vld [vmem:[%s244 + $0xb0] sm:$0x1]
      %v9196 = vld [vmem:[%s244 + $0xbc] sm:$0xf]
      %v9197 = vld [vmem:[%s244 + $0xc0] sm:$0xf]
      %v9198 = vld [vmem:[%s244 + $0xc4] sm:$0x1]
      %v9199 = vld [vmem:[%s244 + $0xd0] sm:$0xf]
      %v9200 = vld [vmem:[%s244 + $0xd4] sm:$0xf]
      %v9201 = vld [vmem:[%s244 + $0xd8] sm:$0x1]
      %v9202 = vld [vmem:[%s244 + $0xe4] sm:$0xf]
      %v9203 = vld [vmem:[%s244 + $0xe8] sm:$0xf]
      %v9204 = vld [vmem:[%s244 + $0xec] sm:$0x1]
      %v9205 = vld [vmem:[%s244 + $0xf8] sm:$0xf]
      %v9206 = vld [vmem:[%s244 + $0xfc] sm:$0xf]
      %v9207 = vld [vmem:[%s244 + $0x100] sm:$0x1]
      %v9208 = vld [vmem:[%s244 + $0x10c] sm:$0xf]
      %v9209 = vld [vmem:[%s244 + $0x110] sm:$0xf]
      %v9210 = vld [vmem:[%s244 + $0x114] sm:$0x1]
      %v9211 = vld [vmem:[%s244 + $0x120] sm:$0xf]
      %v9212 = vld [vmem:[%s244 + $0x124] sm:$0xf]
      %v9213 = vld [vmem:[%s244 + $0x128] sm:$0x1]
      %v9214 = vld [vmem:[%s244 + $0x134] sm:$0xf]
      %v9215 = vld [vmem:[%s244 + $0x138] sm:$0xf]
      %v9216 = vld [vmem:[%s244 + $0x13c] sm:$0x1]
      %v9218 = vshrl.u32 %v9169, 16
      %v9220 = vrot.slane %v9218, 4
      %v9221 = vshll.u32 %v9169, 16
      %v9223 = vrot.slane %v9221, 5
      %v9224 = vor.u32 %v9220, %v9223
      %v9225 = vrot.slane %v9224, 4
      %v9227 = vshll.u32 %v9170, 16
      %v9229 = vrot.slane %v9227, 5
      %v9230 = vsel %vm1599, %v9225, %v9229
      %v9231 = vshrl.u32 %v9170, 16
      %v9233 = vrot.slane %v9231, 4
      %v9234 = vor.u32 %v9233, %v9229
      %v9235 = vrot.slane %v9234, 4
      %v9237 = vshll.u32 %v9171, 16
      %v9239 = vrot.slane %v9237, 5
      %v9240 = vsel %vm1599, %v9235, %v9239
      %v9242 = vshrl.u32 %v9172, 16
      %v9244 = vrot.slane %v9242, 4
      %v9245 = vshll.u32 %v9172, 16
      %v9247 = vrot.slane %v9245, 5
      %v9248 = vor.u32 %v9244, %v9247
      %v9249 = vrot.slane %v9248, 4
      %v9251 = vshll.u32 %v9173, 16
      %v9253 = vrot.slane %v9251, 5
      %v9254 = vsel %vm1599, %v9249, %v9253
      %v9255 = vshrl.u32 %v9173, 16
      %v9257 = vrot.slane %v9255, 4
      %v9258 = vor.u32 %v9257, %v9253
      %v9259 = vrot.slane %v9258, 4
      %v9261 = vshll.u32 %v9174, 16
      %v9263 = vrot.slane %v9261, 5
      %v9264 = vsel %vm1599, %v9259, %v9263
      %v9266 = vshrl.u32 %v9175, 16
      %v9268 = vrot.slane %v9266, 4
      %v9269 = vshll.u32 %v9175, 16
      %v9271 = vrot.slane %v9269, 5
      %v9272 = vor.u32 %v9268, %v9271
      %v9273 = vrot.slane %v9272, 4
      %v9275 = vshll.u32 %v9176, 16
      %v9277 = vrot.slane %v9275, 5
      %v9278 = vsel %vm1599, %v9273, %v9277
      %v9279 = vshrl.u32 %v9176, 16
      %v9281 = vrot.slane %v9279, 4
      %v9282 = vor.u32 %v9281, %v9277
      %v9283 = vrot.slane %v9282, 4
      %v9285 = vshll.u32 %v9177, 16
      %v9287 = vrot.slane %v9285, 5
      %v9288 = vsel %vm1599, %v9283, %v9287
      %v9290 = vshrl.u32 %v9178, 16
      %v9292 = vrot.slane %v9290, 4
      %v9293 = vshll.u32 %v9178, 16
      %v9295 = vrot.slane %v9293, 5
      %v9296 = vor.u32 %v9292, %v9295
      %v9297 = vrot.slane %v9296, 4
      %v9299 = vshll.u32 %v9179, 16
      %v9301 = vrot.slane %v9299, 5
      %v9302 = vsel %vm1599, %v9297, %v9301
      %v9303 = vshrl.u32 %v9179, 16
      %v9305 = vrot.slane %v9303, 4
      %v9306 = vor.u32 %v9305, %v9301
      %v9307 = vrot.slane %v9306, 4
      %v9309 = vshll.u32 %v9180, 16
      %v9311 = vrot.slane %v9309, 5
      %v9312 = vsel %vm1599, %v9307, %v9311
      %v9314 = vshrl.u32 %v9181, 16
      %v9316 = vrot.slane %v9314, 4
      %v9317 = vshll.u32 %v9181, 16
      %v9319 = vrot.slane %v9317, 5
      %v9320 = vor.u32 %v9316, %v9319
      %v9321 = vrot.slane %v9320, 4
      %v9323 = vshll.u32 %v9182, 16
      %v9325 = vrot.slane %v9323, 5
      %v9326 = vsel %vm1599, %v9321, %v9325
      %v9327 = vshrl.u32 %v9182, 16
      %v9329 = vrot.slane %v9327, 4
      %v9330 = vor.u32 %v9329, %v9325
      %v9331 = vrot.slane %v9330, 4
      %v9333 = vshll.u32 %v9183, 16
      %v9335 = vrot.slane %v9333, 5
      %v9336 = vsel %vm1599, %v9331, %v9335
      %v9338 = vshrl.u32 %v9184, 16
      %v9340 = vrot.slane %v9338, 4
      %v9341 = vshll.u32 %v9184, 16
      %v9343 = vrot.slane %v9341, 5
      %v9344 = vor.u32 %v9340, %v9343
      %v9345 = vrot.slane %v9344, 4
      %v9347 = vshll.u32 %v9185, 16
      %v9349 = vrot.slane %v9347, 5
      %v9350 = vsel %vm1599, %v9345, %v9349
      %v9351 = vshrl.u32 %v9185, 16
      %v9353 = vrot.slane %v9351, 4
      %v9354 = vor.u32 %v9353, %v9349
      %v9355 = vrot.slane %v9354, 4
      %v9357 = vshll.u32 %v9186, 16
      %v9359 = vrot.slane %v9357, 5
      %v9360 = vsel %vm1599, %v9355, %v9359
      %v9362 = vshrl.u32 %v9187, 16
      %v9364 = vrot.slane %v9362, 4
      %v9365 = vshll.u32 %v9187, 16
      %v9367 = vrot.slane %v9365, 5
      %v9368 = vor.u32 %v9364, %v9367
      %v9369 = vrot.slane %v9368, 4
      %v9371 = vshll.u32 %v9188, 16
      %v9373 = vrot.slane %v9371, 5
      %v9374 = vsel %vm1599, %v9369, %v9373
      %v9375 = vshrl.u32 %v9188, 16
      %v9377 = vrot.slane %v9375, 4
      %v9378 = vor.u32 %v9377, %v9373
      %v9379 = vrot.slane %v9378, 4
      %v9381 = vshll.u32 %v9189, 16
      %v9383 = vrot.slane %v9381, 5
      %v9384 = vsel %vm1599, %v9379, %v9383
      %v9386 = vshrl.u32 %v9190, 16
      %v9388 = vrot.slane %v9386, 4
      %v9389 = vshll.u32 %v9190, 16
      %v9391 = vrot.slane %v9389, 5
      %v9392 = vor.u32 %v9388, %v9391
      %v9393 = vrot.slane %v9392, 4
      %v9395 = vshll.u32 %v9191, 16
      %v9397 = vrot.slane %v9395, 5
      %v9398 = vsel %vm1599, %v9393, %v9397
      %v9399 = vshrl.u32 %v9191, 16
      %v9401 = vrot.slane %v9399, 4
      %v9402 = vor.u32 %v9401, %v9397
      %v9403 = vrot.slane %v9402, 4
      %v9405 = vshll.u32 %v9192, 16
      %v9407 = vrot.slane %v9405, 5
      %v9408 = vsel %vm1599, %v9403, %v9407
      %v9410 = vshrl.u32 %v9193, 16
      %v9412 = vrot.slane %v9410, 4
      %v9413 = vshll.u32 %v9193, 16
      %v9415 = vrot.slane %v9413, 5
      %v9416 = vor.u32 %v9412, %v9415
      %v9417 = vrot.slane %v9416, 4
      %v9419 = vshll.u32 %v9194, 16
      %v9421 = vrot.slane %v9419, 5
      %v9422 = vsel %vm1599, %v9417, %v9421
      %v9423 = vshrl.u32 %v9194, 16
      %v9425 = vrot.slane %v9423, 4
      %v9426 = vor.u32 %v9425, %v9421
      %v9427 = vrot.slane %v9426, 4
      %v9429 = vshll.u32 %v9195, 16
      %v9431 = vrot.slane %v9429, 5
      %v9432 = vsel %vm1599, %v9427, %v9431
      %v9434 = vshrl.u32 %v9196, 16
      %v9436 = vrot.slane %v9434, 4
      %v9437 = vshll.u32 %v9196, 16
      %v9439 = vrot.slane %v9437, 5
      %v9440 = vor.u32 %v9436, %v9439
      %v9441 = vrot.slane %v9440, 4
      %v9443 = vshll.u32 %v9197, 16
      %v9445 = vrot.slane %v9443, 5
      %v9446 = vsel %vm1599, %v9441, %v9445
      %v9447 = vshrl.u32 %v9197, 16
      %v9449 = vrot.slane %v9447, 4
      %v9450 = vor.u32 %v9449, %v9445
      %v9451 = vrot.slane %v9450, 4
      %v9453 = vshll.u32 %v9198, 16
      %v9455 = vrot.slane %v9453, 5
      %v9456 = vsel %vm1599, %v9451, %v9455
      %v9458 = vshrl.u32 %v9199, 16
      %v9460 = vrot.slane %v9458, 4
      %v9461 = vshll.u32 %v9199, 16
      %v9463 = vrot.slane %v9461, 5
      %v9464 = vor.u32 %v9460, %v9463
      %v9465 = vrot.slane %v9464, 4
      %v9467 = vshll.u32 %v9200, 16
      %v9469 = vrot.slane %v9467, 5
      %v9470 = vsel %vm1599, %v9465, %v9469
      %v9471 = vshrl.u32 %v9200, 16
      %v9473 = vrot.slane %v9471, 4
      %v9474 = vor.u32 %v9473, %v9469
      %v9475 = vrot.slane %v9474, 4
      %v9477 = vshll.u32 %v9201, 16
      %v9479 = vrot.slane %v9477, 5
      %v9480 = vsel %vm1599, %v9475, %v9479
      %v9482 = vshrl.u32 %v9202, 16
      %v9484 = vrot.slane %v9482, 4
      %v9485 = vshll.u32 %v9202, 16
      %v9487 = vrot.slane %v9485, 5
      %v9488 = vor.u32 %v9484, %v9487
      %v9489 = vrot.slane %v9488, 4
      %v9491 = vshll.u32 %v9203, 16
      %v9493 = vrot.slane %v9491, 5
      %v9494 = vsel %vm1599, %v9489, %v9493
      %v9495 = vshrl.u32 %v9203, 16
      %v9497 = vrot.slane %v9495, 4
      %v9498 = vor.u32 %v9497, %v9493
      %v9499 = vrot.slane %v9498, 4
      %v9501 = vshll.u32 %v9204, 16
      %v9503 = vrot.slane %v9501, 5
      %v9504 = vsel %vm1599, %v9499, %v9503
      %v9506 = vshrl.u32 %v9205, 16
      %v9508 = vrot.slane %v9506, 4
      %v9509 = vshll.u32 %v9205, 16
      %v9511 = vrot.slane %v9509, 5
      %v9512 = vor.u32 %v9508, %v9511
      %v9513 = vrot.slane %v9512, 4
      %v9515 = vshll.u32 %v9206, 16
      %v9517 = vrot.slane %v9515, 5
      %v9518 = vsel %vm1599, %v9513, %v9517
      %v9519 = vshrl.u32 %v9206, 16
      %v9521 = vrot.slane %v9519, 4
      %v9522 = vor.u32 %v9521, %v9517
      %v9523 = vrot.slane %v9522, 4
      %v9525 = vshll.u32 %v9207, 16
      %v9527 = vrot.slane %v9525, 5
      %v9528 = vsel %vm1599, %v9523, %v9527
      %v9530 = vshrl.u32 %v9208, 16
      %v9532 = vrot.slane %v9530, 4
      %v9533 = vshll.u32 %v9208, 16
      %v9535 = vrot.slane %v9533, 5
      %v9536 = vor.u32 %v9532, %v9535
      %v9537 = vrot.slane %v9536, 4
      %v9539 = vshll.u32 %v9209, 16
      %v9541 = vrot.slane %v9539, 5
      %v9542 = vsel %vm1599, %v9537, %v9541
      %v9543 = vshrl.u32 %v9209, 16
      %v9545 = vrot.slane %v9543, 4
      %v9546 = vor.u32 %v9545, %v9541
      %v9547 = vrot.slane %v9546, 4
      %v9549 = vshll.u32 %v9210, 16
      %v9551 = vrot.slane %v9549, 5
      %v9552 = vsel %vm1599, %v9547, %v9551
      %v9554 = vshrl.u32 %v9211, 16
      %v9556 = vrot.slane %v9554, 4
      %v9557 = vshll.u32 %v9211, 16
      %v9559 = vrot.slane %v9557, 5
      %v9560 = vor.u32 %v9556, %v9559
      %v9561 = vrot.slane %v9560, 4
      %v9563 = vshll.u32 %v9212, 16
      %v9565 = vrot.slane %v9563, 5
      %v9566 = vsel %vm1599, %v9561, %v9565
      %v9567 = vshrl.u32 %v9212, 16
      %v9569 = vrot.slane %v9567, 4
      %v9570 = vor.u32 %v9569, %v9565
      %v9571 = vrot.slane %v9570, 4
      %v9573 = vshll.u32 %v9213, 16
      %v9575 = vrot.slane %v9573, 5
      %v9576 = vsel %vm1599, %v9571, %v9575
      %v9578 = vshrl.u32 %v9214, 16
      %v9580 = vrot.slane %v9578, 4
      %v9581 = vshll.u32 %v9214, 16
      %v9583 = vrot.slane %v9581, 5
      %v9584 = vor.u32 %v9580, %v9583
      %v9585 = vrot.slane %v9584, 4
      %v9587 = vshll.u32 %v9215, 16
      %v9589 = vrot.slane %v9587, 5
      %v9590 = vsel %vm1599, %v9585, %v9589
      %v9591 = vshrl.u32 %v9215, 16
      %v9593 = vrot.slane %v9591, 4
      %v9594 = vor.u32 %v9593, %v9589
      %v9595 = vrot.slane %v9594, 4
      %v9597 = vshll.u32 %v9216, 16
      %v9599 = vrot.slane %v9597, 5
      %v9600 = vsel %vm1599, %v9595, %v9599
      %s9601 = scalar_lea.vmem %s1, 896
      %v9602 = vld [vmem:[%s9601] sm:$0xf]
      %v9603 = vld [vmem:[%s9601 + $0x4] sm:$0xf]
      %v9604 = vld [vmem:[%s9601 + $0x8] sm:$0xf]
      %v9605 = vld [vmem:[%s9601 + $0xc] sm:$0xf]
      %v9606 = vld [vmem:[%s9601 + $0x10] sm:$0xf]
      %v9607 = vld [vmem:[%s9601 + $0x14] sm:$0xf]
      %v9608 = vld [vmem:[%s9601 + $0x18] sm:$0xf]
      %v9609 = vld [vmem:[%s9601 + $0x1c] sm:$0xf]
      %v9610 = vld [vmem:[%s9601 + $0x20] sm:$0xf]
      %v9611 = vld [vmem:[%s9601 + $0x24] sm:$0xf]
      %v9612 = vld [vmem:[%s9601 + $0x28] sm:$0xf]
      %v9613 = vld [vmem:[%s9601 + $0x2c] sm:$0xf]
      %v9614 = vld [vmem:[%s9601 + $0x30] sm:$0xf]
      %v9615 = vld [vmem:[%s9601 + $0x34] sm:$0xf]
      %v9616 = vld [vmem:[%s9601 + $0x38] sm:$0xf]
      %v9617 = vld [vmem:[%s9601 + $0x3c] sm:$0xf]
      %v9618 = vunpack.c.l.b16 %v9230
      %v9619 = vunpack.c.l.b16 %v9240
      %v9620 = vunpack.c.l.b16 %v9254
      %v9621 = vunpack.c.l.b16 %v9264
      %v9622 = vunpack.c.l.b16 %v9278
      %v9623 = vunpack.c.l.b16 %v9288
      %v9624 = vunpack.c.l.b16 %v9302
      %v9625 = vunpack.c.l.b16 %v9312
      %v9626 = vunpack.c.l.b16 %v9326
      %v9627 = vunpack.c.l.b16 %v9336
      %v9628 = vunpack.c.l.b16 %v9350
      %v9629 = vunpack.c.l.b16 %v9360
      %v9630 = vunpack.c.l.b16 %v9374
      %v9631 = vunpack.c.l.b16 %v9384
      %v9632 = vunpack.c.l.b16 %v9398
      %v9633 = vunpack.c.l.b16 %v9408
      %v9634 = vunpack.c.l.b16 %v9422
      %v9635 = vunpack.c.l.b16 %v9432
      %v9636 = vunpack.c.l.b16 %v9446
      %v9637 = vunpack.c.l.b16 %v9456
      %v9638 = vunpack.c.l.b16 %v9470
      %v9639 = vunpack.c.l.b16 %v9480
      %v9640 = vunpack.c.l.b16 %v9494
      %v9641 = vunpack.c.l.b16 %v9504
      %v9642 = vunpack.c.l.b16 %v9518
      %v9643 = vunpack.c.l.b16 %v9528
      %v9644 = vunpack.c.l.b16 %v9542
      %v9645 = vunpack.c.l.b16 %v9552
      %v9646 = vunpack.c.l.b16 %v9566
      %v9647 = vunpack.c.l.b16 %v9576
      %v9648 = vunpack.c.l.b16 %v9590
      %v9649 = vunpack.c.l.b16 %v9600
      %v9650 = vpack.c.b16 %v9619, %v9618
      %v9651 = vpack.c.b16 %v9621, %v9620
      %v9652 = vpack.c.b16 %v9623, %v9622
      %v9653 = vpack.c.b16 %v9625, %v9624
      %v9654 = vpack.c.b16 %v9627, %v9626
      %v9655 = vpack.c.b16 %v9629, %v9628
      %v9656 = vpack.c.b16 %v9631, %v9630
      %v9657 = vpack.c.b16 %v9633, %v9632
      %v9658 = vpack.c.b16 %v9635, %v9634
      %v9659 = vpack.c.b16 %v9637, %v9636
      %v9660 = vpack.c.b16 %v9639, %v9638
      %v9661 = vpack.c.b16 %v9641, %v9640
      %v9662 = vpack.c.b16 %v9643, %v9642
      %v9663 = vpack.c.b16 %v9645, %v9644
      %v9664 = vpack.c.b16 %v9647, %v9646
      %v9665 = vpack.c.b16 %v9649, %v9648
      %v9698 = vunpack.c.l.b16 %v9602
      %v9699 = vunpack.c.l.b16 %v9603
      %v9700 = vunpack.c.l.b16 %v9604
      %v9701 = vunpack.c.l.b16 %v9605
      %v9702 = vunpack.c.l.b16 %v9606
      %v9703 = vunpack.c.l.b16 %v9607
      %v9704 = vunpack.c.l.b16 %v9608
      %v9705 = vunpack.c.l.b16 %v9609
      %v9706 = vunpack.c.l.b16 %v9610
      %v9707 = vunpack.c.l.b16 %v9611
      %v9708 = vunpack.c.l.b16 %v9612
      %v9709 = vunpack.c.l.b16 %v9613
      %v9710 = vunpack.c.l.b16 %v9614
      %v9711 = vunpack.c.l.b16 %v9615
      %v9712 = vunpack.c.l.b16 %v9616
      %v9713 = vunpack.c.l.b16 %v9617
      %v9714 = vpack.c.b16 %v9699, %v9698
      %v9715 = vpack.c.b16 %v9701, %v9700
      %v9716 = vpack.c.b16 %v9703, %v9702
      %v9717 = vpack.c.b16 %v9705, %v9704
      %v9718 = vpack.c.b16 %v9707, %v9706
      %v9719 = vpack.c.b16 %v9709, %v9708
      %v9720 = vpack.c.b16 %v9711, %v9710
      %v9721 = vpack.c.b16 %v9713, %v9712
      %9730 = vmatprep.subr.bf16.mxu0 0
      %9731 = vmatpush1.bf16.msra.mxu0 %v9714
      %9732 = vmatprep.subr.bf16.mxu0 0
      %9733 = vmatpush1.bf16.msra.mxu0 %v9715
      %9734 = vmatprep.subr.bf16.mxu0 0
      %9735 = vmatpush1.bf16.msra.mxu0 %v9716
      %9736 = vmatprep.subr.bf16.mxu0 0
      %9737 = vmatpush1.bf16.msra.mxu0 %v9717
      %9738 = vmatprep.subr.bf16.mxu0 0
      %9739 = vmatpush1.bf16.msra.mxu0 %v9718
      %9740 = vmatprep.subr.bf16.mxu0 0
      %9741 = vmatpush1.bf16.msra.mxu0 %v9719
      %9742 = vmatprep.subr.bf16.mxu0 0
      %9743 = vmatpush1.bf16.msra.mxu0 %v9720
      %9744 = vmatprep.subr.bf16.mxu0 0
      %9745 = vmatpush1.bf16.msra.mxu0 %v9721
      %9746 = vmatprep.subr.bf16.mxu0 0
      %9747 = vmatpush1.bf16.msra.mxu0 0
      %9748 = vmatprep.subr.bf16.mxu0 0
      %9749 = vmatpush1.bf16.msra.mxu0 0
      %9750 = vmatprep.subr.bf16.mxu0 0
      %9751 = vmatpush1.bf16.msra.mxu0 0
      %9752 = vmatprep.subr.bf16.mxu0 0
      %9753 = vmatpush1.bf16.msra.mxu0 0
      %9754 = vmatprep.subr.bf16.mxu0 0
      %9755 = vmatpush1.bf16.msra.mxu0 0
      %9756 = vmatprep.subr.bf16.mxu0 0
      %9757 = vmatpush1.bf16.msra.mxu0 0
      %9758 = vmatprep.subr.bf16.mxu0 0
      %9759 = vmatpush1.bf16.msra.mxu0 0
      %9760 = vmatprep.subr.bf16.mxu0 0
      %9761 = vmatpush1.bf16.msra.mxu0 0
      %9762 = vmatprep.mubr.bf16.mxu0 0
      %9763 = vmatmul.mubr.bf16.gmra.mrb[0].mxu0 %v9650
      %v9764 = vpop.f32.mrb[0].mxu0
      %v9765 = vadd.f32 0.0, %v9764
      %v9766 = vpop.f32.mrb[0].mxu0
      %v9767 = vpop.f32.mrb[0].mxu0
      %v9768 = vadd.f32 0.0, %v9767
      %v9769 = vpop.f32.mrb[0].mxu0
      %9770 = vmatprep.mubr.bf16.mxu0 0
      %9771 = vmatmul.mubr.bf16.gmra.mrb[0].mxu0 %v9651
      %v9772 = vpop.f32.mrb[0].mxu0
      %v9773 = vadd.f32 0.0, %v9772
      %v9774 = vpop.f32.mrb[0].mxu0
      %v9775 = vpop.f32.mrb[0].mxu0
      %v9776 = vadd.f32 0.0, %v9775
      %v9777 = vpop.f32.mrb[0].mxu0
      %9778 = vmatprep.mubr.bf16.mxu0 0
      %9779 = vmatmul.mubr.bf16.gmra.mrb[0].mxu0 %v9652
      %v9780 = vpop.f32.mrb[0].mxu0
      %v9781 = vadd.f32 0.0, %v9780
      %v9782 = vpop.f32.mrb[0].mxu0
      %v9783 = vpop.f32.mrb[0].mxu0
      %v9784 = vadd.f32 0.0, %v9783
      %v9785 = vpop.f32.mrb[0].mxu0
      %9786 = vmatprep.mubr.bf16.mxu0 0
      %9787 = vmatmul.mubr.bf16.gmra.mrb[0].mxu0 %v9653
      %v9788 = vpop.f32.mrb[0].mxu0
      %v9789 = vadd.f32 0.0, %v9788
      %v9790 = vpop.f32.mrb[0].mxu0
      %v9791 = vpop.f32.mrb[0].mxu0
      %v9792 = vadd.f32 0.0, %v9791
      %v9793 = vpop.f32.mrb[0].mxu0
      %9794 = vmatprep.mubr.bf16.mxu0 0
      %9795 = vmatmul.mubr.bf16.gmra.mrb[0].mxu0 %v9654
      %v9796 = vpop.f32.mrb[0].mxu0
      %v9797 = vadd.f32 0.0, %v9796
      %v9798 = vpop.f32.mrb[0].mxu0
      %v9799 = vpop.f32.mrb[0].mxu0
      %v9800 = vadd.f32 0.0, %v9799
      %v9801 = vpop.f32.mrb[0].mxu0
      %9802 = vmatprep.mubr.bf16.mxu0 0
      %9803 = vmatmul.mubr.bf16.gmra.mrb[0].mxu0 %v9655
      %v9804 = vpop.f32.mrb[0].mxu0
      %v9805 = vadd.f32 0.0, %v9804
      %v9806 = vpop.f32.mrb[0].mxu0
      %v9807 = vpop.f32.mrb[0].mxu0
      %v9808 = vadd.f32 0.0, %v9807
      %v9809 = vpop.f32.mrb[0].mxu0
      %9810 = vmatprep.mubr.bf16.mxu0 0
      %9811 = vmatmul.mubr.bf16.gmra.mrb[0].mxu0 %v9656
      %v9812 = vpop.f32.mrb[0].mxu0
      %v9813 = vadd.f32 0.0, %v9812
      %v9814 = vpop.f32.mrb[0].mxu0
      %v9815 = vpop.f32.mrb[0].mxu0
      %v9816 = vadd.f32 0.0, %v9815
      %v9817 = vpop.f32.mrb[0].mxu0
      %9818 = vmatprep.mubr.bf16.mxu0 0
      %9819 = vmatmul.mubr.bf16.gmra.mrb[0].mxu0 %v9657
      %v9820 = vpop.f32.mrb[0].mxu0
      %v9821 = vadd.f32 0.0, %v9820
      %v9822 = vpop.f32.mrb[0].mxu0
      %v9823 = vpop.f32.mrb[0].mxu0
      %v9824 = vadd.f32 0.0, %v9823
      %v9825 = vpop.f32.mrb[0].mxu0
      %9826 = vmatprep.mubr.bf16.mxu0 0
      %9827 = vmatmul.mubr.bf16.gmra.mrb[0].mxu0 %v9658
      %v9828 = vpop.f32.mrb[0].mxu0
      %v9829 = vadd.f32 0.0, %v9828
      %v9830 = vpop.f32.mrb[0].mxu0
      %v9831 = vpop.f32.mrb[0].mxu0
      %v9832 = vadd.f32 0.0, %v9831
      %v9833 = vpop.f32.mrb[0].mxu0
      %9834 = vmatprep.mubr.bf16.mxu0 0
      %9835 = vmatmul.mubr.bf16.gmra.mrb[0].mxu0 %v9659
      %v9836 = vpop.f32.mrb[0].mxu0
      %v9837 = vadd.f32 0.0, %v9836
      %v9838 = vpop.f32.mrb[0].mxu0
      %v9839 = vpop.f32.mrb[0].mxu0
      %v9840 = vadd.f32 0.0, %v9839
      %v9841 = vpop.f32.mrb[0].mxu0
      %9842 = vmatprep.mubr.bf16.mxu0 0
      %9843 = vmatmul.mubr.bf16.gmra.mrb[0].mxu0 %v9660
      %v9844 = vpop.f32.mrb[0].mxu0
      %v9845 = vadd.f32 0.0, %v9844
      %v9846 = vpop.f32.mrb[0].mxu0
      %v9847 = vpop.f32.mrb[0].mxu0
      %v9848 = vadd.f32 0.0, %v9847
      %v9849 = vpop.f32.mrb[0].mxu0
      %9850 = vmatprep.mubr.bf16.mxu0 0
      %9851 = vmatmul.mubr.bf16.gmra.mrb[0].mxu0 %v9661
      %v9852 = vpop.f32.mrb[0].mxu0
      %v9853 = vadd.f32 0.0, %v9852
      %v9854 = vpop.f32.mrb[0].mxu0
      %v9855 = vpop.f32.mrb[0].mxu0
      %v9856 = vadd.f32 0.0, %v9855
      %v9857 = vpop.f32.mrb[0].mxu0
      %9858 = vmatprep.mubr.bf16.mxu0 0
      %9859 = vmatmul.mubr.bf16.gmra.mrb[0].mxu0 %v9662
      %v9860 = vpop.f32.mrb[0].mxu0
      %v9861 = vadd.f32 0.0, %v9860
      %v9862 = vpop.f32.mrb[0].mxu0
      %v9863 = vpop.f32.mrb[0].mxu0
      %v9864 = vadd.f32 0.0, %v9863
      %v9865 = vpop.f32.mrb[0].mxu0
      %9866 = vmatprep.mubr.bf16.mxu0 0
      %9867 = vmatmul.mubr.bf16.gmra.mrb[0].mxu0 %v9663
      %v9868 = vpop.f32.mrb[0].mxu0
      %v9869 = vadd.f32 0.0, %v9868
      %v9870 = vpop.f32.mrb[0].mxu0
      %v9871 = vpop.f32.mrb[0].mxu0
      %v9872 = vadd.f32 0.0, %v9871
      %v9873 = vpop.f32.mrb[0].mxu0
      %9874 = vmatprep.mubr.bf16.mxu0 0
      %9875 = vmatmul.mubr.bf16.gmra.mrb[0].mxu0 %v9664
      %v9876 = vpop.f32.mrb[0].mxu0
      %v9877 = vadd.f32 0.0, %v9876
      %v9878 = vpop.f32.mrb[0].mxu0
      %v9879 = vpop.f32.mrb[0].mxu0
      %v9880 = vadd.f32 0.0, %v9879
      %v9881 = vpop.f32.mrb[0].mxu0
      %9882 = vmatprep.mubr.bf16.mxu0 0
      %9883 = vmatmul.mubr.bf16.gmra.mrb[0].mxu0 %v9665
      %v9884 = vpop.f32.mrb[0].mxu0
      %v9885 = vadd.f32 0.0, %v9884
      %v9886 = vpop.f32.mrb[0].mxu0
      %v9887 = vpop.f32.mrb[0].mxu0
      %v9888 = vadd.f32 0.0, %v9887
      %v9889 = vpop.f32.mrb[0].mxu0
      %9890 = vdwg.mxu0
      %v9891 = vadd.f32 %v9137, %v9765
      %v9892 = vadd.f32 %v9138, %v9768
      %v9893 = vadd.f32 %v9139, %v9773
      %v9894 = vadd.f32 %v9140, %v9776
      %v9895 = vadd.f32 %v9141, %v9781
      %v9896 = vadd.f32 %v9142, %v9784
      %v9897 = vadd.f32 %v9143, %v9789
      %v9898 = vadd.f32 %v9144, %v9792
      %v9899 = vadd.f32 %v9145, %v9797
      %v9900 = vadd.f32 %v9146, %v9800
      %v9901 = vadd.f32 %v9147, %v9805
      %v9902 = vadd.f32 %v9148, %v9808
      %v9903 = vadd.f32 %v9149, %v9813
      %v9904 = vadd.f32 %v9150, %v9816
      %v9905 = vadd.f32 %v9151, %v9821
      %v9906 = vadd.f32 %v9152, %v9824
      %v9907 = vadd.f32 %v9153, %v9829
      %v9908 = vadd.f32 %v9154, %v9832
      %v9909 = vadd.f32 %v9155, %v9837
      %v9910 = vadd.f32 %v9156, %v9840
      %v9911 = vadd.f32 %v9157, %v9845
      %v9912 = vadd.f32 %v9158, %v9848
      %v9913 = vadd.f32 %v9159, %v9853
      %v9914 = vadd.f32 %v9160, %v9856
      %v9915 = vadd.f32 %v9161, %v9861
      %v9916 = vadd.f32 %v9162, %v9864
      %v9917 = vadd.f32 %v9163, %v9869
      %v9918 = vadd.f32 %v9164, %v9872
      %v9919 = vadd.f32 %v9165, %v9877
      %v9920 = vadd.f32 %v9166, %v9880
      %v9921 = vadd.f32 %v9167, %v9885
      %v9922 = vadd.f32 %v9168, %v9888
      %v9923 = vld [vmem:[%s4136 + $0x4] sm:$0x8]
      %v9924 = vld [vmem:[%s4136 + $0x8] sm:$0xf]
      %v9925 = vld [vmem:[%s4136 + $0xc] sm:$0xf]
      %v9926 = vld [vmem:[%s4136 + $0x18] sm:$0x8]
      %v9927 = vld [vmem:[%s4136 + $0x1c] sm:$0xf]
      %v9928 = vld [vmem:[%s4136 + $0x20] sm:$0xf]
      %v9929 = vld [vmem:[%s4136 + $0x2c] sm:$0x8]
      %v9930 = vld [vmem:[%s4136 + $0x30] sm:$0xf]
      %v9931 = vld [vmem:[%s4136 + $0x34] sm:$0xf]
      %v9932 = vld [vmem:[%s4136 + $0x40] sm:$0x8]
      %v9933 = vld [vmem:[%s4136 + $0x44] sm:$0xf]
      %v9934 = vld [vmem:[%s4136 + $0x48] sm:$0xf]
      %v9935 = vld [vmem:[%s4136 + $0x54] sm:$0x8]
      %v9936 = vld [vmem:[%s4136 + $0x58] sm:$0xf]
      %v9937 = vld [vmem:[%s4136 + $0x5c] sm:$0xf]
      %v9938 = vld [vmem:[%s4136 + $0x68] sm:$0x8]
      %v9939 = vld [vmem:[%s4136 + $0x6c] sm:$0xf]
      %v9940 = vld [vmem:[%s4136 + $0x70] sm:$0xf]
      %v9941 = vld [vmem:[%s4136 + $0x7c] sm:$0x8]
      %v9942 = vld [vmem:[%s4136 + $0x80] sm:$0xf]
      %v9943 = vld [vmem:[%s4136 + $0x84] sm:$0xf]
      %v9944 = vld [vmem:[%s4136 + $0x90] sm:$0x8]
      %v9945 = vld [vmem:[%s4136 + $0x94] sm:$0xf]
      %v9946 = vld [vmem:[%s4136 + $0x98] sm:$0xf]
      %v9947 = vld [vmem:[%s4136 + $0xa4] sm:$0x8]
      %v9948 = vld [vmem:[%s4136 + $0xa8] sm:$0xf]
      %v9949 = vld [vmem:[%s4136 + $0xac] sm:$0xf]
      %v9950 = vld [vmem:[%s4136 + $0xb8] sm:$0x8]
      %v9951 = vld [vmem:[%s4136 + $0xbc] sm:$0xf]
      %v9952 = vld [vmem:[%s4136 + $0xc0] sm:$0xf]
      %v9953 = vld [vmem:[%s4136 + $0xcc] sm:$0x8]
      %v9954 = vld [vmem:[%s4136 + $0xd0] sm:$0xf]
      %v9955 = vld [vmem:[%s4136 + $0xd4] sm:$0xf]
      %v9956 = vld [vmem:[%s4136 + $0xe0] sm:$0x8]
      %v9957 = vld [vmem:[%s4136 + $0xe4] sm:$0xf]
      %v9958 = vld [vmem:[%s4136 + $0xe8] sm:$0xf]
      %v9959 = vld [vmem:[%s4136 + $0xf4] sm:$0x8]
      %v9960 = vld [vmem:[%s4136 + $0xf8] sm:$0xf]
      %v9961 = vld [vmem:[%s4136 + $0xfc] sm:$0xf]
      %v9962 = vld [vmem:[%s4136 + $0x108] sm:$0x8]
      %v9963 = vld [vmem:[%s4136 + $0x10c] sm:$0xf]
      %v9964 = vld [vmem:[%s4136 + $0x110] sm:$0xf]
      %v9965 = vld [vmem:[%s4136 + $0x11c] sm:$0x8]
      %v9966 = vld [vmem:[%s4136 + $0x120] sm:$0xf]
      %v9967 = vld [vmem:[%s4136 + $0x124] sm:$0xf]
      %v9968 = vld [vmem:[%s4136 + $0x130] sm:$0x8]
      %v9969 = vld [vmem:[%s4136 + $0x134] sm:$0xf]
      %v9970 = vld [vmem:[%s4136 + $0x138] sm:$0xf]
      %v9972 = vshrl.u32 %v9923, 16
      %v9974 = vrot.slane %v9972, 7
      %v9975 = vrot.slane %v9974, 4
      %v9977 = vshrl.u32 %v9924, 16
      %v9979 = vrot.slane %v9977, 7
      %v9980 = vshll.u32 %v9924, 16
      %v9982 = vor.u32 %v9979, %v9980
      %v9983 = vsel %vm585, %v9975, %v9982
      %v9984 = vrot.slane %v9979, 4
      %v9986 = vshrl.u32 %v9925, 16
      %v9988 = vrot.slane %v9986, 7
      %v9989 = vshll.u32 %v9925, 16
      %v9991 = vor.u32 %v9988, %v9989
      %v9992 = vsel %vm585, %v9984, %v9991
      %v9994 = vshrl.u32 %v9926, 16
      %v9996 = vrot.slane %v9994, 7
      %v9997 = vrot.slane %v9996, 4
      %v9999 = vshrl.u32 %v9927, 16
      %v10001 = vrot.slane %v9999, 7
      %v10002 = vshll.u32 %v9927, 16
      %v10004 = vor.u32 %v10001, %v10002
      %v10005 = vsel %vm585, %v9997, %v10004
      %v10006 = vrot.slane %v10001, 4
      %v10008 = vshrl.u32 %v9928, 16
      %v10010 = vrot.slane %v10008, 7
      %v10011 = vshll.u32 %v9928, 16
      %v10013 = vor.u32 %v10010, %v10011
      %v10014 = vsel %vm585, %v10006, %v10013
      %v10016 = vshrl.u32 %v9929, 16
      %v10018 = vrot.slane %v10016, 7
      %v10019 = vrot.slane %v10018, 4
      %v10021 = vshrl.u32 %v9930, 16
      %v10023 = vrot.slane %v10021, 7
      %v10024 = vshll.u32 %v9930, 16
      %v10026 = vor.u32 %v10023, %v10024
      %v10027 = vsel %vm585, %v10019, %v10026
      %v10028 = vrot.slane %v10023, 4
      %v10030 = vshrl.u32 %v9931, 16
      %v10032 = vrot.slane %v10030, 7
      %v10033 = vshll.u32 %v9931, 16
      %v10035 = vor.u32 %v10032, %v10033
      %v10036 = vsel %vm585, %v10028, %v10035
      %v10038 = vshrl.u32 %v9932, 16
      %v10040 = vrot.slane %v10038, 7
      %v10041 = vrot.slane %v10040, 4
      %v10043 = vshrl.u32 %v9933, 16
      %v10045 = vrot.slane %v10043, 7
      %v10046 = vshll.u32 %v9933, 16
      %v10048 = vor.u32 %v10045, %v10046
      %v10049 = vsel %vm585, %v10041, %v10048
      %v10050 = vrot.slane %v10045, 4
      %v10052 = vshrl.u32 %v9934, 16
      %v10054 = vrot.slane %v10052, 7
      %v10055 = vshll.u32 %v9934, 16
      %v10057 = vor.u32 %v10054, %v10055
      %v10058 = vsel %vm585, %v10050, %v10057
      %v10060 = vshrl.u32 %v9935, 16
      %v10062 = vrot.slane %v10060, 7
      %v10063 = vrot.slane %v10062, 4
      %v10065 = vshrl.u32 %v9936, 16
      %v10067 = vrot.slane %v10065, 7
      %v10068 = vshll.u32 %v9936, 16
      %v10070 = vor.u32 %v10067, %v10068
      %v10071 = vsel %vm585, %v10063, %v10070
      %v10072 = vrot.slane %v10067, 4
      %v10074 = vshrl.u32 %v9937, 16
      %v10076 = vrot.slane %v10074, 7
      %v10077 = vshll.u32 %v9937, 16
      %v10079 = vor.u32 %v10076, %v10077
      %v10080 = vsel %vm585, %v10072, %v10079
      %v10082 = vshrl.u32 %v9938, 16
      %v10084 = vrot.slane %v10082, 7
      %v10085 = vrot.slane %v10084, 4
      %v10087 = vshrl.u32 %v9939, 16
      %v10089 = vrot.slane %v10087, 7
      %v10090 = vshll.u32 %v9939, 16
      %v10092 = vor.u32 %v10089, %v10090
      %v10093 = vsel %vm585, %v10085, %v10092
      %v10094 = vrot.slane %v10089, 4
      %v10096 = vshrl.u32 %v9940, 16
      %v10098 = vrot.slane %v10096, 7
      %v10099 = vshll.u32 %v9940, 16
      %v10101 = vor.u32 %v10098, %v10099
      %v10102 = vsel %vm585, %v10094, %v10101
      %v10104 = vshrl.u32 %v9941, 16
      %v10106 = vrot.slane %v10104, 7
      %v10107 = vrot.slane %v10106, 4
      %v10109 = vshrl.u32 %v9942, 16
      %v10111 = vrot.slane %v10109, 7
      %v10112 = vshll.u32 %v9942, 16
      %v10114 = vor.u32 %v10111, %v10112
      %v10115 = vsel %vm585, %v10107, %v10114
      %v10116 = vrot.slane %v10111, 4
      %v10118 = vshrl.u32 %v9943, 16
      %v10120 = vrot.slane %v10118, 7
      %v10121 = vshll.u32 %v9943, 16
      %v10123 = vor.u32 %v10120, %v10121
      %v10124 = vsel %vm585, %v10116, %v10123
      %v10126 = vshrl.u32 %v9944, 16
      %v10128 = vrot.slane %v10126, 7
      %v10129 = vrot.slane %v10128, 4
      %v10131 = vshrl.u32 %v9945, 16
      %v10133 = vrot.slane %v10131, 7
      %v10134 = vshll.u32 %v9945, 16
      %v10136 = vor.u32 %v10133, %v10134
      %v10137 = vsel %vm585, %v10129, %v10136
      %v10138 = vrot.slane %v10133, 4
      %v10140 = vshrl.u32 %v9946, 16
      %v10142 = vrot.slane %v10140, 7
      %v10143 = vshll.u32 %v9946, 16
      %v10145 = vor.u32 %v10142, %v10143
      %v10146 = vsel %vm585, %v10138, %v10145
      %v10148 = vshrl.u32 %v9947, 16
      %v10150 = vrot.slane %v10148, 7
      %v10151 = vrot.slane %v10150, 4
      %v10153 = vshrl.u32 %v9948, 16
      %v10155 = vrot.slane %v10153, 7
      %v10156 = vshll.u32 %v9948, 16
      %v10158 = vor.u32 %v10155, %v10156
      %v10159 = vsel %vm585, %v10151, %v10158
      %v10160 = vrot.slane %v10155, 4
      %v10162 = vshrl.u32 %v9949, 16
      %v10164 = vrot.slane %v10162, 7
      %v10165 = vshll.u32 %v9949, 16
      %v10167 = vor.u32 %v10164, %v10165
      %v10168 = vsel %vm585, %v10160, %v10167
      %v10170 = vshrl.u32 %v9950, 16
      %v10172 = vrot.slane %v10170, 7
      %v10173 = vrot.slane %v10172, 4
      %v10175 = vshrl.u32 %v9951, 16
      %v10177 = vrot.slane %v10175, 7
      %v10178 = vshll.u32 %v9951, 16
      %v10180 = vor.u32 %v10177, %v10178
      %v10181 = vsel %vm585, %v10173, %v10180
      %v10182 = vrot.slane %v10177, 4
      %v10184 = vshrl.u32 %v9952, 16
      %v10186 = vrot.slane %v10184, 7
      %v10187 = vshll.u32 %v9952, 16
      %v10189 = vor.u32 %v10186, %v10187
      %v10190 = vsel %vm585, %v10182, %v10189
      %v10192 = vshrl.u32 %v9953, 16
      %v10194 = vrot.slane %v10192, 7
      %v10195 = vrot.slane %v10194, 4
      %v10197 = vshrl.u32 %v9954, 16
      %v10199 = vrot.slane %v10197, 7
      %v10200 = vshll.u32 %v9954, 16
      %v10202 = vor.u32 %v10199, %v10200
      %v10203 = vsel %vm585, %v10195, %v10202
      %v10204 = vrot.slane %v10199, 4
      %v10206 = vshrl.u32 %v9955, 16
      %v10208 = vrot.slane %v10206, 7
      %v10209 = vshll.u32 %v9955, 16
      %v10211 = vor.u32 %v10208, %v10209
      %v10212 = vsel %vm585, %v10204, %v10211
      %v10214 = vshrl.u32 %v9956, 16
      %v10216 = vrot.slane %v10214, 7
      %v10217 = vrot.slane %v10216, 4
      %v10219 = vshrl.u32 %v9957, 16
      %v10221 = vrot.slane %v10219, 7
      %v10222 = vshll.u32 %v9957, 16
      %v10224 = vor.u32 %v10221, %v10222
      %v10225 = vsel %vm585, %v10217, %v10224
      %v10226 = vrot.slane %v10221, 4
      %v10228 = vshrl.u32 %v9958, 16
      %v10230 = vrot.slane %v10228, 7
      %v10231 = vshll.u32 %v9958, 16
      %v10233 = vor.u32 %v10230, %v10231
      %v10234 = vsel %vm585, %v10226, %v10233
      %v10236 = vshrl.u32 %v9959, 16
      %v10238 = vrot.slane %v10236, 7
      %v10239 = vrot.slane %v10238, 4
      %v10241 = vshrl.u32 %v9960, 16
      %v10243 = vrot.slane %v10241, 7
      %v10244 = vshll.u32 %v9960, 16
      %v10246 = vor.u32 %v10243, %v10244
      %v10247 = vsel %vm585, %v10239, %v10246
      %v10248 = vrot.slane %v10243, 4
      %v10250 = vshrl.u32 %v9961, 16
      %v10252 = vrot.slane %v10250, 7
      %v10253 = vshll.u32 %v9961, 16
      %v10255 = vor.u32 %v10252, %v10253
      %v10256 = vsel %vm585, %v10248, %v10255
      %v10258 = vshrl.u32 %v9962, 16
      %v10260 = vrot.slane %v10258, 7
      %v10261 = vrot.slane %v10260, 4
      %v10263 = vshrl.u32 %v9963, 16
      %v10265 = vrot.slane %v10263, 7
      %v10266 = vshll.u32 %v9963, 16
      %v10268 = vor.u32 %v10265, %v10266
      %v10269 = vsel %vm585, %v10261, %v10268
      %v10270 = vrot.slane %v10265, 4
      %v10272 = vshrl.u32 %v9964, 16
      %v10274 = vrot.slane %v10272, 7
      %v10275 = vshll.u32 %v9964, 16
      %v10277 = vor.u32 %v10274, %v10275
      %v10278 = vsel %vm585, %v10270, %v10277
      %v10280 = vshrl.u32 %v9965, 16
      %v10282 = vrot.slane %v10280, 7
      %v10283 = vrot.slane %v10282, 4
      %v10285 = vshrl.u32 %v9966, 16
      %v10287 = vrot.slane %v10285, 7
      %v10288 = vshll.u32 %v9966, 16
      %v10290 = vor.u32 %v10287, %v10288
      %v10291 = vsel %vm585, %v10283, %v10290
      %v10292 = vrot.slane %v10287, 4
      %v10294 = vshrl.u32 %v9967, 16
      %v10296 = vrot.slane %v10294, 7
      %v10297 = vshll.u32 %v9967, 16
      %v10299 = vor.u32 %v10296, %v10297
      %v10300 = vsel %vm585, %v10292, %v10299
      %v10302 = vshrl.u32 %v9968, 16
      %v10304 = vrot.slane %v10302, 7
      %v10305 = vrot.slane %v10304, 4
      %v10307 = vshrl.u32 %v9969, 16
      %v10309 = vrot.slane %v10307, 7
      %v10310 = vshll.u32 %v9969, 16
      %v10312 = vor.u32 %v10309, %v10310
      %v10313 = vsel %vm585, %v10305, %v10312
      %v10314 = vrot.slane %v10309, 4
      %v10316 = vshrl.u32 %v9970, 16
      %v10318 = vrot.slane %v10316, 7
      %v10319 = vshll.u32 %v9970, 16
      %v10321 = vor.u32 %v10318, %v10319
      %v10322 = vsel %vm585, %v10314, %v10321
      %s10323 = scalar_lea.vmem %s1, 960
      %v10324 = vld [vmem:[%s10323] sm:$0xf]
      %v10325 = vld [vmem:[%s10323 + $0x4] sm:$0xf]
      %v10326 = vld [vmem:[%s10323 + $0x8] sm:$0xf]
      %v10327 = vld [vmem:[%s10323 + $0xc] sm:$0xf]
      %v10328 = vld [vmem:[%s10323 + $0x10] sm:$0xf]
      %v10329 = vld [vmem:[%s10323 + $0x14] sm:$0xf]
      %v10330 = vld [vmem:[%s10323 + $0x18] sm:$0xf]
      %v10331 = vld [vmem:[%s10323 + $0x1c] sm:$0xf]
      %v10332 = vld [vmem:[%s10323 + $0x20] sm:$0xf]
      %v10333 = vld [vmem:[%s10323 + $0x24] sm:$0xf]
      %v10334 = vld [vmem:[%s10323 + $0x28] sm:$0xf]
      %v10335 = vld [vmem:[%s10323 + $0x2c] sm:$0xf]
      %v10336 = vld [vmem:[%s10323 + $0x30] sm:$0xf]
      %v10337 = vld [vmem:[%s10323 + $0x34] sm:$0xf]
      %v10338 = vld [vmem:[%s10323 + $0x38] sm:$0xf]
      %v10339 = vld [vmem:[%s10323 + $0x3c] sm:$0xf]
      %v10340 = vunpack.c.l.b16 %v9983
      %v10341 = vunpack.c.l.b16 %v9992
      %v10342 = vunpack.c.l.b16 %v10005
      %v10343 = vunpack.c.l.b16 %v10014
      %v10344 = vunpack.c.l.b16 %v10027
      %v10345 = vunpack.c.l.b16 %v10036
      %v10346 = vunpack.c.l.b16 %v10049
      %v10347 = vunpack.c.l.b16 %v10058
      %v10348 = vunpack.c.l.b16 %v10071
      %v10349 = vunpack.c.l.b16 %v10080
      %v10350 = vunpack.c.l.b16 %v10093
      %v10351 = vunpack.c.l.b16 %v10102
      %v10352 = vunpack.c.l.b16 %v10115
      %v10353 = vunpack.c.l.b16 %v10124
      %v10354 = vunpack.c.l.b16 %v10137
      %v10355 = vunpack.c.l.b16 %v10146
      %v10356 = vunpack.c.l.b16 %v10159
      %v10357 = vunpack.c.l.b16 %v10168
      %v10358 = vunpack.c.l.b16 %v10181
      %v10359 = vunpack.c.l.b16 %v10190
      %v10360 = vunpack.c.l.b16 %v10203
      %v10361 = vunpack.c.l.b16 %v10212
      %v10362 = vunpack.c.l.b16 %v10225
      %v10363 = vunpack.c.l.b16 %v10234
      %v10364 = vunpack.c.l.b16 %v10247
      %v10365 = vunpack.c.l.b16 %v10256
      %v10366 = vunpack.c.l.b16 %v10269
      %v10367 = vunpack.c.l.b16 %v10278
      %v10368 = vunpack.c.l.b16 %v10291
      %v10369 = vunpack.c.l.b16 %v10300
      %v10370 = vunpack.c.l.b16 %v10313
      %v10371 = vunpack.c.l.b16 %v10322
      %v10372 = vpack.c.b16 %v10341, %v10340
      %v10373 = vpack.c.b16 %v10343, %v10342
      %v10374 = vpack.c.b16 %v10345, %v10344
      %v10375 = vpack.c.b16 %v10347, %v10346
      %v10376 = vpack.c.b16 %v10349, %v10348
      %v10377 = vpack.c.b16 %v10351, %v10350
      %v10378 = vpack.c.b16 %v10353, %v10352
      %v10379 = vpack.c.b16 %v10355, %v10354
      %v10380 = vpack.c.b16 %v10357, %v10356
      %v10381 = vpack.c.b16 %v10359, %v10358
      %v10382 = vpack.c.b16 %v10361, %v10360
      %v10383 = vpack.c.b16 %v10363, %v10362
      %v10384 = vpack.c.b16 %v10365, %v10364
      %v10385 = vpack.c.b16 %v10367, %v10366
      %v10386 = vpack.c.b16 %v10369, %v10368
      %v10387 = vpack.c.b16 %v10371, %v10370
      %v10420 = vunpack.c.l.b16 %v10324
      %v10421 = vunpack.c.l.b16 %v10325
      %v10422 = vunpack.c.l.b16 %v10326
      %v10423 = vunpack.c.l.b16 %v10327
      %v10424 = vunpack.c.l.b16 %v10328
      %v10425 = vunpack.c.l.b16 %v10329
      %v10426 = vunpack.c.l.b16 %v10330
      %v10427 = vunpack.c.l.b16 %v10331
      %v10428 = vunpack.c.l.b16 %v10332
      %v10429 = vunpack.c.l.b16 %v10333
      %v10430 = vunpack.c.l.b16 %v10334
      %v10431 = vunpack.c.l.b16 %v10335
      %v10432 = vunpack.c.l.b16 %v10336
      %v10433 = vunpack.c.l.b16 %v10337
      %v10434 = vunpack.c.l.b16 %v10338
      %v10435 = vunpack.c.l.b16 %v10339
      %v10436 = vpack.c.b16 %v10421, %v10420
      %v10437 = vpack.c.b16 %v10423, %v10422
      %v10438 = vpack.c.b16 %v10425, %v10424
      %v10439 = vpack.c.b16 %v10427, %v10426
      %v10440 = vpack.c.b16 %v10429, %v10428
      %v10441 = vpack.c.b16 %v10431, %v10430
      %v10442 = vpack.c.b16 %v10433, %v10432
      %v10443 = vpack.c.b16 %v10435, %v10434
      %10452 = vmatprep.subr.bf16.mxu0 0
      %10453 = vmatpush1.bf16.msra.mxu0 %v10436
      %10454 = vmatprep.subr.bf16.mxu0 0
      %10455 = vmatpush1.bf16.msra.mxu0 %v10437
      %10456 = vmatprep.subr.bf16.mxu0 0
      %10457 = vmatpush1.bf16.msra.mxu0 %v10438
      %10458 = vmatprep.subr.bf16.mxu0 0
      %10459 = vmatpush1.bf16.msra.mxu0 %v10439
      %10460 = vmatprep.subr.bf16.mxu0 0
      %10461 = vmatpush1.bf16.msra.mxu0 %v10440
      %10462 = vmatprep.subr.bf16.mxu0 0
      %10463 = vmatpush1.bf16.msra.mxu0 %v10441
      %10464 = vmatprep.subr.bf16.mxu0 0
      %10465 = vmatpush1.bf16.msra.mxu0 %v10442
      %10466 = vmatprep.subr.bf16.mxu0 0
      %10467 = vmatpush1.bf16.msra.mxu0 %v10443
      %10468 = vmatprep.subr.bf16.mxu0 0
      %10469 = vmatpush1.bf16.msra.mxu0 0
      %10470 = vmatprep.subr.bf16.mxu0 0
      %10471 = vmatpush1.bf16.msra.mxu0 0
      %10472 = vmatprep.subr.bf16.mxu0 0
      %10473 = vmatpush1.bf16.msra.mxu0 0
      %10474 = vmatprep.subr.bf16.mxu0 0
      %10475 = vmatpush1.bf16.msra.mxu0 0
      %10476 = vmatprep.subr.bf16.mxu0 0
      %10477 = vmatpush1.bf16.msra.mxu0 0
      %10478 = vmatprep.subr.bf16.mxu0 0
      %10479 = vmatpush1.bf16.msra.mxu0 0
      %10480 = vmatprep.subr.bf16.mxu0 0
      %10481 = vmatpush1.bf16.msra.mxu0 0
      %10482 = vmatprep.subr.bf16.mxu0 0
      %10483 = vmatpush1.bf16.msra.mxu0 0
      %10484 = vmatprep.mubr.bf16.mxu0 0
      %10485 = vmatmul.mubr.bf16.gmra.mrb[0].mxu0 %v10372
      %v10486 = vpop.f32.mrb[0].mxu0
      %v10487 = vadd.f32 0.0, %v10486
      %v10488 = vpop.f32.mrb[0].mxu0
      %v10489 = vpop.f32.mrb[0].mxu0
      %v10490 = vadd.f32 0.0, %v10489
      %v10491 = vpop.f32.mrb[0].mxu0
      %10492 = vmatprep.mubr.bf16.mxu0 0
      %10493 = vmatmul.mubr.bf16.gmra.mrb[0].mxu0 %v10373
      %v10494 = vpop.f32.mrb[0].mxu0
      %v10495 = vadd.f32 0.0, %v10494
      %v10496 = vpop.f32.mrb[0].mxu0
      %v10497 = vpop.f32.mrb[0].mxu0
      %v10498 = vadd.f32 0.0, %v10497
      %v10499 = vpop.f32.mrb[0].mxu0
      %10500 = vmatprep.mubr.bf16.mxu0 0
      %10501 = vmatmul.mubr.bf16.gmra.mrb[0].mxu0 %v10374
      %v10502 = vpop.f32.mrb[0].mxu0
      %v10503 = vadd.f32 0.0, %v10502
      %v10504 = vpop.f32.mrb[0].mxu0
      %v10505 = vpop.f32.mrb[0].mxu0
      %v10506 = vadd.f32 0.0, %v10505
      %v10507 = vpop.f32.mrb[0].mxu0
      %10508 = vmatprep.mubr.bf16.mxu0 0
      %10509 = vmatmul.mubr.bf16.gmra.mrb[0].mxu0 %v10375
      %v10510 = vpop.f32.mrb[0].mxu0
      %v10511 = vadd.f32 0.0, %v10510
      %v10512 = vpop.f32.mrb[0].mxu0
      %v10513 = vpop.f32.mrb[0].mxu0
      %v10514 = vadd.f32 0.0, %v10513
      %v10515 = vpop.f32.mrb[0].mxu0
      %10516 = vmatprep.mubr.bf16.mxu0 0
      %10517 = vmatmul.mubr.bf16.gmra.mrb[0].mxu0 %v10376
      %v10518 = vpop.f32.mrb[0].mxu0
      %v10519 = vadd.f32 0.0, %v10518
      %v10520 = vpop.f32.mrb[0].mxu0
      %v10521 = vpop.f32.mrb[0].mxu0
      %v10522 = vadd.f32 0.0, %v10521
      %v10523 = vpop.f32.mrb[0].mxu0
      %10524 = vmatprep.mubr.bf16.mxu0 0
      %10525 = vmatmul.mubr.bf16.gmra.mrb[0].mxu0 %v10377
      %v10526 = vpop.f32.mrb[0].mxu0
      %v10527 = vadd.f32 0.0, %v10526
      %v10528 = vpop.f32.mrb[0].mxu0
      %v10529 = vpop.f32.mrb[0].mxu0
      %v10530 = vadd.f32 0.0, %v10529
      %v10531 = vpop.f32.mrb[0].mxu0
      %10532 = vmatprep.mubr.bf16.mxu0 0
      %10533 = vmatmul.mubr.bf16.gmra.mrb[0].mxu0 %v10378
      %v10534 = vpop.f32.mrb[0].mxu0
      %v10535 = vadd.f32 0.0, %v10534
      %v10536 = vpop.f32.mrb[0].mxu0
      %v10537 = vpop.f32.mrb[0].mxu0
      %v10538 = vadd.f32 0.0, %v10537
      %v10539 = vpop.f32.mrb[0].mxu0
      %10540 = vmatprep.mubr.bf16.mxu0 0
      %10541 = vmatmul.mubr.bf16.gmra.mrb[0].mxu0 %v10379
      %v10542 = vpop.f32.mrb[0].mxu0
      %v10543 = vadd.f32 0.0, %v10542
      %v10544 = vpop.f32.mrb[0].mxu0
      %v10545 = vpop.f32.mrb[0].mxu0
      %v10546 = vadd.f32 0.0, %v10545
      %v10547 = vpop.f32.mrb[0].mxu0
      %10548 = vmatprep.mubr.bf16.mxu0 0
      %10549 = vmatmul.mubr.bf16.gmra.mrb[0].mxu0 %v10380
      %v10550 = vpop.f32.mrb[0].mxu0
      %v10551 = vadd.f32 0.0, %v10550
      %v10552 = vpop.f32.mrb[0].mxu0
      %v10553 = vpop.f32.mrb[0].mxu0
      %v10554 = vadd.f32 0.0, %v10553
      %v10555 = vpop.f32.mrb[0].mxu0
      %10556 = vmatprep.mubr.bf16.mxu0 0
      %10557 = vmatmul.mubr.bf16.gmra.mrb[0].mxu0 %v10381
      %v10558 = vpop.f32.mrb[0].mxu0
      %v10559 = vadd.f32 0.0, %v10558
      %v10560 = vpop.f32.mrb[0].mxu0
      %v10561 = vpop.f32.mrb[0].mxu0
      %v10562 = vadd.f32 0.0, %v10561
      %v10563 = vpop.f32.mrb[0].mxu0
      %10564 = vmatprep.mubr.bf16.mxu0 0
      %10565 = vmatmul.mubr.bf16.gmra.mrb[0].mxu0 %v10382
      %v10566 = vpop.f32.mrb[0].mxu0
      %v10567 = vadd.f32 0.0, %v10566
      %v10568 = vpop.f32.mrb[0].mxu0
      %v10569 = vpop.f32.mrb[0].mxu0
      %v10570 = vadd.f32 0.0, %v10569
      %v10571 = vpop.f32.mrb[0].mxu0
      %10572 = vmatprep.mubr.bf16.mxu0 0
      %10573 = vmatmul.mubr.bf16.gmra.mrb[0].mxu0 %v10383
      %v10574 = vpop.f32.mrb[0].mxu0
      %v10575 = vadd.f32 0.0, %v10574
      %v10576 = vpop.f32.mrb[0].mxu0
      %v10577 = vpop.f32.mrb[0].mxu0
      %v10578 = vadd.f32 0.0, %v10577
      %v10579 = vpop.f32.mrb[0].mxu0
      %10580 = vmatprep.mubr.bf16.mxu0 0
      %10581 = vmatmul.mubr.bf16.gmra.mrb[0].mxu0 %v10384
      %v10582 = vpop.f32.mrb[0].mxu0
      %v10583 = vadd.f32 0.0, %v10582
      %v10584 = vpop.f32.mrb[0].mxu0
      %v10585 = vpop.f32.mrb[0].mxu0
      %v10586 = vadd.f32 0.0, %v10585
      %v10587 = vpop.f32.mrb[0].mxu0
      %10588 = vmatprep.mubr.bf16.mxu0 0
      %10589 = vmatmul.mubr.bf16.gmra.mrb[0].mxu0 %v10385
      %v10590 = vpop.f32.mrb[0].mxu0
      %v10591 = vadd.f32 0.0, %v10590
      %v10592 = vpop.f32.mrb[0].mxu0
      %v10593 = vpop.f32.mrb[0].mxu0
      %v10594 = vadd.f32 0.0, %v10593
      %v10595 = vpop.f32.mrb[0].mxu0
      %10596 = vmatprep.mubr.bf16.mxu0 0
      %10597 = vmatmul.mubr.bf16.gmra.mrb[0].mxu0 %v10386
      %v10598 = vpop.f32.mrb[0].mxu0
      %v10599 = vadd.f32 0.0, %v10598
      %v10600 = vpop.f32.mrb[0].mxu0
      %v10601 = vpop.f32.mrb[0].mxu0
      %v10602 = vadd.f32 0.0, %v10601
      %v10603 = vpop.f32.mrb[0].mxu0
      %10604 = vmatprep.mubr.bf16.mxu0 0
      %10605 = vmatmul.mubr.bf16.gmra.mrb[0].mxu0 %v10387
      %v10606 = vpop.f32.mrb[0].mxu0
      %v10607 = vadd.f32 0.0, %v10606
      %v10608 = vpop.f32.mrb[0].mxu0
      %v10609 = vpop.f32.mrb[0].mxu0
      %v10610 = vadd.f32 0.0, %v10609
      %v10611 = vpop.f32.mrb[0].mxu0
      %10612 = vdwg.mxu0
      %v10613 = vadd.f32 %v9891, %v10487
      %v10614 = vadd.f32 %v9892, %v10490
      %v10615 = vadd.f32 %v9893, %v10495
      %v10616 = vadd.f32 %v9894, %v10498
      %v10617 = vadd.f32 %v9895, %v10503
      %v10618 = vadd.f32 %v9896, %v10506
      %v10619 = vadd.f32 %v9897, %v10511
      %v10620 = vadd.f32 %v9898, %v10514
      %v10621 = vadd.f32 %v9899, %v10519
      %v10622 = vadd.f32 %v9900, %v10522
      %v10623 = vadd.f32 %v9901, %v10527
      %v10624 = vadd.f32 %v9902, %v10530
      %v10625 = vadd.f32 %v9903, %v10535
      %v10626 = vadd.f32 %v9904, %v10538
      %v10627 = vadd.f32 %v9905, %v10543
      %v10628 = vadd.f32 %v9906, %v10546
      %v10629 = vadd.f32 %v9907, %v10551
      %v10630 = vadd.f32 %v9908, %v10554
      %v10631 = vadd.f32 %v9909, %v10559
      %v10632 = vadd.f32 %v9910, %v10562
      %v10633 = vadd.f32 %v9911, %v10567
      %v10634 = vadd.f32 %v9912, %v10570
      %v10635 = vadd.f32 %v9913, %v10575
      %v10636 = vadd.f32 %v9914, %v10578
      %v10637 = vadd.f32 %v9915, %v10583
      %v10638 = vadd.f32 %v9916, %v10586
      %v10639 = vadd.f32 %v9917, %v10591
      %v10640 = vadd.f32 %v9918, %v10594
      %v10641 = vadd.f32 %v9919, %v10599
      %v10642 = vadd.f32 %v9920, %v10602
      %v10643 = vadd.f32 %v9921, %v10607
      %v10644 = vadd.f32 %v9922, %v10610
      %s10645 = scalar_lea.vmem %s1, 1024
      %v10646 = vld [vmem:[%s10645] sm:$0xf]
      %v10647 = vld [vmem:[%s10645 + $0x4] sm:$0xf]
      %v10648 = vld [vmem:[%s10645 + $0x8] sm:$0xf]
      %v10649 = vld [vmem:[%s10645 + $0xc] sm:$0xf]
      %v10650 = vld [vmem:[%s10645 + $0x10] sm:$0xf]
      %v10651 = vld [vmem:[%s10645 + $0x14] sm:$0xf]
      %v10652 = vld [vmem:[%s10645 + $0x18] sm:$0xf]
      %v10653 = vld [vmem:[%s10645 + $0x1c] sm:$0xf]
      %v10654 = vld [vmem:[%s10645 + $0x20] sm:$0xf]
      %v10655 = vld [vmem:[%s10645 + $0x24] sm:$0xf]
      %v10656 = vld [vmem:[%s10645 + $0x28] sm:$0xf]
      %v10657 = vld [vmem:[%s10645 + $0x2c] sm:$0xf]
      %v10658 = vld [vmem:[%s10645 + $0x30] sm:$0xf]
      %v10659 = vld [vmem:[%s10645 + $0x34] sm:$0xf]
      %v10660 = vld [vmem:[%s10645 + $0x38] sm:$0xf]
      %v10661 = vld [vmem:[%s10645 + $0x3c] sm:$0xf]
      %v10694 = vunpack.c.l.b16 %v9924
      %v10695 = vunpack.c.l.b16 %v9925
      %v10696 = vunpack.c.l.b16 %v9927
      %v10697 = vunpack.c.l.b16 %v9928
      %v10698 = vunpack.c.l.b16 %v9930
      %v10699 = vunpack.c.l.b16 %v9931
      %v10700 = vunpack.c.l.b16 %v9933
      %v10701 = vunpack.c.l.b16 %v9934
      %v10702 = vunpack.c.l.b16 %v9936
      %v10703 = vunpack.c.l.b16 %v9937
      %v10704 = vunpack.c.l.b16 %v9939
      %v10705 = vunpack.c.l.b16 %v9940
      %v10706 = vunpack.c.l.b16 %v9942
      %v10707 = vunpack.c.l.b16 %v9943
      %v10708 = vunpack.c.l.b16 %v9945
      %v10709 = vunpack.c.l.b16 %v9946
      %v10710 = vunpack.c.l.b16 %v9948
      %v10711 = vunpack.c.l.b16 %v9949
      %v10712 = vunpack.c.l.b16 %v9951
      %v10713 = vunpack.c.l.b16 %v9952
      %v10714 = vunpack.c.l.b16 %v9954
      %v10715 = vunpack.c.l.b16 %v9955
      %v10716 = vunpack.c.l.b16 %v9957
      %v10717 = vunpack.c.l.b16 %v9958
      %v10718 = vunpack.c.l.b16 %v9960
      %v10719 = vunpack.c.l.b16 %v9961
      %v10720 = vunpack.c.l.b16 %v9963
      %v10721 = vunpack.c.l.b16 %v9964
      %v10722 = vunpack.c.l.b16 %v9966
      %v10723 = vunpack.c.l.b16 %v9967
      %v10724 = vunpack.c.l.b16 %v9969
      %v10725 = vunpack.c.l.b16 %v9970
      %v10726 = vpack.c.b16 %v10695, %v10694
      %v10727 = vpack.c.b16 %v10697, %v10696
      %v10728 = vpack.c.b16 %v10699, %v10698
      %v10729 = vpack.c.b16 %v10701, %v10700
      %v10730 = vpack.c.b16 %v10703, %v10702
      %v10731 = vpack.c.b16 %v10705, %v10704
      %v10732 = vpack.c.b16 %v10707, %v10706
      %v10733 = vpack.c.b16 %v10709, %v10708
      %v10734 = vpack.c.b16 %v10711, %v10710
      %v10735 = vpack.c.b16 %v10713, %v10712
      %v10736 = vpack.c.b16 %v10715, %v10714
      %v10737 = vpack.c.b16 %v10717, %v10716
      %v10738 = vpack.c.b16 %v10719, %v10718
      %v10739 = vpack.c.b16 %v10721, %v10720
      %v10740 = vpack.c.b16 %v10723, %v10722
      %v10741 = vpack.c.b16 %v10725, %v10724
      %v10774 = vunpack.c.l.b16 %v10646
      %v10775 = vunpack.c.l.b16 %v10647
      %v10776 = vunpack.c.l.b16 %v10648
      %v10777 = vunpack.c.l.b16 %v10649
      %v10778 = vunpack.c.l.b16 %v10650
      %v10779 = vunpack.c.l.b16 %v10651
      %v10780 = vunpack.c.l.b16 %v10652
      %v10781 = vunpack.c.l.b16 %v10653
      %v10782 = vunpack.c.l.b16 %v10654
      %v10783 = vunpack.c.l.b16 %v10655
      %v10784 = vunpack.c.l.b16 %v10656
      %v10785 = vunpack.c.l.b16 %v10657
      %v10786 = vunpack.c.l.b16 %v10658
      %v10787 = vunpack.c.l.b16 %v10659
      %v10788 = vunpack.c.l.b16 %v10660
      %v10789 = vunpack.c.l.b16 %v10661
      %v10790 = vpack.c.b16 %v10775, %v10774
      %v10791 = vpack.c.b16 %v10777, %v10776
      %v10792 = vpack.c.b16 %v10779, %v10778
      %v10793 = vpack.c.b16 %v10781, %v10780
      %v10794 = vpack.c.b16 %v10783, %v10782
      %v10795 = vpack.c.b16 %v10785, %v10784
      %v10796 = vpack.c.b16 %v10787, %v10786
      %v10797 = vpack.c.b16 %v10789, %v10788
      %10806 = vmatprep.subr.bf16.mxu0 0
      %10807 = vmatpush1.bf16.msra.mxu0 %v10790
      %10808 = vmatprep.subr.bf16.mxu0 0
      %10809 = vmatpush1.bf16.msra.mxu0 %v10791
      %10810 = vmatprep.subr.bf16.mxu0 0
      %10811 = vmatpush1.bf16.msra.mxu0 %v10792
      %10812 = vmatprep.subr.bf16.mxu0 0
      %10813 = vmatpush1.bf16.msra.mxu0 %v10793
      %10814 = vmatprep.subr.bf16.mxu0 0
      %10815 = vmatpush1.bf16.msra.mxu0 %v10794
      %10816 = vmatprep.subr.bf16.mxu0 0
      %10817 = vmatpush1.bf16.msra.mxu0 %v10795
      %10818 = vmatprep.subr.bf16.mxu0 0
      %10819 = vmatpush1.bf16.msra.mxu0 %v10796
      %10820 = vmatprep.subr.bf16.mxu0 0
      %10821 = vmatpush1.bf16.msra.mxu0 %v10797
      %10822 = vmatprep.subr.bf16.mxu0 0
      %10823 = vmatpush1.bf16.msra.mxu0 0
      %10824 = vmatprep.subr.bf16.mxu0 0
      %10825 = vmatpush1.bf16.msra.mxu0 0
      %10826 = vmatprep.subr.bf16.mxu0 0
      %10827 = vmatpush1.bf16.msra.mxu0 0
      %10828 = vmatprep.subr.bf16.mxu0 0
      %10829 = vmatpush1.bf16.msra.mxu0 0
      %10830 = vmatprep.subr.bf16.mxu0 0
      %10831 = vmatpush1.bf16.msra.mxu0 0
      %10832 = vmatprep.subr.bf16.mxu0 0
      %10833 = vmatpush1.bf16.msra.mxu0 0
      %10834 = vmatprep.subr.bf16.mxu0 0
      %10835 = vmatpush1.bf16.msra.mxu0 0
      %10836 = vmatprep.subr.bf16.mxu0 0
      %10837 = vmatpush1.bf16.msra.mxu0 0
      %10838 = vmatprep.mubr.bf16.mxu0 0
      %10839 = vmatmul.mubr.bf16.gmra.mrb[0].mxu0 %v10726
      %v10840 = vpop.f32.mrb[0].mxu0
      %v10841 = vadd.f32 0.0, %v10840
      %v10842 = vpop.f32.mrb[0].mxu0
      %v10843 = vpop.f32.mrb[0].mxu0
      %v10844 = vadd.f32 0.0, %v10843
      %v10845 = vpop.f32.mrb[0].mxu0
      %10846 = vmatprep.mubr.bf16.mxu0 0
      %10847 = vmatmul.mubr.bf16.gmra.mrb[0].mxu0 %v10727
      %v10848 = vpop.f32.mrb[0].mxu0
      %v10849 = vadd.f32 0.0, %v10848
      %v10850 = vpop.f32.mrb[0].mxu0
      %v10851 = vpop.f32.mrb[0].mxu0
      %v10852 = vadd.f32 0.0, %v10851
      %v10853 = vpop.f32.mrb[0].mxu0
      %10854 = vmatprep.mubr.bf16.mxu0 0
      %10855 = vmatmul.mubr.bf16.gmra.mrb[0].mxu0 %v10728
      %v10856 = vpop.f32.mrb[0].mxu0
      %v10857 = vadd.f32 0.0, %v10856
      %v10858 = vpop.f32.mrb[0].mxu0
      %v10859 = vpop.f32.mrb[0].mxu0
      %v10860 = vadd.f32 0.0, %v10859
      %v10861 = vpop.f32.mrb[0].mxu0
      %10862 = vmatprep.mubr.bf16.mxu0 0
      %10863 = vmatmul.mubr.bf16.gmra.mrb[0].mxu0 %v10729
      %v10864 = vpop.f32.mrb[0].mxu0
      %v10865 = vadd.f32 0.0, %v10864
      %v10866 = vpop.f32.mrb[0].mxu0
      %v10867 = vpop.f32.mrb[0].mxu0
      %v10868 = vadd.f32 0.0, %v10867
      %v10869 = vpop.f32.mrb[0].mxu0
      %10870 = vmatprep.mubr.bf16.mxu0 0
      %10871 = vmatmul.mubr.bf16.gmra.mrb[0].mxu0 %v10730
      %v10872 = vpop.f32.mrb[0].mxu0
      %v10873 = vadd.f32 0.0, %v10872
      %v10874 = vpop.f32.mrb[0].mxu0
      %v10875 = vpop.f32.mrb[0].mxu0
      %v10876 = vadd.f32 0.0, %v10875
      %v10877 = vpop.f32.mrb[0].mxu0
      %10878 = vmatprep.mubr.bf16.mxu0 0
      %10879 = vmatmul.mubr.bf16.gmra.mrb[0].mxu0 %v10731
      %v10880 = vpop.f32.mrb[0].mxu0
      %v10881 = vadd.f32 0.0, %v10880
      %v10882 = vpop.f32.mrb[0].mxu0
      %v10883 = vpop.f32.mrb[0].mxu0
      %v10884 = vadd.f32 0.0, %v10883
      %v10885 = vpop.f32.mrb[0].mxu0
      %10886 = vmatprep.mubr.bf16.mxu0 0
      %10887 = vmatmul.mubr.bf16.gmra.mrb[0].mxu0 %v10732
      %v10888 = vpop.f32.mrb[0].mxu0
      %v10889 = vadd.f32 0.0, %v10888
      %v10890 = vpop.f32.mrb[0].mxu0
      %v10891 = vpop.f32.mrb[0].mxu0
      %v10892 = vadd.f32 0.0, %v10891
      %v10893 = vpop.f32.mrb[0].mxu0
      %10894 = vmatprep.mubr.bf16.mxu0 0
      %10895 = vmatmul.mubr.bf16.gmra.mrb[0].mxu0 %v10733
      %v10896 = vpop.f32.mrb[0].mxu0
      %v10897 = vadd.f32 0.0, %v10896
      %v10898 = vpop.f32.mrb[0].mxu0
      %v10899 = vpop.f32.mrb[0].mxu0
      %v10900 = vadd.f32 0.0, %v10899
      %v10901 = vpop.f32.mrb[0].mxu0
      %10902 = vmatprep.mubr.bf16.mxu0 0
      %10903 = vmatmul.mubr.bf16.gmra.mrb[0].mxu0 %v10734
      %v10904 = vpop.f32.mrb[0].mxu0
      %v10905 = vadd.f32 0.0, %v10904
      %v10906 = vpop.f32.mrb[0].mxu0
      %v10907 = vpop.f32.mrb[0].mxu0
      %v10908 = vadd.f32 0.0, %v10907
      %v10909 = vpop.f32.mrb[0].mxu0
      %10910 = vmatprep.mubr.bf16.mxu0 0
      %10911 = vmatmul.mubr.bf16.gmra.mrb[0].mxu0 %v10735
      %v10912 = vpop.f32.mrb[0].mxu0
      %v10913 = vadd.f32 0.0, %v10912
      %v10914 = vpop.f32.mrb[0].mxu0
      %v10915 = vpop.f32.mrb[0].mxu0
      %v10916 = vadd.f32 0.0, %v10915
      %v10917 = vpop.f32.mrb[0].mxu0
      %10918 = vmatprep.mubr.bf16.mxu0 0
      %10919 = vmatmul.mubr.bf16.gmra.mrb[0].mxu0 %v10736
      %v10920 = vpop.f32.mrb[0].mxu0
      %v10921 = vadd.f32 0.0, %v10920
      %v10922 = vpop.f32.mrb[0].mxu0
      %v10923 = vpop.f32.mrb[0].mxu0
      %v10924 = vadd.f32 0.0, %v10923
      %v10925 = vpop.f32.mrb[0].mxu0
      %10926 = vmatprep.mubr.bf16.mxu0 0
      %10927 = vmatmul.mubr.bf16.gmra.mrb[0].mxu0 %v10737
      %v10928 = vpop.f32.mrb[0].mxu0
      %v10929 = vadd.f32 0.0, %v10928
      %v10930 = vpop.f32.mrb[0].mxu0
      %v10931 = vpop.f32.mrb[0].mxu0
      %v10932 = vadd.f32 0.0, %v10931
      %v10933 = vpop.f32.mrb[0].mxu0
      %10934 = vmatprep.mubr.bf16.mxu0 0
      %10935 = vmatmul.mubr.bf16.gmra.mrb[0].mxu0 %v10738
      %v10936 = vpop.f32.mrb[0].mxu0
      %v10937 = vadd.f32 0.0, %v10936
      %v10938 = vpop.f32.mrb[0].mxu0
      %v10939 = vpop.f32.mrb[0].mxu0
      %v10940 = vadd.f32 0.0, %v10939
      %v10941 = vpop.f32.mrb[0].mxu0
      %10942 = vmatprep.mubr.bf16.mxu0 0
      %10943 = vmatmul.mubr.bf16.gmra.mrb[0].mxu0 %v10739
      %v10944 = vpop.f32.mrb[0].mxu0
      %v10945 = vadd.f32 0.0, %v10944
      %v10946 = vpop.f32.mrb[0].mxu0
      %v10947 = vpop.f32.mrb[0].mxu0
      %v10948 = vadd.f32 0.0, %v10947
      %v10949 = vpop.f32.mrb[0].mxu0
      %10950 = vmatprep.mubr.bf16.mxu0 0
      %10951 = vmatmul.mubr.bf16.gmra.mrb[0].mxu0 %v10740
      %v10952 = vpop.f32.mrb[0].mxu0
      %v10953 = vadd.f32 0.0, %v10952
      %v10954 = vpop.f32.mrb[0].mxu0
      %v10955 = vpop.f32.mrb[0].mxu0
      %v10956 = vadd.f32 0.0, %v10955
      %v10957 = vpop.f32.mrb[0].mxu0
      %10958 = vmatprep.mubr.bf16.mxu0 0
      %10959 = vmatmul.mubr.bf16.gmra.mrb[0].mxu0 %v10741
      %v10960 = vpop.f32.mrb[0].mxu0
      %v10961 = vadd.f32 0.0, %v10960
      %v10962 = vpop.f32.mrb[0].mxu0
      %v10963 = vpop.f32.mrb[0].mxu0
      %v10964 = vadd.f32 0.0, %v10963
      %v10965 = vpop.f32.mrb[0].mxu0
      %10966 = vdwg.mxu0
      %v10967 = vadd.f32 %v10613, %v10841
      %v10968 = vadd.f32 %v10614, %v10844
      %v10969 = vadd.f32 %v10615, %v10849
      %v10970 = vadd.f32 %v10616, %v10852
      %v10971 = vadd.f32 %v10617, %v10857
      %v10972 = vadd.f32 %v10618, %v10860
      %v10973 = vadd.f32 %v10619, %v10865
      %v10974 = vadd.f32 %v10620, %v10868
      %v10975 = vadd.f32 %v10621, %v10873
      %v10976 = vadd.f32 %v10622, %v10876
      %v10977 = vadd.f32 %v10623, %v10881
      %v10978 = vadd.f32 %v10624, %v10884
      %v10979 = vadd.f32 %v10625, %v10889
      %v10980 = vadd.f32 %v10626, %v10892
      %v10981 = vadd.f32 %v10627, %v10897
      %v10982 = vadd.f32 %v10628, %v10900
      %v10983 = vadd.f32 %v10629, %v10905
      %v10984 = vadd.f32 %v10630, %v10908
      %v10985 = vadd.f32 %v10631, %v10913
      %v10986 = vadd.f32 %v10632, %v10916
      %v10987 = vadd.f32 %v10633, %v10921
      %v10988 = vadd.f32 %v10634, %v10924
      %v10989 = vadd.f32 %v10635, %v10929
      %v10990 = vadd.f32 %v10636, %v10932
      %v10991 = vadd.f32 %v10637, %v10937
      %v10992 = vadd.f32 %v10638, %v10940
      %v10993 = vadd.f32 %v10639, %v10945
      %v10994 = vadd.f32 %v10640, %v10948
      %v10995 = vadd.f32 %v10641, %v10953
      %v10996 = vadd.f32 %v10642, %v10956
      %v10997 = vadd.f32 %v10643, %v10961
      %v10998 = vadd.f32 %v10644, %v10964
      %v10999 = vld [vmem:[%s4136 + $0x8] sm:$0xf]
      %v11000 = vld [vmem:[%s4136 + $0xc] sm:$0xf]
      %v11001 = vld [vmem:[%s4136 + $0x10] sm:$0x1]
      %v11002 = vld [vmem:[%s4136 + $0x1c] sm:$0xf]
      %v11003 = vld [vmem:[%s4136 + $0x20] sm:$0xf]
      %v11004 = vld [vmem:[%s4136 + $0x24] sm:$0x1]
      %v11005 = vld [vmem:[%s4136 + $0x30] sm:$0xf]
      %v11006 = vld [vmem:[%s4136 + $0x34] sm:$0xf]
      %v11007 = vld [vmem:[%s4136 + $0x38] sm:$0x1]
      %v11008 = vld [vmem:[%s4136 + $0x44] sm:$0xf]
      %v11009 = vld [vmem:[%s4136 + $0x48] sm:$0xf]
      %v11010 = vld [vmem:[%s4136 + $0x4c] sm:$0x1]
      %v11011 = vld [vmem:[%s4136 + $0x58] sm:$0xf]
      %v11012 = vld [vmem:[%s4136 + $0x5c] sm:$0xf]
      %v11013 = vld [vmem:[%s4136 + $0x60] sm:$0x1]
      %v11014 = vld [vmem:[%s4136 + $0x6c] sm:$0xf]
      %v11015 = vld [vmem:[%s4136 + $0x70] sm:$0xf]
      %v11016 = vld [vmem:[%s4136 + $0x74] sm:$0x1]
      %v11017 = vld [vmem:[%s4136 + $0x80] sm:$0xf]
      %v11018 = vld [vmem:[%s4136 + $0x84] sm:$0xf]
      %v11019 = vld [vmem:[%s4136 + $0x88] sm:$0x1]
      %v11020 = vld [vmem:[%s4136 + $0x94] sm:$0xf]
      %v11021 = vld [vmem:[%s4136 + $0x98] sm:$0xf]
      %v11022 = vld [vmem:[%s4136 + $0x9c] sm:$0x1]
      %v11023 = vld [vmem:[%s4136 + $0xa8] sm:$0xf]
      %v11024 = vld [vmem:[%s4136 + $0xac] sm:$0xf]
      %v11025 = vld [vmem:[%s4136 + $0xb0] sm:$0x1]
      %v11026 = vld [vmem:[%s4136 + $0xbc] sm:$0xf]
      %v11027 = vld [vmem:[%s4136 + $0xc0] sm:$0xf]
      %v11028 = vld [vmem:[%s4136 + $0xc4] sm:$0x1]
      %v11029 = vld [vmem:[%s4136 + $0xd0] sm:$0xf]
      %v11030 = vld [vmem:[%s4136 + $0xd4] sm:$0xf]
      %v11031 = vld [vmem:[%s4136 + $0xd8] sm:$0x1]
      %v11032 = vld [vmem:[%s4136 + $0xe4] sm:$0xf]
      %v11033 = vld [vmem:[%s4136 + $0xe8] sm:$0xf]
      %v11034 = vld [vmem:[%s4136 + $0xec] sm:$0x1]
      %v11035 = vld [vmem:[%s4136 + $0xf8] sm:$0xf]
      %v11036 = vld [vmem:[%s4136 + $0xfc] sm:$0xf]
      %v11037 = vld [vmem:[%s4136 + $0x100] sm:$0x1]
      %v11038 = vld [vmem:[%s4136 + $0x10c] sm:$0xf]
      %v11039 = vld [vmem:[%s4136 + $0x110] sm:$0xf]
      %v11040 = vld [vmem:[%s4136 + $0x114] sm:$0x1]
      %v11041 = vld [vmem:[%s4136 + $0x120] sm:$0xf]
      %v11042 = vld [vmem:[%s4136 + $0x124] sm:$0xf]
      %v11043 = vld [vmem:[%s4136 + $0x128] sm:$0x1]
      %v11044 = vld [vmem:[%s4136 + $0x134] sm:$0xf]
      %v11045 = vld [vmem:[%s4136 + $0x138] sm:$0xf]
      %v11046 = vld [vmem:[%s4136 + $0x13c] sm:$0x1]
      %v11048 = vshrl.u32 %v10999, 16
      %v11050 = vrot.slane %v11048, 4
      %v11051 = vshll.u32 %v10999, 16
      %v11053 = vrot.slane %v11051, 5
      %v11054 = vor.u32 %v11050, %v11053
      %v11055 = vrot.slane %v11054, 4
      %v11057 = vshll.u32 %v11000, 16
      %v11059 = vrot.slane %v11057, 5
      %v11060 = vsel %vm1599, %v11055, %v11059
      %v11061 = vshrl.u32 %v11000, 16
      %v11063 = vrot.slane %v11061, 4
      %v11064 = vor.u32 %v11063, %v11059
      %v11065 = vrot.slane %v11064, 4
      %v11067 = vshll.u32 %v11001, 16
      %v11069 = vrot.slane %v11067, 5
      %v11070 = vsel %vm1599, %v11065, %v11069
      %v11072 = vshrl.u32 %v11002, 16
      %v11074 = vrot.slane %v11072, 4
      %v11075 = vshll.u32 %v11002, 16
      %v11077 = vrot.slane %v11075, 5
      %v11078 = vor.u32 %v11074, %v11077
      %v11079 = vrot.slane %v11078, 4
      %v11081 = vshll.u32 %v11003, 16
      %v11083 = vrot.slane %v11081, 5
      %v11084 = vsel %vm1599, %v11079, %v11083
      %v11085 = vshrl.u32 %v11003, 16
      %v11087 = vrot.slane %v11085, 4
      %v11088 = vor.u32 %v11087, %v11083
      %v11089 = vrot.slane %v11088, 4
      %v11091 = vshll.u32 %v11004, 16
      %v11093 = vrot.slane %v11091, 5
      %v11094 = vsel %vm1599, %v11089, %v11093
      %v11096 = vshrl.u32 %v11005, 16
      %v11098 = vrot.slane %v11096, 4
      %v11099 = vshll.u32 %v11005, 16
      %v11101 = vrot.slane %v11099, 5
      %v11102 = vor.u32 %v11098, %v11101
      %v11103 = vrot.slane %v11102, 4
      %v11105 = vshll.u32 %v11006, 16
      %v11107 = vrot.slane %v11105, 5
      %v11108 = vsel %vm1599, %v11103, %v11107
      %v11109 = vshrl.u32 %v11006, 16
      %v11111 = vrot.slane %v11109, 4
      %v11112 = vor.u32 %v11111, %v11107
      %v11113 = vrot.slane %v11112, 4
      %v11115 = vshll.u32 %v11007, 16
      %v11117 = vrot.slane %v11115, 5
      %v11118 = vsel %vm1599, %v11113, %v11117
      %v11120 = vshrl.u32 %v11008, 16
      %v11122 = vrot.slane %v11120, 4
      %v11123 = vshll.u32 %v11008, 16
      %v11125 = vrot.slane %v11123, 5
      %v11126 = vor.u32 %v11122, %v11125
      %v11127 = vrot.slane %v11126, 4
      %v11129 = vshll.u32 %v11009, 16
      %v11131 = vrot.slane %v11129, 5
      %v11132 = vsel %vm1599, %v11127, %v11131
      %v11133 = vshrl.u32 %v11009, 16
      %v11135 = vrot.slane %v11133, 4
      %v11136 = vor.u32 %v11135, %v11131
      %v11137 = vrot.slane %v11136, 4
      %v11139 = vshll.u32 %v11010, 16
      %v11141 = vrot.slane %v11139, 5
      %v11142 = vsel %vm1599, %v11137, %v11141
      %v11144 = vshrl.u32 %v11011, 16
      %v11146 = vrot.slane %v11144, 4
      %v11147 = vshll.u32 %v11011, 16
      %v11149 = vrot.slane %v11147, 5
      %v11150 = vor.u32 %v11146, %v11149
      %v11151 = vrot.slane %v11150, 4
      %v11153 = vshll.u32 %v11012, 16
      %v11155 = vrot.slane %v11153, 5
      %v11156 = vsel %vm1599, %v11151, %v11155
      %v11157 = vshrl.u32 %v11012, 16
      %v11159 = vrot.slane %v11157, 4
      %v11160 = vor.u32 %v11159, %v11155
      %v11161 = vrot.slane %v11160, 4
      %v11163 = vshll.u32 %v11013, 16
      %v11165 = vrot.slane %v11163, 5
      %v11166 = vsel %vm1599, %v11161, %v11165
      %v11168 = vshrl.u32 %v11014, 16
      %v11170 = vrot.slane %v11168, 4
      %v11171 = vshll.u32 %v11014, 16
      %v11173 = vrot.slane %v11171, 5
      %v11174 = vor.u32 %v11170, %v11173
      %v11175 = vrot.slane %v11174, 4
      %v11177 = vshll.u32 %v11015, 16
      %v11179 = vrot.slane %v11177, 5
      %v11180 = vsel %vm1599, %v11175, %v11179
      %v11181 = vshrl.u32 %v11015, 16
      %v11183 = vrot.slane %v11181, 4
      %v11184 = vor.u32 %v11183, %v11179
      %v11185 = vrot.slane %v11184, 4
      %v11187 = vshll.u32 %v11016, 16
      %v11189 = vrot.slane %v11187, 5
      %v11190 = vsel %vm1599, %v11185, %v11189
      %v11192 = vshrl.u32 %v11017, 16
      %v11194 = vrot.slane %v11192, 4
      %v11195 = vshll.u32 %v11017, 16
      %v11197 = vrot.slane %v11195, 5
      %v11198 = vor.u32 %v11194, %v11197
      %v11199 = vrot.slane %v11198, 4
      %v11201 = vshll.u32 %v11018, 16
      %v11203 = vrot.slane %v11201, 5
      %v11204 = vsel %vm1599, %v11199, %v11203
      %v11205 = vshrl.u32 %v11018, 16
      %v11207 = vrot.slane %v11205, 4
      %v11208 = vor.u32 %v11207, %v11203
      %v11209 = vrot.slane %v11208, 4
      %v11211 = vshll.u32 %v11019, 16
      %v11213 = vrot.slane %v11211, 5
      %v11214 = vsel %vm1599, %v11209, %v11213
      %v11216 = vshrl.u32 %v11020, 16
      %v11218 = vrot.slane %v11216, 4
      %v11219 = vshll.u32 %v11020, 16
      %v11221 = vrot.slane %v11219, 5
      %v11222 = vor.u32 %v11218, %v11221
      %v11223 = vrot.slane %v11222, 4
      %v11225 = vshll.u32 %v11021, 16
      %v11227 = vrot.slane %v11225, 5
      %v11228 = vsel %vm1599, %v11223, %v11227
      %v11229 = vshrl.u32 %v11021, 16
      %v11231 = vrot.slane %v11229, 4
      %v11232 = vor.u32 %v11231, %v11227
      %v11233 = vrot.slane %v11232, 4
      %v11235 = vshll.u32 %v11022, 16
      %v11237 = vrot.slane %v11235, 5
      %v11238 = vsel %vm1599, %v11233, %v11237
      %v11240 = vshrl.u32 %v11023, 16
      %v11242 = vrot.slane %v11240, 4
      %v11243 = vshll.u32 %v11023, 16
      %v11245 = vrot.slane %v11243, 5
      %v11246 = vor.u32 %v11242, %v11245
      %v11247 = vrot.slane %v11246, 4
      %v11249 = vshll.u32 %v11024, 16
      %v11251 = vrot.slane %v11249, 5
      %v11252 = vsel %vm1599, %v11247, %v11251
      %v11253 = vshrl.u32 %v11024, 16
      %v11255 = vrot.slane %v11253, 4
      %v11256 = vor.u32 %v11255, %v11251
      %v11257 = vrot.slane %v11256, 4
      %v11259 = vshll.u32 %v11025, 16
      %v11261 = vrot.slane %v11259, 5
      %v11262 = vsel %vm1599, %v11257, %v11261
      %v11264 = vshrl.u32 %v11026, 16
      %v11266 = vrot.slane %v11264, 4
      %v11267 = vshll.u32 %v11026, 16
      %v11269 = vrot.slane %v11267, 5
      %v11270 = vor.u32 %v11266, %v11269
      %v11271 = vrot.slane %v11270, 4
      %v11273 = vshll.u32 %v11027, 16
      %v11275 = vrot.slane %v11273, 5
      %v11276 = vsel %vm1599, %v11271, %v11275
      %v11277 = vshrl.u32 %v11027, 16
      %v11279 = vrot.slane %v11277, 4
      %v11280 = vor.u32 %v11279, %v11275
      %v11281 = vrot.slane %v11280, 4
      %v11283 = vshll.u32 %v11028, 16
      %v11285 = vrot.slane %v11283, 5
      %v11286 = vsel %vm1599, %v11281, %v11285
      %v11288 = vshrl.u32 %v11029, 16
      %v11290 = vrot.slane %v11288, 4
      %v11291 = vshll.u32 %v11029, 16
      %v11293 = vrot.slane %v11291, 5
      %v11294 = vor.u32 %v11290, %v11293
      %v11295 = vrot.slane %v11294, 4
      %v11297 = vshll.u32 %v11030, 16
      %v11299 = vrot.slane %v11297, 5
      %v11300 = vsel %vm1599, %v11295, %v11299
      %v11301 = vshrl.u32 %v11030, 16
      %v11303 = vrot.slane %v11301, 4
      %v11304 = vor.u32 %v11303, %v11299
      %v11305 = vrot.slane %v11304, 4
      %v11307 = vshll.u32 %v11031, 16
      %v11309 = vrot.slane %v11307, 5
      %v11310 = vsel %vm1599, %v11305, %v11309
      %v11312 = vshrl.u32 %v11032, 16
      %v11314 = vrot.slane %v11312, 4
      %v11315 = vshll.u32 %v11032, 16
      %v11317 = vrot.slane %v11315, 5
      %v11318 = vor.u32 %v11314, %v11317
      %v11319 = vrot.slane %v11318, 4
      %v11321 = vshll.u32 %v11033, 16
      %v11323 = vrot.slane %v11321, 5
      %v11324 = vsel %vm1599, %v11319, %v11323
      %v11325 = vshrl.u32 %v11033, 16
      %v11327 = vrot.slane %v11325, 4
      %v11328 = vor.u32 %v11327, %v11323
      %v11329 = vrot.slane %v11328, 4
      %v11331 = vshll.u32 %v11034, 16
      %v11333 = vrot.slane %v11331, 5
      %v11334 = vsel %vm1599, %v11329, %v11333
      %v11336 = vshrl.u32 %v11035, 16
      %v11338 = vrot.slane %v11336, 4
      %v11339 = vshll.u32 %v11035, 16
      %v11341 = vrot.slane %v11339, 5
      %v11342 = vor.u32 %v11338, %v11341
      %v11343 = vrot.slane %v11342, 4
      %v11345 = vshll.u32 %v11036, 16
      %v11347 = vrot.slane %v11345, 5
      %v11348 = vsel %vm1599, %v11343, %v11347
      %v11349 = vshrl.u32 %v11036, 16
      %v11351 = vrot.slane %v11349, 4
      %v11352 = vor.u32 %v11351, %v11347
      %v11353 = vrot.slane %v11352, 4
      %v11355 = vshll.u32 %v11037, 16
      %v11357 = vrot.slane %v11355, 5
      %v11358 = vsel %vm1599, %v11353, %v11357
      %v11360 = vshrl.u32 %v11038, 16
      %v11362 = vrot.slane %v11360, 4
      %v11363 = vshll.u32 %v11038, 16
      %v11365 = vrot.slane %v11363, 5
      %v11366 = vor.u32 %v11362, %v11365
      %v11367 = vrot.slane %v11366, 4
      %v11369 = vshll.u32 %v11039, 16
      %v11371 = vrot.slane %v11369, 5
      %v11372 = vsel %vm1599, %v11367, %v11371
      %v11373 = vshrl.u32 %v11039, 16
      %v11375 = vrot.slane %v11373, 4
      %v11376 = vor.u32 %v11375, %v11371
      %v11377 = vrot.slane %v11376, 4
      %v11379 = vshll.u32 %v11040, 16
      %v11381 = vrot.slane %v11379, 5
      %v11382 = vsel %vm1599, %v11377, %v11381
      %v11384 = vshrl.u32 %v11041, 16
      %v11386 = vrot.slane %v11384, 4
      %v11387 = vshll.u32 %v11041, 16
      %v11389 = vrot.slane %v11387, 5
      %v11390 = vor.u32 %v11386, %v11389
      %v11391 = vrot.slane %v11390, 4
      %v11393 = vshll.u32 %v11042, 16
      %v11395 = vrot.slane %v11393, 5
      %v11396 = vsel %vm1599, %v11391, %v11395
      %v11397 = vshrl.u32 %v11042, 16
      %v11399 = vrot.slane %v11397, 4
      %v11400 = vor.u32 %v11399, %v11395
      %v11401 = vrot.slane %v11400, 4
      %v11403 = vshll.u32 %v11043, 16
      %v11405 = vrot.slane %v11403, 5
      %v11406 = vsel %vm1599, %v11401, %v11405
      %v11408 = vshrl.u32 %v11044, 16
      %v11410 = vrot.slane %v11408, 4
      %v11411 = vshll.u32 %v11044, 16
      %v11413 = vrot.slane %v11411, 5
      %v11414 = vor.u32 %v11410, %v11413
      %v11415 = vrot.slane %v11414, 4
      %v11417 = vshll.u32 %v11045, 16
      %v11419 = vrot.slane %v11417, 5
      %v11420 = vsel %vm1599, %v11415, %v11419
      %v11421 = vshrl.u32 %v11045, 16
      %v11423 = vrot.slane %v11421, 4
      %v11424 = vor.u32 %v11423, %v11419
      %v11425 = vrot.slane %v11424, 4
      %v11427 = vshll.u32 %v11046, 16
      %v11429 = vrot.slane %v11427, 5
      %v11430 = vsel %vm1599, %v11425, %v11429
      %s11431 = scalar_lea.vmem %s1, 1088
      %v11432 = vld [vmem:[%s11431] sm:$0xf]
      %v11433 = vld [vmem:[%s11431 + $0x4] sm:$0xf]
      %v11434 = vld [vmem:[%s11431 + $0x8] sm:$0xf]
      %v11435 = vld [vmem:[%s11431 + $0xc] sm:$0xf]
      %v11436 = vld [vmem:[%s11431 + $0x10] sm:$0xf]
      %v11437 = vld [vmem:[%s11431 + $0x14] sm:$0xf]
      %v11438 = vld [vmem:[%s11431 + $0x18] sm:$0xf]
      %v11439 = vld [vmem:[%s11431 + $0x1c] sm:$0xf]
      %v11440 = vld [vmem:[%s11431 + $0x20] sm:$0xf]
      %v11441 = vld [vmem:[%s11431 + $0x24] sm:$0xf]
      %v11442 = vld [vmem:[%s11431 + $0x28] sm:$0xf]
      %v11443 = vld [vmem:[%s11431 + $0x2c] sm:$0xf]
      %v11444 = vld [vmem:[%s11431 + $0x30] sm:$0xf]
      %v11445 = vld [vmem:[%s11431 + $0x34] sm:$0xf]
      %v11446 = vld [vmem:[%s11431 + $0x38] sm:$0xf]
      %v11447 = vld [vmem:[%s11431 + $0x3c] sm:$0xf]
      %v11448 = vunpack.c.l.b16 %v11060
      %v11449 = vunpack.c.l.b16 %v11070
      %v11450 = vunpack.c.l.b16 %v11084
      %v11451 = vunpack.c.l.b16 %v11094
      %v11452 = vunpack.c.l.b16 %v11108
      %v11453 = vunpack.c.l.b16 %v11118
      %v11454 = vunpack.c.l.b16 %v11132
      %v11455 = vunpack.c.l.b16 %v11142
      %v11456 = vunpack.c.l.b16 %v11156
      %v11457 = vunpack.c.l.b16 %v11166
      %v11458 = vunpack.c.l.b16 %v11180
      %v11459 = vunpack.c.l.b16 %v11190
      %v11460 = vunpack.c.l.b16 %v11204
      %v11461 = vunpack.c.l.b16 %v11214
      %v11462 = vunpack.c.l.b16 %v11228
      %v11463 = vunpack.c.l.b16 %v11238
      %v11464 = vunpack.c.l.b16 %v11252
      %v11465 = vunpack.c.l.b16 %v11262
      %v11466 = vunpack.c.l.b16 %v11276
      %v11467 = vunpack.c.l.b16 %v11286
      %v11468 = vunpack.c.l.b16 %v11300
      %v11469 = vunpack.c.l.b16 %v11310
      %v11470 = vunpack.c.l.b16 %v11324
      %v11471 = vunpack.c.l.b16 %v11334
      %v11472 = vunpack.c.l.b16 %v11348
      %v11473 = vunpack.c.l.b16 %v11358
      %v11474 = vunpack.c.l.b16 %v11372
      %v11475 = vunpack.c.l.b16 %v11382
      %v11476 = vunpack.c.l.b16 %v11396
      %v11477 = vunpack.c.l.b16 %v11406
      %v11478 = vunpack.c.l.b16 %v11420
      %v11479 = vunpack.c.l.b16 %v11430
      %v11480 = vpack.c.b16 %v11449, %v11448
      %v11481 = vpack.c.b16 %v11451, %v11450
      %v11482 = vpack.c.b16 %v11453, %v11452
      %v11483 = vpack.c.b16 %v11455, %v11454
      %v11484 = vpack.c.b16 %v11457, %v11456
      %v11485 = vpack.c.b16 %v11459, %v11458
      %v11486 = vpack.c.b16 %v11461, %v11460
      %v11487 = vpack.c.b16 %v11463, %v11462
      %v11488 = vpack.c.b16 %v11465, %v11464
      %v11489 = vpack.c.b16 %v11467, %v11466
      %v11490 = vpack.c.b16 %v11469, %v11468
      %v11491 = vpack.c.b16 %v11471, %v11470
      %v11492 = vpack.c.b16 %v11473, %v11472
      %v11493 = vpack.c.b16 %v11475, %v11474
      %v11494 = vpack.c.b16 %v11477, %v11476
      %v11495 = vpack.c.b16 %v11479, %v11478
      %v11528 = vunpack.c.l.b16 %v11432
      %v11529 = vunpack.c.l.b16 %v11433
      %v11530 = vunpack.c.l.b16 %v11434
      %v11531 = vunpack.c.l.b16 %v11435
      %v11532 = vunpack.c.l.b16 %v11436
      %v11533 = vunpack.c.l.b16 %v11437
      %v11534 = vunpack.c.l.b16 %v11438
      %v11535 = vunpack.c.l.b16 %v11439
      %v11536 = vunpack.c.l.b16 %v11440
      %v11537 = vunpack.c.l.b16 %v11441
      %v11538 = vunpack.c.l.b16 %v11442
      %v11539 = vunpack.c.l.b16 %v11443
      %v11540 = vunpack.c.l.b16 %v11444
      %v11541 = vunpack.c.l.b16 %v11445
      %v11542 = vunpack.c.l.b16 %v11446
      %v11543 = vunpack.c.l.b16 %v11447
      %v11544 = vpack.c.b16 %v11529, %v11528
      %v11545 = vpack.c.b16 %v11531, %v11530
      %v11546 = vpack.c.b16 %v11533, %v11532
      %v11547 = vpack.c.b16 %v11535, %v11534
      %v11548 = vpack.c.b16 %v11537, %v11536
      %v11549 = vpack.c.b16 %v11539, %v11538
      %v11550 = vpack.c.b16 %v11541, %v11540
      %v11551 = vpack.c.b16 %v11543, %v11542
      %11560 = vmatprep.subr.bf16.mxu0 0
      %11561 = vmatpush1.bf16.msra.mxu0 %v11544
      %11562 = vmatprep.subr.bf16.mxu0 0
      %11563 = vmatpush1.bf16.msra.mxu0 %v11545
      %11564 = vmatprep.subr.bf16.mxu0 0
      %11565 = vmatpush1.bf16.msra.mxu0 %v11546
      %11566 = vmatprep.subr.bf16.mxu0 0
      %11567 = vmatpush1.bf16.msra.mxu0 %v11547
      %11568 = vmatprep.subr.bf16.mxu0 0
      %11569 = vmatpush1.bf16.msra.mxu0 %v11548
      %11570 = vmatprep.subr.bf16.mxu0 0
      %11571 = vmatpush1.bf16.msra.mxu0 %v11549
      %11572 = vmatprep.subr.bf16.mxu0 0
      %11573 = vmatpush1.bf16.msra.mxu0 %v11550
      %11574 = vmatprep.subr.bf16.mxu0 0
      %11575 = vmatpush1.bf16.msra.mxu0 %v11551
      %11576 = vmatprep.subr.bf16.mxu0 0
      %11577 = vmatpush1.bf16.msra.mxu0 0
      %11578 = vmatprep.subr.bf16.mxu0 0
      %11579 = vmatpush1.bf16.msra.mxu0 0
      %11580 = vmatprep.subr.bf16.mxu0 0
      %11581 = vmatpush1.bf16.msra.mxu0 0
      %11582 = vmatprep.subr.bf16.mxu0 0
      %11583 = vmatpush1.bf16.msra.mxu0 0
      %11584 = vmatprep.subr.bf16.mxu0 0
      %11585 = vmatpush1.bf16.msra.mxu0 0
      %11586 = vmatprep.subr.bf16.mxu0 0
      %11587 = vmatpush1.bf16.msra.mxu0 0
      %11588 = vmatprep.subr.bf16.mxu0 0
      %11589 = vmatpush1.bf16.msra.mxu0 0
      %11590 = vmatprep.subr.bf16.mxu0 0
      %11591 = vmatpush1.bf16.msra.mxu0 0
      %11592 = vmatprep.mubr.bf16.mxu0 0
      %11593 = vmatmul.mubr.bf16.gmra.mrb[0].mxu0 %v11480
      %v11594 = vpop.f32.mrb[0].mxu0
      %v11595 = vadd.f32 0.0, %v11594
      %v11596 = vpop.f32.mrb[0].mxu0
      %v11597 = vpop.f32.mrb[0].mxu0
      %v11598 = vadd.f32 0.0, %v11597
      %v11599 = vpop.f32.mrb[0].mxu0
      %11600 = vmatprep.mubr.bf16.mxu0 0
      %11601 = vmatmul.mubr.bf16.gmra.mrb[0].mxu0 %v11481
      %v11602 = vpop.f32.mrb[0].mxu0
      %v11603 = vadd.f32 0.0, %v11602
      %v11604 = vpop.f32.mrb[0].mxu0
      %v11605 = vpop.f32.mrb[0].mxu0
      %v11606 = vadd.f32 0.0, %v11605
      %v11607 = vpop.f32.mrb[0].mxu0
      %11608 = vmatprep.mubr.bf16.mxu0 0
      %11609 = vmatmul.mubr.bf16.gmra.mrb[0].mxu0 %v11482
      %v11610 = vpop.f32.mrb[0].mxu0
      %v11611 = vadd.f32 0.0, %v11610
      %v11612 = vpop.f32.mrb[0].mxu0
      %v11613 = vpop.f32.mrb[0].mxu0
      %v11614 = vadd.f32 0.0, %v11613
      %v11615 = vpop.f32.mrb[0].mxu0
      %11616 = vmatprep.mubr.bf16.mxu0 0
      %11617 = vmatmul.mubr.bf16.gmra.mrb[0].mxu0 %v11483
      %v11618 = vpop.f32.mrb[0].mxu0
      %v11619 = vadd.f32 0.0, %v11618
      %v11620 = vpop.f32.mrb[0].mxu0
      %v11621 = vpop.f32.mrb[0].mxu0
      %v11622 = vadd.f32 0.0, %v11621
      %v11623 = vpop.f32.mrb[0].mxu0
      %11624 = vmatprep.mubr.bf16.mxu0 0
      %11625 = vmatmul.mubr.bf16.gmra.mrb[0].mxu0 %v11484
      %v11626 = vpop.f32.mrb[0].mxu0
      %v11627 = vadd.f32 0.0, %v11626
      %v11628 = vpop.f32.mrb[0].mxu0
      %v11629 = vpop.f32.mrb[0].mxu0
      %v11630 = vadd.f32 0.0, %v11629
      %v11631 = vpop.f32.mrb[0].mxu0
      %11632 = vmatprep.mubr.bf16.mxu0 0
      %11633 = vmatmul.mubr.bf16.gmra.mrb[0].mxu0 %v11485
      %v11634 = vpop.f32.mrb[0].mxu0
      %v11635 = vadd.f32 0.0, %v11634
      %v11636 = vpop.f32.mrb[0].mxu0
      %v11637 = vpop.f32.mrb[0].mxu0
      %v11638 = vadd.f32 0.0, %v11637
      %v11639 = vpop.f32.mrb[0].mxu0
      %11640 = vmatprep.mubr.bf16.mxu0 0
      %11641 = vmatmul.mubr.bf16.gmra.mrb[0].mxu0 %v11486
      %v11642 = vpop.f32.mrb[0].mxu0
      %v11643 = vadd.f32 0.0, %v11642
      %v11644 = vpop.f32.mrb[0].mxu0
      %v11645 = vpop.f32.mrb[0].mxu0
      %v11646 = vadd.f32 0.0, %v11645
      %v11647 = vpop.f32.mrb[0].mxu0
      %11648 = vmatprep.mubr.bf16.mxu0 0
      %11649 = vmatmul.mubr.bf16.gmra.mrb[0].mxu0 %v11487
      %v11650 = vpop.f32.mrb[0].mxu0
      %v11651 = vadd.f32 0.0, %v11650
      %v11652 = vpop.f32.mrb[0].mxu0
      %v11653 = vpop.f32.mrb[0].mxu0
      %v11654 = vadd.f32 0.0, %v11653
      %v11655 = vpop.f32.mrb[0].mxu0
      %11656 = vmatprep.mubr.bf16.mxu0 0
      %11657 = vmatmul.mubr.bf16.gmra.mrb[0].mxu0 %v11488
      %v11658 = vpop.f32.mrb[0].mxu0
      %v11659 = vadd.f32 0.0, %v11658
      %v11660 = vpop.f32.mrb[0].mxu0
      %v11661 = vpop.f32.mrb[0].mxu0
      %v11662 = vadd.f32 0.0, %v11661
      %v11663 = vpop.f32.mrb[0].mxu0
      %11664 = vmatprep.mubr.bf16.mxu0 0
      %11665 = vmatmul.mubr.bf16.gmra.mrb[0].mxu0 %v11489
      %v11666 = vpop.f32.mrb[0].mxu0
      %v11667 = vadd.f32 0.0, %v11666
      %v11668 = vpop.f32.mrb[0].mxu0
      %v11669 = vpop.f32.mrb[0].mxu0
      %v11670 = vadd.f32 0.0, %v11669
      %v11671 = vpop.f32.mrb[0].mxu0
      %11672 = vmatprep.mubr.bf16.mxu0 0
      %11673 = vmatmul.mubr.bf16.gmra.mrb[0].mxu0 %v11490
      %v11674 = vpop.f32.mrb[0].mxu0
      %v11675 = vadd.f32 0.0, %v11674
      %v11676 = vpop.f32.mrb[0].mxu0
      %v11677 = vpop.f32.mrb[0].mxu0
      %v11678 = vadd.f32 0.0, %v11677
      %v11679 = vpop.f32.mrb[0].mxu0
      %11680 = vmatprep.mubr.bf16.mxu0 0
      %11681 = vmatmul.mubr.bf16.gmra.mrb[0].mxu0 %v11491
      %v11682 = vpop.f32.mrb[0].mxu0
      %v11683 = vadd.f32 0.0, %v11682
      %v11684 = vpop.f32.mrb[0].mxu0
      %v11685 = vpop.f32.mrb[0].mxu0
      %v11686 = vadd.f32 0.0, %v11685
      %v11687 = vpop.f32.mrb[0].mxu0
      %11688 = vmatprep.mubr.bf16.mxu0 0
      %11689 = vmatmul.mubr.bf16.gmra.mrb[0].mxu0 %v11492
      %v11690 = vpop.f32.mrb[0].mxu0
      %v11691 = vadd.f32 0.0, %v11690
      %v11692 = vpop.f32.mrb[0].mxu0
      %v11693 = vpop.f32.mrb[0].mxu0
      %v11694 = vadd.f32 0.0, %v11693
      %v11695 = vpop.f32.mrb[0].mxu0
      %11696 = vmatprep.mubr.bf16.mxu0 0
      %11697 = vmatmul.mubr.bf16.gmra.mrb[0].mxu0 %v11493
      %v11698 = vpop.f32.mrb[0].mxu0
      %v11699 = vadd.f32 0.0, %v11698
      %v11700 = vpop.f32.mrb[0].mxu0
      %v11701 = vpop.f32.mrb[0].mxu0
      %v11702 = vadd.f32 0.0, %v11701
      %v11703 = vpop.f32.mrb[0].mxu0
      %11704 = vmatprep.mubr.bf16.mxu0 0
      %11705 = vmatmul.mubr.bf16.gmra.mrb[0].mxu0 %v11494
      %v11706 = vpop.f32.mrb[0].mxu0
      %v11707 = vadd.f32 0.0, %v11706
      %v11708 = vpop.f32.mrb[0].mxu0
      %v11709 = vpop.f32.mrb[0].mxu0
      %v11710 = vadd.f32 0.0, %v11709
      %v11711 = vpop.f32.mrb[0].mxu0
      %11712 = vmatprep.mubr.bf16.mxu0 0
      %11713 = vmatmul.mubr.bf16.gmra.mrb[0].mxu0 %v11495
      %v11714 = vpop.f32.mrb[0].mxu0
      %v11715 = vadd.f32 0.0, %v11714
      %v11716 = vpop.f32.mrb[0].mxu0
      %v11717 = vpop.f32.mrb[0].mxu0
      %v11718 = vadd.f32 0.0, %v11717
      %v11719 = vpop.f32.mrb[0].mxu0
      %11720 = vdwg.mxu0
      %v11721 = vadd.f32 %v10967, %v11595
      %v11722 = vadd.f32 %v10968, %v11598
      %v11723 = vadd.f32 %v10969, %v11603
      %v11724 = vadd.f32 %v10970, %v11606
      %v11725 = vadd.f32 %v10971, %v11611
      %v11726 = vadd.f32 %v10972, %v11614
      %v11727 = vadd.f32 %v10973, %v11619
      %v11728 = vadd.f32 %v10974, %v11622
      %v11729 = vadd.f32 %v10975, %v11627
      %v11730 = vadd.f32 %v10976, %v11630
      %v11731 = vadd.f32 %v10977, %v11635
      %v11732 = vadd.f32 %v10978, %v11638
      %v11733 = vadd.f32 %v10979, %v11643
      %v11734 = vadd.f32 %v10980, %v11646
      %v11735 = vadd.f32 %v10981, %v11651
      %v11736 = vadd.f32 %v10982, %v11654
      %v11737 = vadd.f32 %v10983, %v11659
      %v11738 = vadd.f32 %v10984, %v11662
      %v11739 = vadd.f32 %v10985, %v11667
      %v11740 = vadd.f32 %v10986, %v11670
      %v11741 = vadd.f32 %v10987, %v11675
      %v11742 = vadd.f32 %v10988, %v11678
      %v11743 = vadd.f32 %v10989, %v11683
      %v11744 = vadd.f32 %v10990, %v11686
      %v11745 = vadd.f32 %v10991, %v11691
      %v11746 = vadd.f32 %v10992, %v11694
      %v11747 = vadd.f32 %v10993, %v11699
      %v11748 = vadd.f32 %v10994, %v11702
      %v11749 = vadd.f32 %v10995, %v11707
      %v11750 = vadd.f32 %v10996, %v11710
      %v11751 = vadd.f32 %v10997, %v11715
      %v11752 = vadd.f32 %v10998, %v11718
      %s11753 = scalar_lea.vmem %s2, 1
      %v11754 = vld [vmem:[%s11753] sm:$0x1]
      %v11756 = vlaneseq
      %v11757 = vshrl.u32 %v11756, 7
      %v11758 = vsub.s32 0, %v11757
      %v11759 = vrot.slane %v11754, %v11758
      %v11761 = vadd.f32 %v11721, %v11759
      %v11762 = vadd.f32 %v11722, %v11759
      %v11763 = vadd.f32 %v11723, %v11759
      %v11764 = vadd.f32 %v11724, %v11759
      %v11765 = vadd.f32 %v11725, %v11759
      %v11766 = vadd.f32 %v11726, %v11759
      %v11767 = vadd.f32 %v11727, %v11759
      %v11768 = vadd.f32 %v11728, %v11759
      %v11769 = vadd.f32 %v11729, %v11759
      %v11770 = vadd.f32 %v11730, %v11759
      %v11771 = vadd.f32 %v11731, %v11759
      %v11772 = vadd.f32 %v11732, %v11759
      %v11773 = vadd.f32 %v11733, %v11759
      %v11774 = vadd.f32 %v11734, %v11759
      %v11775 = vadd.f32 %v11735, %v11759
      %v11776 = vadd.f32 %v11736, %v11759
      %v11777 = vadd.f32 %v11737, %v11759
      %v11778 = vadd.f32 %v11738, %v11759
      %v11779 = vadd.f32 %v11739, %v11759
      %v11780 = vadd.f32 %v11740, %v11759
      %v11781 = vadd.f32 %v11741, %v11759
      %v11782 = vadd.f32 %v11742, %v11759
      %v11783 = vadd.f32 %v11743, %v11759
      %v11784 = vadd.f32 %v11744, %v11759
      %v11785 = vadd.f32 %v11745, %v11759
      %v11786 = vadd.f32 %v11746, %v11759
      %v11787 = vadd.f32 %v11747, %v11759
      %v11788 = vadd.f32 %v11748, %v11759
      %v11789 = vadd.f32 %v11749, %v11759
      %v11790 = vadd.f32 %v11750, %v11759
      %v11791 = vadd.f32 %v11751, %v11759
      %v11792 = vadd.f32 %v11752, %v11759
      %vm11793 = vcmp.gt.f32.partialorder %v11761, 0.0
      %vm11794 = vcmp.gt.f32.partialorder %v11762, 0.0
      %vm11795 = vcmp.gt.f32.partialorder %v11763, 0.0
      %vm11796 = vcmp.gt.f32.partialorder %v11764, 0.0
      %vm11797 = vcmp.gt.f32.partialorder %v11765, 0.0
      %vm11798 = vcmp.gt.f32.partialorder %v11766, 0.0
      %vm11799 = vcmp.gt.f32.partialorder %v11767, 0.0
      %vm11800 = vcmp.gt.f32.partialorder %v11768, 0.0
      %vm11801 = vcmp.gt.f32.partialorder %v11769, 0.0
      %vm11802 = vcmp.gt.f32.partialorder %v11770, 0.0
      %vm11803 = vcmp.gt.f32.partialorder %v11771, 0.0
      %vm11804 = vcmp.gt.f32.partialorder %v11772, 0.0
      %vm11805 = vcmp.gt.f32.partialorder %v11773, 0.0
      %vm11806 = vcmp.gt.f32.partialorder %v11774, 0.0
      %vm11807 = vcmp.gt.f32.partialorder %v11775, 0.0
      %vm11808 = vcmp.gt.f32.partialorder %v11776, 0.0
      %vm11809 = vcmp.gt.f32.partialorder %v11777, 0.0
      %vm11810 = vcmp.gt.f32.partialorder %v11778, 0.0
      %vm11811 = vcmp.gt.f32.partialorder %v11779, 0.0
      %vm11812 = vcmp.gt.f32.partialorder %v11780, 0.0
      %vm11813 = vcmp.gt.f32.partialorder %v11781, 0.0
      %vm11814 = vcmp.gt.f32.partialorder %v11782, 0.0
      %vm11815 = vcmp.gt.f32.partialorder %v11783, 0.0
      %vm11816 = vcmp.gt.f32.partialorder %v11784, 0.0
      %vm11817 = vcmp.gt.f32.partialorder %v11785, 0.0
      %vm11818 = vcmp.gt.f32.partialorder %v11786, 0.0
      %vm11819 = vcmp.gt.f32.partialorder %v11787, 0.0
      %vm11820 = vcmp.gt.f32.partialorder %v11788, 0.0
      %vm11821 = vcmp.gt.f32.partialorder %v11789, 0.0
      %vm11822 = vcmp.gt.f32.partialorder %v11790, 0.0
      %vm11823 = vcmp.gt.f32.partialorder %v11791, 0.0
      %vm11824 = vcmp.gt.f32.partialorder %v11792, 0.0
      %v11825 = vmul.f32 %v11761, 0.1
      %v11826 = vmul.f32 %v11762, 0.1
      %v11827 = vmul.f32 %v11763, 0.1
      %v11828 = vmul.f32 %v11764, 0.1
      %v11829 = vmul.f32 %v11765, 0.1
      %v11830 = vmul.f32 %v11766, 0.1
      %v11831 = vmul.f32 %v11767, 0.1
      %v11832 = vmul.f32 %v11768, 0.1
      %v11833 = vmul.f32 %v11769, 0.1
      %v11834 = vmul.f32 %v11770, 0.1
      %v11835 = vmul.f32 %v11771, 0.1
      %v11836 = vmul.f32 %v11772, 0.1
      %v11837 = vmul.f32 %v11773, 0.1
      %v11838 = vmul.f32 %v11774, 0.1
      %v11839 = vmul.f32 %v11775, 0.1
      %v11840 = vmul.f32 %v11776, 0.1
      %v11841 = vmul.f32 %v11777, 0.1
      %v11842 = vmul.f32 %v11778, 0.1
      %v11843 = vmul.f32 %v11779, 0.1
      %v11844 = vmul.f32 %v11780, 0.1
      %v11845 = vmul.f32 %v11781, 0.1
      %v11846 = vmul.f32 %v11782, 0.1
      %v11847 = vmul.f32 %v11783, 0.1
      %v11848 = vmul.f32 %v11784, 0.1
      %v11849 = vmul.f32 %v11785, 0.1
      %v11850 = vmul.f32 %v11786, 0.1
      %v11851 = vmul.f32 %v11787, 0.1
      %v11852 = vmul.f32 %v11788, 0.1
      %v11853 = vmul.f32 %v11789, 0.1
      %v11854 = vmul.f32 %v11790, 0.1
      %v11855 = vmul.f32 %v11791, 0.1
      %v11856 = vmul.f32 %v11792, 0.1
      %v11857 = vsel %vm11793, %v11761, %v11825
      %v11858 = vsel %vm11794, %v11762, %v11826
      %v11859 = vsel %vm11795, %v11763, %v11827
      %v11860 = vsel %vm11796, %v11764, %v11828
      %v11861 = vsel %vm11797, %v11765, %v11829
      %v11862 = vsel %vm11798, %v11766, %v11830
      %v11863 = vsel %vm11799, %v11767, %v11831
      %v11864 = vsel %vm11800, %v11768, %v11832
      %v11865 = vsel %vm11801, %v11769, %v11833
      %v11866 = vsel %vm11802, %v11770, %v11834
      %v11867 = vsel %vm11803, %v11771, %v11835
      %v11868 = vsel %vm11804, %v11772, %v11836
      %v11869 = vsel %vm11805, %v11773, %v11837
      %v11870 = vsel %vm11806, %v11774, %v11838
      %v11871 = vsel %vm11807, %v11775, %v11839
      %v11872 = vsel %vm11808, %v11776, %v11840
      %v11873 = vsel %vm11809, %v11777, %v11841
      %v11874 = vsel %vm11810, %v11778, %v11842
      %v11875 = vsel %vm11811, %v11779, %v11843
      %v11876 = vsel %vm11812, %v11780, %v11844
      %v11877 = vsel %vm11813, %v11781, %v11845
      %v11878 = vsel %vm11814, %v11782, %v11846
      %v11879 = vsel %vm11815, %v11783, %v11847
      %v11880 = vsel %vm11816, %v11784, %v11848
      %v11881 = vsel %vm11817, %v11785, %v11849
      %v11882 = vsel %vm11818, %v11786, %v11850
      %v11883 = vsel %vm11819, %v11787, %v11851
      %v11884 = vsel %vm11820, %v11788, %v11852
      %v11885 = vsel %vm11821, %v11789, %v11853
      %v11886 = vsel %vm11822, %v11790, %v11854
      %v11887 = vsel %vm11823, %v11791, %v11855
      %v11888 = vsel %vm11824, %v11792, %v11856
      %v11889 = vpack.c.bf16 %v11858, %v11857
      %v11890 = vpack.c.bf16 %v11860, %v11859
      %v11891 = vpack.c.bf16 %v11862, %v11861
      %v11892 = vpack.c.bf16 %v11864, %v11863
      %v11893 = vpack.c.bf16 %v11866, %v11865
      %v11894 = vpack.c.bf16 %v11868, %v11867
      %v11895 = vpack.c.bf16 %v11870, %v11869
      %v11896 = vpack.c.bf16 %v11872, %v11871
      %v11897 = vpack.c.bf16 %v11874, %v11873
      %v11898 = vpack.c.bf16 %v11876, %v11875
      %v11899 = vpack.c.bf16 %v11878, %v11877
      %v11900 = vpack.c.bf16 %v11880, %v11879
      %v11901 = vpack.c.bf16 %v11882, %v11881
      %v11902 = vpack.c.bf16 %v11884, %v11883
      %v11903 = vpack.c.bf16 %v11886, %v11885
      %v11904 = vpack.c.bf16 %v11888, %v11887
      %v11921 = vunpack.c.l.b16 %v11889
      %v11922 = vunpack.c.h.b16 %v11889
      %v11923 = vunpack.c.l.b16 %v11890
      %v11924 = vunpack.c.h.b16 %v11890
      %v11925 = vunpack.c.l.b16 %v11891
      %v11926 = vunpack.c.h.b16 %v11891
      %v11927 = vunpack.c.l.b16 %v11892
      %v11928 = vunpack.c.h.b16 %v11892
      %v11929 = vunpack.c.l.b16 %v11893
      %v11930 = vunpack.c.h.b16 %v11893
      %v11931 = vunpack.c.l.b16 %v11894
      %v11932 = vunpack.c.h.b16 %v11894
      %v11933 = vunpack.c.l.b16 %v11895
      %v11934 = vunpack.c.h.b16 %v11895
      %v11935 = vunpack.c.l.b16 %v11896
      %v11936 = vunpack.c.h.b16 %v11896
      %v11937 = vunpack.c.l.b16 %v11897
      %v11938 = vunpack.c.h.b16 %v11897
      %v11939 = vunpack.c.l.b16 %v11898
      %v11940 = vunpack.c.h.b16 %v11898
      %v11941 = vunpack.c.l.b16 %v11899
      %v11942 = vunpack.c.h.b16 %v11899
      %v11943 = vunpack.c.l.b16 %v11900
      %v11944 = vunpack.c.h.b16 %v11900
      %v11945 = vunpack.c.l.b16 %v11901
      %v11946 = vunpack.c.h.b16 %v11901
      %v11947 = vunpack.c.l.b16 %v11902
      %v11948 = vunpack.c.h.b16 %v11902
      %v11949 = vunpack.c.l.b16 %v11903
      %v11950 = vunpack.c.h.b16 %v11903
      %v11951 = vunpack.c.l.b16 %v11904
      %v11952 = vunpack.c.h.b16 %v11904
      %v11953 = vpack.c.b16 %v11921, %v11921
      %v11954 = vpack.c.b16 %v11922, %v11922
      %v11955 = vpack.c.b16 %v11923, %v11923
      %v11956 = vpack.c.b16 %v11924, %v11924
      %v11957 = vpack.c.b16 %v11925, %v11925
      %v11958 = vpack.c.b16 %v11926, %v11926
      %v11959 = vpack.c.b16 %v11927, %v11927
      %v11960 = vpack.c.b16 %v11928, %v11928
      %v11961 = vpack.c.b16 %v11929, %v11929
      %v11962 = vpack.c.b16 %v11930, %v11930
      %v11963 = vpack.c.b16 %v11931, %v11931
      %v11964 = vpack.c.b16 %v11932, %v11932
      %v11965 = vpack.c.b16 %v11933, %v11933
      %v11966 = vpack.c.b16 %v11934, %v11934
      %v11967 = vpack.c.b16 %v11935, %v11935
      %v11968 = vpack.c.b16 %v11936, %v11936
      %v11969 = vpack.c.b16 %v11937, %v11937
      %v11970 = vpack.c.b16 %v11938, %v11938
      %v11971 = vpack.c.b16 %v11939, %v11939
      %v11972 = vpack.c.b16 %v11940, %v11940
      %v11973 = vpack.c.b16 %v11941, %v11941
      %v11974 = vpack.c.b16 %v11942, %v11942
      %v11975 = vpack.c.b16 %v11943, %v11943
      %v11976 = vpack.c.b16 %v11944, %v11944
      %v11977 = vpack.c.b16 %v11945, %v11945
      %v11978 = vpack.c.b16 %v11946, %v11946
      %v11979 = vpack.c.b16 %v11947, %v11947
      %v11980 = vpack.c.b16 %v11948, %v11948
      %v11981 = vpack.c.b16 %v11949, %v11949
      %v11982 = vpack.c.b16 %v11950, %v11950
      %v11983 = vpack.c.b16 %v11951, %v11951
      %v11984 = vpack.c.b16 %v11952, %v11952
      %11985 = vrot.lane.b32.xlu0 %v11953, 12
      %v11986 = vpop.permute.xlu0 %11985
      %11987 = vrot.lane.b32.xlu0 %v11954, 12
      %v11988 = vpop.permute.xlu0 %11987
      %11989 = vrot.lane.b32.xlu0 %v11955, 12
      %v11990 = vpop.permute.xlu0 %11989
      %11991 = vrot.lane.b32.xlu0 %v11956, 12
      %v11992 = vpop.permute.xlu0 %11991
      %11993 = vrot.lane.b32.xlu0 %v11957, 12
      %v11994 = vpop.permute.xlu0 %11993
      %11995 = vrot.lane.b32.xlu0 %v11958, 12
      %v11996 = vpop.permute.xlu0 %11995
      %11997 = vrot.lane.b32.xlu0 %v11959, 12
      %v11998 = vpop.permute.xlu0 %11997
      %11999 = vrot.lane.b32.xlu0 %v11960, 12
      %v12000 = vpop.permute.xlu0 %11999
      %12001 = vrot.lane.b32.xlu0 %v11961, 12
      %v12002 = vpop.permute.xlu0 %12001
      %12003 = vrot.lane.b32.xlu0 %v11962, 12
      %v12004 = vpop.permute.xlu0 %12003
      %12005 = vrot.lane.b32.xlu0 %v11963, 12
      %v12006 = vpop.permute.xlu0 %12005
      %12007 = vrot.lane.b32.xlu0 %v11964, 12
      %v12008 = vpop.permute.xlu0 %12007
      %12009 = vrot.lane.b32.xlu0 %v11965, 12
      %v12010 = vpop.permute.xlu0 %12009
      %12011 = vrot.lane.b32.xlu0 %v11966, 12
      %v12012 = vpop.permute.xlu0 %12011
      %12013 = vrot.lane.b32.xlu0 %v11967, 12
      %v12014 = vpop.permute.xlu0 %12013
      %12015 = vrot.lane.b32.xlu0 %v11968, 12
      %v12016 = vpop.permute.xlu0 %12015
      %12017 = vrot.lane.b32.xlu0 %v11969, 12
      %v12018 = vpop.permute.xlu0 %12017
      %12019 = vrot.lane.b32.xlu0 %v11970, 12
      %v12020 = vpop.permute.xlu0 %12019
      %12021 = vrot.lane.b32.xlu0 %v11971, 12
      %v12022 = vpop.permute.xlu0 %12021
      %12023 = vrot.lane.b32.xlu0 %v11972, 12
      %v12024 = vpop.permute.xlu0 %12023
      %12025 = vrot.lane.b32.xlu0 %v11973, 12
      %v12026 = vpop.permute.xlu0 %12025
      %12027 = vrot.lane.b32.xlu0 %v11974, 12
      %v12028 = vpop.permute.xlu0 %12027
      %12029 = vrot.lane.b32.xlu0 %v11975, 12
      %v12030 = vpop.permute.xlu0 %12029
      %12031 = vrot.lane.b32.xlu0 %v11976, 12
      %v12032 = vpop.permute.xlu0 %12031
      %12033 = vrot.lane.b32.xlu0 %v11977, 12
      %v12034 = vpop.permute.xlu0 %12033
      %12035 = vrot.lane.b32.xlu0 %v11978, 12
      %v12036 = vpop.permute.xlu0 %12035
      %12037 = vrot.lane.b32.xlu0 %v11979, 12
      %v12038 = vpop.permute.xlu0 %12037
      %12039 = vrot.lane.b32.xlu0 %v11980, 12
      %v12040 = vpop.permute.xlu0 %12039
      %12041 = vrot.lane.b32.xlu0 %v11981, 12
      %v12042 = vpop.permute.xlu0 %12041
      %12043 = vrot.lane.b32.xlu0 %v11982, 12
      %v12044 = vpop.permute.xlu0 %12043
      %12045 = vrot.lane.b32.xlu0 %v11983, 12
      %v12046 = vpop.permute.xlu0 %12045
      %12047 = vrot.lane.b32.xlu0 %v11984, 12
      %v12048 = vpop.permute.xlu0 %12047
      %vm12081 = vcmask 126048
      %12082 = vst.msk [vmem:[%s244 + $0x8] sm:$0xf] %vm12081, %v11986
      %12083 = vst.msk [vmem:[%s244 + $0xc] sm:$0xf] %vm12081, %v11988
      %12084 = vst.msk [vmem:[%s244 + $0x1c] sm:$0xf] %vm12081, %v11990
      %12085 = vst.msk [vmem:[%s244 + $0x20] sm:$0xf] %vm12081, %v11992
      %12086 = vst.msk [vmem:[%s244 + $0x30] sm:$0xf] %vm12081, %v11994
      %12087 = vst.msk [vmem:[%s244 + $0x34] sm:$0xf] %vm12081, %v11996
      %12088 = vst.msk [vmem:[%s244 + $0x44] sm:$0xf] %vm12081, %v11998
      %12089 = vst.msk [vmem:[%s244 + $0x48] sm:$0xf] %vm12081, %v12000
      %12090 = vst.msk [vmem:[%s244 + $0x58] sm:$0xf] %vm12081, %v12002
      %12091 = vst.msk [vmem:[%s244 + $0x5c] sm:$0xf] %vm12081, %v12004
      %12092 = vst.msk [vmem:[%s244 + $0x6c] sm:$0xf] %vm12081, %v12006
      %12093 = vst.msk [vmem:[%s244 + $0x70] sm:$0xf] %vm12081, %v12008
      %12094 = vst.msk [vmem:[%s244 + $0x80] sm:$0xf] %vm12081, %v12010
      %12095 = vst.msk [vmem:[%s244 + $0x84] sm:$0xf] %vm12081, %v12012
      %12096 = vst.msk [vmem:[%s244 + $0x94] sm:$0xf] %vm12081, %v12014
      %12097 = vst.msk [vmem:[%s244 + $0x98] sm:$0xf] %vm12081, %v12016
      %12098 = vst.msk [vmem:[%s244 + $0xa8] sm:$0xf] %vm12081, %v12018
      %12099 = vst.msk [vmem:[%s244 + $0xac] sm:$0xf] %vm12081, %v12020
      %12100 = vst.msk [vmem:[%s244 + $0xbc] sm:$0xf] %vm12081, %v12022
      %12101 = vst.msk [vmem:[%s244 + $0xc0] sm:$0xf] %vm12081, %v12024
      %12102 = vst.msk [vmem:[%s244 + $0xd0] sm:$0xf] %vm12081, %v12026
      %12103 = vst.msk [vmem:[%s244 + $0xd4] sm:$0xf] %vm12081, %v12028
      %12104 = vst.msk [vmem:[%s244 + $0xe4] sm:$0xf] %vm12081, %v12030
      %12105 = vst.msk [vmem:[%s244 + $0xe8] sm:$0xf] %vm12081, %v12032
      %12106 = vst.msk [vmem:[%s244 + $0xf8] sm:$0xf] %vm12081, %v12034
      %12107 = vst.msk [vmem:[%s244 + $0xfc] sm:$0xf] %vm12081, %v12036
      %12108 = vst.msk [vmem:[%s244 + $0x10c] sm:$0xf] %vm12081, %v12038
      %12109 = vst.msk [vmem:[%s244 + $0x110] sm:$0xf] %vm12081, %v12040
      %12110 = vst.msk [vmem:[%s244 + $0x120] sm:$0xf] %vm12081, %v12042
      %12111 = vst.msk [vmem:[%s244 + $0x124] sm:$0xf] %vm12081, %v12044
      %12112 = vst.msk [vmem:[%s244 + $0x134] sm:$0xf] %vm12081, %v12046
      %12113 = vst.msk [vmem:[%s244 + $0x138] sm:$0xf] %vm12081, %v12048
      %v12114 = vld [vmem:[%s244 + $0x8] sm:$0xf]
      %v12115 = vld [vmem:[%s244 + $0xc] sm:$0xf]
      %v12116 = vld [vmem:[%s244 + $0x1c] sm:$0xf]
      %v12117 = vld [vmem:[%s244 + $0x20] sm:$0xf]
      %v12118 = vld [vmem:[%s244 + $0x30] sm:$0xf]
      %v12119 = vld [vmem:[%s244 + $0x34] sm:$0xf]
      %v12120 = vld [vmem:[%s244 + $0x44] sm:$0xf]
      %v12121 = vld [vmem:[%s244 + $0x48] sm:$0xf]
      %v12122 = vld [vmem:[%s244 + $0x58] sm:$0xf]
      %v12123 = vld [vmem:[%s244 + $0x5c] sm:$0xf]
      %v12124 = vld [vmem:[%s244 + $0x6c] sm:$0xf]
      %v12125 = vld [vmem:[%s244 + $0x70] sm:$0xf]
      %v12126 = vld [vmem:[%s244 + $0x80] sm:$0xf]
      %v12127 = vld [vmem:[%s244 + $0x84] sm:$0xf]
      %v12128 = vld [vmem:[%s244 + $0x94] sm:$0xf]
      %v12129 = vld [vmem:[%s244 + $0x98] sm:$0xf]
      %v12130 = vld [vmem:[%s244 + $0xa8] sm:$0xf]
      %v12131 = vld [vmem:[%s244 + $0xac] sm:$0xf]
      %v12132 = vld [vmem:[%s244 + $0xbc] sm:$0xf]
      %v12133 = vld [vmem:[%s244 + $0xc0] sm:$0xf]
      %v12134 = vld [vmem:[%s244 + $0xd0] sm:$0xf]
      %v12135 = vld [vmem:[%s244 + $0xd4] sm:$0xf]
      %v12136 = vld [vmem:[%s244 + $0xe4] sm:$0xf]
      %v12137 = vld [vmem:[%s244 + $0xe8] sm:$0xf]
      %v12138 = vld [vmem:[%s244 + $0xf8] sm:$0xf]
      %v12139 = vld [vmem:[%s244 + $0xfc] sm:$0xf]
      %v12140 = vld [vmem:[%s244 + $0x10c] sm:$0xf]
      %v12141 = vld [vmem:[%s244 + $0x110] sm:$0xf]
      %v12142 = vld [vmem:[%s244 + $0x120] sm:$0xf]
      %v12143 = vld [vmem:[%s244 + $0x124] sm:$0xf]
      %v12144 = vld [vmem:[%s244 + $0x134] sm:$0xf]
      %v12145 = vld [vmem:[%s244 + $0x138] sm:$0xf]
      %v12146 = vld [vmem:[%s3] sm:$0xf]
      %v12147 = vld [vmem:[%s3 + $0x4] sm:$0xf]
      %v12148 = vld [vmem:[%s3 + $0x8] sm:$0xf]
      %v12149 = vld [vmem:[%s3 + $0xc] sm:$0xf]
      %v12150 = vld [vmem:[%s3 + $0x10] sm:$0xf]
      %v12151 = vld [vmem:[%s3 + $0x14] sm:$0xf]
      %v12152 = vld [vmem:[%s3 + $0x18] sm:$0xf]
      %v12153 = vld [vmem:[%s3 + $0x1c] sm:$0xf]
      %v12154 = vld [vmem:[%s3 + $0x20] sm:$0xf]
      %v12155 = vld [vmem:[%s3 + $0x24] sm:$0xf]
      %v12156 = vld [vmem:[%s3 + $0x28] sm:$0xf]
      %v12157 = vld [vmem:[%s3 + $0x2c] sm:$0xf]
      %v12158 = vld [vmem:[%s3 + $0x30] sm:$0xf]
      %v12159 = vld [vmem:[%s3 + $0x34] sm:$0xf]
      %v12160 = vld [vmem:[%s3 + $0x38] sm:$0xf]
      %v12161 = vld [vmem:[%s3 + $0x3c] sm:$0xf]
      %v12162 = vld [vmem:[%s4] sm:$0x1]
      %v12164 = vlaneseq
      %v12165 = vshrl.u32 %v12164, 7
      %v12166 = vsub.s32 0, %v12165
      %v12167 = vrot.slane %v12162, %v12166
      %v12201 = vunpack.c.l.b16 %v12114
      %v12202 = vunpack.c.l.b16 %v12115
      %v12203 = vunpack.c.l.b16 %v12116
      %v12204 = vunpack.c.l.b16 %v12117
      %v12205 = vunpack.c.l.b16 %v12118
      %v12206 = vunpack.c.l.b16 %v12119
      %v12207 = vunpack.c.l.b16 %v12120
      %v12208 = vunpack.c.l.b16 %v12121
      %v12209 = vunpack.c.l.b16 %v12122
      %v12210 = vunpack.c.l.b16 %v12123
      %v12211 = vunpack.c.l.b16 %v12124
      %v12212 = vunpack.c.l.b16 %v12125
      %v12213 = vunpack.c.l.b16 %v12126
      %v12214 = vunpack.c.l.b16 %v12127
      %v12215 = vunpack.c.l.b16 %v12128
      %v12216 = vunpack.c.l.b16 %v12129
      %v12217 = vunpack.c.l.b16 %v12130
      %v12218 = vunpack.c.l.b16 %v12131
      %v12219 = vunpack.c.l.b16 %v12132
      %v12220 = vunpack.c.l.b16 %v12133
      %v12221 = vunpack.c.l.b16 %v12134
      %v12222 = vunpack.c.l.b16 %v12135
      %v12223 = vunpack.c.l.b16 %v12136
      %v12224 = vunpack.c.l.b16 %v12137
      %v12225 = vunpack.c.l.b16 %v12138
      %v12226 = vunpack.c.l.b16 %v12139
      %v12227 = vunpack.c.l.b16 %v12140
      %v12228 = vunpack.c.l.b16 %v12141
      %v12229 = vunpack.c.l.b16 %v12142
      %v12230 = vunpack.c.l.b16 %v12143
      %v12231 = vunpack.c.l.b16 %v12144
      %v12232 = vunpack.c.l.b16 %v12145
      %v12233 = vpack.c.b16 %v12202, %v12201
      %v12234 = vpack.c.b16 %v12204, %v12203
      %v12235 = vpack.c.b16 %v12206, %v12205
      %v12236 = vpack.c.b16 %v12208, %v12207
      %v12237 = vpack.c.b16 %v12210, %v12209
      %v12238 = vpack.c.b16 %v12212, %v12211
      %v12239 = vpack.c.b16 %v12214, %v12213
      %v12240 = vpack.c.b16 %v12216, %v12215
      %v12241 = vpack.c.b16 %v12218, %v12217
      %v12242 = vpack.c.b16 %v12220, %v12219
      %v12243 = vpack.c.b16 %v12222, %v12221
      %v12244 = vpack.c.b16 %v12224, %v12223
      %v12245 = vpack.c.b16 %v12226, %v12225
      %v12246 = vpack.c.b16 %v12228, %v12227
      %v12247 = vpack.c.b16 %v12230, %v12229
      %v12248 = vpack.c.b16 %v12232, %v12231
      %v12281 = vunpack.c.l.b16 %v12146
      %v12282 = vunpack.c.l.b16 %v12147
      %v12283 = vunpack.c.l.b16 %v12148
      %v12284 = vunpack.c.l.b16 %v12149
      %v12285 = vunpack.c.l.b16 %v12150
      %v12286 = vunpack.c.l.b16 %v12151
      %v12287 = vunpack.c.l.b16 %v12152
      %v12288 = vunpack.c.l.b16 %v12153
      %v12289 = vunpack.c.l.b16 %v12154
      %v12290 = vunpack.c.l.b16 %v12155
      %v12291 = vunpack.c.l.b16 %v12156
      %v12292 = vunpack.c.l.b16 %v12157
      %v12293 = vunpack.c.l.b16 %v12158
      %v12294 = vunpack.c.l.b16 %v12159
      %v12295 = vunpack.c.l.b16 %v12160
      %v12296 = vunpack.c.l.b16 %v12161
      %v12297 = vpack.c.b16 %v12282, %v12281
      %v12298 = vpack.c.b16 %v12284, %v12283
      %v12299 = vpack.c.b16 %v12286, %v12285
      %v12300 = vpack.c.b16 %v12288, %v12287
      %v12301 = vpack.c.b16 %v12290, %v12289
      %v12302 = vpack.c.b16 %v12292, %v12291
      %v12303 = vpack.c.b16 %v12294, %v12293
      %v12304 = vpack.c.b16 %v12296, %v12295
      %12313 = vmatprep.subr.bf16.mxu0 0
      %12314 = vmatpush1.bf16.msra.mxu0 %v12297
      %12315 = vmatprep.subr.bf16.mxu0 0
      %12316 = vmatpush1.bf16.msra.mxu0 %v12298
      %12317 = vmatprep.subr.bf16.mxu0 0
      %12318 = vmatpush1.bf16.msra.mxu0 %v12299
      %12319 = vmatprep.subr.bf16.mxu0 0
      %12320 = vmatpush1.bf16.msra.mxu0 %v12300
      %12321 = vmatprep.subr.bf16.mxu0 0
      %12322 = vmatpush1.bf16.msra.mxu0 %v12301
      %12323 = vmatprep.subr.bf16.mxu0 0
      %12324 = vmatpush1.bf16.msra.mxu0 %v12302
      %12325 = vmatprep.subr.bf16.mxu0 0
      %12326 = vmatpush1.bf16.msra.mxu0 %v12303
      %12327 = vmatprep.subr.bf16.mxu0 0
      %12328 = vmatpush1.bf16.msra.mxu0 %v12304
      %12329 = vmatprep.subr.bf16.mxu0 0
      %12330 = vmatpush1.bf16.msra.mxu0 0
      %12331 = vmatprep.subr.bf16.mxu0 0
      %12332 = vmatpush1.bf16.msra.mxu0 0
      %12333 = vmatprep.subr.bf16.mxu0 0
      %12334 = vmatpush1.bf16.msra.mxu0 0
      %12335 = vmatprep.subr.bf16.mxu0 0
      %12336 = vmatpush1.bf16.msra.mxu0 0
      %12337 = vmatprep.subr.bf16.mxu0 0
      %12338 = vmatpush1.bf16.msra.mxu0 0
      %12339 = vmatprep.subr.bf16.mxu0 0
      %12340 = vmatpush1.bf16.msra.mxu0 0
      %12341 = vmatprep.subr.bf16.mxu0 0
      %12342 = vmatpush1.bf16.msra.mxu0 0
      %12343 = vmatprep.subr.bf16.mxu0 0
      %12344 = vmatpush1.bf16.msra.mxu0 0
      %12345 = vmatprep.mubr.bf16.mxu0 0
      %12346 = vmatmul.mubr.bf16.gmra.mrb[0].mxu0 %v12233
      %v12347 = vpop.f32.mrb[0].mxu0
      %v12348 = vadd.f32 %v12167, %v12347
      %v12349 = vpop.f32.mrb[0].mxu0
      %v12350 = vpop.f32.mrb[0].mxu0
      %v12351 = vadd.f32 %v12167, %v12350
      %v12352 = vpop.f32.mrb[0].mxu0
      %12353 = vmatprep.mubr.bf16.mxu0 0
      %12354 = vmatmul.mubr.bf16.gmra.mrb[0].mxu0 %v12234
      %v12355 = vpop.f32.mrb[0].mxu0
      %v12356 = vadd.f32 %v12167, %v12355
      %v12357 = vpop.f32.mrb[0].mxu0
      %v12358 = vpop.f32.mrb[0].mxu0
      %v12359 = vadd.f32 %v12167, %v12358
      %v12360 = vpop.f32.mrb[0].mxu0
      %12361 = vmatprep.mubr.bf16.mxu0 0
      %12362 = vmatmul.mubr.bf16.gmra.mrb[0].mxu0 %v12235
      %v12363 = vpop.f32.mrb[0].mxu0
      %v12364 = vadd.f32 %v12167, %v12363
      %v12365 = vpop.f32.mrb[0].mxu0
      %v12366 = vpop.f32.mrb[0].mxu0
      %v12367 = vadd.f32 %v12167, %v12366
      %v12368 = vpop.f32.mrb[0].mxu0
      %12369 = vmatprep.mubr.bf16.mxu0 0
      %12370 = vmatmul.mubr.bf16.gmra.mrb[0].mxu0 %v12236
      %v12371 = vpop.f32.mrb[0].mxu0
      %v12372 = vadd.f32 %v12167, %v12371
      %v12373 = vpop.f32.mrb[0].mxu0
      %v12374 = vpop.f32.mrb[0].mxu0
      %v12375 = vadd.f32 %v12167, %v12374
      %v12376 = vpop.f32.mrb[0].mxu0
      %12377 = vmatprep.mubr.bf16.mxu0 0
      %12378 = vmatmul.mubr.bf16.gmra.mrb[0].mxu0 %v12237
      %v12379 = vpop.f32.mrb[0].mxu0
      %v12380 = vadd.f32 %v12167, %v12379
      %v12381 = vpop.f32.mrb[0].mxu0
      %v12382 = vpop.f32.mrb[0].mxu0
      %v12383 = vadd.f32 %v12167, %v12382
      %v12384 = vpop.f32.mrb[0].mxu0
      %12385 = vmatprep.mubr.bf16.mxu0 0
      %12386 = vmatmul.mubr.bf16.gmra.mrb[0].mxu0 %v12238
      %v12387 = vpop.f32.mrb[0].mxu0
      %v12388 = vadd.f32 %v12167, %v12387
      %v12389 = vpop.f32.mrb[0].mxu0
      %v12390 = vpop.f32.mrb[0].mxu0
      %v12391 = vadd.f32 %v12167, %v12390
      %v12392 = vpop.f32.mrb[0].mxu0
      %12393 = vmatprep.mubr.bf16.mxu0 0
      %12394 = vmatmul.mubr.bf16.gmra.mrb[0].mxu0 %v12239
      %v12395 = vpop.f32.mrb[0].mxu0
      %v12396 = vadd.f32 %v12167, %v12395
      %v12397 = vpop.f32.mrb[0].mxu0
      %v12398 = vpop.f32.mrb[0].mxu0
      %v12399 = vadd.f32 %v12167, %v12398
      %v12400 = vpop.f32.mrb[0].mxu0
      %12401 = vmatprep.mubr.bf16.mxu0 0
      %12402 = vmatmul.mubr.bf16.gmra.mrb[0].mxu0 %v12240
      %v12403 = vpop.f32.mrb[0].mxu0
      %v12404 = vadd.f32 %v12167, %v12403
      %v12405 = vpop.f32.mrb[0].mxu0
      %v12406 = vpop.f32.mrb[0].mxu0
      %v12407 = vadd.f32 %v12167, %v12406
      %v12408 = vpop.f32.mrb[0].mxu0
      %12409 = vmatprep.mubr.bf16.mxu0 0
      %12410 = vmatmul.mubr.bf16.gmra.mrb[0].mxu0 %v12241
      %v12411 = vpop.f32.mrb[0].mxu0
      %v12412 = vadd.f32 %v12167, %v12411
      %v12413 = vpop.f32.mrb[0].mxu0
      %v12414 = vpop.f32.mrb[0].mxu0
      %v12415 = vadd.f32 %v12167, %v12414
      %v12416 = vpop.f32.mrb[0].mxu0
      %12417 = vmatprep.mubr.bf16.mxu0 0
      %12418 = vmatmul.mubr.bf16.gmra.mrb[0].mxu0 %v12242
      %v12419 = vpop.f32.mrb[0].mxu0
      %v12420 = vadd.f32 %v12167, %v12419
      %v12421 = vpop.f32.mrb[0].mxu0
      %v12422 = vpop.f32.mrb[0].mxu0
      %v12423 = vadd.f32 %v12167, %v12422
      %v12424 = vpop.f32.mrb[0].mxu0
      %12425 = vmatprep.mubr.bf16.mxu0 0
      %12426 = vmatmul.mubr.bf16.gmra.mrb[0].mxu0 %v12243
      %v12427 = vpop.f32.mrb[0].mxu0
      %v12428 = vadd.f32 %v12167, %v12427
      %v12429 = vpop.f32.mrb[0].mxu0
      %v12430 = vpop.f32.mrb[0].mxu0
      %v12431 = vadd.f32 %v12167, %v12430
      %v12432 = vpop.f32.mrb[0].mxu0
      %12433 = vmatprep.mubr.bf16.mxu0 0
      %12434 = vmatmul.mubr.bf16.gmra.mrb[0].mxu0 %v12244
      %v12435 = vpop.f32.mrb[0].mxu0
      %v12436 = vadd.f32 %v12167, %v12435
      %v12437 = vpop.f32.mrb[0].mxu0
      %v12438 = vpop.f32.mrb[0].mxu0
      %v12439 = vadd.f32 %v12167, %v12438
      %v12440 = vpop.f32.mrb[0].mxu0
      %12441 = vmatprep.mubr.bf16.mxu0 0
      %12442 = vmatmul.mubr.bf16.gmra.mrb[0].mxu0 %v12245
      %v12443 = vpop.f32.mrb[0].mxu0
      %v12444 = vadd.f32 %v12167, %v12443
      %v12445 = vpop.f32.mrb[0].mxu0
      %v12446 = vpop.f32.mrb[0].mxu0
      %v12447 = vadd.f32 %v12167, %v12446
      %v12448 = vpop.f32.mrb[0].mxu0
      %12449 = vmatprep.mubr.bf16.mxu0 0
      %12450 = vmatmul.mubr.bf16.gmra.mrb[0].mxu0 %v12246
      %v12451 = vpop.f32.mrb[0].mxu0
      %v12452 = vadd.f32 %v12167, %v12451
      %v12453 = vpop.f32.mrb[0].mxu0
      %v12454 = vpop.f32.mrb[0].mxu0
      %v12455 = vadd.f32 %v12167, %v12454
      %v12456 = vpop.f32.mrb[0].mxu0
      %12457 = vmatprep.mubr.bf16.mxu0 0
      %12458 = vmatmul.mubr.bf16.gmra.mrb[0].mxu0 %v12247
      %v12459 = vpop.f32.mrb[0].mxu0
      %v12460 = vadd.f32 %v12167, %v12459
      %v12461 = vpop.f32.mrb[0].mxu0
      %v12462 = vpop.f32.mrb[0].mxu0
      %v12463 = vadd.f32 %v12167, %v12462
      %v12464 = vpop.f32.mrb[0].mxu0
      %12465 = vmatprep.mubr.bf16.mxu0 0
      %12466 = vmatmul.mubr.bf16.gmra.mrb[0].mxu0 %v12248
      %v12467 = vpop.f32.mrb[0].mxu0
      %v12468 = vadd.f32 %v12167, %v12467
      %v12469 = vpop.f32.mrb[0].mxu0
      %v12470 = vpop.f32.mrb[0].mxu0
      %v12471 = vadd.f32 %v12167, %v12470
      %v12472 = vpop.f32.mrb[0].mxu0
      %12473 = vdwg.mxu0
      %v12474 = vadd.f32 %v12348, %v344
      %v12475 = vadd.f32 %v12351, %v345
      %v12476 = vadd.f32 %v12356, %v346
      %v12477 = vadd.f32 %v12359, %v347
      %v12478 = vadd.f32 %v12364, %v348
      %v12479 = vadd.f32 %v12367, %v349
      %v12480 = vadd.f32 %v12372, %v350
      %v12481 = vadd.f32 %v12375, %v351
      %v12482 = vadd.f32 %v12380, %v352
      %v12483 = vadd.f32 %v12383, %v353
      %v12484 = vadd.f32 %v12388, %v354
      %v12485 = vadd.f32 %v12391, %v355
      %v12486 = vadd.f32 %v12396, %v356
      %v12487 = vadd.f32 %v12399, %v357
      %v12488 = vadd.f32 %v12404, %v358
      %v12489 = vadd.f32 %v12407, %v359
      %v12490 = vadd.f32 %v12412, %v360
      %v12491 = vadd.f32 %v12415, %v361
      %v12492 = vadd.f32 %v12420, %v362
      %v12493 = vadd.f32 %v12423, %v363
      %v12494 = vadd.f32 %v12428, %v364
      %v12495 = vadd.f32 %v12431, %v365
      %v12496 = vadd.f32 %v12436, %v366
      %v12497 = vadd.f32 %v12439, %v367
      %v12498 = vadd.f32 %v12444, %v368
      %v12499 = vadd.f32 %v12447, %v369
      %v12500 = vadd.f32 %v12452, %v370
      %v12501 = vadd.f32 %v12455, %v371
      %v12502 = vadd.f32 %v12460, %v372
      %v12503 = vadd.f32 %v12463, %v373
      %v12504 = vadd.f32 %v12468, %v374
      %v12505 = vadd.f32 %v12471, %v375
      %12506 = vst [vmem:[%s224] sm:$0xff] %v12474
      %12507 = vst [vmem:[%s224 + $0x8] sm:$0xff] %v12475
      %12508 = vst [vmem:[%s224 + $0x10] sm:$0xff] %v12476
      %12509 = vst [vmem:[%s224 + $0x18] sm:$0xff] %v12477
      %12510 = vst [vmem:[%s224 + $0x20] sm:$0xff] %v12478
      %12511 = vst [vmem:[%s224 + $0x28] sm:$0xff] %v12479
      %12512 = vst [vmem:[%s224 + $0x30] sm:$0xff] %v12480
      %12513 = vst [vmem:[%s224 + $0x38] sm:$0xff] %v12481
      %12514 = vst [vmem:[%s224 + $0x40] sm:$0xff] %v12482
      %12515 = vst [vmem:[%s224 + $0x48] sm:$0xff] %v12483
      %12516 = vst [vmem:[%s224 + $0x50] sm:$0xff] %v12484
      %12517 = vst [vmem:[%s224 + $0x58] sm:$0xff] %v12485
      %12518 = vst [vmem:[%s224 + $0x60] sm:$0xff] %v12486
      %12519 = vst [vmem:[%s224 + $0x68] sm:$0xff] %v12487
      %12520 = vst [vmem:[%s224 + $0x70] sm:$0xff] %v12488
      %12521 = vst [vmem:[%s224 + $0x78] sm:$0xff] %v12489
      %12522 = vst [vmem:[%s224 + $0x80] sm:$0xff] %v12490
      %12523 = vst [vmem:[%s224 + $0x88] sm:$0xff] %v12491
      %12524 = vst [vmem:[%s224 + $0x90] sm:$0xff] %v12492
      %12525 = vst [vmem:[%s224 + $0x98] sm:$0xff] %v12493
      %12526 = vst [vmem:[%s224 + $0xa0] sm:$0xff] %v12494
      %12527 = vst [vmem:[%s224 + $0xa8] sm:$0xff] %v12495
      %12528 = vst [vmem:[%s224 + $0xb0] sm:$0xff] %v12496
      %12529 = vst [vmem:[%s224 + $0xb8] sm:$0xff] %v12497
      %12530 = vst [vmem:[%s224 + $0xc0] sm:$0xff] %v12498
      %12531 = vst [vmem:[%s224 + $0xc8] sm:$0xff] %v12499
      %12532 = vst [vmem:[%s224 + $0xd0] sm:$0xff] %v12500
      %12533 = vst [vmem:[%s224 + $0xd8] sm:$0xff] %v12501
      %12534 = vst [vmem:[%s224 + $0xe0] sm:$0xff] %v12502
      %12535 = vst [vmem:[%s224 + $0xe8] sm:$0xff] %v12503
      %12536 = vst [vmem:[%s224 + $0xf0] sm:$0xff] %v12504
      %12537 = vst [vmem:[%s224 + $0xf8] sm:$0xff] %v12505
      %p12538 = scmp.lt.s32.totalorder %s16, 1
      %s12539 = scalar_select %p12538, %s16, 1
      %s12540 = smul.addr %s12539, 32
      %s12541 = smul.addr %s12540, 8
      %s12542 = scalar_lea.vmem %s5, %s12541
      // Predicated region
      $region41: #{rdb_forward.1} parent=39 // pred_check
        %p12543 = pneg %p144
      $region42: #{rdb_forward.1} parent=39 // pred_check_branch
        %12545 = sbr.rel (%p12543) target = $region44
      $region43: #{rdb_forward.1} parent=39 // pred_region
        _
      $region44: #{rdb_forward.1} parent=39 // pred_fallthru
        _
    $region40: #{rdb_forward.1} parent=5 // pred_fallthru
      _
    %p12546 = scmp.le.s32.totalorder 2, %s11
    // Predicated region
    $region45: #{rdb_forward.1} parent=5 // pred_check
      %p12547 = pneg %p12546
    $region46: #{rdb_forward.1} parent=5 // pred_check_branch
      %12549 = sbr.rel (%p12547) target = $region48
    $region47: #{rdb_forward.1} parent=5 // pred_region
      %s12550 = ssub.s32 %s11, 2
      // Predicated region
      $region49: #{rdb_forward.1} parent=47 // pred_check
        %p12551 = pneg %p150
      $region50: #{rdb_forward.1} parent=47 // pred_check_branch
        %12553 = sbr.rel (%p12551) target = $region52
      $region51: #{rdb_forward.1} parent=47 // pred_region
        %p12554 = scmp.lt.s32.totalorder %s17, 1
        %s12555 = scalar_select %p12554, %s17, 1
        %s12556 = smul.addr %s12555, 32
        %s12557 = smul.addr %s12556, 8
        %s12558 = scalar_lea.vmem %s5, %s12557
      $region52: #{rdb_forward.1} parent=47 // pred_fallthru
        _
    $region48: #{rdb_forward.1} parent=5 // pred_fallthru
      _
  $region6: #{rdb_forward.1} parent=0 // loop_footer
    %s15 = sadd.s32 1, %s11
  $region7: #{rdb_forward.1} parent=0 // loop_footer_branch
    %10 = sbr.rel target = $region3
  $region8: #{rdb_forward.1} parent=0 // loop_exit
    _

</llo_original>
